<compile_context>
chip_gen: v7x
topology: tpu7x:2x2x1
jax: 0.10.0
libtpu: 0.0.40
codegen_flags: <defaults>
</compile_context>

<pallas_src>
import jax
import jax.numpy as jnp
from jax.experimental import pallas as pl
from jax.experimental.pallas import tpu as pltpu

LANES = 128          # channel / feature lane padding
PI, PJ = 12, 16      # pool1 spatial grid: 12x12, W padded to 16 (tile aligned)


# ----------------------------------------------------------------------------
# Fused LeNet kernel
# ----------------------------------------------------------------------------
def _make_kernel(B):
    def kernel(pat_ref, w1_ref, b1_ref, w2_ref, b2_ref,
               wf1_ref, bf1_ref, wf2_ref, bf2_ref, wf3_ref, bf3_ref,
               out_ref, p1s_ref, y2s_ref):
        f32 = jnp.float32
        rows = PI * PJ                       # 192 pooled rows per (phase, batch)

        # ---- conv1 (1->6, 5x5) + ReLU + 2x2 maxpool -------------------------
        # Patch rows arrive phase-major (ph, pw, b, i, j), so the max pool is an
        # elementwise max over four aligned row slabs — no gathers, no strides.
        w1 = w1_ref[...]
        b1 = b1_ref[...]
        for b in range(B):
            pooled = None
            for t in range(4):               # the four pooling phases (ph, pw)
                start = (t * B + b) * rows
                y = jnp.dot(pat_ref[pl.ds(start, rows), :], w1,
                            preferred_element_type=f32)
                y = jnp.maximum(y + b1, 0.0)
                pooled = y if pooled is None else jnp.maximum(pooled, y)
            # rows are (i, j) with j padded 12->16 -> tile-aligned store
            p1s_ref[b] = pooled.reshape(PI, PJ, LANES)

        # ---- conv2 (6->16, 5x5) + ReLU ---------------------------------------
        # Direct convolution: 25 shifted (B*64,128)@(128,128) MXU matmuls on the
        # channels-last pooled activation held in VMEM scratch.
        acc = jnp.zeros((B * 64, LANES), f32) + b2_ref[...]
        for kh in range(5):
            for kw in range(5):
                slab = p1s_ref[:, kh:kh + 8, kw:kw + 8, :]      # (B, 8, 8, 128)
                slab = slab.reshape(B * 64, LANES)
                acc = acc + jnp.dot(slab, w2_ref[kh * 5 + kw],
                                    preferred_element_type=f32)
        y2s_ref[...] = jnp.maximum(acc, 0.0).reshape(B, 8, 8, LANES)

        # ---- 2x2 maxpool + flatten (torch C,H,W order) + fc1 + ReLU ----------
        # The flatten/transpose is folded into the fc1 weight layout: for each
        # of the 16 pooled spatial positions s, contract the (B,128) channel
        # vector with the matching 128x128 weight slice and accumulate.
        h = jnp.zeros((B, LANES), f32) + bf1_ref[...]
        for i in range(4):
            for j in range(4):
                v = jnp.maximum(
                    jnp.maximum(y2s_ref[:, 2 * i, 2 * j, :],
                                y2s_ref[:, 2 * i, 2 * j + 1, :]),
                    jnp.maximum(y2s_ref[:, 2 * i + 1, 2 * j, :],
                                y2s_ref[:, 2 * i + 1, 2 * j + 1, :]))
                h = h + jnp.dot(v, wf1_ref[i * 4 + j],
                                preferred_element_type=f32)
        h = jnp.maximum(h, 0.0)

        # ---- fc2 + ReLU, fc3 --------------------------------------------------
        h = jnp.maximum(
            jnp.dot(h, wf2_ref[...], preferred_element_type=f32) + bf2_ref[...],
            0.0)
        out_ref[...] = (jnp.dot(h, wf3_ref[...], preferred_element_type=f32)
                        + bf3_ref[...])

    return kernel


# ----------------------------------------------------------------------------
# Parameter preparation (done once, outside the jitted forward):
# pad/reorder PyTorch-shaped weights into the lane-dense kernel layout.
# ----------------------------------------------------------------------------
def prepare_params(p, num_classes=10):
    f32 = jnp.float32
    # conv1 (6,1,5,5): features k = kh*5 + kw  ->  (32, 128)
    w1 = p["conv1_w"].reshape(6, 25).T                       # (25, 6)
    w1p = jnp.zeros((32, LANES), f32).at[:25, :6].set(w1)
    b1p = jnp.zeros((1, LANES), f32).at[0, :6].set(p["conv1_b"])
    # conv2 (16,6,5,5): per-tap (cin, cout) slices, padded to (25,128,128)
    w2 = jnp.transpose(p["conv2_w"], (2, 3, 1, 0)).reshape(25, 6, 16)
    w2p = jnp.zeros((25, LANES, LANES), f32).at[:, :6, :16].set(w2)
    b2p = jnp.zeros((1, LANES), f32).at[0, :16].set(p["conv2_b"])
    # fc1 (120,256): torch feature f = c*16 + s (s = i*4 + j)  ->  (16,128,128)
    wf1 = jnp.transpose(p["fc1_w"].reshape(120, 16, 16), (2, 1, 0))  # (s, c, o)
    wf1p = jnp.zeros((16, LANES, LANES), f32).at[:, :16, :120].set(wf1)
    bf1p = jnp.zeros((1, LANES), f32).at[0, :120].set(p["fc1_b"])
    # fc2 (84,120) / fc3 (num_classes,84): transpose + zero pad to (128,128)
    wf2p = jnp.zeros((LANES, LANES), f32).at[:120, :84].set(p["fc2_w"].T)
    bf2p = jnp.zeros((1, LANES), f32).at[0, :84].set(p["fc2_b"])
    wf3p = jnp.zeros((LANES, LANES), f32).at[:84, :num_classes].set(p["fc3_w"].T)
    bf3p = jnp.zeros((1, LANES), f32).at[0, :num_classes].set(p["fc3_b"])
    return dict(w1=w1p, b1=b1p, w2=w2p, b2=b2p, wf1=wf1p, bf1=bf1p,
                wf2=wf2p, bf2=bf2p, wf3=wf3p, bf3=bf3p)


# ----------------------------------------------------------------------------
# Forward pass
# ----------------------------------------------------------------------------
def lenet_forward(x, pp, num_classes=10):
    """x: (B, 1, 28, 28) float32 NCHW.  Returns (B, num_classes) logits."""
    B = x.shape[0]
    f32 = jnp.float32

    # Input-boundary glue: conv1 patch extraction as ONE XLA conv (identity
    # kernel, tap k = kh*5 + kw), rearranged to phase-major pooled rows
    # (ph, pw, b, i, j) with j padded 12->16 and K padded 25->32.
    eye = jnp.eye(25, dtype=f32).reshape(25, 1, 5, 5)
    pat = jax.lax.conv_general_dilated(
        x.astype(f32), eye, (1, 1), "VALID",
        dimension_numbers=("NCHW", "OIHW", "NCHW"))          # (B, 25, 24, 24)
    pat = pat.transpose(0, 2, 3, 1)                           # (B, 24, 24, 25)
    pat = pat.reshape(B, PI, 2, PI, 2, 25).transpose(2, 4, 0, 1, 3, 5)
    pat = jnp.pad(pat, ((0, 0),) * 4 + ((0, PJ - PI), (0, 7)))
    pat = pat.reshape(4 * B * PI * PJ, 32)                    # (1536, 32)

    operands = (pat, pp["w1"], pp["b1"], pp["w2"], pp["b2"],
                pp["wf1"], pp["bf1"], pp["wf2"], pp["bf2"],
                pp["wf3"], pp["bf3"])

    def full_spec(a):
        r = a.ndim
        return pl.BlockSpec(a.shape, lambda i, r=r: (0,) * r)

    out = pl.pallas_call(
        _make_kernel(B),
        out_shape=jax.ShapeDtypeStruct((B, LANES), f32),
        grid=(1,),
        in_specs=[full_spec(a) for a in operands],
        out_specs=pl.BlockSpec((B, LANES), lambda i: (0, 0)),
        scratch_shapes=[pltpu.VMEM((B, PI, PJ, LANES), f32),   # pool1 output
                        pltpu.VMEM((B, 8, 8, LANES), f32)],    # conv2 output
        compiler_params=pltpu.CompilerParams(
            dimension_semantics=("arbitrary",)),
    )(*operands)
    return out[:, :num_classes]


# ----------------------------------------------------------------------------
# Pure-JAX reference (mirrors the PyTorch module exactly)
# ----------------------------------------------------------------------------
def lenet_reference(x, p):
    dn = ("NCHW", "OIHW", "NCHW")
    y = jax.lax.conv_general_dilated(x, p["conv1_w"], (1, 1), "VALID",
                                     dimension_numbers=dn)
    y = jax.nn.relu(y + p["conv1_b"][None, :, None, None])
    y = jax.lax.reduce_window(y, -jnp.inf, jax.lax.max,
                              (1, 1, 2, 2), (1, 1, 2, 2), "VALID")
    y = jax.lax.conv_general_dilated(y, p["conv2_w"], (1, 1), "VALID",
                                     dimension_numbers=dn)
    y = jax.nn.relu(y + p["conv2_b"][None, :, None, None])
    y = jax.lax.reduce_window(y, -jnp.inf, jax.lax.max,
                              (1, 1, 2, 2), (1, 1, 2, 2), "VALID")
    y = y.reshape(y.shape[0], -1)                    # torch .view (C,H,W) order
    y = jax.nn.relu(y @ p["fc1_w"].T + p["fc1_b"])
    y = jax.nn.relu(y @ p["fc2_w"].T + p["fc2_b"])
    return y @ p["fc3_w"].T + p["fc3_b"]


def init_params(key, num_classes=10):
    """Deterministic synthetic parameters with PyTorch shapes."""
    ks = jax.random.split(key, 8)

    def conv_init(k, shape):                 # kaiming_normal_, mode='fan_out'
        cout, _, kh, kw = shape
        fan_out = cout * kh * kw
        return jax.random.normal(k, shape, jnp.float32) * jnp.sqrt(2.0 / fan_out)

    def lin_init(k, shape):
        fan_in = shape[1]
        return jax.random.normal(k, shape, jnp.float32) * jnp.sqrt(1.0 / fan_in)

    return {
        "conv1_w": conv_init(ks[0], (6, 1, 5, 5)),
        "conv1_b": jnp.zeros((6,), jnp.float32),
        "conv2_w": conv_init(ks[1], (16, 6, 5, 5)),
        "conv2_b": jnp.zeros((16,), jnp.float32),
        "fc1_w": lin_init(ks[2], (120, 256)),
        "fc1_b": jax.random.normal(ks[3], (120,), jnp.float32) * 0.01,
        "fc2_w": lin_init(ks[4], (84, 120)),
        "fc2_b": jax.random.normal(ks[5], (84,), jnp.float32) * 0.01,
        "fc3_w": lin_init(ks[6], (num_classes, 84)),
        "fc3_b": jax.random.normal(ks[7], (num_classes,), jnp.float32) * 0.01,
    }


if __name__ == "__main__":
    key = jax.random.PRNGKey(0)
    k_x, k_p = jax.random.split(key)

    # LeNet's classifier (Linear(256, ...)) implies a 1x28x28 input.
    x = jax.random.normal(k_x, (2, 1, 28, 28), jnp.float32)
    params = init_params(k_p)
    prepped = prepare_params(params)         # one-time weight pad/reorder

    fwd = jax.jit(lenet_forward)
    logits = jax.block_until_ready(fwd(x, prepped))

    assert logits.shape == (2, 10), logits.shape
    assert logits.dtype == jnp.float32

    ref = lenet_reference(x, params)
    max_err = float(jnp.max(jnp.abs(logits - ref)))
    assert jnp.allclose(logits, ref, atol=1e-3, rtol=1e-3), (
        f"mismatch vs reference, max abs err {max_err}")

    print("KERNEL_OK")
</pallas_src>

<mosaic_0001>
module attributes {stable_mosaic.version = 11 : i64} {
  func.func @kernel(%arg0: i32, %arg1: memref<1536x32xf32, #tpu.memory_space<vmem>>, %arg2: memref<32x128xf32, #tpu.memory_space<vmem>>, %arg3: memref<1x128xf32, #tpu.memory_space<vmem>>, %arg4: memref<25x128x128xf32, #tpu.memory_space<vmem>>, %arg5: memref<1x128xf32, #tpu.memory_space<vmem>>, %arg6: memref<16x128x128xf32, #tpu.memory_space<vmem>>, %arg7: memref<1x128xf32, #tpu.memory_space<vmem>>, %arg8: memref<128x128xf32, #tpu.memory_space<vmem>>, %arg9: memref<1x128xf32, #tpu.memory_space<vmem>>, %arg10: memref<128x128xf32, #tpu.memory_space<vmem>>, %arg11: memref<1x128xf32, #tpu.memory_space<vmem>>, %arg12: memref<2x128xf32, #tpu.memory_space<vmem>>, %arg13: memref<2x12x16x128xf32, #tpu.memory_space<vmem>>, %arg14: memref<2x8x8x128xf32, #tpu.memory_space<vmem>>) attributes {dimension_semantics = [#tpu.dimension_semantics<arbitrary>], iteration_bounds = array<i64: 1>, scalar_prefetch = 0 : i64, scratch_operands = 2 : i64, tpu.core_type = #tpu.core_type<tc>, window_params = [{pipeline_mode = #tpu.pipeline_mode<synchronous>, transform_indices = @transform_0, window_bounds = array<i64: 1536, 32>}, {pipeline_mode = #tpu.pipeline_mode<synchronous>, transform_indices = @transform_1, window_bounds = array<i64: 32, 128>}, {pipeline_mode = #tpu.pipeline_mode<synchronous>, transform_indices = @transform_2, window_bounds = array<i64: 1, 128>}, {pipeline_mode = #tpu.pipeline_mode<synchronous>, transform_indices = @transform_3, window_bounds = array<i64: 25, 128, 128>}, {pipeline_mode = #tpu.pipeline_mode<synchronous>, transform_indices = @transform_4, window_bounds = array<i64: 1, 128>}, {pipeline_mode = #tpu.pipeline_mode<synchronous>, transform_indices = @transform_5, window_bounds = array<i64: 16, 128, 128>}, {pipeline_mode = #tpu.pipeline_mode<synchronous>, transform_indices = @transform_6, window_bounds = array<i64: 1, 128>}, {pipeline_mode = #tpu.pipeline_mode<synchronous>, transform_indices = @transform_7, window_bounds = array<i64: 128, 128>}, {pipeline_mode = #tpu.pipeline_mode<synchronous>, transform_indices = @transform_8, window_bounds = array<i64: 1, 128>}, {pipeline_mode = #tpu.pipeline_mode<synchronous>, transform_indices = @transform_9, window_bounds = array<i64: 128, 128>}, {pipeline_mode = #tpu.pipeline_mode<synchronous>, transform_indices = @transform_10, window_bounds = array<i64: 1, 128>}, {pipeline_mode = #tpu.pipeline_mode<synchronous>, transform_indices = @transform_11, window_bounds = array<i64: 2, 128>}]} {
    %c0 = arith.constant 0 : index
    %c0_0 = arith.constant 0 : index
    %0 = vector.load %arg2[%c0, %c0_0] : memref<32x128xf32, #tpu.memory_space<vmem>>, vector<32x128xf32>
    %c0_1 = arith.constant 0 : index
    %c0_2 = arith.constant 0 : index
    %1 = vector.load %arg3[%c0_1, %c0_2] : memref<1x128xf32, #tpu.memory_space<vmem>>, vector<1x128xf32>
    %c0_3 = arith.constant 0 : index
    %c0_4 = arith.constant 0 : index
    %2 = vector.load %arg1[%c0_3, %c0_4] : memref<1536x32xf32, #tpu.memory_space<vmem>>, vector<192x32xf32>
    %cst = arith.constant dense<0.000000e+00> : vector<192x128xf32>
    %3 = tpu.matmul %2, %0, %cst {dimension_numbers = #tpu.dot_dimension_numbers<[1], [0], [0], [1], [0, 0, 1, 1], [], []>} : vector<192x32xf32>, vector<32x128xf32>, vector<192x128xf32> -> vector<192x128xf32>
    %4 = vector.broadcast %1 : vector<1x128xf32> to vector<192x128xf32>
    %5 = arith.addf %3, %4 : vector<192x128xf32>
    %cst_5 = arith.constant 0.000000e+00 : f32
    %6 = vector.broadcast %cst_5 : f32 to vector<192x128xf32>
    %7 = arith.maximumf %5, %6 : vector<192x128xf32>
    %c384 = arith.constant 384 : index
    %c0_6 = arith.constant 0 : index
    %8 = vector.load %arg1[%c384, %c0_6] : memref<1536x32xf32, #tpu.memory_space<vmem>>, vector<192x32xf32>
    %cst_7 = arith.constant dense<0.000000e+00> : vector<192x128xf32>
    %9 = tpu.matmul %8, %0, %cst_7 {dimension_numbers = #tpu.dot_dimension_numbers<[1], [0], [0], [1], [0, 0, 1, 1], [], []>} : vector<192x32xf32>, vector<32x128xf32>, vector<192x128xf32> -> vector<192x128xf32>
    %10 = vector.broadcast %1 : vector<1x128xf32> to vector<192x128xf32>
    %11 = arith.addf %9, %10 : vector<192x128xf32>
    %cst_8 = arith.constant 0.000000e+00 : f32
    %12 = vector.broadcast %cst_8 : f32 to vector<192x128xf32>
    %13 = arith.maximumf %11, %12 : vector<192x128xf32>
    %14 = arith.maximumf %7, %13 : vector<192x128xf32>
    %c768 = arith.constant 768 : index
    %c0_9 = arith.constant 0 : index
    %15 = vector.load %arg1[%c768, %c0_9] : memref<1536x32xf32, #tpu.memory_space<vmem>>, vector<192x32xf32>
    %cst_10 = arith.constant dense<0.000000e+00> : vector<192x128xf32>
    %16 = tpu.matmul %15, %0, %cst_10 {dimension_numbers = #tpu.dot_dimension_numbers<[1], [0], [0], [1], [0, 0, 1, 1], [], []>} : vector<192x32xf32>, vector<32x128xf32>, vector<192x128xf32> -> vector<192x128xf32>
    %17 = vector.broadcast %1 : vector<1x128xf32> to vector<192x128xf32>
    %18 = arith.addf %16, %17 : vector<192x128xf32>
    %cst_11 = arith.constant 0.000000e+00 : f32
    %19 = vector.broadcast %cst_11 : f32 to vector<192x128xf32>
    %20 = arith.maximumf %18, %19 : vector<192x128xf32>
    %21 = arith.maximumf %14, %20 : vector<192x128xf32>
    %c1152 = arith.constant 1152 : index
    %c0_12 = arith.constant 0 : index
    %22 = vector.load %arg1[%c1152, %c0_12] : memref<1536x32xf32, #tpu.memory_space<vmem>>, vector<192x32xf32>
    %cst_13 = arith.constant dense<0.000000e+00> : vector<192x128xf32>
    %23 = tpu.matmul %22, %0, %cst_13 {dimension_numbers = #tpu.dot_dimension_numbers<[1], [0], [0], [1], [0, 0, 1, 1], [], []>} : vector<192x32xf32>, vector<32x128xf32>, vector<192x128xf32> -> vector<192x128xf32>
    %24 = vector.broadcast %1 : vector<1x128xf32> to vector<192x128xf32>
    %25 = arith.addf %23, %24 : vector<192x128xf32>
    %cst_14 = arith.constant 0.000000e+00 : f32
    %26 = vector.broadcast %cst_14 : f32 to vector<192x128xf32>
    %27 = arith.maximumf %25, %26 : vector<192x128xf32>
    %28 = arith.maximumf %21, %27 : vector<192x128xf32>
    %29 = vector.shape_cast %28 : vector<192x128xf32> to vector<12x16x128xf32>
    %c0_15 = arith.constant 0 : index
    %c0_16 = arith.constant 0 : index
    %c0_17 = arith.constant 0 : index
    %c0_18 = arith.constant 0 : index
    %30 = vector.load %arg13[%c0_15, %c0_16, %c0_17, %c0_18] : memref<2x12x16x128xf32, #tpu.memory_space<vmem>>, vector<1x12x16x128xf32>
    %31 = vector.shape_cast %30 : vector<1x12x16x128xf32> to vector<12x16x128xf32>
    %32 = vector.shape_cast %29 : vector<12x16x128xf32> to vector<1x12x16x128xf32>
    tpu.vector_store %arg13[%c0_15, %c0_16, %c0_17, %c0_18], %32 {strides = array<i32>} : memref<2x12x16x128xf32, #tpu.memory_space<vmem>>, vector<1x12x16x128xf32>,
    %c192 = arith.constant 192 : index
    %c0_19 = arith.constant 0 : index
    %33 = vector.load %arg1[%c192, %c0_19] : memref<1536x32xf32, #tpu.memory_space<vmem>>, vector<192x32xf32>
    %cst_20 = arith.constant dense<0.000000e+00> : vector<192x128xf32>
    %34 = tpu.matmul %33, %0, %cst_20 {dimension_numbers = #tpu.dot_dimension_numbers<[1], [0], [0], [1], [0, 0, 1, 1], [], []>} : vector<192x32xf32>, vector<32x128xf32>, vector<192x128xf32> -> vector<192x128xf32>
    %35 = vector.broadcast %1 : vector<1x128xf32> to vector<192x128xf32>
    %36 = arith.addf %34, %35 : vector<192x128xf32>
    %cst_21 = arith.constant 0.000000e+00 : f32
    %37 = vector.broadcast %cst_21 : f32 to vector<192x128xf32>
    %38 = arith.maximumf %36, %37 : vector<192x128xf32>
    %c576 = arith.constant 576 : index
    %c0_22 = arith.constant 0 : index
    %39 = vector.load %arg1[%c576, %c0_22] : memref<1536x32xf32, #tpu.memory_space<vmem>>, vector<192x32xf32>
    %cst_23 = arith.constant dense<0.000000e+00> : vector<192x128xf32>
    %40 = tpu.matmul %39, %0, %cst_23 {dimension_numbers = #tpu.dot_dimension_numbers<[1], [0], [0], [1], [0, 0, 1, 1], [], []>} : vector<192x32xf32>, vector<32x128xf32>, vector<192x128xf32> -> vector<192x128xf32>
    %41 = vector.broadcast %1 : vector<1x128xf32> to vector<192x128xf32>
    %42 = arith.addf %40, %41 : vector<192x128xf32>
    %cst_24 = arith.constant 0.000000e+00 : f32
    %43 = vector.broadcast %cst_24 : f32 to vector<192x128xf32>
    %44 = arith.maximumf %42, %43 : vector<192x128xf32>
    %45 = arith.maximumf %38, %44 : vector<192x128xf32>
    %c960 = arith.constant 960 : index
    %c0_25 = arith.constant 0 : index
    %46 = vector.load %arg1[%c960, %c0_25] : memref<1536x32xf32, #tpu.memory_space<vmem>>, vector<192x32xf32>
    %cst_26 = arith.constant dense<0.000000e+00> : vector<192x128xf32>
    %47 = tpu.matmul %46, %0, %cst_26 {dimension_numbers = #tpu.dot_dimension_numbers<[1], [0], [0], [1], [0, 0, 1, 1], [], []>} : vector<192x32xf32>, vector<32x128xf32>, vector<192x128xf32> -> vector<192x128xf32>
    %48 = vector.broadcast %1 : vector<1x128xf32> to vector<192x128xf32>
    %49 = arith.addf %47, %48 : vector<192x128xf32>
    %cst_27 = arith.constant 0.000000e+00 : f32
    %50 = vector.broadcast %cst_27 : f32 to vector<192x128xf32>
    %51 = arith.maximumf %49, %50 : vector<192x128xf32>
    %52 = arith.maximumf %45, %51 : vector<192x128xf32>
    %c1344 = arith.constant 1344 : index
    %c0_28 = arith.constant 0 : index
    %53 = vector.load %arg1[%c1344, %c0_28] : memref<1536x32xf32, #tpu.memory_space<vmem>>, vector<192x32xf32>
    %cst_29 = arith.constant dense<0.000000e+00> : vector<192x128xf32>
    %54 = tpu.matmul %53, %0, %cst_29 {dimension_numbers = #tpu.dot_dimension_numbers<[1], [0], [0], [1], [0, 0, 1, 1], [], []>} : vector<192x32xf32>, vector<32x128xf32>, vector<192x128xf32> -> vector<192x128xf32>
    %55 = vector.broadcast %1 : vector<1x128xf32> to vector<192x128xf32>
    %56 = arith.addf %54, %55 : vector<192x128xf32>
    %cst_30 = arith.constant 0.000000e+00 : f32
    %57 = vector.broadcast %cst_30 : f32 to vector<192x128xf32>
    %58 = arith.maximumf %56, %57 : vector<192x128xf32>
    %59 = arith.maximumf %52, %58 : vector<192x128xf32>
    %60 = vector.shape_cast %59 : vector<192x128xf32> to vector<12x16x128xf32>
    %c1 = arith.constant 1 : index
    %c0_31 = arith.constant 0 : index
    %c0_32 = arith.constant 0 : index
    %c0_33 = arith.constant 0 : index
    %61 = vector.load %arg13[%c1, %c0_31, %c0_32, %c0_33] : memref<2x12x16x128xf32, #tpu.memory_space<vmem>>, vector<1x12x16x128xf32>
    %62 = vector.shape_cast %61 : vector<1x12x16x128xf32> to vector<12x16x128xf32>
    %63 = vector.shape_cast %60 : vector<12x16x128xf32> to vector<1x12x16x128xf32>
    tpu.vector_store %arg13[%c1, %c0_31, %c0_32, %c0_33], %63 {strides = array<i32>} : memref<2x12x16x128xf32, #tpu.memory_space<vmem>>, vector<1x12x16x128xf32>,
    %cst_34 = arith.constant 0.000000e+00 : f32
    %64 = vector.broadcast %cst_34 : f32 to vector<128x128xf32>
    %c0_35 = arith.constant 0 : index
    %c0_36 = arith.constant 0 : index
    %65 = vector.load %arg5[%c0_35, %c0_36] : memref<1x128xf32, #tpu.memory_space<vmem>>, vector<1x128xf32>
    %66 = vector.broadcast %65 : vector<1x128xf32> to vector<128x128xf32>
    %67 = arith.addf %64, %66 : vector<128x128xf32>
    %c0_37 = arith.constant 0 : index
    %c0_38 = arith.constant 0 : index
    %c0_39 = arith.constant 0 : index
    %c0_40 = arith.constant 0 : index
    %68 = vector.load %arg13[%c0_37, %c0_38, %c0_39, %c0_40] : memref<2x12x16x128xf32, #tpu.memory_space<vmem>>, vector<2x8x8x128xf32>
    %69 = vector.shape_cast %68 : vector<2x8x8x128xf32> to vector<128x128xf32>
    %c0_41 = arith.constant 0 : index
    %c0_42 = arith.constant 0 : index
    %c0_43 = arith.constant 0 : index
    %70 = vector.load %arg4[%c0_41, %c0_42, %c0_43] : memref<25x128x128xf32, #tpu.memory_space<vmem>>, vector<1x128x128xf32>
    %71 = vector.shape_cast %70 : vector<1x128x128xf32> to vector<128x128xf32>
    %cst_44 = arith.constant dense<0.000000e+00> : vector<128x128xf32>
    %72 = tpu.matmul %69, %71, %cst_44 {dimension_numbers = #tpu.dot_dimension_numbers<[1], [0], [0], [1], [0, 0, 1, 1], [], []>} : vector<128x128xf32>, vector<128x128xf32>, vector<128x128xf32> -> vector<128x128xf32>
    %73 = arith.addf %67, %72 : vector<128x128xf32>
    %c0_45 = arith.constant 0 : index
    %c0_46 = arith.constant 0 : index
    %c1_47 = arith.constant 1 : index
    %c0_48 = arith.constant 0 : index
    %74 = vector.load %arg13[%c0_45, %c0_46, %c1_47, %c0_48] : memref<2x12x16x128xf32, #tpu.memory_space<vmem>>, vector<2x8x8x128xf32>
    %75 = vector.shape_cast %74 : vector<2x8x8x128xf32> to vector<128x128xf32>
    %c1_49 = arith.constant 1 : index
    %c0_50 = arith.constant 0 : index
    %c0_51 = arith.constant 0 : index
    %76 = vector.load %arg4[%c1_49, %c0_50, %c0_51] : memref<25x128x128xf32, #tpu.memory_space<vmem>>, vector<1x128x128xf32>
    %77 = vector.shape_cast %76 : vector<1x128x128xf32> to vector<128x128xf32>
    %cst_52 = arith.constant dense<0.000000e+00> : vector<128x128xf32>
    %78 = tpu.matmul %75, %77, %cst_52 {dimension_numbers = #tpu.dot_dimension_numbers<[1], [0], [0], [1], [0, 0, 1, 1], [], []>} : vector<128x128xf32>, vector<128x128xf32>, vector<128x128xf32> -> vector<128x128xf32>
    %79 = arith.addf %73, %78 : vector<128x128xf32>
    %c0_53 = arith.constant 0 : index
    %c0_54 = arith.constant 0 : index
    %c2 = arith.constant 2 : index
    %c0_55 = arith.constant 0 : index
    %80 = vector.load %arg13[%c0_53, %c0_54, %c2, %c0_55] : memref<2x12x16x128xf32, #tpu.memory_space<vmem>>, vector<2x8x8x128xf32>
    %81 = vector.shape_cast %80 : vector<2x8x8x128xf32> to vector<128x128xf32>
    %c2_56 = arith.constant 2 : index
    %c0_57 = arith.constant 0 : index
    %c0_58 = arith.constant 0 : index
    %82 = vector.load %arg4[%c2_56, %c0_57, %c0_58] : memref<25x128x128xf32, #tpu.memory_space<vmem>>, vector<1x128x128xf32>
    %83 = vector.shape_cast %82 : vector<1x128x128xf32> to vector<128x128xf32>
    %cst_59 = arith.constant dense<0.000000e+00> : vector<128x128xf32>
    %84 = tpu.matmul %81, %83, %cst_59 {dimension_numbers = #tpu.dot_dimension_numbers<[1], [0], [0], [1], [0, 0, 1, 1], [], []>} : vector<128x128xf32>, vector<128x128xf32>, vector<128x128xf32> -> vector<128x128xf32>
    %85 = arith.addf %79, %84 : vector<128x128xf32>
    %c0_60 = arith.constant 0 : index
    %c0_61 = arith.constant 0 : index
    %c3 = arith.constant 3 : index
    %c0_62 = arith.constant 0 : index
    %86 = vector.load %arg13[%c0_60, %c0_61, %c3, %c0_62] : memref<2x12x16x128xf32, #tpu.memory_space<vmem>>, vector<2x8x8x128xf32>
    %87 = vector.shape_cast %86 : vector<2x8x8x128xf32> to vector<128x128xf32>
    %c3_63 = arith.constant 3 : index
    %c0_64 = arith.constant 0 : index
    %c0_65 = arith.constant 0 : index
    %88 = vector.load %arg4[%c3_63, %c0_64, %c0_65] : memref<25x128x128xf32, #tpu.memory_space<vmem>>, vector<1x128x128xf32>
    %89 = vector.shape_cast %88 : vector<1x128x128xf32> to vector<128x128xf32>
    %cst_66 = arith.constant dense<0.000000e+00> : vector<128x128xf32>
    %90 = tpu.matmul %87, %89, %cst_66 {dimension_numbers = #tpu.dot_dimension_numbers<[1], [0], [0], [1], [0, 0, 1, 1], [], []>} : vector<128x128xf32>, vector<128x128xf32>, vector<128x128xf32> -> vector<128x128xf32>
    %91 = arith.addf %85, %90 : vector<128x128xf32>
    %c0_67 = arith.constant 0 : index
    %c0_68 = arith.constant 0 : index
    %c4 = arith.constant 4 : index
    %c0_69 = arith.constant 0 : index
    %92 = vector.load %arg13[%c0_67, %c0_68, %c4, %c0_69] : memref<2x12x16x128xf32, #tpu.memory_space<vmem>>, vector<2x8x8x128xf32>
    %93 = vector.shape_cast %92 : vector<2x8x8x128xf32> to vector<128x128xf32>
    %c4_70 = arith.constant 4 : index
    %c0_71 = arith.constant 0 : index
    %c0_72 = arith.constant 0 : index
    %94 = vector.load %arg4[%c4_70, %c0_71, %c0_72] : memref<25x128x128xf32, #tpu.memory_space<vmem>>, vector<1x128x128xf32>
    %95 = vector.shape_cast %94 : vector<1x128x128xf32> to vector<128x128xf32>
    %cst_73 = arith.constant dense<0.000000e+00> : vector<128x128xf32>
    %96 = tpu.matmul %93, %95, %cst_73 {dimension_numbers = #tpu.dot_dimension_numbers<[1], [0], [0], [1], [0, 0, 1, 1], [], []>} : vector<128x128xf32>, vector<128x128xf32>, vector<128x128xf32> -> vector<128x128xf32>
    %97 = arith.addf %91, %96 : vector<128x128xf32>
    %c0_74 = arith.constant 0 : index
    %c1_75 = arith.constant 1 : index
    %c0_76 = arith.constant 0 : index
    %c0_77 = arith.constant 0 : index
    %98 = vector.load %arg13[%c0_74, %c1_75, %c0_76, %c0_77] : memref<2x12x16x128xf32, #tpu.memory_space<vmem>>, vector<2x8x8x128xf32>
    %99 = vector.shape_cast %98 : vector<2x8x8x128xf32> to vector<128x128xf32>
    %c5 = arith.constant 5 : index
    %c0_78 = arith.constant 0 : index
    %c0_79 = arith.constant 0 : index
    %100 = vector.load %arg4[%c5, %c0_78, %c0_79] : memref<25x128x128xf32, #tpu.memory_space<vmem>>, vector<1x128x128xf32>
    %101 = vector.shape_cast %100 : vector<1x128x128xf32> to vector<128x128xf32>
    %cst_80 = arith.constant dense<0.000000e+00> : vector<128x128xf32>
    %102 = tpu.matmul %99, %101, %cst_80 {dimension_numbers = #tpu.dot_dimension_numbers<[1], [0], [0], [1], [0, 0, 1, 1], [], []>} : vector<128x128xf32>, vector<128x128xf32>, vector<128x128xf32> -> vector<128x128xf32>
    %103 = arith.addf %97, %102 : vector<128x128xf32>
    %c0_81 = arith.constant 0 : index
    %c1_82 = arith.constant 1 : index
    %c1_83 = arith.constant 1 : index
    %c0_84 = arith.constant 0 : index
    %104 = vector.load %arg13[%c0_81, %c1_82, %c1_83, %c0_84] : memref<2x12x16x128xf32, #tpu.memory_space<vmem>>, vector<2x8x8x128xf32>
    %105 = vector.shape_cast %104 : vector<2x8x8x128xf32> to vector<128x128xf32>
    %c6 = arith.constant 6 : index
    %c0_85 = arith.constant 0 : index
    %c0_86 = arith.constant 0 : index
    %106 = vector.load %arg4[%c6, %c0_85, %c0_86] : memref<25x128x128xf32, #tpu.memory_space<vmem>>, vector<1x128x128xf32>
    %107 = vector.shape_cast %106 : vector<1x128x128xf32> to vector<128x128xf32>
    %cst_87 = arith.constant dense<0.000000e+00> : vector<128x128xf32>
    %108 = tpu.matmul %105, %107, %cst_87 {dimension_numbers = #tpu.dot_dimension_numbers<[1], [0], [0], [1], [0, 0, 1, 1], [], []>} : vector<128x128xf32>, vector<128x128xf32>, vector<128x128xf32> -> vector<128x128xf32>
    %109 = arith.addf %103, %108 : vector<128x128xf32>
    %c0_88 = arith.constant 0 : index
    %c1_89 = arith.constant 1 : index
    %c2_90 = arith.constant 2 : index
    %c0_91 = arith.constant 0 : index
    %110 = vector.load %arg13[%c0_88, %c1_89, %c2_90, %c0_91] : memref<2x12x16x128xf32, #tpu.memory_space<vmem>>, vector<2x8x8x128xf32>
    %111 = vector.shape_cast %110 : vector<2x8x8x128xf32> to vector<128x128xf32>
    %c7 = arith.constant 7 : index
    %c0_92 = arith.constant 0 : index
    %c0_93 = arith.constant 0 : index
    %112 = vector.load %arg4[%c7, %c0_92, %c0_93] : memref<25x128x128xf32, #tpu.memory_space<vmem>>, vector<1x128x128xf32>
    %113 = vector.shape_cast %112 : vector<1x128x128xf32> to vector<128x128xf32>
    %cst_94 = arith.constant dense<0.000000e+00> : vector<128x128xf32>
    %114 = tpu.matmul %111, %113, %cst_94 {dimension_numbers = #tpu.dot_dimension_numbers<[1], [0], [0], [1], [0, 0, 1, 1], [], []>} : vector<128x128xf32>, vector<128x128xf32>, vector<128x128xf32> -> vector<128x128xf32>
    %115 = arith.addf %109, %114 : vector<128x128xf32>
    %c0_95 = arith.constant 0 : index
    %c1_96 = arith.constant 1 : index
    %c3_97 = arith.constant 3 : index
    %c0_98 = arith.constant 0 : index
    %116 = vector.load %arg13[%c0_95, %c1_96, %c3_97, %c0_98] : memref<2x12x16x128xf32, #tpu.memory_space<vmem>>, vector<2x8x8x128xf32>
    %117 = vector.shape_cast %116 : vector<2x8x8x128xf32> to vector<128x128xf32>
    %c8 = arith.constant 8 : index
    %c0_99 = arith.constant 0 : index
    %c0_100 = arith.constant 0 : index
    %118 = vector.load %arg4[%c8, %c0_99, %c0_100] : memref<25x128x128xf32, #tpu.memory_space<vmem>>, vector<1x128x128xf32>
    %119 = vector.shape_cast %118 : vector<1x128x128xf32> to vector<128x128xf32>
    %cst_101 = arith.constant dense<0.000000e+00> : vector<128x128xf32>
    %120 = tpu.matmul %117, %119, %cst_101 {dimension_numbers = #tpu.dot_dimension_numbers<[1], [0], [0], [1], [0, 0, 1, 1], [], []>} : vector<128x128xf32>, vector<128x128xf32>, vector<128x128xf32> -> vector<128x128xf32>
    %121 = arith.addf %115, %120 : vector<128x128xf32>
    %c0_102 = arith.constant 0 : index
    %c1_103 = arith.constant 1 : index
    %c4_104 = arith.constant 4 : index
    %c0_105 = arith.constant 0 : index
    %122 = vector.load %arg13[%c0_102, %c1_103, %c4_104, %c0_105] : memref<2x12x16x128xf32, #tpu.memory_space<vmem>>, vector<2x8x8x128xf32>
    %123 = vector.shape_cast %122 : vector<2x8x8x128xf32> to vector<128x128xf32>
    %c9 = arith.constant 9 : index
    %c0_106 = arith.constant 0 : index
    %c0_107 = arith.constant 0 : index
    %124 = vector.load %arg4[%c9, %c0_106, %c0_107] : memref<25x128x128xf32, #tpu.memory_space<vmem>>, vector<1x128x128xf32>
    %125 = vector.shape_cast %124 : vector<1x128x128xf32> to vector<128x128xf32>
    %cst_108 = arith.constant dense<0.000000e+00> : vector<128x128xf32>
    %126 = tpu.matmul %123, %125, %cst_108 {dimension_numbers = #tpu.dot_dimension_numbers<[1], [0], [0], [1], [0, 0, 1, 1], [], []>} : vector<128x128xf32>, vector<128x128xf32>, vector<128x128xf32> -> vector<128x128xf32>
    %127 = arith.addf %121, %126 : vector<128x128xf32>
    %c0_109 = arith.constant 0 : index
    %c2_110 = arith.constant 2 : index
    %c0_111 = arith.constant 0 : index
    %c0_112 = arith.constant 0 : index
    %128 = vector.load %arg13[%c0_109, %c2_110, %c0_111, %c0_112] : memref<2x12x16x128xf32, #tpu.memory_space<vmem>>, vector<2x8x8x128xf32>
    %129 = vector.shape_cast %128 : vector<2x8x8x128xf32> to vector<128x128xf32>
    %c10 = arith.constant 10 : index
    %c0_113 = arith.constant 0 : index
    %c0_114 = arith.constant 0 : index
    %130 = vector.load %arg4[%c10, %c0_113, %c0_114] : memref<25x128x128xf32, #tpu.memory_space<vmem>>, vector<1x128x128xf32>
    %131 = vector.shape_cast %130 : vector<1x128x128xf32> to vector<128x128xf32>
    %cst_115 = arith.constant dense<0.000000e+00> : vector<128x128xf32>
    %132 = tpu.matmul %129, %131, %cst_115 {dimension_numbers = #tpu.dot_dimension_numbers<[1], [0], [0], [1], [0, 0, 1, 1], [], []>} : vector<128x128xf32>, vector<128x128xf32>, vector<128x128xf32> -> vector<128x128xf32>
    %133 = arith.addf %127, %132 : vector<128x128xf32>
    %c0_116 = arith.constant 0 : index
    %c2_117 = arith.constant 2 : index
    %c1_118 = arith.constant 1 : index
    %c0_119 = arith.constant 0 : index
    %134 = vector.load %arg13[%c0_116, %c2_117, %c1_118, %c0_119] : memref<2x12x16x128xf32, #tpu.memory_space<vmem>>, vector<2x8x8x128xf32>
    %135 = vector.shape_cast %134 : vector<2x8x8x128xf32> to vector<128x128xf32>
    %c11 = arith.constant 11 : index
    %c0_120 = arith.constant 0 : index
    %c0_121 = arith.constant 0 : index
    %136 = vector.load %arg4[%c11, %c0_120, %c0_121] : memref<25x128x128xf32, #tpu.memory_space<vmem>>, vector<1x128x128xf32>
    %137 = vector.shape_cast %136 : vector<1x128x128xf32> to vector<128x128xf32>
    %cst_122 = arith.constant dense<0.000000e+00> : vector<128x128xf32>
    %138 = tpu.matmul %135, %137, %cst_122 {dimension_numbers = #tpu.dot_dimension_numbers<[1], [0], [0], [1], [0, 0, 1, 1], [], []>} : vector<128x128xf32>, vector<128x128xf32>, vector<128x128xf32> -> vector<128x128xf32>
    %139 = arith.addf %133, %138 : vector<128x128xf32>
    %c0_123 = arith.constant 0 : index
    %c2_124 = arith.constant 2 : index
    %c2_125 = arith.constant 2 : index
    %c0_126 = arith.constant 0 : index
    %140 = vector.load %arg13[%c0_123, %c2_124, %c2_125, %c0_126] : memref<2x12x16x128xf32, #tpu.memory_space<vmem>>, vector<2x8x8x128xf32>
    %141 = vector.shape_cast %140 : vector<2x8x8x128xf32> to vector<128x128xf32>
    %c12 = arith.constant 12 : index
    %c0_127 = arith.constant 0 : index
    %c0_128 = arith.constant 0 : index
    %142 = vector.load %arg4[%c12, %c0_127, %c0_128] : memref<25x128x128xf32, #tpu.memory_space<vmem>>, vector<1x128x128xf32>
    %143 = vector.shape_cast %142 : vector<1x128x128xf32> to vector<128x128xf32>
    %cst_129 = arith.constant dense<0.000000e+00> : vector<128x128xf32>
    %144 = tpu.matmul %141, %143, %cst_129 {dimension_numbers = #tpu.dot_dimension_numbers<[1], [0], [0], [1], [0, 0, 1, 1], [], []>} : vector<128x128xf32>, vector<128x128xf32>, vector<128x128xf32> -> vector<128x128xf32>
    %145 = arith.addf %139, %144 : vector<128x128xf32>
    %c0_130 = arith.constant 0 : index
    %c2_131 = arith.constant 2 : index
    %c3_132 = arith.constant 3 : index
    %c0_133 = arith.constant 0 : index
    %146 = vector.load %arg13[%c0_130, %c2_131, %c3_132, %c0_133] : memref<2x12x16x128xf32, #tpu.memory_space<vmem>>, vector<2x8x8x128xf32>
    %147 = vector.shape_cast %146 : vector<2x8x8x128xf32> to vector<128x128xf32>
    %c13 = arith.constant 13 : index
    %c0_134 = arith.constant 0 : index
    %c0_135 = arith.constant 0 : index
    %148 = vector.load %arg4[%c13, %c0_134, %c0_135] : memref<25x128x128xf32, #tpu.memory_space<vmem>>, vector<1x128x128xf32>
    %149 = vector.shape_cast %148 : vector<1x128x128xf32> to vector<128x128xf32>
    %cst_136 = arith.constant dense<0.000000e+00> : vector<128x128xf32>
    %150 = tpu.matmul %147, %149, %cst_136 {dimension_numbers = #tpu.dot_dimension_numbers<[1], [0], [0], [1], [0, 0, 1, 1], [], []>} : vector<128x128xf32>, vector<128x128xf32>, vector<128x128xf32> -> vector<128x128xf32>
    %151 = arith.addf %145, %150 : vector<128x128xf32>
    %c0_137 = arith.constant 0 : index
    %c2_138 = arith.constant 2 : index
    %c4_139 = arith.constant 4 : index
    %c0_140 = arith.constant 0 : index
    %152 = vector.load %arg13[%c0_137, %c2_138, %c4_139, %c0_140] : memref<2x12x16x128xf32, #tpu.memory_space<vmem>>, vector<2x8x8x128xf32>
    %153 = vector.shape_cast %152 : vector<2x8x8x128xf32> to vector<128x128xf32>
    %c14 = arith.constant 14 : index
    %c0_141 = arith.constant 0 : index
    %c0_142 = arith.constant 0 : index
    %154 = vector.load %arg4[%c14, %c0_141, %c0_142] : memref<25x128x128xf32, #tpu.memory_space<vmem>>, vector<1x128x128xf32>
    %155 = vector.shape_cast %154 : vector<1x128x128xf32> to vector<128x128xf32>
    %cst_143 = arith.constant dense<0.000000e+00> : vector<128x128xf32>
    %156 = tpu.matmul %153, %155, %cst_143 {dimension_numbers = #tpu.dot_dimension_numbers<[1], [0], [0], [1], [0, 0, 1, 1], [], []>} : vector<128x128xf32>, vector<128x128xf32>, vector<128x128xf32> -> vector<128x128xf32>
    %157 = arith.addf %151, %156 : vector<128x128xf32>
    %c0_144 = arith.constant 0 : index
    %c3_145 = arith.constant 3 : index
    %c0_146 = arith.constant 0 : index
    %c0_147 = arith.constant 0 : index
    %158 = vector.load %arg13[%c0_144, %c3_145, %c0_146, %c0_147] : memref<2x12x16x128xf32, #tpu.memory_space<vmem>>, vector<2x8x8x128xf32>
    %159 = vector.shape_cast %158 : vector<2x8x8x128xf32> to vector<128x128xf32>
    %c15 = arith.constant 15 : index
    %c0_148 = arith.constant 0 : index
    %c0_149 = arith.constant 0 : index
    %160 = vector.load %arg4[%c15, %c0_148, %c0_149] : memref<25x128x128xf32, #tpu.memory_space<vmem>>, vector<1x128x128xf32>
    %161 = vector.shape_cast %160 : vector<1x128x128xf32> to vector<128x128xf32>
    %cst_150 = arith.constant dense<0.000000e+00> : vector<128x128xf32>
    %162 = tpu.matmul %159, %161, %cst_150 {dimension_numbers = #tpu.dot_dimension_numbers<[1], [0], [0], [1], [0, 0, 1, 1], [], []>} : vector<128x128xf32>, vector<128x128xf32>, vector<128x128xf32> -> vector<128x128xf32>
    %163 = arith.addf %157, %162 : vector<128x128xf32>
    %c0_151 = arith.constant 0 : index
    %c3_152 = arith.constant 3 : index
    %c1_153 = arith.constant 1 : index
    %c0_154 = arith.constant 0 : index
    %164 = vector.load %arg13[%c0_151, %c3_152, %c1_153, %c0_154] : memref<2x12x16x128xf32, #tpu.memory_space<vmem>>, vector<2x8x8x128xf32>
    %165 = vector.shape_cast %164 : vector<2x8x8x128xf32> to vector<128x128xf32>
    %c16 = arith.constant 16 : index
    %c0_155 = arith.constant 0 : index
    %c0_156 = arith.constant 0 : index
    %166 = vector.load %arg4[%c16, %c0_155, %c0_156] : memref<25x128x128xf32, #tpu.memory_space<vmem>>, vector<1x128x128xf32>
    %167 = vector.shape_cast %166 : vector<1x128x128xf32> to vector<128x128xf32>
    %cst_157 = arith.constant dense<0.000000e+00> : vector<128x128xf32>
    %168 = tpu.matmul %165, %167, %cst_157 {dimension_numbers = #tpu.dot_dimension_numbers<[1], [0], [0], [1], [0, 0, 1, 1], [], []>} : vector<128x128xf32>, vector<128x128xf32>, vector<128x128xf32> -> vector<128x128xf32>
    %169 = arith.addf %163, %168 : vector<128x128xf32>
    %c0_158 = arith.constant 0 : index
    %c3_159 = arith.constant 3 : index
    %c2_160 = arith.constant 2 : index
    %c0_161 = arith.constant 0 : index
    %170 = vector.load %arg13[%c0_158, %c3_159, %c2_160, %c0_161] : memref<2x12x16x128xf32, #tpu.memory_space<vmem>>, vector<2x8x8x128xf32>
    %171 = vector.shape_cast %170 : vector<2x8x8x128xf32> to vector<128x128xf32>
    %c17 = arith.constant 17 : index
    %c0_162 = arith.constant 0 : index
    %c0_163 = arith.constant 0 : index
    %172 = vector.load %arg4[%c17, %c0_162, %c0_163] : memref<25x128x128xf32, #tpu.memory_space<vmem>>, vector<1x128x128xf32>
    %173 = vector.shape_cast %172 : vector<1x128x128xf32> to vector<128x128xf32>
    %cst_164 = arith.constant dense<0.000000e+00> : vector<128x128xf32>
    %174 = tpu.matmul %171, %173, %cst_164 {dimension_numbers = #tpu.dot_dimension_numbers<[1], [0], [0], [1], [0, 0, 1, 1], [], []>} : vector<128x128xf32>, vector<128x128xf32>, vector<128x128xf32> -> vector<128x128xf32>
    %175 = arith.addf %169, %174 : vector<128x128xf32>
    %c0_165 = arith.constant 0 : index
    %c3_166 = arith.constant 3 : index
    %c3_167 = arith.constant 3 : index
    %c0_168 = arith.constant 0 : index
    %176 = vector.load %arg13[%c0_165, %c3_166, %c3_167, %c0_168] : memref<2x12x16x128xf32, #tpu.memory_space<vmem>>, vector<2x8x8x128xf32>
    %177 = vector.shape_cast %176 : vector<2x8x8x128xf32> to vector<128x128xf32>
    %c18 = arith.constant 18 : index
    %c0_169 = arith.constant 0 : index
    %c0_170 = arith.constant 0 : index
    %178 = vector.load %arg4[%c18, %c0_169, %c0_170] : memref<25x128x128xf32, #tpu.memory_space<vmem>>, vector<1x128x128xf32>
    %179 = vector.shape_cast %178 : vector<1x128x128xf32> to vector<128x128xf32>
    %cst_171 = arith.constant dense<0.000000e+00> : vector<128x128xf32>
    %180 = tpu.matmul %177, %179, %cst_171 {dimension_numbers = #tpu.dot_dimension_numbers<[1], [0], [0], [1], [0, 0, 1, 1], [], []>} : vector<128x128xf32>, vector<128x128xf32>, vector<128x128xf32> -> vector<128x128xf32>
    %181 = arith.addf %175, %180 : vector<128x128xf32>
    %c0_172 = arith.constant 0 : index
    %c3_173 = arith.constant 3 : index
    %c4_174 = arith.constant 4 : index
    %c0_175 = arith.constant 0 : index
    %182 = vector.load %arg13[%c0_172, %c3_173, %c4_174, %c0_175] : memref<2x12x16x128xf32, #tpu.memory_space<vmem>>, vector<2x8x8x128xf32>
    %183 = vector.shape_cast %182 : vector<2x8x8x128xf32> to vector<128x128xf32>
    %c19 = arith.constant 19 : index
    %c0_176 = arith.constant 0 : index
    %c0_177 = arith.constant 0 : index
    %184 = vector.load %arg4[%c19, %c0_176, %c0_177] : memref<25x128x128xf32, #tpu.memory_space<vmem>>, vector<1x128x128xf32>
    %185 = vector.shape_cast %184 : vector<1x128x128xf32> to vector<128x128xf32>
    %cst_178 = arith.constant dense<0.000000e+00> : vector<128x128xf32>
    %186 = tpu.matmul %183, %185, %cst_178 {dimension_numbers = #tpu.dot_dimension_numbers<[1], [0], [0], [1], [0, 0, 1, 1], [], []>} : vector<128x128xf32>, vector<128x128xf32>, vector<128x128xf32> -> vector<128x128xf32>
    %187 = arith.addf %181, %186 : vector<128x128xf32>
    %c0_179 = arith.constant 0 : index
    %c4_180 = arith.constant 4 : index
    %c0_181 = arith.constant 0 : index
    %c0_182 = arith.constant 0 : index
    %188 = vector.load %arg13[%c0_179, %c4_180, %c0_181, %c0_182] : memref<2x12x16x128xf32, #tpu.memory_space<vmem>>, vector<2x8x8x128xf32>
    %189 = vector.shape_cast %188 : vector<2x8x8x128xf32> to vector<128x128xf32>
    %c20 = arith.constant 20 : index
    %c0_183 = arith.constant 0 : index
    %c0_184 = arith.constant 0 : index
    %190 = vector.load %arg4[%c20, %c0_183, %c0_184] : memref<25x128x128xf32, #tpu.memory_space<vmem>>, vector<1x128x128xf32>
    %191 = vector.shape_cast %190 : vector<1x128x128xf32> to vector<128x128xf32>
    %cst_185 = arith.constant dense<0.000000e+00> : vector<128x128xf32>
    %192 = tpu.matmul %189, %191, %cst_185 {dimension_numbers = #tpu.dot_dimension_numbers<[1], [0], [0], [1], [0, 0, 1, 1], [], []>} : vector<128x128xf32>, vector<128x128xf32>, vector<128x128xf32> -> vector<128x128xf32>
    %193 = arith.addf %187, %192 : vector<128x128xf32>
    %c0_186 = arith.constant 0 : index
    %c4_187 = arith.constant 4 : index
    %c1_188 = arith.constant 1 : index
    %c0_189 = arith.constant 0 : index
    %194 = vector.load %arg13[%c0_186, %c4_187, %c1_188, %c0_189] : memref<2x12x16x128xf32, #tpu.memory_space<vmem>>, vector<2x8x8x128xf32>
    %195 = vector.shape_cast %194 : vector<2x8x8x128xf32> to vector<128x128xf32>
    %c21 = arith.constant 21 : index
    %c0_190 = arith.constant 0 : index
    %c0_191 = arith.constant 0 : index
    %196 = vector.load %arg4[%c21, %c0_190, %c0_191] : memref<25x128x128xf32, #tpu.memory_space<vmem>>, vector<1x128x128xf32>
    %197 = vector.shape_cast %196 : vector<1x128x128xf32> to vector<128x128xf32>
    %cst_192 = arith.constant dense<0.000000e+00> : vector<128x128xf32>
    %198 = tpu.matmul %195, %197, %cst_192 {dimension_numbers = #tpu.dot_dimension_numbers<[1], [0], [0], [1], [0, 0, 1, 1], [], []>} : vector<128x128xf32>, vector<128x128xf32>, vector<128x128xf32> -> vector<128x128xf32>
    %199 = arith.addf %193, %198 : vector<128x128xf32>
    %c0_193 = arith.constant 0 : index
    %c4_194 = arith.constant 4 : index
    %c2_195 = arith.constant 2 : index
    %c0_196 = arith.constant 0 : index
    %200 = vector.load %arg13[%c0_193, %c4_194, %c2_195, %c0_196] : memref<2x12x16x128xf32, #tpu.memory_space<vmem>>, vector<2x8x8x128xf32>
    %201 = vector.shape_cast %200 : vector<2x8x8x128xf32> to vector<128x128xf32>
    %c22 = arith.constant 22 : index
    %c0_197 = arith.constant 0 : index
    %c0_198 = arith.constant 0 : index
    %202 = vector.load %arg4[%c22, %c0_197, %c0_198] : memref<25x128x128xf32, #tpu.memory_space<vmem>>, vector<1x128x128xf32>
    %203 = vector.shape_cast %202 : vector<1x128x128xf32> to vector<128x128xf32>
    %cst_199 = arith.constant dense<0.000000e+00> : vector<128x128xf32>
    %204 = tpu.matmul %201, %203, %cst_199 {dimension_numbers = #tpu.dot_dimension_numbers<[1], [0], [0], [1], [0, 0, 1, 1], [], []>} : vector<128x128xf32>, vector<128x128xf32>, vector<128x128xf32> -> vector<128x128xf32>
    %205 = arith.addf %199, %204 : vector<128x128xf32>
    %c0_200 = arith.constant 0 : index
    %c4_201 = arith.constant 4 : index
    %c3_202 = arith.constant 3 : index
    %c0_203 = arith.constant 0 : index
    %206 = vector.load %arg13[%c0_200, %c4_201, %c3_202, %c0_203] : memref<2x12x16x128xf32, #tpu.memory_space<vmem>>, vector<2x8x8x128xf32>
    %207 = vector.shape_cast %206 : vector<2x8x8x128xf32> to vector<128x128xf32>
    %c23 = arith.constant 23 : index
    %c0_204 = arith.constant 0 : index
    %c0_205 = arith.constant 0 : index
    %208 = vector.load %arg4[%c23, %c0_204, %c0_205] : memref<25x128x128xf32, #tpu.memory_space<vmem>>, vector<1x128x128xf32>
    %209 = vector.shape_cast %208 : vector<1x128x128xf32> to vector<128x128xf32>
    %cst_206 = arith.constant dense<0.000000e+00> : vector<128x128xf32>
    %210 = tpu.matmul %207, %209, %cst_206 {dimension_numbers = #tpu.dot_dimension_numbers<[1], [0], [0], [1], [0, 0, 1, 1], [], []>} : vector<128x128xf32>, vector<128x128xf32>, vector<128x128xf32> -> vector<128x128xf32>
    %211 = arith.addf %205, %210 : vector<128x128xf32>
    %c0_207 = arith.constant 0 : index
    %c4_208 = arith.constant 4 : index
    %c4_209 = arith.constant 4 : index
    %c0_210 = arith.constant 0 : index
    %212 = vector.load %arg13[%c0_207, %c4_208, %c4_209, %c0_210] : memref<2x12x16x128xf32, #tpu.memory_space<vmem>>, vector<2x8x8x128xf32>
    %213 = vector.shape_cast %212 : vector<2x8x8x128xf32> to vector<128x128xf32>
    %c24 = arith.constant 24 : index
    %c0_211 = arith.constant 0 : index
    %c0_212 = arith.constant 0 : index
    %214 = vector.load %arg4[%c24, %c0_211, %c0_212] : memref<25x128x128xf32, #tpu.memory_space<vmem>>, vector<1x128x128xf32>
    %215 = vector.shape_cast %214 : vector<1x128x128xf32> to vector<128x128xf32>
    %cst_213 = arith.constant dense<0.000000e+00> : vector<128x128xf32>
    %216 = tpu.matmul %213, %215, %cst_213 {dimension_numbers = #tpu.dot_dimension_numbers<[1], [0], [0], [1], [0, 0, 1, 1], [], []>} : vector<128x128xf32>, vector<128x128xf32>, vector<128x128xf32> -> vector<128x128xf32>
    %217 = arith.addf %211, %216 : vector<128x128xf32>
    %cst_214 = arith.constant 0.000000e+00 : f32
    %218 = vector.broadcast %cst_214 : f32 to vector<128x128xf32>
    %219 = arith.maximumf %217, %218 : vector<128x128xf32>
    %220 = vector.shape_cast %219 : vector<128x128xf32> to vector<2x8x8x128xf32>
    %c0_215 = arith.constant 0 : index
    %c0_216 = arith.constant 0 : index
    %c0_217 = arith.constant 0 : index
    %c0_218 = arith.constant 0 : index
    %221 = vector.load %arg14[%c0_215, %c0_216, %c0_217, %c0_218] : memref<2x8x8x128xf32, #tpu.memory_space<vmem>>, vector<2x8x8x128xf32>
    tpu.vector_store %arg14[%c0_215, %c0_216, %c0_217, %c0_218], %220 {strides = array<i32>} : memref<2x8x8x128xf32, #tpu.memory_space<vmem>>, vector<2x8x8x128xf32>,
    %cst_219 = arith.constant 0.000000e+00 : f32
    %222 = vector.broadcast %cst_219 : f32 to vector<2x128xf32>
    %c0_220 = arith.constant 0 : index
    %c0_221 = arith.constant 0 : index
    %223 = vector.load %arg7[%c0_220, %c0_221] : memref<1x128xf32, #tpu.memory_space<vmem>>, vector<1x128xf32>
    %224 = vector.broadcast %223 : vector<1x128xf32> to vector<2x128xf32>
    %225 = arith.addf %222, %224 : vector<2x128xf32>
    %c0_222 = arith.constant 0 : index
    %c0_223 = arith.constant 0 : index
    %c0_224 = arith.constant 0 : index
    %c0_225 = arith.constant 0 : index
    %226 = vector.load %arg14[%c0_222, %c0_223, %c0_224, %c0_225] : memref<2x8x8x128xf32, #tpu.memory_space<vmem>>, vector<2x1x1x128xf32>
    %227 = vector.shape_cast %226 : vector<2x1x1x128xf32> to vector<2x128xf32>
    %c0_226 = arith.constant 0 : index
    %c0_227 = arith.constant 0 : index
    %c1_228 = arith.constant 1 : index
    %c0_229 = arith.constant 0 : index
    %228 = vector.load %arg14[%c0_226, %c0_227, %c1_228, %c0_229] : memref<2x8x8x128xf32, #tpu.memory_space<vmem>>, vector<2x1x1x128xf32>
    %229 = vector.shape_cast %228 : vector<2x1x1x128xf32> to vector<2x128xf32>
    %230 = arith.maximumf %227, %229 : vector<2x128xf32>
    %c0_230 = arith.constant 0 : index
    %c1_231 = arith.constant 1 : index
    %c0_232 = arith.constant 0 : index
    %c0_233 = arith.constant 0 : index
    %231 = vector.load %arg14[%c0_230, %c1_231, %c0_232, %c0_233] : memref<2x8x8x128xf32, #tpu.memory_space<vmem>>, vector<2x1x1x128xf32>
    %232 = vector.shape_cast %231 : vector<2x1x1x128xf32> to vector<2x128xf32>
    %c0_234 = arith.constant 0 : index
    %c1_235 = arith.constant 1 : index
    %c1_236 = arith.constant 1 : index
    %c0_237 = arith.constant 0 : index
    %233 = vector.load %arg14[%c0_234, %c1_235, %c1_236, %c0_237] : memref<2x8x8x128xf32, #tpu.memory_space<vmem>>, vector<2x1x1x128xf32>
    %234 = vector.shape_cast %233 : vector<2x1x1x128xf32> to vector<2x128xf32>
    %235 = arith.maximumf %232, %234 : vector<2x128xf32>
    %236 = arith.maximumf %230, %235 : vector<2x128xf32>
    %c0_238 = arith.constant 0 : index
    %c0_239 = arith.constant 0 : index
    %c0_240 = arith.constant 0 : index
    %237 = vector.load %arg6[%c0_238, %c0_239, %c0_240] : memref<16x128x128xf32, #tpu.memory_space<vmem>>, vector<1x128x128xf32>
    %238 = vector.shape_cast %237 : vector<1x128x128xf32> to vector<128x128xf32>
    %cst_241 = arith.constant dense<0.000000e+00> : vector<2x128xf32>
    %239 = tpu.matmul %236, %238, %cst_241 {dimension_numbers = #tpu.dot_dimension_numbers<[1], [0], [0], [1], [0, 0, 1, 1], [], []>} : vector<2x128xf32>, vector<128x128xf32>, vector<2x128xf32> -> vector<2x128xf32>
    %240 = arith.addf %225, %239 : vector<2x128xf32>
    %c0_242 = arith.constant 0 : index
    %c0_243 = arith.constant 0 : index
    %c2_244 = arith.constant 2 : index
    %c0_245 = arith.constant 0 : index
    %241 = vector.load %arg14[%c0_242, %c0_243, %c2_244, %c0_245] : memref<2x8x8x128xf32, #tpu.memory_space<vmem>>, vector<2x1x1x128xf32>
    %242 = vector.shape_cast %241 : vector<2x1x1x128xf32> to vector<2x128xf32>
    %c0_246 = arith.constant 0 : index
    %c0_247 = arith.constant 0 : index
    %c3_248 = arith.constant 3 : index
    %c0_249 = arith.constant 0 : index
    %243 = vector.load %arg14[%c0_246, %c0_247, %c3_248, %c0_249] : memref<2x8x8x128xf32, #tpu.memory_space<vmem>>, vector<2x1x1x128xf32>
    %244 = vector.shape_cast %243 : vector<2x1x1x128xf32> to vector<2x128xf32>
    %245 = arith.maximumf %242, %244 : vector<2x128xf32>
    %c0_250 = arith.constant 0 : index
    %c1_251 = arith.constant 1 : index
    %c2_252 = arith.constant 2 : index
    %c0_253 = arith.constant 0 : index
    %246 = vector.load %arg14[%c0_250, %c1_251, %c2_252, %c0_253] : memref<2x8x8x128xf32, #tpu.memory_space<vmem>>, vector<2x1x1x128xf32>
    %247 = vector.shape_cast %246 : vector<2x1x1x128xf32> to vector<2x128xf32>
    %c0_254 = arith.constant 0 : index
    %c1_255 = arith.constant 1 : index
    %c3_256 = arith.constant 3 : index
    %c0_257 = arith.constant 0 : index
    %248 = vector.load %arg14[%c0_254, %c1_255, %c3_256, %c0_257] : memref<2x8x8x128xf32, #tpu.memory_space<vmem>>, vector<2x1x1x128xf32>
    %249 = vector.shape_cast %248 : vector<2x1x1x128xf32> to vector<2x128xf32>
    %250 = arith.maximumf %247, %249 : vector<2x128xf32>
    %251 = arith.maximumf %245, %250 : vector<2x128xf32>
    %c1_258 = arith.constant 1 : index
    %c0_259 = arith.constant 0 : index
    %c0_260 = arith.constant 0 : index
    %252 = vector.load %arg6[%c1_258, %c0_259, %c0_260] : memref<16x128x128xf32, #tpu.memory_space<vmem>>, vector<1x128x128xf32>
    %253 = vector.shape_cast %252 : vector<1x128x128xf32> to vector<128x128xf32>
    %cst_261 = arith.constant dense<0.000000e+00> : vector<2x128xf32>
    %254 = tpu.matmul %251, %253, %cst_261 {dimension_numbers = #tpu.dot_dimension_numbers<[1], [0], [0], [1], [0, 0, 1, 1], [], []>} : vector<2x128xf32>, vector<128x128xf32>, vector<2x128xf32> -> vector<2x128xf32>
    %255 = arith.addf %240, %254 : vector<2x128xf32>
    %c0_262 = arith.constant 0 : index
    %c0_263 = arith.constant 0 : index
    %c4_264 = arith.constant 4 : index
    %c0_265 = arith.constant 0 : index
    %256 = vector.load %arg14[%c0_262, %c0_263, %c4_264, %c0_265] : memref<2x8x8x128xf32, #tpu.memory_space<vmem>>, vector<2x1x1x128xf32>
    %257 = vector.shape_cast %256 : vector<2x1x1x128xf32> to vector<2x128xf32>
    %c0_266 = arith.constant 0 : index
    %c0_267 = arith.constant 0 : index
    %c5_268 = arith.constant 5 : index
    %c0_269 = arith.constant 0 : index
    %258 = vector.load %arg14[%c0_266, %c0_267, %c5_268, %c0_269] : memref<2x8x8x128xf32, #tpu.memory_space<vmem>>, vector<2x1x1x128xf32>
    %259 = vector.shape_cast %258 : vector<2x1x1x128xf32> to vector<2x128xf32>
    %260 = arith.maximumf %257, %259 : vector<2x128xf32>
    %c0_270 = arith.constant 0 : index
    %c1_271 = arith.constant 1 : index
    %c4_272 = arith.constant 4 : index
    %c0_273 = arith.constant 0 : index
    %261 = vector.load %arg14[%c0_270, %c1_271, %c4_272, %c0_273] : memref<2x8x8x128xf32, #tpu.memory_space<vmem>>, vector<2x1x1x128xf32>
    %262 = vector.shape_cast %261 : vector<2x1x1x128xf32> to vector<2x128xf32>
    %c0_274 = arith.constant 0 : index
    %c1_275 = arith.constant 1 : index
    %c5_276 = arith.constant 5 : index
    %c0_277 = arith.constant 0 : index
    %263 = vector.load %arg14[%c0_274, %c1_275, %c5_276, %c0_277] : memref<2x8x8x128xf32, #tpu.memory_space<vmem>>, vector<2x1x1x128xf32>
    %264 = vector.shape_cast %263 : vector<2x1x1x128xf32> to vector<2x128xf32>
    %265 = arith.maximumf %262, %264 : vector<2x128xf32>
    %266 = arith.maximumf %260, %265 : vector<2x128xf32>
    %c2_278 = arith.constant 2 : index
    %c0_279 = arith.constant 0 : index
    %c0_280 = arith.constant 0 : index
    %267 = vector.load %arg6[%c2_278, %c0_279, %c0_280] : memref<16x128x128xf32, #tpu.memory_space<vmem>>, vector<1x128x128xf32>
    %268 = vector.shape_cast %267 : vector<1x128x128xf32> to vector<128x128xf32>
    %cst_281 = arith.constant dense<0.000000e+00> : vector<2x128xf32>
    %269 = tpu.matmul %266, %268, %cst_281 {dimension_numbers = #tpu.dot_dimension_numbers<[1], [0], [0], [1], [0, 0, 1, 1], [], []>} : vector<2x128xf32>, vector<128x128xf32>, vector<2x128xf32> -> vector<2x128xf32>
    %270 = arith.addf %255, %269 : vector<2x128xf32>
    %c0_282 = arith.constant 0 : index
    %c0_283 = arith.constant 0 : index
    %c6_284 = arith.constant 6 : index
    %c0_285 = arith.constant 0 : index
    %271 = vector.load %arg14[%c0_282, %c0_283, %c6_284, %c0_285] : memref<2x8x8x128xf32, #tpu.memory_space<vmem>>, vector<2x1x1x128xf32>
    %272 = vector.shape_cast %271 : vector<2x1x1x128xf32> to vector<2x128xf32>
    %c0_286 = arith.constant 0 : index
    %c0_287 = arith.constant 0 : index
    %c7_288 = arith.constant 7 : index
    %c0_289 = arith.constant 0 : index
    %273 = vector.load %arg14[%c0_286, %c0_287, %c7_288, %c0_289] : memref<2x8x8x128xf32, #tpu.memory_space<vmem>>, vector<2x1x1x128xf32>
    %274 = vector.shape_cast %273 : vector<2x1x1x128xf32> to vector<2x128xf32>
    %275 = arith.maximumf %272, %274 : vector<2x128xf32>
    %c0_290 = arith.constant 0 : index
    %c1_291 = arith.constant 1 : index
    %c6_292 = arith.constant 6 : index
    %c0_293 = arith.constant 0 : index
    %276 = vector.load %arg14[%c0_290, %c1_291, %c6_292, %c0_293] : memref<2x8x8x128xf32, #tpu.memory_space<vmem>>, vector<2x1x1x128xf32>
    %277 = vector.shape_cast %276 : vector<2x1x1x128xf32> to vector<2x128xf32>
    %c0_294 = arith.constant 0 : index
    %c1_295 = arith.constant 1 : index
    %c7_296 = arith.constant 7 : index
    %c0_297 = arith.constant 0 : index
    %278 = vector.load %arg14[%c0_294, %c1_295, %c7_296, %c0_297] : memref<2x8x8x128xf32, #tpu.memory_space<vmem>>, vector<2x1x1x128xf32>
    %279 = vector.shape_cast %278 : vector<2x1x1x128xf32> to vector<2x128xf32>
    %280 = arith.maximumf %277, %279 : vector<2x128xf32>
    %281 = arith.maximumf %275, %280 : vector<2x128xf32>
    %c3_298 = arith.constant 3 : index
    %c0_299 = arith.constant 0 : index
    %c0_300 = arith.constant 0 : index
    %282 = vector.load %arg6[%c3_298, %c0_299, %c0_300] : memref<16x128x128xf32, #tpu.memory_space<vmem>>, vector<1x128x128xf32>
    %283 = vector.shape_cast %282 : vector<1x128x128xf32> to vector<128x128xf32>
    %cst_301 = arith.constant dense<0.000000e+00> : vector<2x128xf32>
    %284 = tpu.matmul %281, %283, %cst_301 {dimension_numbers = #tpu.dot_dimension_numbers<[1], [0], [0], [1], [0, 0, 1, 1], [], []>} : vector<2x128xf32>, vector<128x128xf32>, vector<2x128xf32> -> vector<2x128xf32>
    %285 = arith.addf %270, %284 : vector<2x128xf32>
    %c0_302 = arith.constant 0 : index
    %c2_303 = arith.constant 2 : index
    %c0_304 = arith.constant 0 : index
    %c0_305 = arith.constant 0 : index
    %286 = vector.load %arg14[%c0_302, %c2_303, %c0_304, %c0_305] : memref<2x8x8x128xf32, #tpu.memory_space<vmem>>, vector<2x1x1x128xf32>
    %287 = vector.shape_cast %286 : vector<2x1x1x128xf32> to vector<2x128xf32>
    %c0_306 = arith.constant 0 : index
    %c2_307 = arith.constant 2 : index
    %c1_308 = arith.constant 1 : index
    %c0_309 = arith.constant 0 : index
    %288 = vector.load %arg14[%c0_306, %c2_307, %c1_308, %c0_309] : memref<2x8x8x128xf32, #tpu.memory_space<vmem>>, vector<2x1x1x128xf32>
    %289 = vector.shape_cast %288 : vector<2x1x1x128xf32> to vector<2x128xf32>
    %290 = arith.maximumf %287, %289 : vector<2x128xf32>
    %c0_310 = arith.constant 0 : index
    %c3_311 = arith.constant 3 : index
    %c0_312 = arith.constant 0 : index
    %c0_313 = arith.constant 0 : index
    %291 = vector.load %arg14[%c0_310, %c3_311, %c0_312, %c0_313] : memref<2x8x8x128xf32, #tpu.memory_space<vmem>>, vector<2x1x1x128xf32>
    %292 = vector.shape_cast %291 : vector<2x1x1x128xf32> to vector<2x128xf32>
    %c0_314 = arith.constant 0 : index
    %c3_315 = arith.constant 3 : index
    %c1_316 = arith.constant 1 : index
    %c0_317 = arith.constant 0 : index
    %293 = vector.load %arg14[%c0_314, %c3_315, %c1_316, %c0_317] : memref<2x8x8x128xf32, #tpu.memory_space<vmem>>, vector<2x1x1x128xf32>
    %294 = vector.shape_cast %293 : vector<2x1x1x128xf32> to vector<2x128xf32>
    %295 = arith.maximumf %292, %294 : vector<2x128xf32>
    %296 = arith.maximumf %290, %295 : vector<2x128xf32>
    %c4_318 = arith.constant 4 : index
    %c0_319 = arith.constant 0 : index
    %c0_320 = arith.constant 0 : index
    %297 = vector.load %arg6[%c4_318, %c0_319, %c0_320] : memref<16x128x128xf32, #tpu.memory_space<vmem>>, vector<1x128x128xf32>
    %298 = vector.shape_cast %297 : vector<1x128x128xf32> to vector<128x128xf32>
    %cst_321 = arith.constant dense<0.000000e+00> : vector<2x128xf32>
    %299 = tpu.matmul %296, %298, %cst_321 {dimension_numbers = #tpu.dot_dimension_numbers<[1], [0], [0], [1], [0, 0, 1, 1], [], []>} : vector<2x128xf32>, vector<128x128xf32>, vector<2x128xf32> -> vector<2x128xf32>
    %300 = arith.addf %285, %299 : vector<2x128xf32>
    %c0_322 = arith.constant 0 : index
    %c2_323 = arith.constant 2 : index
    %c2_324 = arith.constant 2 : index
    %c0_325 = arith.constant 0 : index
    %301 = vector.load %arg14[%c0_322, %c2_323, %c2_324, %c0_325] : memref<2x8x8x128xf32, #tpu.memory_space<vmem>>, vector<2x1x1x128xf32>
    %302 = vector.shape_cast %301 : vector<2x1x1x128xf32> to vector<2x128xf32>
    %c0_326 = arith.constant 0 : index
    %c2_327 = arith.constant 2 : index
    %c3_328 = arith.constant 3 : index
    %c0_329 = arith.constant 0 : index
    %303 = vector.load %arg14[%c0_326, %c2_327, %c3_328, %c0_329] : memref<2x8x8x128xf32, #tpu.memory_space<vmem>>, vector<2x1x1x128xf32>
    %304 = vector.shape_cast %303 : vector<2x1x1x128xf32> to vector<2x128xf32>
    %305 = arith.maximumf %302, %304 : vector<2x128xf32>
    %c0_330 = arith.constant 0 : index
    %c3_331 = arith.constant 3 : index
    %c2_332 = arith.constant 2 : index
    %c0_333 = arith.constant 0 : index
    %306 = vector.load %arg14[%c0_330, %c3_331, %c2_332, %c0_333] : memref<2x8x8x128xf32, #tpu.memory_space<vmem>>, vector<2x1x1x128xf32>
    %307 = vector.shape_cast %306 : vector<2x1x1x128xf32> to vector<2x128xf32>
    %c0_334 = arith.constant 0 : index
    %c3_335 = arith.constant 3 : index
    %c3_336 = arith.constant 3 : index
    %c0_337 = arith.constant 0 : index
    %308 = vector.load %arg14[%c0_334, %c3_335, %c3_336, %c0_337] : memref<2x8x8x128xf32, #tpu.memory_space<vmem>>, vector<2x1x1x128xf32>
    %309 = vector.shape_cast %308 : vector<2x1x1x128xf32> to vector<2x128xf32>
    %310 = arith.maximumf %307, %309 : vector<2x128xf32>
    %311 = arith.maximumf %305, %310 : vector<2x128xf32>
    %c5_338 = arith.constant 5 : index
    %c0_339 = arith.constant 0 : index
    %c0_340 = arith.constant 0 : index
    %312 = vector.load %arg6[%c5_338, %c0_339, %c0_340] : memref<16x128x128xf32, #tpu.memory_space<vmem>>, vector<1x128x128xf32>
    %313 = vector.shape_cast %312 : vector<1x128x128xf32> to vector<128x128xf32>
    %cst_341 = arith.constant dense<0.000000e+00> : vector<2x128xf32>
    %314 = tpu.matmul %311, %313, %cst_341 {dimension_numbers = #tpu.dot_dimension_numbers<[1], [0], [0], [1], [0, 0, 1, 1], [], []>} : vector<2x128xf32>, vector<128x128xf32>, vector<2x128xf32> -> vector<2x128xf32>
    %315 = arith.addf %300, %314 : vector<2x128xf32>
    %c0_342 = arith.constant 0 : index
    %c2_343 = arith.constant 2 : index
    %c4_344 = arith.constant 4 : index
    %c0_345 = arith.constant 0 : index
    %316 = vector.load %arg14[%c0_342, %c2_343, %c4_344, %c0_345] : memref<2x8x8x128xf32, #tpu.memory_space<vmem>>, vector<2x1x1x128xf32>
    %317 = vector.shape_cast %316 : vector<2x1x1x128xf32> to vector<2x128xf32>
    %c0_346 = arith.constant 0 : index
    %c2_347 = arith.constant 2 : index
    %c5_348 = arith.constant 5 : index
    %c0_349 = arith.constant 0 : index
    %318 = vector.load %arg14[%c0_346, %c2_347, %c5_348, %c0_349] : memref<2x8x8x128xf32, #tpu.memory_space<vmem>>, vector<2x1x1x128xf32>
    %319 = vector.shape_cast %318 : vector<2x1x1x128xf32> to vector<2x128xf32>
    %320 = arith.maximumf %317, %319 : vector<2x128xf32>
    %c0_350 = arith.constant 0 : index
    %c3_351 = arith.constant 3 : index
    %c4_352 = arith.constant 4 : index
    %c0_353 = arith.constant 0 : index
    %321 = vector.load %arg14[%c0_350, %c3_351, %c4_352, %c0_353] : memref<2x8x8x128xf32, #tpu.memory_space<vmem>>, vector<2x1x1x128xf32>
    %322 = vector.shape_cast %321 : vector<2x1x1x128xf32> to vector<2x128xf32>
    %c0_354 = arith.constant 0 : index
    %c3_355 = arith.constant 3 : index
    %c5_356 = arith.constant 5 : index
    %c0_357 = arith.constant 0 : index
    %323 = vector.load %arg14[%c0_354, %c3_355, %c5_356, %c0_357] : memref<2x8x8x128xf32, #tpu.memory_space<vmem>>, vector<2x1x1x128xf32>
    %324 = vector.shape_cast %323 : vector<2x1x1x128xf32> to vector<2x128xf32>
    %325 = arith.maximumf %322, %324 : vector<2x128xf32>
    %326 = arith.maximumf %320, %325 : vector<2x128xf32>
    %c6_358 = arith.constant 6 : index
    %c0_359 = arith.constant 0 : index
    %c0_360 = arith.constant 0 : index
    %327 = vector.load %arg6[%c6_358, %c0_359, %c0_360] : memref<16x128x128xf32, #tpu.memory_space<vmem>>, vector<1x128x128xf32>
    %328 = vector.shape_cast %327 : vector<1x128x128xf32> to vector<128x128xf32>
    %cst_361 = arith.constant dense<0.000000e+00> : vector<2x128xf32>
    %329 = tpu.matmul %326, %328, %cst_361 {dimension_numbers = #tpu.dot_dimension_numbers<[1], [0], [0], [1], [0, 0, 1, 1], [], []>} : vector<2x128xf32>, vector<128x128xf32>, vector<2x128xf32> -> vector<2x128xf32>
    %330 = arith.addf %315, %329 : vector<2x128xf32>
    %c0_362 = arith.constant 0 : index
    %c2_363 = arith.constant 2 : index
    %c6_364 = arith.constant 6 : index
    %c0_365 = arith.constant 0 : index
    %331 = vector.load %arg14[%c0_362, %c2_363, %c6_364, %c0_365] : memref<2x8x8x128xf32, #tpu.memory_space<vmem>>, vector<2x1x1x128xf32>
    %332 = vector.shape_cast %331 : vector<2x1x1x128xf32> to vector<2x128xf32>
    %c0_366 = arith.constant 0 : index
    %c2_367 = arith.constant 2 : index
    %c7_368 = arith.constant 7 : index
    %c0_369 = arith.constant 0 : index
    %333 = vector.load %arg14[%c0_366, %c2_367, %c7_368, %c0_369] : memref<2x8x8x128xf32, #tpu.memory_space<vmem>>, vector<2x1x1x128xf32>
    %334 = vector.shape_cast %333 : vector<2x1x1x128xf32> to vector<2x128xf32>
    %335 = arith.maximumf %332, %334 : vector<2x128xf32>
    %c0_370 = arith.constant 0 : index
    %c3_371 = arith.constant 3 : index
    %c6_372 = arith.constant 6 : index
    %c0_373 = arith.constant 0 : index
    %336 = vector.load %arg14[%c0_370, %c3_371, %c6_372, %c0_373] : memref<2x8x8x128xf32, #tpu.memory_space<vmem>>, vector<2x1x1x128xf32>
    %337 = vector.shape_cast %336 : vector<2x1x1x128xf32> to vector<2x128xf32>
    %c0_374 = arith.constant 0 : index
    %c3_375 = arith.constant 3 : index
    %c7_376 = arith.constant 7 : index
    %c0_377 = arith.constant 0 : index
    %338 = vector.load %arg14[%c0_374, %c3_375, %c7_376, %c0_377] : memref<2x8x8x128xf32, #tpu.memory_space<vmem>>, vector<2x1x1x128xf32>
    %339 = vector.shape_cast %338 : vector<2x1x1x128xf32> to vector<2x128xf32>
    %340 = arith.maximumf %337, %339 : vector<2x128xf32>
    %341 = arith.maximumf %335, %340 : vector<2x128xf32>
    %c7_378 = arith.constant 7 : index
    %c0_379 = arith.constant 0 : index
    %c0_380 = arith.constant 0 : index
    %342 = vector.load %arg6[%c7_378, %c0_379, %c0_380] : memref<16x128x128xf32, #tpu.memory_space<vmem>>, vector<1x128x128xf32>
    %343 = vector.shape_cast %342 : vector<1x128x128xf32> to vector<128x128xf32>
    %cst_381 = arith.constant dense<0.000000e+00> : vector<2x128xf32>
    %344 = tpu.matmul %341, %343, %cst_381 {dimension_numbers = #tpu.dot_dimension_numbers<[1], [0], [0], [1], [0, 0, 1, 1], [], []>} : vector<2x128xf32>, vector<128x128xf32>, vector<2x128xf32> -> vector<2x128xf32>
    %345 = arith.addf %330, %344 : vector<2x128xf32>
    %c0_382 = arith.constant 0 : index
    %c4_383 = arith.constant 4 : index
    %c0_384 = arith.constant 0 : index
    %c0_385 = arith.constant 0 : index
    %346 = vector.load %arg14[%c0_382, %c4_383, %c0_384, %c0_385] : memref<2x8x8x128xf32, #tpu.memory_space<vmem>>, vector<2x1x1x128xf32>
    %347 = vector.shape_cast %346 : vector<2x1x1x128xf32> to vector<2x128xf32>
    %c0_386 = arith.constant 0 : index
    %c4_387 = arith.constant 4 : index
    %c1_388 = arith.constant 1 : index
    %c0_389 = arith.constant 0 : index
    %348 = vector.load %arg14[%c0_386, %c4_387, %c1_388, %c0_389] : memref<2x8x8x128xf32, #tpu.memory_space<vmem>>, vector<2x1x1x128xf32>
    %349 = vector.shape_cast %348 : vector<2x1x1x128xf32> to vector<2x128xf32>
    %350 = arith.maximumf %347, %349 : vector<2x128xf32>
    %c0_390 = arith.constant 0 : index
    %c5_391 = arith.constant 5 : index
    %c0_392 = arith.constant 0 : index
    %c0_393 = arith.constant 0 : index
    %351 = vector.load %arg14[%c0_390, %c5_391, %c0_392, %c0_393] : memref<2x8x8x128xf32, #tpu.memory_space<vmem>>, vector<2x1x1x128xf32>
    %352 = vector.shape_cast %351 : vector<2x1x1x128xf32> to vector<2x128xf32>
    %c0_394 = arith.constant 0 : index
    %c5_395 = arith.constant 5 : index
    %c1_396 = arith.constant 1 : index
    %c0_397 = arith.constant 0 : index
    %353 = vector.load %arg14[%c0_394, %c5_395, %c1_396, %c0_397] : memref<2x8x8x128xf32, #tpu.memory_space<vmem>>, vector<2x1x1x128xf32>
    %354 = vector.shape_cast %353 : vector<2x1x1x128xf32> to vector<2x128xf32>
    %355 = arith.maximumf %352, %354 : vector<2x128xf32>
    %356 = arith.maximumf %350, %355 : vector<2x128xf32>
    %c8_398 = arith.constant 8 : index
    %c0_399 = arith.constant 0 : index
    %c0_400 = arith.constant 0 : index
    %357 = vector.load %arg6[%c8_398, %c0_399, %c0_400] : memref<16x128x128xf32, #tpu.memory_space<vmem>>, vector<1x128x128xf32>
    %358 = vector.shape_cast %357 : vector<1x128x128xf32> to vector<128x128xf32>
    %cst_401 = arith.constant dense<0.000000e+00> : vector<2x128xf32>
    %359 = tpu.matmul %356, %358, %cst_401 {dimension_numbers = #tpu.dot_dimension_numbers<[1], [0], [0], [1], [0, 0, 1, 1], [], []>} : vector<2x128xf32>, vector<128x128xf32>, vector<2x128xf32> -> vector<2x128xf32>
    %360 = arith.addf %345, %359 : vector<2x128xf32>
    %c0_402 = arith.constant 0 : index
    %c4_403 = arith.constant 4 : index
    %c2_404 = arith.constant 2 : index
    %c0_405 = arith.constant 0 : index
    %361 = vector.load %arg14[%c0_402, %c4_403, %c2_404, %c0_405] : memref<2x8x8x128xf32, #tpu.memory_space<vmem>>, vector<2x1x1x128xf32>
    %362 = vector.shape_cast %361 : vector<2x1x1x128xf32> to vector<2x128xf32>
    %c0_406 = arith.constant 0 : index
    %c4_407 = arith.constant 4 : index
    %c3_408 = arith.constant 3 : index
    %c0_409 = arith.constant 0 : index
    %363 = vector.load %arg14[%c0_406, %c4_407, %c3_408, %c0_409] : memref<2x8x8x128xf32, #tpu.memory_space<vmem>>, vector<2x1x1x128xf32>
    %364 = vector.shape_cast %363 : vector<2x1x1x128xf32> to vector<2x128xf32>
    %365 = arith.maximumf %362, %364 : vector<2x128xf32>
    %c0_410 = arith.constant 0 : index
    %c5_411 = arith.constant 5 : index
    %c2_412 = arith.constant 2 : index
    %c0_413 = arith.constant 0 : index
    %366 = vector.load %arg14[%c0_410, %c5_411, %c2_412, %c0_413] : memref<2x8x8x128xf32, #tpu.memory_space<vmem>>, vector<2x1x1x128xf32>
    %367 = vector.shape_cast %366 : vector<2x1x1x128xf32> to vector<2x128xf32>
    %c0_414 = arith.constant 0 : index
    %c5_415 = arith.constant 5 : index
    %c3_416 = arith.constant 3 : index
    %c0_417 = arith.constant 0 : index
    %368 = vector.load %arg14[%c0_414, %c5_415, %c3_416, %c0_417] : memref<2x8x8x128xf32, #tpu.memory_space<vmem>>, vector<2x1x1x128xf32>
    %369 = vector.shape_cast %368 : vector<2x1x1x128xf32> to vector<2x128xf32>
    %370 = arith.maximumf %367, %369 : vector<2x128xf32>
    %371 = arith.maximumf %365, %370 : vector<2x128xf32>
    %c9_418 = arith.constant 9 : index
    %c0_419 = arith.constant 0 : index
    %c0_420 = arith.constant 0 : index
    %372 = vector.load %arg6[%c9_418, %c0_419, %c0_420] : memref<16x128x128xf32, #tpu.memory_space<vmem>>, vector<1x128x128xf32>
    %373 = vector.shape_cast %372 : vector<1x128x128xf32> to vector<128x128xf32>
    %cst_421 = arith.constant dense<0.000000e+00> : vector<2x128xf32>
    %374 = tpu.matmul %371, %373, %cst_421 {dimension_numbers = #tpu.dot_dimension_numbers<[1], [0], [0], [1], [0, 0, 1, 1], [], []>} : vector<2x128xf32>, vector<128x128xf32>, vector<2x128xf32> -> vector<2x128xf32>
    %375 = arith.addf %360, %374 : vector<2x128xf32>
    %c0_422 = arith.constant 0 : index
    %c4_423 = arith.constant 4 : index
    %c4_424 = arith.constant 4 : index
    %c0_425 = arith.constant 0 : index
    %376 = vector.load %arg14[%c0_422, %c4_423, %c4_424, %c0_425] : memref<2x8x8x128xf32, #tpu.memory_space<vmem>>, vector<2x1x1x128xf32>
    %377 = vector.shape_cast %376 : vector<2x1x1x128xf32> to vector<2x128xf32>
    %c0_426 = arith.constant 0 : index
    %c4_427 = arith.constant 4 : index
    %c5_428 = arith.constant 5 : index
    %c0_429 = arith.constant 0 : index
    %378 = vector.load %arg14[%c0_426, %c4_427, %c5_428, %c0_429] : memref<2x8x8x128xf32, #tpu.memory_space<vmem>>, vector<2x1x1x128xf32>
    %379 = vector.shape_cast %378 : vector<2x1x1x128xf32> to vector<2x128xf32>
    %380 = arith.maximumf %377, %379 : vector<2x128xf32>
    %c0_430 = arith.constant 0 : index
    %c5_431 = arith.constant 5 : index
    %c4_432 = arith.constant 4 : index
    %c0_433 = arith.constant 0 : index
    %381 = vector.load %arg14[%c0_430, %c5_431, %c4_432, %c0_433] : memref<2x8x8x128xf32, #tpu.memory_space<vmem>>, vector<2x1x1x128xf32>
    %382 = vector.shape_cast %381 : vector<2x1x1x128xf32> to vector<2x128xf32>
    %c0_434 = arith.constant 0 : index
    %c5_435 = arith.constant 5 : index
    %c5_436 = arith.constant 5 : index
    %c0_437 = arith.constant 0 : index
    %383 = vector.load %arg14[%c0_434, %c5_435, %c5_436, %c0_437] : memref<2x8x8x128xf32, #tpu.memory_space<vmem>>, vector<2x1x1x128xf32>
    %384 = vector.shape_cast %383 : vector<2x1x1x128xf32> to vector<2x128xf32>
    %385 = arith.maximumf %382, %384 : vector<2x128xf32>
    %386 = arith.maximumf %380, %385 : vector<2x128xf32>
    %c10_438 = arith.constant 10 : index
    %c0_439 = arith.constant 0 : index
    %c0_440 = arith.constant 0 : index
    %387 = vector.load %arg6[%c10_438, %c0_439, %c0_440] : memref<16x128x128xf32, #tpu.memory_space<vmem>>, vector<1x128x128xf32>
    %388 = vector.shape_cast %387 : vector<1x128x128xf32> to vector<128x128xf32>
    %cst_441 = arith.constant dense<0.000000e+00> : vector<2x128xf32>
    %389 = tpu.matmul %386, %388, %cst_441 {dimension_numbers = #tpu.dot_dimension_numbers<[1], [0], [0], [1], [0, 0, 1, 1], [], []>} : vector<2x128xf32>, vector<128x128xf32>, vector<2x128xf32> -> vector<2x128xf32>
    %390 = arith.addf %375, %389 : vector<2x128xf32>
    %c0_442 = arith.constant 0 : index
    %c4_443 = arith.constant 4 : index
    %c6_444 = arith.constant 6 : index
    %c0_445 = arith.constant 0 : index
    %391 = vector.load %arg14[%c0_442, %c4_443, %c6_444, %c0_445] : memref<2x8x8x128xf32, #tpu.memory_space<vmem>>, vector<2x1x1x128xf32>
    %392 = vector.shape_cast %391 : vector<2x1x1x128xf32> to vector<2x128xf32>
    %c0_446 = arith.constant 0 : index
    %c4_447 = arith.constant 4 : index
    %c7_448 = arith.constant 7 : index
    %c0_449 = arith.constant 0 : index
    %393 = vector.load %arg14[%c0_446, %c4_447, %c7_448, %c0_449] : memref<2x8x8x128xf32, #tpu.memory_space<vmem>>, vector<2x1x1x128xf32>
    %394 = vector.shape_cast %393 : vector<2x1x1x128xf32> to vector<2x128xf32>
    %395 = arith.maximumf %392, %394 : vector<2x128xf32>
    %c0_450 = arith.constant 0 : index
    %c5_451 = arith.constant 5 : index
    %c6_452 = arith.constant 6 : index
    %c0_453 = arith.constant 0 : index
    %396 = vector.load %arg14[%c0_450, %c5_451, %c6_452, %c0_453] : memref<2x8x8x128xf32, #tpu.memory_space<vmem>>, vector<2x1x1x128xf32>
    %397 = vector.shape_cast %396 : vector<2x1x1x128xf32> to vector<2x128xf32>
    %c0_454 = arith.constant 0 : index
    %c5_455 = arith.constant 5 : index
    %c7_456 = arith.constant 7 : index
    %c0_457 = arith.constant 0 : index
    %398 = vector.load %arg14[%c0_454, %c5_455, %c7_456, %c0_457] : memref<2x8x8x128xf32, #tpu.memory_space<vmem>>, vector<2x1x1x128xf32>
    %399 = vector.shape_cast %398 : vector<2x1x1x128xf32> to vector<2x128xf32>
    %400 = arith.maximumf %397, %399 : vector<2x128xf32>
    %401 = arith.maximumf %395, %400 : vector<2x128xf32>
    %c11_458 = arith.constant 11 : index
    %c0_459 = arith.constant 0 : index
    %c0_460 = arith.constant 0 : index
    %402 = vector.load %arg6[%c11_458, %c0_459, %c0_460] : memref<16x128x128xf32, #tpu.memory_space<vmem>>, vector<1x128x128xf32>
    %403 = vector.shape_cast %402 : vector<1x128x128xf32> to vector<128x128xf32>
    %cst_461 = arith.constant dense<0.000000e+00> : vector<2x128xf32>
    %404 = tpu.matmul %401, %403, %cst_461 {dimension_numbers = #tpu.dot_dimension_numbers<[1], [0], [0], [1], [0, 0, 1, 1], [], []>} : vector<2x128xf32>, vector<128x128xf32>, vector<2x128xf32> -> vector<2x128xf32>
    %405 = arith.addf %390, %404 : vector<2x128xf32>
    %c0_462 = arith.constant 0 : index
    %c6_463 = arith.constant 6 : index
    %c0_464 = arith.constant 0 : index
    %c0_465 = arith.constant 0 : index
    %406 = vector.load %arg14[%c0_462, %c6_463, %c0_464, %c0_465] : memref<2x8x8x128xf32, #tpu.memory_space<vmem>>, vector<2x1x1x128xf32>
    %407 = vector.shape_cast %406 : vector<2x1x1x128xf32> to vector<2x128xf32>
    %c0_466 = arith.constant 0 : index
    %c6_467 = arith.constant 6 : index
    %c1_468 = arith.constant 1 : index
    %c0_469 = arith.constant 0 : index
    %408 = vector.load %arg14[%c0_466, %c6_467, %c1_468, %c0_469] : memref<2x8x8x128xf32, #tpu.memory_space<vmem>>, vector<2x1x1x128xf32>
    %409 = vector.shape_cast %408 : vector<2x1x1x128xf32> to vector<2x128xf32>
    %410 = arith.maximumf %407, %409 : vector<2x128xf32>
    %c0_470 = arith.constant 0 : index
    %c7_471 = arith.constant 7 : index
    %c0_472 = arith.constant 0 : index
    %c0_473 = arith.constant 0 : index
    %411 = vector.load %arg14[%c0_470, %c7_471, %c0_472, %c0_473] : memref<2x8x8x128xf32, #tpu.memory_space<vmem>>, vector<2x1x1x128xf32>
    %412 = vector.shape_cast %411 : vector<2x1x1x128xf32> to vector<2x128xf32>
    %c0_474 = arith.constant 0 : index
    %c7_475 = arith.constant 7 : index
    %c1_476 = arith.constant 1 : index
    %c0_477 = arith.constant 0 : index
    %413 = vector.load %arg14[%c0_474, %c7_475, %c1_476, %c0_477] : memref<2x8x8x128xf32, #tpu.memory_space<vmem>>, vector<2x1x1x128xf32>
    %414 = vector.shape_cast %413 : vector<2x1x1x128xf32> to vector<2x128xf32>
    %415 = arith.maximumf %412, %414 : vector<2x128xf32>
    %416 = arith.maximumf %410, %415 : vector<2x128xf32>
    %c12_478 = arith.constant 12 : index
    %c0_479 = arith.constant 0 : index
    %c0_480 = arith.constant 0 : index
    %417 = vector.load %arg6[%c12_478, %c0_479, %c0_480] : memref<16x128x128xf32, #tpu.memory_space<vmem>>, vector<1x128x128xf32>
    %418 = vector.shape_cast %417 : vector<1x128x128xf32> to vector<128x128xf32>
    %cst_481 = arith.constant dense<0.000000e+00> : vector<2x128xf32>
    %419 = tpu.matmul %416, %418, %cst_481 {dimension_numbers = #tpu.dot_dimension_numbers<[1], [0], [0], [1], [0, 0, 1, 1], [], []>} : vector<2x128xf32>, vector<128x128xf32>, vector<2x128xf32> -> vector<2x128xf32>
    %420 = arith.addf %405, %419 : vector<2x128xf32>
    %c0_482 = arith.constant 0 : index
    %c6_483 = arith.constant 6 : index
    %c2_484 = arith.constant 2 : index
    %c0_485 = arith.constant 0 : index
    %421 = vector.load %arg14[%c0_482, %c6_483, %c2_484, %c0_485] : memref<2x8x8x128xf32, #tpu.memory_space<vmem>>, vector<2x1x1x128xf32>
    %422 = vector.shape_cast %421 : vector<2x1x1x128xf32> to vector<2x128xf32>
    %c0_486 = arith.constant 0 : index
    %c6_487 = arith.constant 6 : index
    %c3_488 = arith.constant 3 : index
    %c0_489 = arith.constant 0 : index
    %423 = vector.load %arg14[%c0_486, %c6_487, %c3_488, %c0_489] : memref<2x8x8x128xf32, #tpu.memory_space<vmem>>, vector<2x1x1x128xf32>
    %424 = vector.shape_cast %423 : vector<2x1x1x128xf32> to vector<2x128xf32>
    %425 = arith.maximumf %422, %424 : vector<2x128xf32>
    %c0_490 = arith.constant 0 : index
    %c7_491 = arith.constant 7 : index
    %c2_492 = arith.constant 2 : index
    %c0_493 = arith.constant 0 : index
    %426 = vector.load %arg14[%c0_490, %c7_491, %c2_492, %c0_493] : memref<2x8x8x128xf32, #tpu.memory_space<vmem>>, vector<2x1x1x128xf32>
    %427 = vector.shape_cast %426 : vector<2x1x1x128xf32> to vector<2x128xf32>
    %c0_494 = arith.constant 0 : index
    %c7_495 = arith.constant 7 : index
    %c3_496 = arith.constant 3 : index
    %c0_497 = arith.constant 0 : index
    %428 = vector.load %arg14[%c0_494, %c7_495, %c3_496, %c0_497] : memref<2x8x8x128xf32, #tpu.memory_space<vmem>>, vector<2x1x1x128xf32>
    %429 = vector.shape_cast %428 : vector<2x1x1x128xf32> to vector<2x128xf32>
    %430 = arith.maximumf %427, %429 : vector<2x128xf32>
    %431 = arith.maximumf %425, %430 : vector<2x128xf32>
    %c13_498 = arith.constant 13 : index
    %c0_499 = arith.constant 0 : index
    %c0_500 = arith.constant 0 : index
    %432 = vector.load %arg6[%c13_498, %c0_499, %c0_500] : memref<16x128x128xf32, #tpu.memory_space<vmem>>, vector<1x128x128xf32>
    %433 = vector.shape_cast %432 : vector<1x128x128xf32> to vector<128x128xf32>
    %cst_501 = arith.constant dense<0.000000e+00> : vector<2x128xf32>
    %434 = tpu.matmul %431, %433, %cst_501 {dimension_numbers = #tpu.dot_dimension_numbers<[1], [0], [0], [1], [0, 0, 1, 1], [], []>} : vector<2x128xf32>, vector<128x128xf32>, vector<2x128xf32> -> vector<2x128xf32>
    %435 = arith.addf %420, %434 : vector<2x128xf32>
    %c0_502 = arith.constant 0 : index
    %c6_503 = arith.constant 6 : index
    %c4_504 = arith.constant 4 : index
    %c0_505 = arith.constant 0 : index
    %436 = vector.load %arg14[%c0_502, %c6_503, %c4_504, %c0_505] : memref<2x8x8x128xf32, #tpu.memory_space<vmem>>, vector<2x1x1x128xf32>
    %437 = vector.shape_cast %436 : vector<2x1x1x128xf32> to vector<2x128xf32>
    %c0_506 = arith.constant 0 : index
    %c6_507 = arith.constant 6 : index
    %c5_508 = arith.constant 5 : index
    %c0_509 = arith.constant 0 : index
    %438 = vector.load %arg14[%c0_506, %c6_507, %c5_508, %c0_509] : memref<2x8x8x128xf32, #tpu.memory_space<vmem>>, vector<2x1x1x128xf32>
    %439 = vector.shape_cast %438 : vector<2x1x1x128xf32> to vector<2x128xf32>
    %440 = arith.maximumf %437, %439 : vector<2x128xf32>
    %c0_510 = arith.constant 0 : index
    %c7_511 = arith.constant 7 : index
    %c4_512 = arith.constant 4 : index
    %c0_513 = arith.constant 0 : index
    %441 = vector.load %arg14[%c0_510, %c7_511, %c4_512, %c0_513] : memref<2x8x8x128xf32, #tpu.memory_space<vmem>>, vector<2x1x1x128xf32>
    %442 = vector.shape_cast %441 : vector<2x1x1x128xf32> to vector<2x128xf32>
    %c0_514 = arith.constant 0 : index
    %c7_515 = arith.constant 7 : index
    %c5_516 = arith.constant 5 : index
    %c0_517 = arith.constant 0 : index
    %443 = vector.load %arg14[%c0_514, %c7_515, %c5_516, %c0_517] : memref<2x8x8x128xf32, #tpu.memory_space<vmem>>, vector<2x1x1x128xf32>
    %444 = vector.shape_cast %443 : vector<2x1x1x128xf32> to vector<2x128xf32>
    %445 = arith.maximumf %442, %444 : vector<2x128xf32>
    %446 = arith.maximumf %440, %445 : vector<2x128xf32>
    %c14_518 = arith.constant 14 : index
    %c0_519 = arith.constant 0 : index
    %c0_520 = arith.constant 0 : index
    %447 = vector.load %arg6[%c14_518, %c0_519, %c0_520] : memref<16x128x128xf32, #tpu.memory_space<vmem>>, vector<1x128x128xf32>
    %448 = vector.shape_cast %447 : vector<1x128x128xf32> to vector<128x128xf32>
    %cst_521 = arith.constant dense<0.000000e+00> : vector<2x128xf32>
    %449 = tpu.matmul %446, %448, %cst_521 {dimension_numbers = #tpu.dot_dimension_numbers<[1], [0], [0], [1], [0, 0, 1, 1], [], []>} : vector<2x128xf32>, vector<128x128xf32>, vector<2x128xf32> -> vector<2x128xf32>
    %450 = arith.addf %435, %449 : vector<2x128xf32>
    %c0_522 = arith.constant 0 : index
    %c6_523 = arith.constant 6 : index
    %c6_524 = arith.constant 6 : index
    %c0_525 = arith.constant 0 : index
    %451 = vector.load %arg14[%c0_522, %c6_523, %c6_524, %c0_525] : memref<2x8x8x128xf32, #tpu.memory_space<vmem>>, vector<2x1x1x128xf32>
    %452 = vector.shape_cast %451 : vector<2x1x1x128xf32> to vector<2x128xf32>
    %c0_526 = arith.constant 0 : index
    %c6_527 = arith.constant 6 : index
    %c7_528 = arith.constant 7 : index
    %c0_529 = arith.constant 0 : index
    %453 = vector.load %arg14[%c0_526, %c6_527, %c7_528, %c0_529] : memref<2x8x8x128xf32, #tpu.memory_space<vmem>>, vector<2x1x1x128xf32>
    %454 = vector.shape_cast %453 : vector<2x1x1x128xf32> to vector<2x128xf32>
    %455 = arith.maximumf %452, %454 : vector<2x128xf32>
    %c0_530 = arith.constant 0 : index
    %c7_531 = arith.constant 7 : index
    %c6_532 = arith.constant 6 : index
    %c0_533 = arith.constant 0 : index
    %456 = vector.load %arg14[%c0_530, %c7_531, %c6_532, %c0_533] : memref<2x8x8x128xf32, #tpu.memory_space<vmem>>, vector<2x1x1x128xf32>
    %457 = vector.shape_cast %456 : vector<2x1x1x128xf32> to vector<2x128xf32>
    %c0_534 = arith.constant 0 : index
    %c7_535 = arith.constant 7 : index
    %c7_536 = arith.constant 7 : index
    %c0_537 = arith.constant 0 : index
    %458 = vector.load %arg14[%c0_534, %c7_535, %c7_536, %c0_537] : memref<2x8x8x128xf32, #tpu.memory_space<vmem>>, vector<2x1x1x128xf32>
    %459 = vector.shape_cast %458 : vector<2x1x1x128xf32> to vector<2x128xf32>
    %460 = arith.maximumf %457, %459 : vector<2x128xf32>
    %461 = arith.maximumf %455, %460 : vector<2x128xf32>
    %c15_538 = arith.constant 15 : index
    %c0_539 = arith.constant 0 : index
    %c0_540 = arith.constant 0 : index
    %462 = vector.load %arg6[%c15_538, %c0_539, %c0_540] : memref<16x128x128xf32, #tpu.memory_space<vmem>>, vector<1x128x128xf32>
    %463 = vector.shape_cast %462 : vector<1x128x128xf32> to vector<128x128xf32>
    %cst_541 = arith.constant dense<0.000000e+00> : vector<2x128xf32>
    %464 = tpu.matmul %461, %463, %cst_541 {dimension_numbers = #tpu.dot_dimension_numbers<[1], [0], [0], [1], [0, 0, 1, 1], [], []>} : vector<2x128xf32>, vector<128x128xf32>, vector<2x128xf32> -> vector<2x128xf32>
    %465 = arith.addf %450, %464 : vector<2x128xf32>
    %cst_542 = arith.constant 0.000000e+00 : f32
    %466 = vector.broadcast %cst_542 : f32 to vector<2x128xf32>
    %467 = arith.maximumf %465, %466 : vector<2x128xf32>
    %c0_543 = arith.constant 0 : index
    %c0_544 = arith.constant 0 : index
    %468 = vector.load %arg8[%c0_543, %c0_544] : memref<128x128xf32, #tpu.memory_space<vmem>>, vector<128x128xf32>
    %cst_545 = arith.constant dense<0.000000e+00> : vector<2x128xf32>
    %469 = tpu.matmul %467, %468, %cst_545 {dimension_numbers = #tpu.dot_dimension_numbers<[1], [0], [0], [1], [0, 0, 1, 1], [], []>} : vector<2x128xf32>, vector<128x128xf32>, vector<2x128xf32> -> vector<2x128xf32>
    %c0_546 = arith.constant 0 : index
    %c0_547 = arith.constant 0 : index
    %470 = vector.load %arg9[%c0_546, %c0_547] : memref<1x128xf32, #tpu.memory_space<vmem>>, vector<1x128xf32>
    %471 = vector.broadcast %470 : vector<1x128xf32> to vector<2x128xf32>
    %472 = arith.addf %469, %471 : vector<2x128xf32>
    %cst_548 = arith.constant 0.000000e+00 : f32
    %473 = vector.broadcast %cst_548 : f32 to vector<2x128xf32>
    %474 = arith.maximumf %472, %473 : vector<2x128xf32>
    %c0_549 = arith.constant 0 : index
    %c0_550 = arith.constant 0 : index
    %475 = vector.load %arg10[%c0_549, %c0_550] : memref<128x128xf32, #tpu.memory_space<vmem>>, vector<128x128xf32>
    %cst_551 = arith.constant dense<0.000000e+00> : vector<2x128xf32>
    %476 = tpu.matmul %474, %475, %cst_551 {dimension_numbers = #tpu.dot_dimension_numbers<[1], [0], [0], [1], [0, 0, 1, 1], [], []>} : vector<2x128xf32>, vector<128x128xf32>, vector<2x128xf32> -> vector<2x128xf32>
    %c0_552 = arith.constant 0 : index
    %c0_553 = arith.constant 0 : index
    %477 = vector.load %arg11[%c0_552, %c0_553] : memref<1x128xf32, #tpu.memory_space<vmem>>, vector<1x128xf32>
    %478 = vector.broadcast %477 : vector<1x128xf32> to vector<2x128xf32>
    %479 = arith.addf %476, %478 : vector<2x128xf32>
    %c0_554 = arith.constant 0 : index
    %c0_555 = arith.constant 0 : index
    %480 = vector.load %arg12[%c0_554, %c0_555] : memref<2x128xf32, #tpu.memory_space<vmem>>, vector<2x128xf32>
    tpu.vector_store %arg12[%c0_554, %c0_555], %479 {strides = array<i32>} : memref<2x128xf32, #tpu.memory_space<vmem>>, vector<2x128xf32>,
    return
  }
  func.func @transform_0(%arg0: i32) -> (i32, i32) {
    %c0_i32 = arith.constant 0 : i32
    %c0_i32_0 = arith.constant 0 : i32
    %c0_i32_1 = arith.constant 0 : i32
    return %c0_i32, %c0_i32_0 : i32, i32
  }
  func.func @transform_1(%arg0: i32) -> (i32, i32) {
    %c0_i32 = arith.constant 0 : i32
    %c0_i32_0 = arith.constant 0 : i32
    %c0_i32_1 = arith.constant 0 : i32
    return %c0_i32, %c0_i32_0 : i32, i32
  }
  func.func @transform_2(%arg0: i32) -> (i32, i32) {
    %c0_i32 = arith.constant 0 : i32
    %c0_i32_0 = arith.constant 0 : i32
    %c0_i32_1 = arith.constant 0 : i32
    return %c0_i32, %c0_i32_0 : i32, i32
  }
  func.func @transform_3(%arg0: i32) -> (i32, i32, i32) {
    %c0_i32 = arith.constant 0 : i32
    %c0_i32_0 = arith.constant 0 : i32
    %c0_i32_1 = arith.constant 0 : i32
    %c0_i32_2 = arith.constant 0 : i32
    return %c0_i32, %c0_i32_0, %c0_i32_1 : i32, i32, i32
  }
  func.func @transform_4(%arg0: i32) -> (i32, i32) {
    %c0_i32 = arith.constant 0 : i32
    %c0_i32_0 = arith.constant 0 : i32
    %c0_i32_1 = arith.constant 0 : i32
    return %c0_i32, %c0_i32_0 : i32, i32
  }
  func.func @transform_5(%arg0: i32) -> (i32, i32, i32) {
    %c0_i32 = arith.constant 0 : i32
    %c0_i32_0 = arith.constant 0 : i32
    %c0_i32_1 = arith.constant 0 : i32
    %c0_i32_2 = arith.constant 0 : i32
    return %c0_i32, %c0_i32_0, %c0_i32_1 : i32, i32, i32
  }
  func.func @transform_6(%arg0: i32) -> (i32, i32) {
    %c0_i32 = arith.constant 0 : i32
    %c0_i32_0 = arith.constant 0 : i32
    %c0_i32_1 = arith.constant 0 : i32
    return %c0_i32, %c0_i32_0 : i32, i32
  }
  func.func @transform_7(%arg0: i32) -> (i32, i32) {
    %c0_i32 = arith.constant 0 : i32
    %c0_i32_0 = arith.constant 0 : i32
    %c0_i32_1 = arith.constant 0 : i32
    return %c0_i32, %c0_i32_0 : i32, i32
  }
  func.func @transform_8(%arg0: i32) -> (i32, i32) {
    %c0_i32 = arith.constant 0 : i32
    %c0_i32_0 = arith.constant 0 : i32
    %c0_i32_1 = arith.constant 0 : i32
    return %c0_i32, %c0_i32_0 : i32, i32
  }
  func.func @transform_9(%arg0: i32) -> (i32, i32) {
    %c0_i32 = arith.constant 0 : i32
    %c0_i32_0 = arith.constant 0 : i32
    %c0_i32_1 = arith.constant 0 : i32
    return %c0_i32, %c0_i32_0 : i32, i32
  }
  func.func @transform_10(%arg0: i32) -> (i32, i32) {
    %c0_i32 = arith.constant 0 : i32
    %c0_i32_0 = arith.constant 0 : i32
    %c0_i32_1 = arith.constant 0 : i32
    return %c0_i32, %c0_i32_0 : i32, i32
  }
  func.func @transform_11(%arg0: i32) -> (i32, i32) {
    %c0_i32 = arith.constant 0 : i32
    %c0_i32_0 = arith.constant 0 : i32
    %c0_i32_1 = arith.constant 0 : i32
    return %c0_i32, %c0_i32_0 : i32, i32
  }
}

</mosaic_0001>

<llo_original>
// kernel: lenet_forward.1
$region0: #{lenet_forward.1}
  #allocation0 [shape = 'u32[]', space=smem, size = 0x4, offset = 0x4, fixed_abs, tag = 'smem constant byte address 0x4 - core index']
  #allocation1 [shape = 'u32[144,128]{1,0:T(1,128)}', space=vmem, size = 0x12000, scoped, tag = 'internal scratch']
  #allocation2 [shape = 'f32[2,12,16,128]{3,2,1,0:T(8,128)}', space=vmem, size = 0x30000, scoped, tag = 'scratch operand']
  #allocation3 [shape = 'f32[2,8,8,128]{3,2,1,0:T(8,128)}', space=vmem, size = 0x10000, scoped, tag = 'scratch operand']
  %s0 = inlined_call_operand.vmem [shape: f32[1536,32], index: 0, kind: input, shape index: {}]
  %s1 = inlined_call_operand.vmem [shape: f32[32,128], index: 1, kind: input, shape index: {}]
  %s2 = inlined_call_operand.vmem [shape: f32[1,128], index: 2, kind: input, shape index: {}]
  %s3 = inlined_call_operand.vmem [shape: f32[25,128,128], index: 3, kind: input, shape index: {}]
  %s4 = inlined_call_operand.vmem [shape: f32[1,128], index: 4, kind: input, shape index: {}]
  %s5 = inlined_call_operand.vmem [shape: f32[16,128,128], index: 5, kind: input, shape index: {}]
  %s6 = inlined_call_operand.vmem [shape: f32[1,128], index: 6, kind: input, shape index: {}]
  %s7 = inlined_call_operand.vmem [shape: f32[128,128], index: 7, kind: input, shape index: {}]
  %s8 = inlined_call_operand.vmem [shape: f32[1,128], index: 8, kind: input, shape index: {}]
  %s9 = inlined_call_operand.vmem [shape: f32[128,128], index: 9, kind: input, shape index: {}]
  %s10 = inlined_call_operand.vmem [shape: f32[1,128], index: 10, kind: input, shape index: {}]
  %s11 = inlined_call_operand.hbm [shape: f32[2,128], index: 11, kind: output, shape index: {}]
  %s12 = sld [smem:[#allocation0]]
  $region54: #{lenet_forward.1} parent=0
    _
  %s14 = ssub.s32 1, %s12
  %s15 = scalar_select 0, %s14, %s12
  $region1: #{lenet_forward.1} parent=0
    #allocation4 [shape = 'u8[1024]{0}', space=vmem, size = 0x400, scoped, tag = 'output window, operand 0, single buffered']
    #allocation5 [shape = 's32[1]{0}', space=sflag, size = 0x4, scoped, tag = 'scoped memory for lenet_forward.1']
    %16 = vsyncpa [#allocation5], 0
    // Predicated region
    $region2: #{lenet_forward.1} parent=1 // pred_check
      _
    $region3: #{lenet_forward.1} parent=1 // pred_check_branch
      %18 = sbr.rel (0) target = $region5
    $region4: #{lenet_forward.1} parent=1 // pred_region
      _
    $region5: #{lenet_forward.1} parent=1 // pred_fallthru
      _
    // Predicated region
    $region6: #{lenet_forward.1} parent=1 // pred_check
      _
    $region7: #{lenet_forward.1} parent=1 // pred_check_branch
      %20 = sbr.rel (0) target = $region9
    $region8: #{lenet_forward.1} parent=1 // pred_region
      _
    $region9: #{lenet_forward.1} parent=1 // pred_fallthru
      _
    // Predicated region
    $region10: #{lenet_forward.1} parent=1 // pred_check
      _
    $region11: #{lenet_forward.1} parent=1 // pred_check_branch
      %22 = sbr.rel (0) target = $region13
    $region12: #{lenet_forward.1} parent=1 // pred_region
      _
    $region13: #{lenet_forward.1} parent=1 // pred_fallthru
      _
    // Predicated region
    $region14: #{lenet_forward.1} parent=1 // pred_check
      _
    $region15: #{lenet_forward.1} parent=1 // pred_check_branch
      %24 = sbr.rel (0) target = $region17
    $region16: #{lenet_forward.1} parent=1 // pred_region
      _
    $region17: #{lenet_forward.1} parent=1 // pred_fallthru
      _
    // Predicated region
    $region18: #{lenet_forward.1} parent=1 // pred_check
      _
    $region19: #{lenet_forward.1} parent=1 // pred_check_branch
      %26 = sbr.rel (0) target = $region21
    $region20: #{lenet_forward.1} parent=1 // pred_region
      _
    $region21: #{lenet_forward.1} parent=1 // pred_fallthru
      _
    // Predicated region
    $region22: #{lenet_forward.1} parent=1 // pred_check
      _
    $region23: #{lenet_forward.1} parent=1 // pred_check_branch
      %28 = sbr.rel (0) target = $region25
    $region24: #{lenet_forward.1} parent=1 // pred_region
      _
    $region25: #{lenet_forward.1} parent=1 // pred_fallthru
      _
    // Predicated region
    $region26: #{lenet_forward.1} parent=1 // pred_check
      _
    $region27: #{lenet_forward.1} parent=1 // pred_check_branch
      %30 = sbr.rel (0) target = $region29
    $region28: #{lenet_forward.1} parent=1 // pred_region
      _
    $region29: #{lenet_forward.1} parent=1 // pred_fallthru
      _
    // Predicated region
    $region30: #{lenet_forward.1} parent=1 // pred_check
      _
    $region31: #{lenet_forward.1} parent=1 // pred_check_branch
      %32 = sbr.rel (0) target = $region33
    $region32: #{lenet_forward.1} parent=1 // pred_region
      _
    $region33: #{lenet_forward.1} parent=1 // pred_fallthru
      _
    // Predicated region
    $region34: #{lenet_forward.1} parent=1 // pred_check
      _
    $region35: #{lenet_forward.1} parent=1 // pred_check_branch
      %34 = sbr.rel (0) target = $region37
    $region36: #{lenet_forward.1} parent=1 // pred_region
      _
    $region37: #{lenet_forward.1} parent=1 // pred_fallthru
      _
    // Predicated region
    $region38: #{lenet_forward.1} parent=1 // pred_check
      _
    $region39: #{lenet_forward.1} parent=1 // pred_check_branch
      %36 = sbr.rel (0) target = $region41
    $region40: #{lenet_forward.1} parent=1 // pred_region
      _
    $region41: #{lenet_forward.1} parent=1 // pred_fallthru
      _
    // Predicated region
    $region42: #{lenet_forward.1} parent=1 // pred_check
      _
    $region43: #{lenet_forward.1} parent=1 // pred_check_branch
      %38 = sbr.rel (0) target = $region45
    $region44: #{lenet_forward.1} parent=1 // pred_region
      _
    $region45: #{lenet_forward.1} parent=1 // pred_fallthru
      _
    %v39 = vld [vmem:[%s1] sm:$0xff]
    %v40 = vld [vmem:[%s1 + $0x8] sm:$0xff]
    %v41 = vld [vmem:[%s1 + $0x10] sm:$0xff]
    %v42 = vld [vmem:[%s1 + $0x18] sm:$0xff]
    %v43 = vld [vmem:[%s2] sm:$0x1]
    %v44 = vld [vmem:[%s0] sm:$0xff]
    %v45 = vld [vmem:[%s0 + $0x8] sm:$0xff]
    %v46 = vld [vmem:[%s0 + $0x10] sm:$0xff]
    %v47 = vld [vmem:[%s0 + $0x18] sm:$0xff]
    %v48 = vld [vmem:[%s0 + $0x20] sm:$0xff]
    %v49 = vld [vmem:[%s0 + $0x28] sm:$0xff]
    %v50 = vld [vmem:[%s0 + $0x30] sm:$0xff]
    %v51 = vld [vmem:[%s0 + $0x38] sm:$0xff]
    %v52 = vld [vmem:[%s0 + $0x40] sm:$0xff]
    %v53 = vld [vmem:[%s0 + $0x48] sm:$0xff]
    %v54 = vld [vmem:[%s0 + $0x50] sm:$0xff]
    %v55 = vld [vmem:[%s0 + $0x58] sm:$0xff]
    %v56 = vld [vmem:[%s0 + $0x60] sm:$0xff]
    %v57 = vld [vmem:[%s0 + $0x68] sm:$0xff]
    %v58 = vld [vmem:[%s0 + $0x70] sm:$0xff]
    %v59 = vld [vmem:[%s0 + $0x78] sm:$0xff]
    %v60 = vld [vmem:[%s0 + $0x80] sm:$0xff]
    %v61 = vld [vmem:[%s0 + $0x88] sm:$0xff]
    %v62 = vld [vmem:[%s0 + $0x90] sm:$0xff]
    %v63 = vld [vmem:[%s0 + $0x98] sm:$0xff]
    %v64 = vld [vmem:[%s0 + $0xa0] sm:$0xff]
    %v65 = vld [vmem:[%s0 + $0xa8] sm:$0xff]
    %v66 = vld [vmem:[%s0 + $0xb0] sm:$0xff]
    %v67 = vld [vmem:[%s0 + $0xb8] sm:$0xff]
    %v69 = vlaneseq
    %v70 = vshrl.u32 %v69, 7
    %v71 = vsub.s32 0, %v70
    %v72 = vrot.slane %v43, %v71
    %vm74 = vcmask 261120
    %v76 = vsel %vm74, %v44, 0
    %v79 = vsel %vm74, %v45, 0
    %v82 = vsel %vm74, %v46, 0
    %v85 = vsel %vm74, %v47, 0
    %v88 = vsel %vm74, %v48, 0
    %v91 = vsel %vm74, %v49, 0
    %v94 = vsel %vm74, %v50, 0
    %v97 = vsel %vm74, %v51, 0
    %v100 = vsel %vm74, %v52, 0
    %v103 = vsel %vm74, %v53, 0
    %v106 = vsel %vm74, %v54, 0
    %v109 = vsel %vm74, %v55, 0
    %v112 = vsel %vm74, %v56, 0
    %v115 = vsel %vm74, %v57, 0
    %v118 = vsel %vm74, %v58, 0
    %v121 = vsel %vm74, %v59, 0
    %v124 = vsel %vm74, %v60, 0
    %v127 = vsel %vm74, %v61, 0
    %v130 = vsel %vm74, %v62, 0
    %v133 = vsel %vm74, %v63, 0
    %v136 = vsel %vm74, %v64, 0
    %v139 = vsel %vm74, %v65, 0
    %v142 = vsel %vm74, %v66, 0
    %v145 = vsel %vm74, %v67, 0
    %147 = vmatprep.subr.mxu0 0.0
    %148 = vmatpush1.msra.mxu0 %v39
    %149 = vmatprep.subr.mxu0 0.0
    %150 = vmatpush1.msra.mxu0 %v40
    %151 = vmatprep.subr.mxu0 0.0
    %152 = vmatpush1.msra.mxu0 %v41
    %153 = vmatprep.subr.mxu0 0.0
    %154 = vmatpush1.msra.mxu0 %v42
    %155 = vmatprep.subr.mxu0 0.0
    %156 = vmatpush1.msra.mxu0 0.0
    %157 = vmatprep.subr.mxu0 0.0
    %158 = vmatpush1.msra.mxu0 0.0
    %159 = vmatprep.subr.mxu0 0.0
    %160 = vmatpush1.msra.mxu0 0.0
    %161 = vmatprep.subr.mxu0 0.0
    %162 = vmatpush1.msra.mxu0 0.0
    %163 = vmatprep.subr.mxu0 0.0
    %164 = vmatpush1.msra.mxu0 0.0
    %165 = vmatprep.subr.mxu0 0.0
    %166 = vmatpush1.msra.mxu0 0.0
    %167 = vmatprep.subr.mxu0 0.0
    %168 = vmatpush1.msra.mxu0 0.0
    %169 = vmatprep.subr.mxu0 0.0
    %170 = vmatpush1.msra.mxu0 0.0
    %171 = vmatprep.subr.mxu0 0.0
    %172 = vmatpush1.msra.mxu0 0.0
    %173 = vmatprep.subr.mxu0 0.0
    %174 = vmatpush1.msra.mxu0 0.0
    %175 = vmatprep.subr.mxu0 0.0
    %176 = vmatpush1.msra.mxu0 0.0
    %177 = vmatprep.subr.mxu0 0.0
    %178 = vmatpush1.msra.mxu0 0.0
    %179 = vmatprep.subr.mxu0 0.0
    %180 = vmatpush1.msra.mxu0 0.0
    %181 = vmatprep.subr.mxu0 0.0
    %182 = vmatpush1.msra.mxu0 0.0
    %183 = vmatprep.subr.mxu0 0.0
    %184 = vmatpush1.msra.mxu0 0.0
    %185 = vmatprep.subr.mxu0 0.0
    %186 = vmatpush1.msra.mxu0 0.0
    %187 = vmatprep.subr.mxu0 0.0
    %188 = vmatpush1.msra.mxu0 0.0
    %189 = vmatprep.subr.mxu0 0.0
    %190 = vmatpush1.msra.mxu0 0.0
    %191 = vmatprep.subr.mxu0 0.0
    %192 = vmatpush1.msra.mxu0 0.0
    %193 = vmatprep.subr.mxu0 0.0
    %194 = vmatpush1.msra.mxu0 0.0
    %195 = vmatprep.subr.mxu0 0.0
    %196 = vmatpush1.msra.mxu0 0.0
    %197 = vmatprep.subr.mxu0 0.0
    %198 = vmatpush1.msra.mxu0 0.0
    %199 = vmatprep.subr.mxu0 0.0
    %200 = vmatpush1.msra.mxu0 0.0
    %201 = vmatprep.subr.mxu0 0.0
    %202 = vmatpush1.msra.mxu0 0.0
    %203 = vmatprep.subr.mxu0 0.0
    %204 = vmatpush1.msra.mxu0 0.0
    %205 = vmatprep.subr.mxu0 0.0
    %206 = vmatpush1.msra.mxu0 0.0
    %207 = vmatprep.subr.mxu0 0.0
    %208 = vmatpush1.msra.mxu0 0.0
    %209 = vmatprep.subr.mxu0 0.0
    %210 = vmatpush1.msra.mxu0 0.0
    %211 = vmatprep.mubr.f32.mxu0 0.0
    %212 = vmatmul.mubr.f32.gmra.mrb[0].mxu0 %v76
    %v213 = vpop.f32.mrb[0].mxu0
    %v214 = vadd.f32 %v72, %v213
    %v215 = vpop.f32.mrb[0].mxu0
    %216 = vmatprep.mubr.f32.mxu0 0.0
    %217 = vmatmul.mubr.f32.gmra.mrb[0].mxu0 %v79
    %v218 = vpop.f32.mrb[0].mxu0
    %v219 = vadd.f32 %v72, %v218
    %v220 = vpop.f32.mrb[0].mxu0
    %221 = vmatprep.mubr.f32.mxu0 0.0
    %222 = vmatmul.mubr.f32.gmra.mrb[0].mxu0 %v82
    %v223 = vpop.f32.mrb[0].mxu0
    %v224 = vadd.f32 %v72, %v223
    %v225 = vpop.f32.mrb[0].mxu0
    %226 = vmatprep.mubr.f32.mxu0 0.0
    %227 = vmatmul.mubr.f32.gmra.mrb[0].mxu0 %v85
    %v228 = vpop.f32.mrb[0].mxu0
    %v229 = vadd.f32 %v72, %v228
    %v230 = vpop.f32.mrb[0].mxu0
    %231 = vmatprep.mubr.f32.mxu0 0.0
    %232 = vmatmul.mubr.f32.gmra.mrb[0].mxu0 %v88
    %v233 = vpop.f32.mrb[0].mxu0
    %v234 = vadd.f32 %v72, %v233
    %v235 = vpop.f32.mrb[0].mxu0
    %236 = vmatprep.mubr.f32.mxu0 0.0
    %237 = vmatmul.mubr.f32.gmra.mrb[0].mxu0 %v91
    %v238 = vpop.f32.mrb[0].mxu0
    %v239 = vadd.f32 %v72, %v238
    %v240 = vpop.f32.mrb[0].mxu0
    %241 = vmatprep.mubr.f32.mxu0 0.0
    %242 = vmatmul.mubr.f32.gmra.mrb[0].mxu0 %v94
    %v243 = vpop.f32.mrb[0].mxu0
    %v244 = vadd.f32 %v72, %v243
    %v245 = vpop.f32.mrb[0].mxu0
    %246 = vmatprep.mubr.f32.mxu0 0.0
    %247 = vmatmul.mubr.f32.gmra.mrb[0].mxu0 %v97
    %v248 = vpop.f32.mrb[0].mxu0
    %v249 = vadd.f32 %v72, %v248
    %v250 = vpop.f32.mrb[0].mxu0
    %251 = vmatprep.mubr.f32.mxu0 0.0
    %252 = vmatmul.mubr.f32.gmra.mrb[0].mxu0 %v100
    %v253 = vpop.f32.mrb[0].mxu0
    %v254 = vadd.f32 %v72, %v253
    %v255 = vpop.f32.mrb[0].mxu0
    %256 = vmatprep.mubr.f32.mxu0 0.0
    %257 = vmatmul.mubr.f32.gmra.mrb[0].mxu0 %v103
    %v258 = vpop.f32.mrb[0].mxu0
    %v259 = vadd.f32 %v72, %v258
    %v260 = vpop.f32.mrb[0].mxu0
    %261 = vmatprep.mubr.f32.mxu0 0.0
    %262 = vmatmul.mubr.f32.gmra.mrb[0].mxu0 %v106
    %v263 = vpop.f32.mrb[0].mxu0
    %v264 = vadd.f32 %v72, %v263
    %v265 = vpop.f32.mrb[0].mxu0
    %266 = vmatprep.mubr.f32.mxu0 0.0
    %267 = vmatmul.mubr.f32.gmra.mrb[0].mxu0 %v109
    %v268 = vpop.f32.mrb[0].mxu0
    %v269 = vadd.f32 %v72, %v268
    %v270 = vpop.f32.mrb[0].mxu0
    %271 = vmatprep.mubr.f32.mxu0 0.0
    %272 = vmatmul.mubr.f32.gmra.mrb[0].mxu0 %v112
    %v273 = vpop.f32.mrb[0].mxu0
    %v274 = vadd.f32 %v72, %v273
    %v275 = vpop.f32.mrb[0].mxu0
    %276 = vmatprep.mubr.f32.mxu0 0.0
    %277 = vmatmul.mubr.f32.gmra.mrb[0].mxu0 %v115
    %v278 = vpop.f32.mrb[0].mxu0
    %v279 = vadd.f32 %v72, %v278
    %v280 = vpop.f32.mrb[0].mxu0
    %281 = vmatprep.mubr.f32.mxu0 0.0
    %282 = vmatmul.mubr.f32.gmra.mrb[0].mxu0 %v118
    %v283 = vpop.f32.mrb[0].mxu0
    %v284 = vadd.f32 %v72, %v283
    %v285 = vpop.f32.mrb[0].mxu0
    %286 = vmatprep.mubr.f32.mxu0 0.0
    %287 = vmatmul.mubr.f32.gmra.mrb[0].mxu0 %v121
    %v288 = vpop.f32.mrb[0].mxu0
    %v289 = vadd.f32 %v72, %v288
    %v290 = vpop.f32.mrb[0].mxu0
    %291 = vmatprep.mubr.f32.mxu0 0.0
    %292 = vmatmul.mubr.f32.gmra.mrb[0].mxu0 %v124
    %v293 = vpop.f32.mrb[0].mxu0
    %v294 = vadd.f32 %v72, %v293
    %v295 = vpop.f32.mrb[0].mxu0
    %296 = vmatprep.mubr.f32.mxu0 0.0
    %297 = vmatmul.mubr.f32.gmra.mrb[0].mxu0 %v127
    %v298 = vpop.f32.mrb[0].mxu0
    %v299 = vadd.f32 %v72, %v298
    %v300 = vpop.f32.mrb[0].mxu0
    %301 = vmatprep.mubr.f32.mxu0 0.0
    %302 = vmatmul.mubr.f32.gmra.mrb[0].mxu0 %v130
    %v303 = vpop.f32.mrb[0].mxu0
    %v304 = vadd.f32 %v72, %v303
    %v305 = vpop.f32.mrb[0].mxu0
    %306 = vmatprep.mubr.f32.mxu0 0.0
    %307 = vmatmul.mubr.f32.gmra.mrb[0].mxu0 %v133
    %v308 = vpop.f32.mrb[0].mxu0
    %v309 = vadd.f32 %v72, %v308
    %v310 = vpop.f32.mrb[0].mxu0
    %311 = vmatprep.mubr.f32.mxu0 0.0
    %312 = vmatmul.mubr.f32.gmra.mrb[0].mxu0 %v136
    %v313 = vpop.f32.mrb[0].mxu0
    %v314 = vadd.f32 %v72, %v313
    %v315 = vpop.f32.mrb[0].mxu0
    %316 = vmatprep.mubr.f32.mxu0 0.0
    %317 = vmatmul.mubr.f32.gmra.mrb[0].mxu0 %v139
    %v318 = vpop.f32.mrb[0].mxu0
    %v319 = vadd.f32 %v72, %v318
    %v320 = vpop.f32.mrb[0].mxu0
    %321 = vmatprep.mubr.f32.mxu0 0.0
    %322 = vmatmul.mubr.f32.gmra.mrb[0].mxu0 %v142
    %v323 = vpop.f32.mrb[0].mxu0
    %v324 = vadd.f32 %v72, %v323
    %v325 = vpop.f32.mrb[0].mxu0
    %326 = vmatprep.mubr.f32.mxu0 0.0
    %327 = vmatmul.mubr.f32.gmra.mrb[0].mxu0 %v145
    %v328 = vpop.f32.mrb[0].mxu0
    %v329 = vadd.f32 %v72, %v328
    %v330 = vpop.f32.mrb[0].mxu0
    %331 = vdwg.mxu0
    %v332 = vmax.f32 %v214, 0.0
    %v333 = vmax.f32 %v219, 0.0
    %v334 = vmax.f32 %v224, 0.0
    %v335 = vmax.f32 %v229, 0.0
    %v336 = vmax.f32 %v234, 0.0
    %v337 = vmax.f32 %v239, 0.0
    %v338 = vmax.f32 %v244, 0.0
    %v339 = vmax.f32 %v249, 0.0
    %v340 = vmax.f32 %v254, 0.0
    %v341 = vmax.f32 %v259, 0.0
    %v342 = vmax.f32 %v264, 0.0
    %v343 = vmax.f32 %v269, 0.0
    %v344 = vmax.f32 %v274, 0.0
    %v345 = vmax.f32 %v279, 0.0
    %v346 = vmax.f32 %v284, 0.0
    %v347 = vmax.f32 %v289, 0.0
    %v348 = vmax.f32 %v294, 0.0
    %v349 = vmax.f32 %v299, 0.0
    %v350 = vmax.f32 %v304, 0.0
    %v351 = vmax.f32 %v309, 0.0
    %v352 = vmax.f32 %v314, 0.0
    %v353 = vmax.f32 %v319, 0.0
    %v354 = vmax.f32 %v324, 0.0
    %v355 = vmax.f32 %v329, 0.0
    %v356 = vld [vmem:[%s0 + $0x180] sm:$0xff]
    %v357 = vld [vmem:[%s0 + $0x188] sm:$0xff]
    %v358 = vld [vmem:[%s0 + $0x190] sm:$0xff]
    %v359 = vld [vmem:[%s0 + $0x198] sm:$0xff]
    %v360 = vld [vmem:[%s0 + $0x1a0] sm:$0xff]
    %v361 = vld [vmem:[%s0 + $0x1a8] sm:$0xff]
    %v362 = vld [vmem:[%s0 + $0x1b0] sm:$0xff]
    %v363 = vld [vmem:[%s0 + $0x1b8] sm:$0xff]
    %v364 = vld [vmem:[%s0 + $0x1c0] sm:$0xff]
    %v365 = vld [vmem:[%s0 + $0x1c8] sm:$0xff]
    %v366 = vld [vmem:[%s0 + $0x1d0] sm:$0xff]
    %v367 = vld [vmem:[%s0 + $0x1d8] sm:$0xff]
    %v368 = vld [vmem:[%s0 + $0x1e0] sm:$0xff]
    %v369 = vld [vmem:[%s0 + $0x1e8] sm:$0xff]
    %v370 = vld [vmem:[%s0 + $0x1f0] sm:$0xff]
    %v371 = vld [vmem:[%s0 + $0x1f8] sm:$0xff]
    %v372 = vld [vmem:[%s0 + $0x200] sm:$0xff]
    %v373 = vld [vmem:[%s0 + $0x208] sm:$0xff]
    %v374 = vld [vmem:[%s0 + $0x210] sm:$0xff]
    %v375 = vld [vmem:[%s0 + $0x218] sm:$0xff]
    %v376 = vld [vmem:[%s0 + $0x220] sm:$0xff]
    %v377 = vld [vmem:[%s0 + $0x228] sm:$0xff]
    %v378 = vld [vmem:[%s0 + $0x230] sm:$0xff]
    %v379 = vld [vmem:[%s0 + $0x238] sm:$0xff]
    %v381 = vsel %vm74, %v356, 0
    %v384 = vsel %vm74, %v357, 0
    %v387 = vsel %vm74, %v358, 0
    %v390 = vsel %vm74, %v359, 0
    %v393 = vsel %vm74, %v360, 0
    %v396 = vsel %vm74, %v361, 0
    %v399 = vsel %vm74, %v362, 0
    %v402 = vsel %vm74, %v363, 0
    %v405 = vsel %vm74, %v364, 0
    %v408 = vsel %vm74, %v365, 0
    %v411 = vsel %vm74, %v366, 0
    %v414 = vsel %vm74, %v367, 0
    %v417 = vsel %vm74, %v368, 0
    %v420 = vsel %vm74, %v369, 0
    %v423 = vsel %vm74, %v370, 0
    %v426 = vsel %vm74, %v371, 0
    %v429 = vsel %vm74, %v372, 0
    %v432 = vsel %vm74, %v373, 0
    %v435 = vsel %vm74, %v374, 0
    %v438 = vsel %vm74, %v375, 0
    %v441 = vsel %vm74, %v376, 0
    %v444 = vsel %vm74, %v377, 0
    %v447 = vsel %vm74, %v378, 0
    %v450 = vsel %vm74, %v379, 0
    %452 = vmatprep.subr.mxu0 0.0
    %453 = vmatpush1.msra.mxu0 %v39
    %454 = vmatprep.subr.mxu0 0.0
    %455 = vmatpush1.msra.mxu0 %v40
    %456 = vmatprep.subr.mxu0 0.0
    %457 = vmatpush1.msra.mxu0 %v41
    %458 = vmatprep.subr.mxu0 0.0
    %459 = vmatpush1.msra.mxu0 %v42
    %460 = vmatprep.subr.mxu0 0.0
    %461 = vmatpush1.msra.mxu0 0.0
    %462 = vmatprep.subr.mxu0 0.0
    %463 = vmatpush1.msra.mxu0 0.0
    %464 = vmatprep.subr.mxu0 0.0
    %465 = vmatpush1.msra.mxu0 0.0
    %466 = vmatprep.subr.mxu0 0.0
    %467 = vmatpush1.msra.mxu0 0.0
    %468 = vmatprep.subr.mxu0 0.0
    %469 = vmatpush1.msra.mxu0 0.0
    %470 = vmatprep.subr.mxu0 0.0
    %471 = vmatpush1.msra.mxu0 0.0
    %472 = vmatprep.subr.mxu0 0.0
    %473 = vmatpush1.msra.mxu0 0.0
    %474 = vmatprep.subr.mxu0 0.0
    %475 = vmatpush1.msra.mxu0 0.0
    %476 = vmatprep.subr.mxu0 0.0
    %477 = vmatpush1.msra.mxu0 0.0
    %478 = vmatprep.subr.mxu0 0.0
    %479 = vmatpush1.msra.mxu0 0.0
    %480 = vmatprep.subr.mxu0 0.0
    %481 = vmatpush1.msra.mxu0 0.0
    %482 = vmatprep.subr.mxu0 0.0
    %483 = vmatpush1.msra.mxu0 0.0
    %484 = vmatprep.subr.mxu0 0.0
    %485 = vmatpush1.msra.mxu0 0.0
    %486 = vmatprep.subr.mxu0 0.0
    %487 = vmatpush1.msra.mxu0 0.0
    %488 = vmatprep.subr.mxu0 0.0
    %489 = vmatpush1.msra.mxu0 0.0
    %490 = vmatprep.subr.mxu0 0.0
    %491 = vmatpush1.msra.mxu0 0.0
    %492 = vmatprep.subr.mxu0 0.0
    %493 = vmatpush1.msra.mxu0 0.0
    %494 = vmatprep.subr.mxu0 0.0
    %495 = vmatpush1.msra.mxu0 0.0
    %496 = vmatprep.subr.mxu0 0.0
    %497 = vmatpush1.msra.mxu0 0.0
    %498 = vmatprep.subr.mxu0 0.0
    %499 = vmatpush1.msra.mxu0 0.0
    %500 = vmatprep.subr.mxu0 0.0
    %501 = vmatpush1.msra.mxu0 0.0
    %502 = vmatprep.subr.mxu0 0.0
    %503 = vmatpush1.msra.mxu0 0.0
    %504 = vmatprep.subr.mxu0 0.0
    %505 = vmatpush1.msra.mxu0 0.0
    %506 = vmatprep.subr.mxu0 0.0
    %507 = vmatpush1.msra.mxu0 0.0
    %508 = vmatprep.subr.mxu0 0.0
    %509 = vmatpush1.msra.mxu0 0.0
    %510 = vmatprep.subr.mxu0 0.0
    %511 = vmatpush1.msra.mxu0 0.0
    %512 = vmatprep.subr.mxu0 0.0
    %513 = vmatpush1.msra.mxu0 0.0
    %514 = vmatprep.subr.mxu0 0.0
    %515 = vmatpush1.msra.mxu0 0.0
    %516 = vmatprep.mubr.f32.mxu0 0.0
    %517 = vmatmul.mubr.f32.gmra.mrb[0].mxu0 %v381
    %v518 = vpop.f32.mrb[0].mxu0
    %v519 = vadd.f32 %v72, %v518
    %v520 = vpop.f32.mrb[0].mxu0
    %521 = vmatprep.mubr.f32.mxu0 0.0
    %522 = vmatmul.mubr.f32.gmra.mrb[0].mxu0 %v384
    %v523 = vpop.f32.mrb[0].mxu0
    %v524 = vadd.f32 %v72, %v523
    %v525 = vpop.f32.mrb[0].mxu0
    %526 = vmatprep.mubr.f32.mxu0 0.0
    %527 = vmatmul.mubr.f32.gmra.mrb[0].mxu0 %v387
    %v528 = vpop.f32.mrb[0].mxu0
    %v529 = vadd.f32 %v72, %v528
    %v530 = vpop.f32.mrb[0].mxu0
    %531 = vmatprep.mubr.f32.mxu0 0.0
    %532 = vmatmul.mubr.f32.gmra.mrb[0].mxu0 %v390
    %v533 = vpop.f32.mrb[0].mxu0
    %v534 = vadd.f32 %v72, %v533
    %v535 = vpop.f32.mrb[0].mxu0
    %536 = vmatprep.mubr.f32.mxu0 0.0
    %537 = vmatmul.mubr.f32.gmra.mrb[0].mxu0 %v393
    %v538 = vpop.f32.mrb[0].mxu0
    %v539 = vadd.f32 %v72, %v538
    %v540 = vpop.f32.mrb[0].mxu0
    %541 = vmatprep.mubr.f32.mxu0 0.0
    %542 = vmatmul.mubr.f32.gmra.mrb[0].mxu0 %v396
    %v543 = vpop.f32.mrb[0].mxu0
    %v544 = vadd.f32 %v72, %v543
    %v545 = vpop.f32.mrb[0].mxu0
    %546 = vmatprep.mubr.f32.mxu0 0.0
    %547 = vmatmul.mubr.f32.gmra.mrb[0].mxu0 %v399
    %v548 = vpop.f32.mrb[0].mxu0
    %v549 = vadd.f32 %v72, %v548
    %v550 = vpop.f32.mrb[0].mxu0
    %551 = vmatprep.mubr.f32.mxu0 0.0
    %552 = vmatmul.mubr.f32.gmra.mrb[0].mxu0 %v402
    %v553 = vpop.f32.mrb[0].mxu0
    %v554 = vadd.f32 %v72, %v553
    %v555 = vpop.f32.mrb[0].mxu0
    %556 = vmatprep.mubr.f32.mxu0 0.0
    %557 = vmatmul.mubr.f32.gmra.mrb[0].mxu0 %v405
    %v558 = vpop.f32.mrb[0].mxu0
    %v559 = vadd.f32 %v72, %v558
    %v560 = vpop.f32.mrb[0].mxu0
    %561 = vmatprep.mubr.f32.mxu0 0.0
    %562 = vmatmul.mubr.f32.gmra.mrb[0].mxu0 %v408
    %v563 = vpop.f32.mrb[0].mxu0
    %v564 = vadd.f32 %v72, %v563
    %v565 = vpop.f32.mrb[0].mxu0
    %566 = vmatprep.mubr.f32.mxu0 0.0
    %567 = vmatmul.mubr.f32.gmra.mrb[0].mxu0 %v411
    %v568 = vpop.f32.mrb[0].mxu0
    %v569 = vadd.f32 %v72, %v568
    %v570 = vpop.f32.mrb[0].mxu0
    %571 = vmatprep.mubr.f32.mxu0 0.0
    %572 = vmatmul.mubr.f32.gmra.mrb[0].mxu0 %v414
    %v573 = vpop.f32.mrb[0].mxu0
    %v574 = vadd.f32 %v72, %v573
    %v575 = vpop.f32.mrb[0].mxu0
    %576 = vmatprep.mubr.f32.mxu0 0.0
    %577 = vmatmul.mubr.f32.gmra.mrb[0].mxu0 %v417
    %v578 = vpop.f32.mrb[0].mxu0
    %v579 = vadd.f32 %v72, %v578
    %v580 = vpop.f32.mrb[0].mxu0
    %581 = vmatprep.mubr.f32.mxu0 0.0
    %582 = vmatmul.mubr.f32.gmra.mrb[0].mxu0 %v420
    %v583 = vpop.f32.mrb[0].mxu0
    %v584 = vadd.f32 %v72, %v583
    %v585 = vpop.f32.mrb[0].mxu0
    %586 = vmatprep.mubr.f32.mxu0 0.0
    %587 = vmatmul.mubr.f32.gmra.mrb[0].mxu0 %v423
    %v588 = vpop.f32.mrb[0].mxu0
    %v589 = vadd.f32 %v72, %v588
    %v590 = vpop.f32.mrb[0].mxu0
    %591 = vmatprep.mubr.f32.mxu0 0.0
    %592 = vmatmul.mubr.f32.gmra.mrb[0].mxu0 %v426
    %v593 = vpop.f32.mrb[0].mxu0
    %v594 = vadd.f32 %v72, %v593
    %v595 = vpop.f32.mrb[0].mxu0
    %596 = vmatprep.mubr.f32.mxu0 0.0
    %597 = vmatmul.mubr.f32.gmra.mrb[0].mxu0 %v429
    %v598 = vpop.f32.mrb[0].mxu0
    %v599 = vadd.f32 %v72, %v598
    %v600 = vpop.f32.mrb[0].mxu0
    %601 = vmatprep.mubr.f32.mxu0 0.0
    %602 = vmatmul.mubr.f32.gmra.mrb[0].mxu0 %v432
    %v603 = vpop.f32.mrb[0].mxu0
    %v604 = vadd.f32 %v72, %v603
    %v605 = vpop.f32.mrb[0].mxu0
    %606 = vmatprep.mubr.f32.mxu0 0.0
    %607 = vmatmul.mubr.f32.gmra.mrb[0].mxu0 %v435
    %v608 = vpop.f32.mrb[0].mxu0
    %v609 = vadd.f32 %v72, %v608
    %v610 = vpop.f32.mrb[0].mxu0
    %611 = vmatprep.mubr.f32.mxu0 0.0
    %612 = vmatmul.mubr.f32.gmra.mrb[0].mxu0 %v438
    %v613 = vpop.f32.mrb[0].mxu0
    %v614 = vadd.f32 %v72, %v613
    %v615 = vpop.f32.mrb[0].mxu0
    %616 = vmatprep.mubr.f32.mxu0 0.0
    %617 = vmatmul.mubr.f32.gmra.mrb[0].mxu0 %v441
    %v618 = vpop.f32.mrb[0].mxu0
    %v619 = vadd.f32 %v72, %v618
    %v620 = vpop.f32.mrb[0].mxu0
    %621 = vmatprep.mubr.f32.mxu0 0.0
    %622 = vmatmul.mubr.f32.gmra.mrb[0].mxu0 %v444
    %v623 = vpop.f32.mrb[0].mxu0
    %v624 = vadd.f32 %v72, %v623
    %v625 = vpop.f32.mrb[0].mxu0
    %626 = vmatprep.mubr.f32.mxu0 0.0
    %627 = vmatmul.mubr.f32.gmra.mrb[0].mxu0 %v447
    %v628 = vpop.f32.mrb[0].mxu0
    %v629 = vadd.f32 %v72, %v628
    %v630 = vpop.f32.mrb[0].mxu0
    %631 = vmatprep.mubr.f32.mxu0 0.0
    %632 = vmatmul.mubr.f32.gmra.mrb[0].mxu0 %v450
    %v633 = vpop.f32.mrb[0].mxu0
    %v634 = vadd.f32 %v72, %v633
    %v635 = vpop.f32.mrb[0].mxu0
    %636 = vdwg.mxu0
    %v637 = vmax.f32 %v519, 0.0
    %v638 = vmax.f32 %v524, 0.0
    %v639 = vmax.f32 %v529, 0.0
    %v640 = vmax.f32 %v534, 0.0
    %v641 = vmax.f32 %v539, 0.0
    %v642 = vmax.f32 %v544, 0.0
    %v643 = vmax.f32 %v549, 0.0
    %v644 = vmax.f32 %v554, 0.0
    %v645 = vmax.f32 %v559, 0.0
    %v646 = vmax.f32 %v564, 0.0
    %v647 = vmax.f32 %v569, 0.0
    %v648 = vmax.f32 %v574, 0.0
    %v649 = vmax.f32 %v579, 0.0
    %v650 = vmax.f32 %v584, 0.0
    %v651 = vmax.f32 %v589, 0.0
    %v652 = vmax.f32 %v594, 0.0
    %v653 = vmax.f32 %v599, 0.0
    %v654 = vmax.f32 %v604, 0.0
    %v655 = vmax.f32 %v609, 0.0
    %v656 = vmax.f32 %v614, 0.0
    %v657 = vmax.f32 %v619, 0.0
    %v658 = vmax.f32 %v624, 0.0
    %v659 = vmax.f32 %v629, 0.0
    %v660 = vmax.f32 %v634, 0.0
    %v661 = vmax.f32 %v332, %v637
    %v662 = vmax.f32 %v333, %v638
    %v663 = vmax.f32 %v334, %v639
    %v664 = vmax.f32 %v335, %v640
    %v665 = vmax.f32 %v336, %v641
    %v666 = vmax.f32 %v337, %v642
    %v667 = vmax.f32 %v338, %v643
    %v668 = vmax.f32 %v339, %v644
    %v669 = vmax.f32 %v340, %v645
    %v670 = vmax.f32 %v341, %v646
    %v671 = vmax.f32 %v342, %v647
    %v672 = vmax.f32 %v343, %v648
    %v673 = vmax.f32 %v344, %v649
    %v674 = vmax.f32 %v345, %v650
    %v675 = vmax.f32 %v346, %v651
    %v676 = vmax.f32 %v347, %v652
    %v677 = vmax.f32 %v348, %v653
    %v678 = vmax.f32 %v349, %v654
    %v679 = vmax.f32 %v350, %v655
    %v680 = vmax.f32 %v351, %v656
    %v681 = vmax.f32 %v352, %v657
    %v682 = vmax.f32 %v353, %v658
    %v683 = vmax.f32 %v354, %v659
    %v684 = vmax.f32 %v355, %v660
    %v685 = vld [vmem:[%s0 + $0x300] sm:$0xff]
    %v686 = vld [vmem:[%s0 + $0x308] sm:$0xff]
    %v687 = vld [vmem:[%s0 + $0x310] sm:$0xff]
    %v688 = vld [vmem:[%s0 + $0x318] sm:$0xff]
    %v689 = vld [vmem:[%s0 + $0x320] sm:$0xff]
    %v690 = vld [vmem:[%s0 + $0x328] sm:$0xff]
    %v691 = vld [vmem:[%s0 + $0x330] sm:$0xff]
    %v692 = vld [vmem:[%s0 + $0x338] sm:$0xff]
    %v693 = vld [vmem:[%s0 + $0x340] sm:$0xff]
    %v694 = vld [vmem:[%s0 + $0x348] sm:$0xff]
    %v695 = vld [vmem:[%s0 + $0x350] sm:$0xff]
    %v696 = vld [vmem:[%s0 + $0x358] sm:$0xff]
    %v697 = vld [vmem:[%s0 + $0x360] sm:$0xff]
    %v698 = vld [vmem:[%s0 + $0x368] sm:$0xff]
    %v699 = vld [vmem:[%s0 + $0x370] sm:$0xff]
    %v700 = vld [vmem:[%s0 + $0x378] sm:$0xff]
    %v701 = vld [vmem:[%s0 + $0x380] sm:$0xff]
    %v702 = vld [vmem:[%s0 + $0x388] sm:$0xff]
    %v703 = vld [vmem:[%s0 + $0x390] sm:$0xff]
    %v704 = vld [vmem:[%s0 + $0x398] sm:$0xff]
    %v705 = vld [vmem:[%s0 + $0x3a0] sm:$0xff]
    %v706 = vld [vmem:[%s0 + $0x3a8] sm:$0xff]
    %v707 = vld [vmem:[%s0 + $0x3b0] sm:$0xff]
    %v708 = vld [vmem:[%s0 + $0x3b8] sm:$0xff]
    %v710 = vsel %vm74, %v685, 0
    %v713 = vsel %vm74, %v686, 0
    %v716 = vsel %vm74, %v687, 0
    %v719 = vsel %vm74, %v688, 0
    %v722 = vsel %vm74, %v689, 0
    %v725 = vsel %vm74, %v690, 0
    %v728 = vsel %vm74, %v691, 0
    %v731 = vsel %vm74, %v692, 0
    %v734 = vsel %vm74, %v693, 0
    %v737 = vsel %vm74, %v694, 0
    %v740 = vsel %vm74, %v695, 0
    %v743 = vsel %vm74, %v696, 0
    %v746 = vsel %vm74, %v697, 0
    %v749 = vsel %vm74, %v698, 0
    %v752 = vsel %vm74, %v699, 0
    %v755 = vsel %vm74, %v700, 0
    %v758 = vsel %vm74, %v701, 0
    %v761 = vsel %vm74, %v702, 0
    %v764 = vsel %vm74, %v703, 0
    %v767 = vsel %vm74, %v704, 0
    %v770 = vsel %vm74, %v705, 0
    %v773 = vsel %vm74, %v706, 0
    %v776 = vsel %vm74, %v707, 0
    %v779 = vsel %vm74, %v708, 0
    %781 = vmatprep.subr.mxu0 0.0
    %782 = vmatpush1.msra.mxu0 %v39
    %783 = vmatprep.subr.mxu0 0.0
    %784 = vmatpush1.msra.mxu0 %v40
    %785 = vmatprep.subr.mxu0 0.0
    %786 = vmatpush1.msra.mxu0 %v41
    %787 = vmatprep.subr.mxu0 0.0
    %788 = vmatpush1.msra.mxu0 %v42
    %789 = vmatprep.subr.mxu0 0.0
    %790 = vmatpush1.msra.mxu0 0.0
    %791 = vmatprep.subr.mxu0 0.0
    %792 = vmatpush1.msra.mxu0 0.0
    %793 = vmatprep.subr.mxu0 0.0
    %794 = vmatpush1.msra.mxu0 0.0
    %795 = vmatprep.subr.mxu0 0.0
    %796 = vmatpush1.msra.mxu0 0.0
    %797 = vmatprep.subr.mxu0 0.0
    %798 = vmatpush1.msra.mxu0 0.0
    %799 = vmatprep.subr.mxu0 0.0
    %800 = vmatpush1.msra.mxu0 0.0
    %801 = vmatprep.subr.mxu0 0.0
    %802 = vmatpush1.msra.mxu0 0.0
    %803 = vmatprep.subr.mxu0 0.0
    %804 = vmatpush1.msra.mxu0 0.0
    %805 = vmatprep.subr.mxu0 0.0
    %806 = vmatpush1.msra.mxu0 0.0
    %807 = vmatprep.subr.mxu0 0.0
    %808 = vmatpush1.msra.mxu0 0.0
    %809 = vmatprep.subr.mxu0 0.0
    %810 = vmatpush1.msra.mxu0 0.0
    %811 = vmatprep.subr.mxu0 0.0
    %812 = vmatpush1.msra.mxu0 0.0
    %813 = vmatprep.subr.mxu0 0.0
    %814 = vmatpush1.msra.mxu0 0.0
    %815 = vmatprep.subr.mxu0 0.0
    %816 = vmatpush1.msra.mxu0 0.0
    %817 = vmatprep.subr.mxu0 0.0
    %818 = vmatpush1.msra.mxu0 0.0
    %819 = vmatprep.subr.mxu0 0.0
    %820 = vmatpush1.msra.mxu0 0.0
    %821 = vmatprep.subr.mxu0 0.0
    %822 = vmatpush1.msra.mxu0 0.0
    %823 = vmatprep.subr.mxu0 0.0
    %824 = vmatpush1.msra.mxu0 0.0
    %825 = vmatprep.subr.mxu0 0.0
    %826 = vmatpush1.msra.mxu0 0.0
    %827 = vmatprep.subr.mxu0 0.0
    %828 = vmatpush1.msra.mxu0 0.0
    %829 = vmatprep.subr.mxu0 0.0
    %830 = vmatpush1.msra.mxu0 0.0
    %831 = vmatprep.subr.mxu0 0.0
    %832 = vmatpush1.msra.mxu0 0.0
    %833 = vmatprep.subr.mxu0 0.0
    %834 = vmatpush1.msra.mxu0 0.0
    %835 = vmatprep.subr.mxu0 0.0
    %836 = vmatpush1.msra.mxu0 0.0
    %837 = vmatprep.subr.mxu0 0.0
    %838 = vmatpush1.msra.mxu0 0.0
    %839 = vmatprep.subr.mxu0 0.0
    %840 = vmatpush1.msra.mxu0 0.0
    %841 = vmatprep.subr.mxu0 0.0
    %842 = vmatpush1.msra.mxu0 0.0
    %843 = vmatprep.subr.mxu0 0.0
    %844 = vmatpush1.msra.mxu0 0.0
    %845 = vmatprep.mubr.f32.mxu0 0.0
    %846 = vmatmul.mubr.f32.gmra.mrb[0].mxu0 %v710
    %v847 = vpop.f32.mrb[0].mxu0
    %v848 = vadd.f32 %v72, %v847
    %v849 = vpop.f32.mrb[0].mxu0
    %850 = vmatprep.mubr.f32.mxu0 0.0
    %851 = vmatmul.mubr.f32.gmra.mrb[0].mxu0 %v713
    %v852 = vpop.f32.mrb[0].mxu0
    %v853 = vadd.f32 %v72, %v852
    %v854 = vpop.f32.mrb[0].mxu0
    %855 = vmatprep.mubr.f32.mxu0 0.0
    %856 = vmatmul.mubr.f32.gmra.mrb[0].mxu0 %v716
    %v857 = vpop.f32.mrb[0].mxu0
    %v858 = vadd.f32 %v72, %v857
    %v859 = vpop.f32.mrb[0].mxu0
    %860 = vmatprep.mubr.f32.mxu0 0.0
    %861 = vmatmul.mubr.f32.gmra.mrb[0].mxu0 %v719
    %v862 = vpop.f32.mrb[0].mxu0
    %v863 = vadd.f32 %v72, %v862
    %v864 = vpop.f32.mrb[0].mxu0
    %865 = vmatprep.mubr.f32.mxu0 0.0
    %866 = vmatmul.mubr.f32.gmra.mrb[0].mxu0 %v722
    %v867 = vpop.f32.mrb[0].mxu0
    %v868 = vadd.f32 %v72, %v867
    %v869 = vpop.f32.mrb[0].mxu0
    %870 = vmatprep.mubr.f32.mxu0 0.0
    %871 = vmatmul.mubr.f32.gmra.mrb[0].mxu0 %v725
    %v872 = vpop.f32.mrb[0].mxu0
    %v873 = vadd.f32 %v72, %v872
    %v874 = vpop.f32.mrb[0].mxu0
    %875 = vmatprep.mubr.f32.mxu0 0.0
    %876 = vmatmul.mubr.f32.gmra.mrb[0].mxu0 %v728
    %v877 = vpop.f32.mrb[0].mxu0
    %v878 = vadd.f32 %v72, %v877
    %v879 = vpop.f32.mrb[0].mxu0
    %880 = vmatprep.mubr.f32.mxu0 0.0
    %881 = vmatmul.mubr.f32.gmra.mrb[0].mxu0 %v731
    %v882 = vpop.f32.mrb[0].mxu0
    %v883 = vadd.f32 %v72, %v882
    %v884 = vpop.f32.mrb[0].mxu0
    %885 = vmatprep.mubr.f32.mxu0 0.0
    %886 = vmatmul.mubr.f32.gmra.mrb[0].mxu0 %v734
    %v887 = vpop.f32.mrb[0].mxu0
    %v888 = vadd.f32 %v72, %v887
    %v889 = vpop.f32.mrb[0].mxu0
    %890 = vmatprep.mubr.f32.mxu0 0.0
    %891 = vmatmul.mubr.f32.gmra.mrb[0].mxu0 %v737
    %v892 = vpop.f32.mrb[0].mxu0
    %v893 = vadd.f32 %v72, %v892
    %v894 = vpop.f32.mrb[0].mxu0
    %895 = vmatprep.mubr.f32.mxu0 0.0
    %896 = vmatmul.mubr.f32.gmra.mrb[0].mxu0 %v740
    %v897 = vpop.f32.mrb[0].mxu0
    %v898 = vadd.f32 %v72, %v897
    %v899 = vpop.f32.mrb[0].mxu0
    %900 = vmatprep.mubr.f32.mxu0 0.0
    %901 = vmatmul.mubr.f32.gmra.mrb[0].mxu0 %v743
    %v902 = vpop.f32.mrb[0].mxu0
    %v903 = vadd.f32 %v72, %v902
    %v904 = vpop.f32.mrb[0].mxu0
    %905 = vmatprep.mubr.f32.mxu0 0.0
    %906 = vmatmul.mubr.f32.gmra.mrb[0].mxu0 %v746
    %v907 = vpop.f32.mrb[0].mxu0
    %v908 = vadd.f32 %v72, %v907
    %v909 = vpop.f32.mrb[0].mxu0
    %910 = vmatprep.mubr.f32.mxu0 0.0
    %911 = vmatmul.mubr.f32.gmra.mrb[0].mxu0 %v749
    %v912 = vpop.f32.mrb[0].mxu0
    %v913 = vadd.f32 %v72, %v912
    %v914 = vpop.f32.mrb[0].mxu0
    %915 = vmatprep.mubr.f32.mxu0 0.0
    %916 = vmatmul.mubr.f32.gmra.mrb[0].mxu0 %v752
    %v917 = vpop.f32.mrb[0].mxu0
    %v918 = vadd.f32 %v72, %v917
    %v919 = vpop.f32.mrb[0].mxu0
    %920 = vmatprep.mubr.f32.mxu0 0.0
    %921 = vmatmul.mubr.f32.gmra.mrb[0].mxu0 %v755
    %v922 = vpop.f32.mrb[0].mxu0
    %v923 = vadd.f32 %v72, %v922
    %v924 = vpop.f32.mrb[0].mxu0
    %925 = vmatprep.mubr.f32.mxu0 0.0
    %926 = vmatmul.mubr.f32.gmra.mrb[0].mxu0 %v758
    %v927 = vpop.f32.mrb[0].mxu0
    %v928 = vadd.f32 %v72, %v927
    %v929 = vpop.f32.mrb[0].mxu0
    %930 = vmatprep.mubr.f32.mxu0 0.0
    %931 = vmatmul.mubr.f32.gmra.mrb[0].mxu0 %v761
    %v932 = vpop.f32.mrb[0].mxu0
    %v933 = vadd.f32 %v72, %v932
    %v934 = vpop.f32.mrb[0].mxu0
    %935 = vmatprep.mubr.f32.mxu0 0.0
    %936 = vmatmul.mubr.f32.gmra.mrb[0].mxu0 %v764
    %v937 = vpop.f32.mrb[0].mxu0
    %v938 = vadd.f32 %v72, %v937
    %v939 = vpop.f32.mrb[0].mxu0
    %940 = vmatprep.mubr.f32.mxu0 0.0
    %941 = vmatmul.mubr.f32.gmra.mrb[0].mxu0 %v767
    %v942 = vpop.f32.mrb[0].mxu0
    %v943 = vadd.f32 %v72, %v942
    %v944 = vpop.f32.mrb[0].mxu0
    %945 = vmatprep.mubr.f32.mxu0 0.0
    %946 = vmatmul.mubr.f32.gmra.mrb[0].mxu0 %v770
    %v947 = vpop.f32.mrb[0].mxu0
    %v948 = vadd.f32 %v72, %v947
    %v949 = vpop.f32.mrb[0].mxu0
    %950 = vmatprep.mubr.f32.mxu0 0.0
    %951 = vmatmul.mubr.f32.gmra.mrb[0].mxu0 %v773
    %v952 = vpop.f32.mrb[0].mxu0
    %v953 = vadd.f32 %v72, %v952
    %v954 = vpop.f32.mrb[0].mxu0
    %955 = vmatprep.mubr.f32.mxu0 0.0
    %956 = vmatmul.mubr.f32.gmra.mrb[0].mxu0 %v776
    %v957 = vpop.f32.mrb[0].mxu0
    %v958 = vadd.f32 %v72, %v957
    %v959 = vpop.f32.mrb[0].mxu0
    %960 = vmatprep.mubr.f32.mxu0 0.0
    %961 = vmatmul.mubr.f32.gmra.mrb[0].mxu0 %v779
    %v962 = vpop.f32.mrb[0].mxu0
    %v963 = vadd.f32 %v72, %v962
    %v964 = vpop.f32.mrb[0].mxu0
    %965 = vdwg.mxu0
    %v966 = vmax.f32 %v848, 0.0
    %v967 = vmax.f32 %v853, 0.0
    %v968 = vmax.f32 %v858, 0.0
    %v969 = vmax.f32 %v863, 0.0
    %v970 = vmax.f32 %v868, 0.0
    %v971 = vmax.f32 %v873, 0.0
    %v972 = vmax.f32 %v878, 0.0
    %v973 = vmax.f32 %v883, 0.0
    %v974 = vmax.f32 %v888, 0.0
    %v975 = vmax.f32 %v893, 0.0
    %v976 = vmax.f32 %v898, 0.0
    %v977 = vmax.f32 %v903, 0.0
    %v978 = vmax.f32 %v908, 0.0
    %v979 = vmax.f32 %v913, 0.0
    %v980 = vmax.f32 %v918, 0.0
    %v981 = vmax.f32 %v923, 0.0
    %v982 = vmax.f32 %v928, 0.0
    %v983 = vmax.f32 %v933, 0.0
    %v984 = vmax.f32 %v938, 0.0
    %v985 = vmax.f32 %v943, 0.0
    %v986 = vmax.f32 %v948, 0.0
    %v987 = vmax.f32 %v953, 0.0
    %v988 = vmax.f32 %v958, 0.0
    %v989 = vmax.f32 %v963, 0.0
    %v990 = vmax.f32 %v661, %v966
    %v991 = vmax.f32 %v662, %v967
    %v992 = vmax.f32 %v663, %v968
    %v993 = vmax.f32 %v664, %v969
    %v994 = vmax.f32 %v665, %v970
    %v995 = vmax.f32 %v666, %v971
    %v996 = vmax.f32 %v667, %v972
    %v997 = vmax.f32 %v668, %v973
    %v998 = vmax.f32 %v669, %v974
    %v999 = vmax.f32 %v670, %v975
    %v1000 = vmax.f32 %v671, %v976
    %v1001 = vmax.f32 %v672, %v977
    %v1002 = vmax.f32 %v673, %v978
    %v1003 = vmax.f32 %v674, %v979
    %v1004 = vmax.f32 %v675, %v980
    %v1005 = vmax.f32 %v676, %v981
    %v1006 = vmax.f32 %v677, %v982
    %v1007 = vmax.f32 %v678, %v983
    %v1008 = vmax.f32 %v679, %v984
    %v1009 = vmax.f32 %v680, %v985
    %v1010 = vmax.f32 %v681, %v986
    %v1011 = vmax.f32 %v682, %v987
    %v1012 = vmax.f32 %v683, %v988
    %v1013 = vmax.f32 %v684, %v989
    %v1014 = vld [vmem:[%s0 + $0x480] sm:$0xff]
    %v1015 = vld [vmem:[%s0 + $0x488] sm:$0xff]
    %v1016 = vld [vmem:[%s0 + $0x490] sm:$0xff]
    %v1017 = vld [vmem:[%s0 + $0x498] sm:$0xff]
    %v1018 = vld [vmem:[%s0 + $0x4a0] sm:$0xff]
    %v1019 = vld [vmem:[%s0 + $0x4a8] sm:$0xff]
    %v1020 = vld [vmem:[%s0 + $0x4b0] sm:$0xff]
    %v1021 = vld [vmem:[%s0 + $0x4b8] sm:$0xff]
    %v1022 = vld [vmem:[%s0 + $0x4c0] sm:$0xff]
    %v1023 = vld [vmem:[%s0 + $0x4c8] sm:$0xff]
    %v1024 = vld [vmem:[%s0 + $0x4d0] sm:$0xff]
    %v1025 = vld [vmem:[%s0 + $0x4d8] sm:$0xff]
    %v1026 = vld [vmem:[%s0 + $0x4e0] sm:$0xff]
    %v1027 = vld [vmem:[%s0 + $0x4e8] sm:$0xff]
    %v1028 = vld [vmem:[%s0 + $0x4f0] sm:$0xff]
    %v1029 = vld [vmem:[%s0 + $0x4f8] sm:$0xff]
    %v1030 = vld [vmem:[%s0 + $0x500] sm:$0xff]
    %v1031 = vld [vmem:[%s0 + $0x508] sm:$0xff]
    %v1032 = vld [vmem:[%s0 + $0x510] sm:$0xff]
    %v1033 = vld [vmem:[%s0 + $0x518] sm:$0xff]
    %v1034 = vld [vmem:[%s0 + $0x520] sm:$0xff]
    %v1035 = vld [vmem:[%s0 + $0x528] sm:$0xff]
    %v1036 = vld [vmem:[%s0 + $0x530] sm:$0xff]
    %v1037 = vld [vmem:[%s0 + $0x538] sm:$0xff]
    %v1039 = vsel %vm74, %v1014, 0
    %v1042 = vsel %vm74, %v1015, 0
    %v1045 = vsel %vm74, %v1016, 0
    %v1048 = vsel %vm74, %v1017, 0
    %v1051 = vsel %vm74, %v1018, 0
    %v1054 = vsel %vm74, %v1019, 0
    %v1057 = vsel %vm74, %v1020, 0
    %v1060 = vsel %vm74, %v1021, 0
    %v1063 = vsel %vm74, %v1022, 0
    %v1066 = vsel %vm74, %v1023, 0
    %v1069 = vsel %vm74, %v1024, 0
    %v1072 = vsel %vm74, %v1025, 0
    %v1075 = vsel %vm74, %v1026, 0
    %v1078 = vsel %vm74, %v1027, 0
    %v1081 = vsel %vm74, %v1028, 0
    %v1084 = vsel %vm74, %v1029, 0
    %v1087 = vsel %vm74, %v1030, 0
    %v1090 = vsel %vm74, %v1031, 0
    %v1093 = vsel %vm74, %v1032, 0
    %v1096 = vsel %vm74, %v1033, 0
    %v1099 = vsel %vm74, %v1034, 0
    %v1102 = vsel %vm74, %v1035, 0
    %v1105 = vsel %vm74, %v1036, 0
    %v1108 = vsel %vm74, %v1037, 0
    %1110 = vmatprep.subr.mxu0 0.0
    %1111 = vmatpush1.msra.mxu0 %v39
    %1112 = vmatprep.subr.mxu0 0.0
    %1113 = vmatpush1.msra.mxu0 %v40
    %1114 = vmatprep.subr.mxu0 0.0
    %1115 = vmatpush1.msra.mxu0 %v41
    %1116 = vmatprep.subr.mxu0 0.0
    %1117 = vmatpush1.msra.mxu0 %v42
    %1118 = vmatprep.subr.mxu0 0.0
    %1119 = vmatpush1.msra.mxu0 0.0
    %1120 = vmatprep.subr.mxu0 0.0
    %1121 = vmatpush1.msra.mxu0 0.0
    %1122 = vmatprep.subr.mxu0 0.0
    %1123 = vmatpush1.msra.mxu0 0.0
    %1124 = vmatprep.subr.mxu0 0.0
    %1125 = vmatpush1.msra.mxu0 0.0
    %1126 = vmatprep.subr.mxu0 0.0
    %1127 = vmatpush1.msra.mxu0 0.0
    %1128 = vmatprep.subr.mxu0 0.0
    %1129 = vmatpush1.msra.mxu0 0.0
    %1130 = vmatprep.subr.mxu0 0.0
    %1131 = vmatpush1.msra.mxu0 0.0
    %1132 = vmatprep.subr.mxu0 0.0
    %1133 = vmatpush1.msra.mxu0 0.0
    %1134 = vmatprep.subr.mxu0 0.0
    %1135 = vmatpush1.msra.mxu0 0.0
    %1136 = vmatprep.subr.mxu0 0.0
    %1137 = vmatpush1.msra.mxu0 0.0
    %1138 = vmatprep.subr.mxu0 0.0
    %1139 = vmatpush1.msra.mxu0 0.0
    %1140 = vmatprep.subr.mxu0 0.0
    %1141 = vmatpush1.msra.mxu0 0.0
    %1142 = vmatprep.subr.mxu0 0.0
    %1143 = vmatpush1.msra.mxu0 0.0
    %1144 = vmatprep.subr.mxu0 0.0
    %1145 = vmatpush1.msra.mxu0 0.0
    %1146 = vmatprep.subr.mxu0 0.0
    %1147 = vmatpush1.msra.mxu0 0.0
    %1148 = vmatprep.subr.mxu0 0.0
    %1149 = vmatpush1.msra.mxu0 0.0
    %1150 = vmatprep.subr.mxu0 0.0
    %1151 = vmatpush1.msra.mxu0 0.0
    %1152 = vmatprep.subr.mxu0 0.0
    %1153 = vmatpush1.msra.mxu0 0.0
    %1154 = vmatprep.subr.mxu0 0.0
    %1155 = vmatpush1.msra.mxu0 0.0
    %1156 = vmatprep.subr.mxu0 0.0
    %1157 = vmatpush1.msra.mxu0 0.0
    %1158 = vmatprep.subr.mxu0 0.0
    %1159 = vmatpush1.msra.mxu0 0.0
    %1160 = vmatprep.subr.mxu0 0.0
    %1161 = vmatpush1.msra.mxu0 0.0
    %1162 = vmatprep.subr.mxu0 0.0
    %1163 = vmatpush1.msra.mxu0 0.0
    %1164 = vmatprep.subr.mxu0 0.0
    %1165 = vmatpush1.msra.mxu0 0.0
    %1166 = vmatprep.subr.mxu0 0.0
    %1167 = vmatpush1.msra.mxu0 0.0
    %1168 = vmatprep.subr.mxu0 0.0
    %1169 = vmatpush1.msra.mxu0 0.0
    %1170 = vmatprep.subr.mxu0 0.0
    %1171 = vmatpush1.msra.mxu0 0.0
    %1172 = vmatprep.subr.mxu0 0.0
    %1173 = vmatpush1.msra.mxu0 0.0
    %1174 = vmatprep.mubr.f32.mxu0 0.0
    %1175 = vmatmul.mubr.f32.gmra.mrb[0].mxu0 %v1039
    %v1176 = vpop.f32.mrb[0].mxu0
    %v1177 = vadd.f32 %v72, %v1176
    %v1178 = vpop.f32.mrb[0].mxu0
    %1179 = vmatprep.mubr.f32.mxu0 0.0
    %1180 = vmatmul.mubr.f32.gmra.mrb[0].mxu0 %v1042
    %v1181 = vpop.f32.mrb[0].mxu0
    %v1182 = vadd.f32 %v72, %v1181
    %v1183 = vpop.f32.mrb[0].mxu0
    %1184 = vmatprep.mubr.f32.mxu0 0.0
    %1185 = vmatmul.mubr.f32.gmra.mrb[0].mxu0 %v1045
    %v1186 = vpop.f32.mrb[0].mxu0
    %v1187 = vadd.f32 %v72, %v1186
    %v1188 = vpop.f32.mrb[0].mxu0
    %1189 = vmatprep.mubr.f32.mxu0 0.0
    %1190 = vmatmul.mubr.f32.gmra.mrb[0].mxu0 %v1048
    %v1191 = vpop.f32.mrb[0].mxu0
    %v1192 = vadd.f32 %v72, %v1191
    %v1193 = vpop.f32.mrb[0].mxu0
    %1194 = vmatprep.mubr.f32.mxu0 0.0
    %1195 = vmatmul.mubr.f32.gmra.mrb[0].mxu0 %v1051
    %v1196 = vpop.f32.mrb[0].mxu0
    %v1197 = vadd.f32 %v72, %v1196
    %v1198 = vpop.f32.mrb[0].mxu0
    %1199 = vmatprep.mubr.f32.mxu0 0.0
    %1200 = vmatmul.mubr.f32.gmra.mrb[0].mxu0 %v1054
    %v1201 = vpop.f32.mrb[0].mxu0
    %v1202 = vadd.f32 %v72, %v1201
    %v1203 = vpop.f32.mrb[0].mxu0
    %1204 = vmatprep.mubr.f32.mxu0 0.0
    %1205 = vmatmul.mubr.f32.gmra.mrb[0].mxu0 %v1057
    %v1206 = vpop.f32.mrb[0].mxu0
    %v1207 = vadd.f32 %v72, %v1206
    %v1208 = vpop.f32.mrb[0].mxu0
    %1209 = vmatprep.mubr.f32.mxu0 0.0
    %1210 = vmatmul.mubr.f32.gmra.mrb[0].mxu0 %v1060
    %v1211 = vpop.f32.mrb[0].mxu0
    %v1212 = vadd.f32 %v72, %v1211
    %v1213 = vpop.f32.mrb[0].mxu0
    %1214 = vmatprep.mubr.f32.mxu0 0.0
    %1215 = vmatmul.mubr.f32.gmra.mrb[0].mxu0 %v1063
    %v1216 = vpop.f32.mrb[0].mxu0
    %v1217 = vadd.f32 %v72, %v1216
    %v1218 = vpop.f32.mrb[0].mxu0
    %1219 = vmatprep.mubr.f32.mxu0 0.0
    %1220 = vmatmul.mubr.f32.gmra.mrb[0].mxu0 %v1066
    %v1221 = vpop.f32.mrb[0].mxu0
    %v1222 = vadd.f32 %v72, %v1221
    %v1223 = vpop.f32.mrb[0].mxu0
    %1224 = vmatprep.mubr.f32.mxu0 0.0
    %1225 = vmatmul.mubr.f32.gmra.mrb[0].mxu0 %v1069
    %v1226 = vpop.f32.mrb[0].mxu0
    %v1227 = vadd.f32 %v72, %v1226
    %v1228 = vpop.f32.mrb[0].mxu0
    %1229 = vmatprep.mubr.f32.mxu0 0.0
    %1230 = vmatmul.mubr.f32.gmra.mrb[0].mxu0 %v1072
    %v1231 = vpop.f32.mrb[0].mxu0
    %v1232 = vadd.f32 %v72, %v1231
    %v1233 = vpop.f32.mrb[0].mxu0
    %1234 = vmatprep.mubr.f32.mxu0 0.0
    %1235 = vmatmul.mubr.f32.gmra.mrb[0].mxu0 %v1075
    %v1236 = vpop.f32.mrb[0].mxu0
    %v1237 = vadd.f32 %v72, %v1236
    %v1238 = vpop.f32.mrb[0].mxu0
    %1239 = vmatprep.mubr.f32.mxu0 0.0
    %1240 = vmatmul.mubr.f32.gmra.mrb[0].mxu0 %v1078
    %v1241 = vpop.f32.mrb[0].mxu0
    %v1242 = vadd.f32 %v72, %v1241
    %v1243 = vpop.f32.mrb[0].mxu0
    %1244 = vmatprep.mubr.f32.mxu0 0.0
    %1245 = vmatmul.mubr.f32.gmra.mrb[0].mxu0 %v1081
    %v1246 = vpop.f32.mrb[0].mxu0
    %v1247 = vadd.f32 %v72, %v1246
    %v1248 = vpop.f32.mrb[0].mxu0
    %1249 = vmatprep.mubr.f32.mxu0 0.0
    %1250 = vmatmul.mubr.f32.gmra.mrb[0].mxu0 %v1084
    %v1251 = vpop.f32.mrb[0].mxu0
    %v1252 = vadd.f32 %v72, %v1251
    %v1253 = vpop.f32.mrb[0].mxu0
    %1254 = vmatprep.mubr.f32.mxu0 0.0
    %1255 = vmatmul.mubr.f32.gmra.mrb[0].mxu0 %v1087
    %v1256 = vpop.f32.mrb[0].mxu0
    %v1257 = vadd.f32 %v72, %v1256
    %v1258 = vpop.f32.mrb[0].mxu0
    %1259 = vmatprep.mubr.f32.mxu0 0.0
    %1260 = vmatmul.mubr.f32.gmra.mrb[0].mxu0 %v1090
    %v1261 = vpop.f32.mrb[0].mxu0
    %v1262 = vadd.f32 %v72, %v1261
    %v1263 = vpop.f32.mrb[0].mxu0
    %1264 = vmatprep.mubr.f32.mxu0 0.0
    %1265 = vmatmul.mubr.f32.gmra.mrb[0].mxu0 %v1093
    %v1266 = vpop.f32.mrb[0].mxu0
    %v1267 = vadd.f32 %v72, %v1266
    %v1268 = vpop.f32.mrb[0].mxu0
    %1269 = vmatprep.mubr.f32.mxu0 0.0
    %1270 = vmatmul.mubr.f32.gmra.mrb[0].mxu0 %v1096
    %v1271 = vpop.f32.mrb[0].mxu0
    %v1272 = vadd.f32 %v72, %v1271
    %v1273 = vpop.f32.mrb[0].mxu0
    %1274 = vmatprep.mubr.f32.mxu0 0.0
    %1275 = vmatmul.mubr.f32.gmra.mrb[0].mxu0 %v1099
    %v1276 = vpop.f32.mrb[0].mxu0
    %v1277 = vadd.f32 %v72, %v1276
    %v1278 = vpop.f32.mrb[0].mxu0
    %1279 = vmatprep.mubr.f32.mxu0 0.0
    %1280 = vmatmul.mubr.f32.gmra.mrb[0].mxu0 %v1102
    %v1281 = vpop.f32.mrb[0].mxu0
    %v1282 = vadd.f32 %v72, %v1281
    %v1283 = vpop.f32.mrb[0].mxu0
    %1284 = vmatprep.mubr.f32.mxu0 0.0
    %1285 = vmatmul.mubr.f32.gmra.mrb[0].mxu0 %v1105
    %v1286 = vpop.f32.mrb[0].mxu0
    %v1287 = vadd.f32 %v72, %v1286
    %v1288 = vpop.f32.mrb[0].mxu0
    %1289 = vmatprep.mubr.f32.mxu0 0.0
    %1290 = vmatmul.mubr.f32.gmra.mrb[0].mxu0 %v1108
    %v1291 = vpop.f32.mrb[0].mxu0
    %v1292 = vadd.f32 %v72, %v1291
    %v1293 = vpop.f32.mrb[0].mxu0
    %1294 = vdwg.mxu0
    %v1295 = vmax.f32 %v1177, 0.0
    %v1296 = vmax.f32 %v1182, 0.0
    %v1297 = vmax.f32 %v1187, 0.0
    %v1298 = vmax.f32 %v1192, 0.0
    %v1299 = vmax.f32 %v1197, 0.0
    %v1300 = vmax.f32 %v1202, 0.0
    %v1301 = vmax.f32 %v1207, 0.0
    %v1302 = vmax.f32 %v1212, 0.0
    %v1303 = vmax.f32 %v1217, 0.0
    %v1304 = vmax.f32 %v1222, 0.0
    %v1305 = vmax.f32 %v1227, 0.0
    %v1306 = vmax.f32 %v1232, 0.0
    %v1307 = vmax.f32 %v1237, 0.0
    %v1308 = vmax.f32 %v1242, 0.0
    %v1309 = vmax.f32 %v1247, 0.0
    %v1310 = vmax.f32 %v1252, 0.0
    %v1311 = vmax.f32 %v1257, 0.0
    %v1312 = vmax.f32 %v1262, 0.0
    %v1313 = vmax.f32 %v1267, 0.0
    %v1314 = vmax.f32 %v1272, 0.0
    %v1315 = vmax.f32 %v1277, 0.0
    %v1316 = vmax.f32 %v1282, 0.0
    %v1317 = vmax.f32 %v1287, 0.0
    %v1318 = vmax.f32 %v1292, 0.0
    %v1319 = vmax.f32 %v990, %v1295
    %v1320 = vmax.f32 %v991, %v1296
    %v1321 = vmax.f32 %v992, %v1297
    %v1322 = vmax.f32 %v993, %v1298
    %v1323 = vmax.f32 %v994, %v1299
    %v1324 = vmax.f32 %v995, %v1300
    %v1325 = vmax.f32 %v996, %v1301
    %v1326 = vmax.f32 %v997, %v1302
    %v1327 = vmax.f32 %v998, %v1303
    %v1328 = vmax.f32 %v999, %v1304
    %v1329 = vmax.f32 %v1000, %v1305
    %v1330 = vmax.f32 %v1001, %v1306
    %v1331 = vmax.f32 %v1002, %v1307
    %v1332 = vmax.f32 %v1003, %v1308
    %v1333 = vmax.f32 %v1004, %v1309
    %v1334 = vmax.f32 %v1005, %v1310
    %v1335 = vmax.f32 %v1006, %v1311
    %v1336 = vmax.f32 %v1007, %v1312
    %v1337 = vmax.f32 %v1008, %v1313
    %v1338 = vmax.f32 %v1009, %v1314
    %v1339 = vmax.f32 %v1010, %v1315
    %v1340 = vmax.f32 %v1011, %v1316
    %v1341 = vmax.f32 %v1012, %v1317
    %v1342 = vmax.f32 %v1013, %v1318
    %1343 = vst [vmem:[#allocation2] sm:$0xff] %v1319
    %1344 = vst [vmem:[#allocation2 + $0x8] sm:$0xff] %v1320
    %1345 = vst [vmem:[#allocation2 + $0x10] sm:$0xff] %v1321
    %1346 = vst [vmem:[#allocation2 + $0x18] sm:$0xff] %v1322
    %1347 = vst [vmem:[#allocation2 + $0x20] sm:$0xff] %v1323
    %1348 = vst [vmem:[#allocation2 + $0x28] sm:$0xff] %v1324
    %1349 = vst [vmem:[#allocation2 + $0x30] sm:$0xff] %v1325
    %1350 = vst [vmem:[#allocation2 + $0x38] sm:$0xff] %v1326
    %1351 = vst [vmem:[#allocation2 + $0x40] sm:$0xff] %v1327
    %1352 = vst [vmem:[#allocation2 + $0x48] sm:$0xff] %v1328
    %1353 = vst [vmem:[#allocation2 + $0x50] sm:$0xff] %v1329
    %1354 = vst [vmem:[#allocation2 + $0x58] sm:$0xff] %v1330
    %1355 = vst [vmem:[#allocation2 + $0x60] sm:$0xff] %v1331
    %1356 = vst [vmem:[#allocation2 + $0x68] sm:$0xff] %v1332
    %1357 = vst [vmem:[#allocation2 + $0x70] sm:$0xff] %v1333
    %1358 = vst [vmem:[#allocation2 + $0x78] sm:$0xff] %v1334
    %1359 = vst [vmem:[#allocation2 + $0x80] sm:$0xff] %v1335
    %1360 = vst [vmem:[#allocation2 + $0x88] sm:$0xff] %v1336
    %1361 = vst [vmem:[#allocation2 + $0x90] sm:$0xff] %v1337
    %1362 = vst [vmem:[#allocation2 + $0x98] sm:$0xff] %v1338
    %1363 = vst [vmem:[#allocation2 + $0xa0] sm:$0xff] %v1339
    %1364 = vst [vmem:[#allocation2 + $0xa8] sm:$0xff] %v1340
    %1365 = vst [vmem:[#allocation2 + $0xb0] sm:$0xff] %v1341
    %1366 = vst [vmem:[#allocation2 + $0xb8] sm:$0xff] %v1342
    %v1367 = vld [vmem:[%s0 + $0xc0] sm:$0xff]
    %v1368 = vld [vmem:[%s0 + $0xc8] sm:$0xff]
    %v1369 = vld [vmem:[%s0 + $0xd0] sm:$0xff]
    %v1370 = vld [vmem:[%s0 + $0xd8] sm:$0xff]
    %v1371 = vld [vmem:[%s0 + $0xe0] sm:$0xff]
    %v1372 = vld [vmem:[%s0 + $0xe8] sm:$0xff]
    %v1373 = vld [vmem:[%s0 + $0xf0] sm:$0xff]
    %v1374 = vld [vmem:[%s0 + $0xf8] sm:$0xff]
    %v1375 = vld [vmem:[%s0 + $0x100] sm:$0xff]
    %v1376 = vld [vmem:[%s0 + $0x108] sm:$0xff]
    %v1377 = vld [vmem:[%s0 + $0x110] sm:$0xff]
    %v1378 = vld [vmem:[%s0 + $0x118] sm:$0xff]
    %v1379 = vld [vmem:[%s0 + $0x120] sm:$0xff]
    %v1380 = vld [vmem:[%s0 + $0x128] sm:$0xff]
    %v1381 = vld [vmem:[%s0 + $0x130] sm:$0xff]
    %v1382 = vld [vmem:[%s0 + $0x138] sm:$0xff]
    %v1383 = vld [vmem:[%s0 + $0x140] sm:$0xff]
    %v1384 = vld [vmem:[%s0 + $0x148] sm:$0xff]
    %v1385 = vld [vmem:[%s0 + $0x150] sm:$0xff]
    %v1386 = vld [vmem:[%s0 + $0x158] sm:$0xff]
    %v1387 = vld [vmem:[%s0 + $0x160] sm:$0xff]
    %v1388 = vld [vmem:[%s0 + $0x168] sm:$0xff]
    %v1389 = vld [vmem:[%s0 + $0x170] sm:$0xff]
    %v1390 = vld [vmem:[%s0 + $0x178] sm:$0xff]
    %v1392 = vsel %vm74, %v1367, 0
    %v1395 = vsel %vm74, %v1368, 0
    %v1398 = vsel %vm74, %v1369, 0
    %v1401 = vsel %vm74, %v1370, 0
    %v1404 = vsel %vm74, %v1371, 0
    %v1407 = vsel %vm74, %v1372, 0
    %v1410 = vsel %vm74, %v1373, 0
    %v1413 = vsel %vm74, %v1374, 0
    %v1416 = vsel %vm74, %v1375, 0
    %v1419 = vsel %vm74, %v1376, 0
    %v1422 = vsel %vm74, %v1377, 0
    %v1425 = vsel %vm74, %v1378, 0
    %v1428 = vsel %vm74, %v1379, 0
    %v1431 = vsel %vm74, %v1380, 0
    %v1434 = vsel %vm74, %v1381, 0
    %v1437 = vsel %vm74, %v1382, 0
    %v1440 = vsel %vm74, %v1383, 0
    %v1443 = vsel %vm74, %v1384, 0
    %v1446 = vsel %vm74, %v1385, 0
    %v1449 = vsel %vm74, %v1386, 0
    %v1452 = vsel %vm74, %v1387, 0
    %v1455 = vsel %vm74, %v1388, 0
    %v1458 = vsel %vm74, %v1389, 0
    %v1461 = vsel %vm74, %v1390, 0
    %1463 = vmatprep.subr.mxu0 0.0
    %1464 = vmatpush1.msra.mxu0 %v39
    %1465 = vmatprep.subr.mxu0 0.0
    %1466 = vmatpush1.msra.mxu0 %v40
    %1467 = vmatprep.subr.mxu0 0.0
    %1468 = vmatpush1.msra.mxu0 %v41
    %1469 = vmatprep.subr.mxu0 0.0
    %1470 = vmatpush1.msra.mxu0 %v42
    %1471 = vmatprep.subr.mxu0 0.0
    %1472 = vmatpush1.msra.mxu0 0.0
    %1473 = vmatprep.subr.mxu0 0.0
    %1474 = vmatpush1.msra.mxu0 0.0
    %1475 = vmatprep.subr.mxu0 0.0
    %1476 = vmatpush1.msra.mxu0 0.0
    %1477 = vmatprep.subr.mxu0 0.0
    %1478 = vmatpush1.msra.mxu0 0.0
    %1479 = vmatprep.subr.mxu0 0.0
    %1480 = vmatpush1.msra.mxu0 0.0
    %1481 = vmatprep.subr.mxu0 0.0
    %1482 = vmatpush1.msra.mxu0 0.0
    %1483 = vmatprep.subr.mxu0 0.0
    %1484 = vmatpush1.msra.mxu0 0.0
    %1485 = vmatprep.subr.mxu0 0.0
    %1486 = vmatpush1.msra.mxu0 0.0
    %1487 = vmatprep.subr.mxu0 0.0
    %1488 = vmatpush1.msra.mxu0 0.0
    %1489 = vmatprep.subr.mxu0 0.0
    %1490 = vmatpush1.msra.mxu0 0.0
    %1491 = vmatprep.subr.mxu0 0.0
    %1492 = vmatpush1.msra.mxu0 0.0
    %1493 = vmatprep.subr.mxu0 0.0
    %1494 = vmatpush1.msra.mxu0 0.0
    %1495 = vmatprep.subr.mxu0 0.0
    %1496 = vmatpush1.msra.mxu0 0.0
    %1497 = vmatprep.subr.mxu0 0.0
    %1498 = vmatpush1.msra.mxu0 0.0
    %1499 = vmatprep.subr.mxu0 0.0
    %1500 = vmatpush1.msra.mxu0 0.0
    %1501 = vmatprep.subr.mxu0 0.0
    %1502 = vmatpush1.msra.mxu0 0.0
    %1503 = vmatprep.subr.mxu0 0.0
    %1504 = vmatpush1.msra.mxu0 0.0
    %1505 = vmatprep.subr.mxu0 0.0
    %1506 = vmatpush1.msra.mxu0 0.0
    %1507 = vmatprep.subr.mxu0 0.0
    %1508 = vmatpush1.msra.mxu0 0.0
    %1509 = vmatprep.subr.mxu0 0.0
    %1510 = vmatpush1.msra.mxu0 0.0
    %1511 = vmatprep.subr.mxu0 0.0
    %1512 = vmatpush1.msra.mxu0 0.0
    %1513 = vmatprep.subr.mxu0 0.0
    %1514 = vmatpush1.msra.mxu0 0.0
    %1515 = vmatprep.subr.mxu0 0.0
    %1516 = vmatpush1.msra.mxu0 0.0
    %1517 = vmatprep.subr.mxu0 0.0
    %1518 = vmatpush1.msra.mxu0 0.0
    %1519 = vmatprep.subr.mxu0 0.0
    %1520 = vmatpush1.msra.mxu0 0.0
    %1521 = vmatprep.subr.mxu0 0.0
    %1522 = vmatpush1.msra.mxu0 0.0
    %1523 = vmatprep.subr.mxu0 0.0
    %1524 = vmatpush1.msra.mxu0 0.0
    %1525 = vmatprep.subr.mxu0 0.0
    %1526 = vmatpush1.msra.mxu0 0.0
    %1527 = vmatprep.mubr.f32.mxu0 0.0
    %1528 = vmatmul.mubr.f32.gmra.mrb[0].mxu0 %v1392
    %v1529 = vpop.f32.mrb[0].mxu0
    %v1530 = vadd.f32 %v72, %v1529
    %v1531 = vpop.f32.mrb[0].mxu0
    %1532 = vmatprep.mubr.f32.mxu0 0.0
    %1533 = vmatmul.mubr.f32.gmra.mrb[0].mxu0 %v1395
    %v1534 = vpop.f32.mrb[0].mxu0
    %v1535 = vadd.f32 %v72, %v1534
    %v1536 = vpop.f32.mrb[0].mxu0
    %1537 = vmatprep.mubr.f32.mxu0 0.0
    %1538 = vmatmul.mubr.f32.gmra.mrb[0].mxu0 %v1398
    %v1539 = vpop.f32.mrb[0].mxu0
    %v1540 = vadd.f32 %v72, %v1539
    %v1541 = vpop.f32.mrb[0].mxu0
    %1542 = vmatprep.mubr.f32.mxu0 0.0
    %1543 = vmatmul.mubr.f32.gmra.mrb[0].mxu0 %v1401
    %v1544 = vpop.f32.mrb[0].mxu0
    %v1545 = vadd.f32 %v72, %v1544
    %v1546 = vpop.f32.mrb[0].mxu0
    %1547 = vmatprep.mubr.f32.mxu0 0.0
    %1548 = vmatmul.mubr.f32.gmra.mrb[0].mxu0 %v1404
    %v1549 = vpop.f32.mrb[0].mxu0
    %v1550 = vadd.f32 %v72, %v1549
    %v1551 = vpop.f32.mrb[0].mxu0
    %1552 = vmatprep.mubr.f32.mxu0 0.0
    %1553 = vmatmul.mubr.f32.gmra.mrb[0].mxu0 %v1407
    %v1554 = vpop.f32.mrb[0].mxu0
    %v1555 = vadd.f32 %v72, %v1554
    %v1556 = vpop.f32.mrb[0].mxu0
    %1557 = vmatprep.mubr.f32.mxu0 0.0
    %1558 = vmatmul.mubr.f32.gmra.mrb[0].mxu0 %v1410
    %v1559 = vpop.f32.mrb[0].mxu0
    %v1560 = vadd.f32 %v72, %v1559
    %v1561 = vpop.f32.mrb[0].mxu0
    %1562 = vmatprep.mubr.f32.mxu0 0.0
    %1563 = vmatmul.mubr.f32.gmra.mrb[0].mxu0 %v1413
    %v1564 = vpop.f32.mrb[0].mxu0
    %v1565 = vadd.f32 %v72, %v1564
    %v1566 = vpop.f32.mrb[0].mxu0
    %1567 = vmatprep.mubr.f32.mxu0 0.0
    %1568 = vmatmul.mubr.f32.gmra.mrb[0].mxu0 %v1416
    %v1569 = vpop.f32.mrb[0].mxu0
    %v1570 = vadd.f32 %v72, %v1569
    %v1571 = vpop.f32.mrb[0].mxu0
    %1572 = vmatprep.mubr.f32.mxu0 0.0
    %1573 = vmatmul.mubr.f32.gmra.mrb[0].mxu0 %v1419
    %v1574 = vpop.f32.mrb[0].mxu0
    %v1575 = vadd.f32 %v72, %v1574
    %v1576 = vpop.f32.mrb[0].mxu0
    %1577 = vmatprep.mubr.f32.mxu0 0.0
    %1578 = vmatmul.mubr.f32.gmra.mrb[0].mxu0 %v1422
    %v1579 = vpop.f32.mrb[0].mxu0
    %v1580 = vadd.f32 %v72, %v1579
    %v1581 = vpop.f32.mrb[0].mxu0
    %1582 = vmatprep.mubr.f32.mxu0 0.0
    %1583 = vmatmul.mubr.f32.gmra.mrb[0].mxu0 %v1425
    %v1584 = vpop.f32.mrb[0].mxu0
    %v1585 = vadd.f32 %v72, %v1584
    %v1586 = vpop.f32.mrb[0].mxu0
    %1587 = vmatprep.mubr.f32.mxu0 0.0
    %1588 = vmatmul.mubr.f32.gmra.mrb[0].mxu0 %v1428
    %v1589 = vpop.f32.mrb[0].mxu0
    %v1590 = vadd.f32 %v72, %v1589
    %v1591 = vpop.f32.mrb[0].mxu0
    %1592 = vmatprep.mubr.f32.mxu0 0.0
    %1593 = vmatmul.mubr.f32.gmra.mrb[0].mxu0 %v1431
    %v1594 = vpop.f32.mrb[0].mxu0
    %v1595 = vadd.f32 %v72, %v1594
    %v1596 = vpop.f32.mrb[0].mxu0
    %1597 = vmatprep.mubr.f32.mxu0 0.0
    %1598 = vmatmul.mubr.f32.gmra.mrb[0].mxu0 %v1434
    %v1599 = vpop.f32.mrb[0].mxu0
    %v1600 = vadd.f32 %v72, %v1599
    %v1601 = vpop.f32.mrb[0].mxu0
    %1602 = vmatprep.mubr.f32.mxu0 0.0
    %1603 = vmatmul.mubr.f32.gmra.mrb[0].mxu0 %v1437
    %v1604 = vpop.f32.mrb[0].mxu0
    %v1605 = vadd.f32 %v72, %v1604
    %v1606 = vpop.f32.mrb[0].mxu0
    %1607 = vmatprep.mubr.f32.mxu0 0.0
    %1608 = vmatmul.mubr.f32.gmra.mrb[0].mxu0 %v1440
    %v1609 = vpop.f32.mrb[0].mxu0
    %v1610 = vadd.f32 %v72, %v1609
    %v1611 = vpop.f32.mrb[0].mxu0
    %1612 = vmatprep.mubr.f32.mxu0 0.0
    %1613 = vmatmul.mubr.f32.gmra.mrb[0].mxu0 %v1443
    %v1614 = vpop.f32.mrb[0].mxu0
    %v1615 = vadd.f32 %v72, %v1614
    %v1616 = vpop.f32.mrb[0].mxu0
    %1617 = vmatprep.mubr.f32.mxu0 0.0
    %1618 = vmatmul.mubr.f32.gmra.mrb[0].mxu0 %v1446
    %v1619 = vpop.f32.mrb[0].mxu0
    %v1620 = vadd.f32 %v72, %v1619
    %v1621 = vpop.f32.mrb[0].mxu0
    %1622 = vmatprep.mubr.f32.mxu0 0.0
    %1623 = vmatmul.mubr.f32.gmra.mrb[0].mxu0 %v1449
    %v1624 = vpop.f32.mrb[0].mxu0
    %v1625 = vadd.f32 %v72, %v1624
    %v1626 = vpop.f32.mrb[0].mxu0
    %1627 = vmatprep.mubr.f32.mxu0 0.0
    %1628 = vmatmul.mubr.f32.gmra.mrb[0].mxu0 %v1452
    %v1629 = vpop.f32.mrb[0].mxu0
    %v1630 = vadd.f32 %v72, %v1629
    %v1631 = vpop.f32.mrb[0].mxu0
    %1632 = vmatprep.mubr.f32.mxu0 0.0
    %1633 = vmatmul.mubr.f32.gmra.mrb[0].mxu0 %v1455
    %v1634 = vpop.f32.mrb[0].mxu0
    %v1635 = vadd.f32 %v72, %v1634
    %v1636 = vpop.f32.mrb[0].mxu0
    %1637 = vmatprep.mubr.f32.mxu0 0.0
    %1638 = vmatmul.mubr.f32.gmra.mrb[0].mxu0 %v1458
    %v1639 = vpop.f32.mrb[0].mxu0
    %v1640 = vadd.f32 %v72, %v1639
    %v1641 = vpop.f32.mrb[0].mxu0
    %1642 = vmatprep.mubr.f32.mxu0 0.0
    %1643 = vmatmul.mubr.f32.gmra.mrb[0].mxu0 %v1461
    %v1644 = vpop.f32.mrb[0].mxu0
    %v1645 = vadd.f32 %v72, %v1644
    %v1646 = vpop.f32.mrb[0].mxu0
    %1647 = vdwg.mxu0
    %v1648 = vmax.f32 %v1530, 0.0
    %v1649 = vmax.f32 %v1535, 0.0
    %v1650 = vmax.f32 %v1540, 0.0
    %v1651 = vmax.f32 %v1545, 0.0
    %v1652 = vmax.f32 %v1550, 0.0
    %v1653 = vmax.f32 %v1555, 0.0
    %v1654 = vmax.f32 %v1560, 0.0
    %v1655 = vmax.f32 %v1565, 0.0
    %v1656 = vmax.f32 %v1570, 0.0
    %v1657 = vmax.f32 %v1575, 0.0
    %v1658 = vmax.f32 %v1580, 0.0
    %v1659 = vmax.f32 %v1585, 0.0
    %v1660 = vmax.f32 %v1590, 0.0
    %v1661 = vmax.f32 %v1595, 0.0
    %v1662 = vmax.f32 %v1600, 0.0
    %v1663 = vmax.f32 %v1605, 0.0
    %v1664 = vmax.f32 %v1610, 0.0
    %v1665 = vmax.f32 %v1615, 0.0
    %v1666 = vmax.f32 %v1620, 0.0
    %v1667 = vmax.f32 %v1625, 0.0
    %v1668 = vmax.f32 %v1630, 0.0
    %v1669 = vmax.f32 %v1635, 0.0
    %v1670 = vmax.f32 %v1640, 0.0
    %v1671 = vmax.f32 %v1645, 0.0
    %v1672 = vld [vmem:[%s0 + $0x240] sm:$0xff]
    %v1673 = vld [vmem:[%s0 + $0x248] sm:$0xff]
    %v1674 = vld [vmem:[%s0 + $0x250] sm:$0xff]
    %v1675 = vld [vmem:[%s0 + $0x258] sm:$0xff]
    %v1676 = vld [vmem:[%s0 + $0x260] sm:$0xff]
    %v1677 = vld [vmem:[%s0 + $0x268] sm:$0xff]
    %v1678 = vld [vmem:[%s0 + $0x270] sm:$0xff]
    %v1679 = vld [vmem:[%s0 + $0x278] sm:$0xff]
    %v1680 = vld [vmem:[%s0 + $0x280] sm:$0xff]
    %v1681 = vld [vmem:[%s0 + $0x288] sm:$0xff]
    %v1682 = vld [vmem:[%s0 + $0x290] sm:$0xff]
    %v1683 = vld [vmem:[%s0 + $0x298] sm:$0xff]
    %v1684 = vld [vmem:[%s0 + $0x2a0] sm:$0xff]
    %v1685 = vld [vmem:[%s0 + $0x2a8] sm:$0xff]
    %v1686 = vld [vmem:[%s0 + $0x2b0] sm:$0xff]
    %v1687 = vld [vmem:[%s0 + $0x2b8] sm:$0xff]
    %v1688 = vld [vmem:[%s0 + $0x2c0] sm:$0xff]
    %v1689 = vld [vmem:[%s0 + $0x2c8] sm:$0xff]
    %v1690 = vld [vmem:[%s0 + $0x2d0] sm:$0xff]
    %v1691 = vld [vmem:[%s0 + $0x2d8] sm:$0xff]
    %v1692 = vld [vmem:[%s0 + $0x2e0] sm:$0xff]
    %v1693 = vld [vmem:[%s0 + $0x2e8] sm:$0xff]
    %v1694 = vld [vmem:[%s0 + $0x2f0] sm:$0xff]
    %v1695 = vld [vmem:[%s0 + $0x2f8] sm:$0xff]
    %v1697 = vsel %vm74, %v1672, 0
    %v1700 = vsel %vm74, %v1673, 0
    %v1703 = vsel %vm74, %v1674, 0
    %v1706 = vsel %vm74, %v1675, 0
    %v1709 = vsel %vm74, %v1676, 0
    %v1712 = vsel %vm74, %v1677, 0
    %v1715 = vsel %vm74, %v1678, 0
    %v1718 = vsel %vm74, %v1679, 0
    %v1721 = vsel %vm74, %v1680, 0
    %v1724 = vsel %vm74, %v1681, 0
    %v1727 = vsel %vm74, %v1682, 0
    %v1730 = vsel %vm74, %v1683, 0
    %v1733 = vsel %vm74, %v1684, 0
    %v1736 = vsel %vm74, %v1685, 0
    %v1739 = vsel %vm74, %v1686, 0
    %v1742 = vsel %vm74, %v1687, 0
    %v1745 = vsel %vm74, %v1688, 0
    %v1748 = vsel %vm74, %v1689, 0
    %v1751 = vsel %vm74, %v1690, 0
    %v1754 = vsel %vm74, %v1691, 0
    %v1757 = vsel %vm74, %v1692, 0
    %v1760 = vsel %vm74, %v1693, 0
    %v1763 = vsel %vm74, %v1694, 0
    %v1766 = vsel %vm74, %v1695, 0
    %1768 = vmatprep.subr.mxu0 0.0
    %1769 = vmatpush1.msra.mxu0 %v39
    %1770 = vmatprep.subr.mxu0 0.0
    %1771 = vmatpush1.msra.mxu0 %v40
    %1772 = vmatprep.subr.mxu0 0.0
    %1773 = vmatpush1.msra.mxu0 %v41
    %1774 = vmatprep.subr.mxu0 0.0
    %1775 = vmatpush1.msra.mxu0 %v42
    %1776 = vmatprep.subr.mxu0 0.0
    %1777 = vmatpush1.msra.mxu0 0.0
    %1778 = vmatprep.subr.mxu0 0.0
    %1779 = vmatpush1.msra.mxu0 0.0
    %1780 = vmatprep.subr.mxu0 0.0
    %1781 = vmatpush1.msra.mxu0 0.0
    %1782 = vmatprep.subr.mxu0 0.0
    %1783 = vmatpush1.msra.mxu0 0.0
    %1784 = vmatprep.subr.mxu0 0.0
    %1785 = vmatpush1.msra.mxu0 0.0
    %1786 = vmatprep.subr.mxu0 0.0
    %1787 = vmatpush1.msra.mxu0 0.0
    %1788 = vmatprep.subr.mxu0 0.0
    %1789 = vmatpush1.msra.mxu0 0.0
    %1790 = vmatprep.subr.mxu0 0.0
    %1791 = vmatpush1.msra.mxu0 0.0
    %1792 = vmatprep.subr.mxu0 0.0
    %1793 = vmatpush1.msra.mxu0 0.0
    %1794 = vmatprep.subr.mxu0 0.0
    %1795 = vmatpush1.msra.mxu0 0.0
    %1796 = vmatprep.subr.mxu0 0.0
    %1797 = vmatpush1.msra.mxu0 0.0
    %1798 = vmatprep.subr.mxu0 0.0
    %1799 = vmatpush1.msra.mxu0 0.0
    %1800 = vmatprep.subr.mxu0 0.0
    %1801 = vmatpush1.msra.mxu0 0.0
    %1802 = vmatprep.subr.mxu0 0.0
    %1803 = vmatpush1.msra.mxu0 0.0
    %1804 = vmatprep.subr.mxu0 0.0
    %1805 = vmatpush1.msra.mxu0 0.0
    %1806 = vmatprep.subr.mxu0 0.0
    %1807 = vmatpush1.msra.mxu0 0.0
    %1808 = vmatprep.subr.mxu0 0.0
    %1809 = vmatpush1.msra.mxu0 0.0
    %1810 = vmatprep.subr.mxu0 0.0
    %1811 = vmatpush1.msra.mxu0 0.0
    %1812 = vmatprep.subr.mxu0 0.0
    %1813 = vmatpush1.msra.mxu0 0.0
    %1814 = vmatprep.subr.mxu0 0.0
    %1815 = vmatpush1.msra.mxu0 0.0
    %1816 = vmatprep.subr.mxu0 0.0
    %1817 = vmatpush1.msra.mxu0 0.0
    %1818 = vmatprep.subr.mxu0 0.0
    %1819 = vmatpush1.msra.mxu0 0.0
    %1820 = vmatprep.subr.mxu0 0.0
    %1821 = vmatpush1.msra.mxu0 0.0
    %1822 = vmatprep.subr.mxu0 0.0
    %1823 = vmatpush1.msra.mxu0 0.0
    %1824 = vmatprep.subr.mxu0 0.0
    %1825 = vmatpush1.msra.mxu0 0.0
    %1826 = vmatprep.subr.mxu0 0.0
    %1827 = vmatpush1.msra.mxu0 0.0
    %1828 = vmatprep.subr.mxu0 0.0
    %1829 = vmatpush1.msra.mxu0 0.0
    %1830 = vmatprep.subr.mxu0 0.0
    %1831 = vmatpush1.msra.mxu0 0.0
    %1832 = vmatprep.mubr.f32.mxu0 0.0
    %1833 = vmatmul.mubr.f32.gmra.mrb[0].mxu0 %v1697
    %v1834 = vpop.f32.mrb[0].mxu0
    %v1835 = vadd.f32 %v72, %v1834
    %v1836 = vpop.f32.mrb[0].mxu0
    %1837 = vmatprep.mubr.f32.mxu0 0.0
    %1838 = vmatmul.mubr.f32.gmra.mrb[0].mxu0 %v1700
    %v1839 = vpop.f32.mrb[0].mxu0
    %v1840 = vadd.f32 %v72, %v1839
    %v1841 = vpop.f32.mrb[0].mxu0
    %1842 = vmatprep.mubr.f32.mxu0 0.0
    %1843 = vmatmul.mubr.f32.gmra.mrb[0].mxu0 %v1703
    %v1844 = vpop.f32.mrb[0].mxu0
    %v1845 = vadd.f32 %v72, %v1844
    %v1846 = vpop.f32.mrb[0].mxu0
    %1847 = vmatprep.mubr.f32.mxu0 0.0
    %1848 = vmatmul.mubr.f32.gmra.mrb[0].mxu0 %v1706
    %v1849 = vpop.f32.mrb[0].mxu0
    %v1850 = vadd.f32 %v72, %v1849
    %v1851 = vpop.f32.mrb[0].mxu0
    %1852 = vmatprep.mubr.f32.mxu0 0.0
    %1853 = vmatmul.mubr.f32.gmra.mrb[0].mxu0 %v1709
    %v1854 = vpop.f32.mrb[0].mxu0
    %v1855 = vadd.f32 %v72, %v1854
    %v1856 = vpop.f32.mrb[0].mxu0
    %1857 = vmatprep.mubr.f32.mxu0 0.0
    %1858 = vmatmul.mubr.f32.gmra.mrb[0].mxu0 %v1712
    %v1859 = vpop.f32.mrb[0].mxu0
    %v1860 = vadd.f32 %v72, %v1859
    %v1861 = vpop.f32.mrb[0].mxu0
    %1862 = vmatprep.mubr.f32.mxu0 0.0
    %1863 = vmatmul.mubr.f32.gmra.mrb[0].mxu0 %v1715
    %v1864 = vpop.f32.mrb[0].mxu0
    %v1865 = vadd.f32 %v72, %v1864
    %v1866 = vpop.f32.mrb[0].mxu0
    %1867 = vmatprep.mubr.f32.mxu0 0.0
    %1868 = vmatmul.mubr.f32.gmra.mrb[0].mxu0 %v1718
    %v1869 = vpop.f32.mrb[0].mxu0
    %v1870 = vadd.f32 %v72, %v1869
    %v1871 = vpop.f32.mrb[0].mxu0
    %1872 = vmatprep.mubr.f32.mxu0 0.0
    %1873 = vmatmul.mubr.f32.gmra.mrb[0].mxu0 %v1721
    %v1874 = vpop.f32.mrb[0].mxu0
    %v1875 = vadd.f32 %v72, %v1874
    %v1876 = vpop.f32.mrb[0].mxu0
    %1877 = vmatprep.mubr.f32.mxu0 0.0
    %1878 = vmatmul.mubr.f32.gmra.mrb[0].mxu0 %v1724
    %v1879 = vpop.f32.mrb[0].mxu0
    %v1880 = vadd.f32 %v72, %v1879
    %v1881 = vpop.f32.mrb[0].mxu0
    %1882 = vmatprep.mubr.f32.mxu0 0.0
    %1883 = vmatmul.mubr.f32.gmra.mrb[0].mxu0 %v1727
    %v1884 = vpop.f32.mrb[0].mxu0
    %v1885 = vadd.f32 %v72, %v1884
    %v1886 = vpop.f32.mrb[0].mxu0
    %1887 = vmatprep.mubr.f32.mxu0 0.0
    %1888 = vmatmul.mubr.f32.gmra.mrb[0].mxu0 %v1730
    %v1889 = vpop.f32.mrb[0].mxu0
    %v1890 = vadd.f32 %v72, %v1889
    %v1891 = vpop.f32.mrb[0].mxu0
    %1892 = vmatprep.mubr.f32.mxu0 0.0
    %1893 = vmatmul.mubr.f32.gmra.mrb[0].mxu0 %v1733
    %v1894 = vpop.f32.mrb[0].mxu0
    %v1895 = vadd.f32 %v72, %v1894
    %v1896 = vpop.f32.mrb[0].mxu0
    %1897 = vmatprep.mubr.f32.mxu0 0.0
    %1898 = vmatmul.mubr.f32.gmra.mrb[0].mxu0 %v1736
    %v1899 = vpop.f32.mrb[0].mxu0
    %v1900 = vadd.f32 %v72, %v1899
    %v1901 = vpop.f32.mrb[0].mxu0
    %1902 = vmatprep.mubr.f32.mxu0 0.0
    %1903 = vmatmul.mubr.f32.gmra.mrb[0].mxu0 %v1739
    %v1904 = vpop.f32.mrb[0].mxu0
    %v1905 = vadd.f32 %v72, %v1904
    %v1906 = vpop.f32.mrb[0].mxu0
    %1907 = vmatprep.mubr.f32.mxu0 0.0
    %1908 = vmatmul.mubr.f32.gmra.mrb[0].mxu0 %v1742
    %v1909 = vpop.f32.mrb[0].mxu0
    %v1910 = vadd.f32 %v72, %v1909
    %v1911 = vpop.f32.mrb[0].mxu0
    %1912 = vmatprep.mubr.f32.mxu0 0.0
    %1913 = vmatmul.mubr.f32.gmra.mrb[0].mxu0 %v1745
    %v1914 = vpop.f32.mrb[0].mxu0
    %v1915 = vadd.f32 %v72, %v1914
    %v1916 = vpop.f32.mrb[0].mxu0
    %1917 = vmatprep.mubr.f32.mxu0 0.0
    %1918 = vmatmul.mubr.f32.gmra.mrb[0].mxu0 %v1748
    %v1919 = vpop.f32.mrb[0].mxu0
    %v1920 = vadd.f32 %v72, %v1919
    %v1921 = vpop.f32.mrb[0].mxu0
    %1922 = vmatprep.mubr.f32.mxu0 0.0
    %1923 = vmatmul.mubr.f32.gmra.mrb[0].mxu0 %v1751
    %v1924 = vpop.f32.mrb[0].mxu0
    %v1925 = vadd.f32 %v72, %v1924
    %v1926 = vpop.f32.mrb[0].mxu0
    %1927 = vmatprep.mubr.f32.mxu0 0.0
    %1928 = vmatmul.mubr.f32.gmra.mrb[0].mxu0 %v1754
    %v1929 = vpop.f32.mrb[0].mxu0
    %v1930 = vadd.f32 %v72, %v1929
    %v1931 = vpop.f32.mrb[0].mxu0
    %1932 = vmatprep.mubr.f32.mxu0 0.0
    %1933 = vmatmul.mubr.f32.gmra.mrb[0].mxu0 %v1757
    %v1934 = vpop.f32.mrb[0].mxu0
    %v1935 = vadd.f32 %v72, %v1934
    %v1936 = vpop.f32.mrb[0].mxu0
    %1937 = vmatprep.mubr.f32.mxu0 0.0
    %1938 = vmatmul.mubr.f32.gmra.mrb[0].mxu0 %v1760
    %v1939 = vpop.f32.mrb[0].mxu0
    %v1940 = vadd.f32 %v72, %v1939
    %v1941 = vpop.f32.mrb[0].mxu0
    %1942 = vmatprep.mubr.f32.mxu0 0.0
    %1943 = vmatmul.mubr.f32.gmra.mrb[0].mxu0 %v1763
    %v1944 = vpop.f32.mrb[0].mxu0
    %v1945 = vadd.f32 %v72, %v1944
    %v1946 = vpop.f32.mrb[0].mxu0
    %1947 = vmatprep.mubr.f32.mxu0 0.0
    %1948 = vmatmul.mubr.f32.gmra.mrb[0].mxu0 %v1766
    %v1949 = vpop.f32.mrb[0].mxu0
    %v1950 = vadd.f32 %v72, %v1949
    %v1951 = vpop.f32.mrb[0].mxu0
    %1952 = vdwg.mxu0
    %v1953 = vmax.f32 %v1835, 0.0
    %v1954 = vmax.f32 %v1840, 0.0
    %v1955 = vmax.f32 %v1845, 0.0
    %v1956 = vmax.f32 %v1850, 0.0
    %v1957 = vmax.f32 %v1855, 0.0
    %v1958 = vmax.f32 %v1860, 0.0
    %v1959 = vmax.f32 %v1865, 0.0
    %v1960 = vmax.f32 %v1870, 0.0
    %v1961 = vmax.f32 %v1875, 0.0
    %v1962 = vmax.f32 %v1880, 0.0
    %v1963 = vmax.f32 %v1885, 0.0
    %v1964 = vmax.f32 %v1890, 0.0
    %v1965 = vmax.f32 %v1895, 0.0
    %v1966 = vmax.f32 %v1900, 0.0
    %v1967 = vmax.f32 %v1905, 0.0
    %v1968 = vmax.f32 %v1910, 0.0
    %v1969 = vmax.f32 %v1915, 0.0
    %v1970 = vmax.f32 %v1920, 0.0
    %v1971 = vmax.f32 %v1925, 0.0
    %v1972 = vmax.f32 %v1930, 0.0
    %v1973 = vmax.f32 %v1935, 0.0
    %v1974 = vmax.f32 %v1940, 0.0
    %v1975 = vmax.f32 %v1945, 0.0
    %v1976 = vmax.f32 %v1950, 0.0
    %v1977 = vmax.f32 %v1648, %v1953
    %v1978 = vmax.f32 %v1649, %v1954
    %v1979 = vmax.f32 %v1650, %v1955
    %v1980 = vmax.f32 %v1651, %v1956
    %v1981 = vmax.f32 %v1652, %v1957
    %v1982 = vmax.f32 %v1653, %v1958
    %v1983 = vmax.f32 %v1654, %v1959
    %v1984 = vmax.f32 %v1655, %v1960
    %v1985 = vmax.f32 %v1656, %v1961
    %v1986 = vmax.f32 %v1657, %v1962
    %v1987 = vmax.f32 %v1658, %v1963
    %v1988 = vmax.f32 %v1659, %v1964
    %v1989 = vmax.f32 %v1660, %v1965
    %v1990 = vmax.f32 %v1661, %v1966
    %v1991 = vmax.f32 %v1662, %v1967
    %v1992 = vmax.f32 %v1663, %v1968
    %v1993 = vmax.f32 %v1664, %v1969
    %v1994 = vmax.f32 %v1665, %v1970
    %v1995 = vmax.f32 %v1666, %v1971
    %v1996 = vmax.f32 %v1667, %v1972
    %v1997 = vmax.f32 %v1668, %v1973
    %v1998 = vmax.f32 %v1669, %v1974
    %v1999 = vmax.f32 %v1670, %v1975
    %v2000 = vmax.f32 %v1671, %v1976
    %v2001 = vld [vmem:[%s0 + $0x3c0] sm:$0xff]
    %v2002 = vld [vmem:[%s0 + $0x3c8] sm:$0xff]
    %v2003 = vld [vmem:[%s0 + $0x3d0] sm:$0xff]
    %v2004 = vld [vmem:[%s0 + $0x3d8] sm:$0xff]
    %v2005 = vld [vmem:[%s0 + $0x3e0] sm:$0xff]
    %v2006 = vld [vmem:[%s0 + $0x3e8] sm:$0xff]
    %v2007 = vld [vmem:[%s0 + $0x3f0] sm:$0xff]
    %v2008 = vld [vmem:[%s0 + $0x3f8] sm:$0xff]
    %v2009 = vld [vmem:[%s0 + $0x400] sm:$0xff]
    %v2010 = vld [vmem:[%s0 + $0x408] sm:$0xff]
    %v2011 = vld [vmem:[%s0 + $0x410] sm:$0xff]
    %v2012 = vld [vmem:[%s0 + $0x418] sm:$0xff]
    %v2013 = vld [vmem:[%s0 + $0x420] sm:$0xff]
    %v2014 = vld [vmem:[%s0 + $0x428] sm:$0xff]
    %v2015 = vld [vmem:[%s0 + $0x430] sm:$0xff]
    %v2016 = vld [vmem:[%s0 + $0x438] sm:$0xff]
    %v2017 = vld [vmem:[%s0 + $0x440] sm:$0xff]
    %v2018 = vld [vmem:[%s0 + $0x448] sm:$0xff]
    %v2019 = vld [vmem:[%s0 + $0x450] sm:$0xff]
    %v2020 = vld [vmem:[%s0 + $0x458] sm:$0xff]
    %v2021 = vld [vmem:[%s0 + $0x460] sm:$0xff]
    %v2022 = vld [vmem:[%s0 + $0x468] sm:$0xff]
    %v2023 = vld [vmem:[%s0 + $0x470] sm:$0xff]
    %v2024 = vld [vmem:[%s0 + $0x478] sm:$0xff]
    %v2026 = vsel %vm74, %v2001, 0
    %v2029 = vsel %vm74, %v2002, 0
    %v2032 = vsel %vm74, %v2003, 0
    %v2035 = vsel %vm74, %v2004, 0
    %v2038 = vsel %vm74, %v2005, 0
    %v2041 = vsel %vm74, %v2006, 0
    %v2044 = vsel %vm74, %v2007, 0
    %v2047 = vsel %vm74, %v2008, 0
    %v2050 = vsel %vm74, %v2009, 0
    %v2053 = vsel %vm74, %v2010, 0
    %v2056 = vsel %vm74, %v2011, 0
    %v2059 = vsel %vm74, %v2012, 0
    %v2062 = vsel %vm74, %v2013, 0
    %v2065 = vsel %vm74, %v2014, 0
    %v2068 = vsel %vm74, %v2015, 0
    %v2071 = vsel %vm74, %v2016, 0
    %v2074 = vsel %vm74, %v2017, 0
    %v2077 = vsel %vm74, %v2018, 0
    %v2080 = vsel %vm74, %v2019, 0
    %v2083 = vsel %vm74, %v2020, 0
    %v2086 = vsel %vm74, %v2021, 0
    %v2089 = vsel %vm74, %v2022, 0
    %v2092 = vsel %vm74, %v2023, 0
    %v2095 = vsel %vm74, %v2024, 0
    %2097 = vmatprep.subr.mxu0 0.0
    %2098 = vmatpush1.msra.mxu0 %v39
    %2099 = vmatprep.subr.mxu0 0.0
    %2100 = vmatpush1.msra.mxu0 %v40
    %2101 = vmatprep.subr.mxu0 0.0
    %2102 = vmatpush1.msra.mxu0 %v41
    %2103 = vmatprep.subr.mxu0 0.0
    %2104 = vmatpush1.msra.mxu0 %v42
    %2105 = vmatprep.subr.mxu0 0.0
    %2106 = vmatpush1.msra.mxu0 0.0
    %2107 = vmatprep.subr.mxu0 0.0
    %2108 = vmatpush1.msra.mxu0 0.0
    %2109 = vmatprep.subr.mxu0 0.0
    %2110 = vmatpush1.msra.mxu0 0.0
    %2111 = vmatprep.subr.mxu0 0.0
    %2112 = vmatpush1.msra.mxu0 0.0
    %2113 = vmatprep.subr.mxu0 0.0
    %2114 = vmatpush1.msra.mxu0 0.0
    %2115 = vmatprep.subr.mxu0 0.0
    %2116 = vmatpush1.msra.mxu0 0.0
    %2117 = vmatprep.subr.mxu0 0.0
    %2118 = vmatpush1.msra.mxu0 0.0
    %2119 = vmatprep.subr.mxu0 0.0
    %2120 = vmatpush1.msra.mxu0 0.0
    %2121 = vmatprep.subr.mxu0 0.0
    %2122 = vmatpush1.msra.mxu0 0.0
    %2123 = vmatprep.subr.mxu0 0.0
    %2124 = vmatpush1.msra.mxu0 0.0
    %2125 = vmatprep.subr.mxu0 0.0
    %2126 = vmatpush1.msra.mxu0 0.0
    %2127 = vmatprep.subr.mxu0 0.0
    %2128 = vmatpush1.msra.mxu0 0.0
    %2129 = vmatprep.subr.mxu0 0.0
    %2130 = vmatpush1.msra.mxu0 0.0
    %2131 = vmatprep.subr.mxu0 0.0
    %2132 = vmatpush1.msra.mxu0 0.0
    %2133 = vmatprep.subr.mxu0 0.0
    %2134 = vmatpush1.msra.mxu0 0.0
    %2135 = vmatprep.subr.mxu0 0.0
    %2136 = vmatpush1.msra.mxu0 0.0
    %2137 = vmatprep.subr.mxu0 0.0
    %2138 = vmatpush1.msra.mxu0 0.0
    %2139 = vmatprep.subr.mxu0 0.0
    %2140 = vmatpush1.msra.mxu0 0.0
    %2141 = vmatprep.subr.mxu0 0.0
    %2142 = vmatpush1.msra.mxu0 0.0
    %2143 = vmatprep.subr.mxu0 0.0
    %2144 = vmatpush1.msra.mxu0 0.0
    %2145 = vmatprep.subr.mxu0 0.0
    %2146 = vmatpush1.msra.mxu0 0.0
    %2147 = vmatprep.subr.mxu0 0.0
    %2148 = vmatpush1.msra.mxu0 0.0
    %2149 = vmatprep.subr.mxu0 0.0
    %2150 = vmatpush1.msra.mxu0 0.0
    %2151 = vmatprep.subr.mxu0 0.0
    %2152 = vmatpush1.msra.mxu0 0.0
    %2153 = vmatprep.subr.mxu0 0.0
    %2154 = vmatpush1.msra.mxu0 0.0
    %2155 = vmatprep.subr.mxu0 0.0
    %2156 = vmatpush1.msra.mxu0 0.0
    %2157 = vmatprep.subr.mxu0 0.0
    %2158 = vmatpush1.msra.mxu0 0.0
    %2159 = vmatprep.subr.mxu0 0.0
    %2160 = vmatpush1.msra.mxu0 0.0
    %2161 = vmatprep.mubr.f32.mxu0 0.0
    %2162 = vmatmul.mubr.f32.gmra.mrb[0].mxu0 %v2026
    %v2163 = vpop.f32.mrb[0].mxu0
    %v2164 = vadd.f32 %v72, %v2163
    %v2165 = vpop.f32.mrb[0].mxu0
    %2166 = vmatprep.mubr.f32.mxu0 0.0
    %2167 = vmatmul.mubr.f32.gmra.mrb[0].mxu0 %v2029
    %v2168 = vpop.f32.mrb[0].mxu0
    %v2169 = vadd.f32 %v72, %v2168
    %v2170 = vpop.f32.mrb[0].mxu0
    %2171 = vmatprep.mubr.f32.mxu0 0.0
    %2172 = vmatmul.mubr.f32.gmra.mrb[0].mxu0 %v2032
    %v2173 = vpop.f32.mrb[0].mxu0
    %v2174 = vadd.f32 %v72, %v2173
    %v2175 = vpop.f32.mrb[0].mxu0
    %2176 = vmatprep.mubr.f32.mxu0 0.0
    %2177 = vmatmul.mubr.f32.gmra.mrb[0].mxu0 %v2035
    %v2178 = vpop.f32.mrb[0].mxu0
    %v2179 = vadd.f32 %v72, %v2178
    %v2180 = vpop.f32.mrb[0].mxu0
    %2181 = vmatprep.mubr.f32.mxu0 0.0
    %2182 = vmatmul.mubr.f32.gmra.mrb[0].mxu0 %v2038
    %v2183 = vpop.f32.mrb[0].mxu0
    %v2184 = vadd.f32 %v72, %v2183
    %v2185 = vpop.f32.mrb[0].mxu0
    %2186 = vmatprep.mubr.f32.mxu0 0.0
    %2187 = vmatmul.mubr.f32.gmra.mrb[0].mxu0 %v2041
    %v2188 = vpop.f32.mrb[0].mxu0
    %v2189 = vadd.f32 %v72, %v2188
    %v2190 = vpop.f32.mrb[0].mxu0
    %2191 = vmatprep.mubr.f32.mxu0 0.0
    %2192 = vmatmul.mubr.f32.gmra.mrb[0].mxu0 %v2044
    %v2193 = vpop.f32.mrb[0].mxu0
    %v2194 = vadd.f32 %v72, %v2193
    %v2195 = vpop.f32.mrb[0].mxu0
    %2196 = vmatprep.mubr.f32.mxu0 0.0
    %2197 = vmatmul.mubr.f32.gmra.mrb[0].mxu0 %v2047
    %v2198 = vpop.f32.mrb[0].mxu0
    %v2199 = vadd.f32 %v72, %v2198
    %v2200 = vpop.f32.mrb[0].mxu0
    %2201 = vmatprep.mubr.f32.mxu0 0.0
    %2202 = vmatmul.mubr.f32.gmra.mrb[0].mxu0 %v2050
    %v2203 = vpop.f32.mrb[0].mxu0
    %v2204 = vadd.f32 %v72, %v2203
    %v2205 = vpop.f32.mrb[0].mxu0
    %2206 = vmatprep.mubr.f32.mxu0 0.0
    %2207 = vmatmul.mubr.f32.gmra.mrb[0].mxu0 %v2053
    %v2208 = vpop.f32.mrb[0].mxu0
    %v2209 = vadd.f32 %v72, %v2208
    %v2210 = vpop.f32.mrb[0].mxu0
    %2211 = vmatprep.mubr.f32.mxu0 0.0
    %2212 = vmatmul.mubr.f32.gmra.mrb[0].mxu0 %v2056
    %v2213 = vpop.f32.mrb[0].mxu0
    %v2214 = vadd.f32 %v72, %v2213
    %v2215 = vpop.f32.mrb[0].mxu0
    %2216 = vmatprep.mubr.f32.mxu0 0.0
    %2217 = vmatmul.mubr.f32.gmra.mrb[0].mxu0 %v2059
    %v2218 = vpop.f32.mrb[0].mxu0
    %v2219 = vadd.f32 %v72, %v2218
    %v2220 = vpop.f32.mrb[0].mxu0
    %2221 = vmatprep.mubr.f32.mxu0 0.0
    %2222 = vmatmul.mubr.f32.gmra.mrb[0].mxu0 %v2062
    %v2223 = vpop.f32.mrb[0].mxu0
    %v2224 = vadd.f32 %v72, %v2223
    %v2225 = vpop.f32.mrb[0].mxu0
    %2226 = vmatprep.mubr.f32.mxu0 0.0
    %2227 = vmatmul.mubr.f32.gmra.mrb[0].mxu0 %v2065
    %v2228 = vpop.f32.mrb[0].mxu0
    %v2229 = vadd.f32 %v72, %v2228
    %v2230 = vpop.f32.mrb[0].mxu0
    %2231 = vmatprep.mubr.f32.mxu0 0.0
    %2232 = vmatmul.mubr.f32.gmra.mrb[0].mxu0 %v2068
    %v2233 = vpop.f32.mrb[0].mxu0
    %v2234 = vadd.f32 %v72, %v2233
    %v2235 = vpop.f32.mrb[0].mxu0
    %2236 = vmatprep.mubr.f32.mxu0 0.0
    %2237 = vmatmul.mubr.f32.gmra.mrb[0].mxu0 %v2071
    %v2238 = vpop.f32.mrb[0].mxu0
    %v2239 = vadd.f32 %v72, %v2238
    %v2240 = vpop.f32.mrb[0].mxu0
    %2241 = vmatprep.mubr.f32.mxu0 0.0
    %2242 = vmatmul.mubr.f32.gmra.mrb[0].mxu0 %v2074
    %v2243 = vpop.f32.mrb[0].mxu0
    %v2244 = vadd.f32 %v72, %v2243
    %v2245 = vpop.f32.mrb[0].mxu0
    %2246 = vmatprep.mubr.f32.mxu0 0.0
    %2247 = vmatmul.mubr.f32.gmra.mrb[0].mxu0 %v2077
    %v2248 = vpop.f32.mrb[0].mxu0
    %v2249 = vadd.f32 %v72, %v2248
    %v2250 = vpop.f32.mrb[0].mxu0
    %2251 = vmatprep.mubr.f32.mxu0 0.0
    %2252 = vmatmul.mubr.f32.gmra.mrb[0].mxu0 %v2080
    %v2253 = vpop.f32.mrb[0].mxu0
    %v2254 = vadd.f32 %v72, %v2253
    %v2255 = vpop.f32.mrb[0].mxu0
    %2256 = vmatprep.mubr.f32.mxu0 0.0
    %2257 = vmatmul.mubr.f32.gmra.mrb[0].mxu0 %v2083
    %v2258 = vpop.f32.mrb[0].mxu0
    %v2259 = vadd.f32 %v72, %v2258
    %v2260 = vpop.f32.mrb[0].mxu0
    %2261 = vmatprep.mubr.f32.mxu0 0.0
    %2262 = vmatmul.mubr.f32.gmra.mrb[0].mxu0 %v2086
    %v2263 = vpop.f32.mrb[0].mxu0
    %v2264 = vadd.f32 %v72, %v2263
    %v2265 = vpop.f32.mrb[0].mxu0
    %2266 = vmatprep.mubr.f32.mxu0 0.0
    %2267 = vmatmul.mubr.f32.gmra.mrb[0].mxu0 %v2089
    %v2268 = vpop.f32.mrb[0].mxu0
    %v2269 = vadd.f32 %v72, %v2268
    %v2270 = vpop.f32.mrb[0].mxu0
    %2271 = vmatprep.mubr.f32.mxu0 0.0
    %2272 = vmatmul.mubr.f32.gmra.mrb[0].mxu0 %v2092
    %v2273 = vpop.f32.mrb[0].mxu0
    %v2274 = vadd.f32 %v72, %v2273
    %v2275 = vpop.f32.mrb[0].mxu0
    %2276 = vmatprep.mubr.f32.mxu0 0.0
    %2277 = vmatmul.mubr.f32.gmra.mrb[0].mxu0 %v2095
    %v2278 = vpop.f32.mrb[0].mxu0
    %v2279 = vadd.f32 %v72, %v2278
    %v2280 = vpop.f32.mrb[0].mxu0
    %2281 = vdwg.mxu0
    %v2282 = vmax.f32 %v2164, 0.0
    %v2283 = vmax.f32 %v2169, 0.0
    %v2284 = vmax.f32 %v2174, 0.0
    %v2285 = vmax.f32 %v2179, 0.0
    %v2286 = vmax.f32 %v2184, 0.0
    %v2287 = vmax.f32 %v2189, 0.0
    %v2288 = vmax.f32 %v2194, 0.0
    %v2289 = vmax.f32 %v2199, 0.0
    %v2290 = vmax.f32 %v2204, 0.0
    %v2291 = vmax.f32 %v2209, 0.0
    %v2292 = vmax.f32 %v2214, 0.0
    %v2293 = vmax.f32 %v2219, 0.0
    %v2294 = vmax.f32 %v2224, 0.0
    %v2295 = vmax.f32 %v2229, 0.0
    %v2296 = vmax.f32 %v2234, 0.0
    %v2297 = vmax.f32 %v2239, 0.0
    %v2298 = vmax.f32 %v2244, 0.0
    %v2299 = vmax.f32 %v2249, 0.0
    %v2300 = vmax.f32 %v2254, 0.0
    %v2301 = vmax.f32 %v2259, 0.0
    %v2302 = vmax.f32 %v2264, 0.0
    %v2303 = vmax.f32 %v2269, 0.0
    %v2304 = vmax.f32 %v2274, 0.0
    %v2305 = vmax.f32 %v2279, 0.0
    %v2306 = vmax.f32 %v1977, %v2282
    %v2307 = vmax.f32 %v1978, %v2283
    %v2308 = vmax.f32 %v1979, %v2284
    %v2309 = vmax.f32 %v1980, %v2285
    %v2310 = vmax.f32 %v1981, %v2286
    %v2311 = vmax.f32 %v1982, %v2287
    %v2312 = vmax.f32 %v1983, %v2288
    %v2313 = vmax.f32 %v1984, %v2289
    %v2314 = vmax.f32 %v1985, %v2290
    %v2315 = vmax.f32 %v1986, %v2291
    %v2316 = vmax.f32 %v1987, %v2292
    %v2317 = vmax.f32 %v1988, %v2293
    %v2318 = vmax.f32 %v1989, %v2294
    %v2319 = vmax.f32 %v1990, %v2295
    %v2320 = vmax.f32 %v1991, %v2296
    %v2321 = vmax.f32 %v1992, %v2297
    %v2322 = vmax.f32 %v1993, %v2298
    %v2323 = vmax.f32 %v1994, %v2299
    %v2324 = vmax.f32 %v1995, %v2300
    %v2325 = vmax.f32 %v1996, %v2301
    %v2326 = vmax.f32 %v1997, %v2302
    %v2327 = vmax.f32 %v1998, %v2303
    %v2328 = vmax.f32 %v1999, %v2304
    %v2329 = vmax.f32 %v2000, %v2305
    %v2330 = vld [vmem:[%s0 + $0x540] sm:$0xff]
    %v2331 = vld [vmem:[%s0 + $0x548] sm:$0xff]
    %v2332 = vld [vmem:[%s0 + $0x550] sm:$0xff]
    %v2333 = vld [vmem:[%s0 + $0x558] sm:$0xff]
    %v2334 = vld [vmem:[%s0 + $0x560] sm:$0xff]
    %v2335 = vld [vmem:[%s0 + $0x568] sm:$0xff]
    %v2336 = vld [vmem:[%s0 + $0x570] sm:$0xff]
    %v2337 = vld [vmem:[%s0 + $0x578] sm:$0xff]
    %v2338 = vld [vmem:[%s0 + $0x580] sm:$0xff]
    %v2339 = vld [vmem:[%s0 + $0x588] sm:$0xff]
    %v2340 = vld [vmem:[%s0 + $0x590] sm:$0xff]
    %v2341 = vld [vmem:[%s0 + $0x598] sm:$0xff]
    %v2342 = vld [vmem:[%s0 + $0x5a0] sm:$0xff]
    %v2343 = vld [vmem:[%s0 + $0x5a8] sm:$0xff]
    %v2344 = vld [vmem:[%s0 + $0x5b0] sm:$0xff]
    %v2345 = vld [vmem:[%s0 + $0x5b8] sm:$0xff]
    %v2346 = vld [vmem:[%s0 + $0x5c0] sm:$0xff]
    %v2347 = vld [vmem:[%s0 + $0x5c8] sm:$0xff]
    %v2348 = vld [vmem:[%s0 + $0x5d0] sm:$0xff]
    %v2349 = vld [vmem:[%s0 + $0x5d8] sm:$0xff]
    %v2350 = vld [vmem:[%s0 + $0x5e0] sm:$0xff]
    %v2351 = vld [vmem:[%s0 + $0x5e8] sm:$0xff]
    %v2352 = vld [vmem:[%s0 + $0x5f0] sm:$0xff]
    %v2353 = vld [vmem:[%s0 + $0x5f8] sm:$0xff]
    %v2355 = vsel %vm74, %v2330, 0
    %v2358 = vsel %vm74, %v2331, 0
    %v2361 = vsel %vm74, %v2332, 0
    %v2364 = vsel %vm74, %v2333, 0
    %v2367 = vsel %vm74, %v2334, 0
    %v2370 = vsel %vm74, %v2335, 0
    %v2373 = vsel %vm74, %v2336, 0
    %v2376 = vsel %vm74, %v2337, 0
    %v2379 = vsel %vm74, %v2338, 0
    %v2382 = vsel %vm74, %v2339, 0
    %v2385 = vsel %vm74, %v2340, 0
    %v2388 = vsel %vm74, %v2341, 0
    %v2391 = vsel %vm74, %v2342, 0
    %v2394 = vsel %vm74, %v2343, 0
    %v2397 = vsel %vm74, %v2344, 0
    %v2400 = vsel %vm74, %v2345, 0
    %v2403 = vsel %vm74, %v2346, 0
    %v2406 = vsel %vm74, %v2347, 0
    %v2409 = vsel %vm74, %v2348, 0
    %v2412 = vsel %vm74, %v2349, 0
    %v2415 = vsel %vm74, %v2350, 0
    %v2418 = vsel %vm74, %v2351, 0
    %v2421 = vsel %vm74, %v2352, 0
    %v2424 = vsel %vm74, %v2353, 0
    %2426 = vmatprep.subr.mxu0 0.0
    %2427 = vmatpush1.msra.mxu0 %v39
    %2428 = vmatprep.subr.mxu0 0.0
    %2429 = vmatpush1.msra.mxu0 %v40
    %2430 = vmatprep.subr.mxu0 0.0
    %2431 = vmatpush1.msra.mxu0 %v41
    %2432 = vmatprep.subr.mxu0 0.0
    %2433 = vmatpush1.msra.mxu0 %v42
    %2434 = vmatprep.subr.mxu0 0.0
    %2435 = vmatpush1.msra.mxu0 0.0
    %2436 = vmatprep.subr.mxu0 0.0
    %2437 = vmatpush1.msra.mxu0 0.0
    %2438 = vmatprep.subr.mxu0 0.0
    %2439 = vmatpush1.msra.mxu0 0.0
    %2440 = vmatprep.subr.mxu0 0.0
    %2441 = vmatpush1.msra.mxu0 0.0
    %2442 = vmatprep.subr.mxu0 0.0
    %2443 = vmatpush1.msra.mxu0 0.0
    %2444 = vmatprep.subr.mxu0 0.0
    %2445 = vmatpush1.msra.mxu0 0.0
    %2446 = vmatprep.subr.mxu0 0.0
    %2447 = vmatpush1.msra.mxu0 0.0
    %2448 = vmatprep.subr.mxu0 0.0
    %2449 = vmatpush1.msra.mxu0 0.0
    %2450 = vmatprep.subr.mxu0 0.0
    %2451 = vmatpush1.msra.mxu0 0.0
    %2452 = vmatprep.subr.mxu0 0.0
    %2453 = vmatpush1.msra.mxu0 0.0
    %2454 = vmatprep.subr.mxu0 0.0
    %2455 = vmatpush1.msra.mxu0 0.0
    %2456 = vmatprep.subr.mxu0 0.0
    %2457 = vmatpush1.msra.mxu0 0.0
    %2458 = vmatprep.subr.mxu0 0.0
    %2459 = vmatpush1.msra.mxu0 0.0
    %2460 = vmatprep.subr.mxu0 0.0
    %2461 = vmatpush1.msra.mxu0 0.0
    %2462 = vmatprep.subr.mxu0 0.0
    %2463 = vmatpush1.msra.mxu0 0.0
    %2464 = vmatprep.subr.mxu0 0.0
    %2465 = vmatpush1.msra.mxu0 0.0
    %2466 = vmatprep.subr.mxu0 0.0
    %2467 = vmatpush1.msra.mxu0 0.0
    %2468 = vmatprep.subr.mxu0 0.0
    %2469 = vmatpush1.msra.mxu0 0.0
    %2470 = vmatprep.subr.mxu0 0.0
    %2471 = vmatpush1.msra.mxu0 0.0
    %2472 = vmatprep.subr.mxu0 0.0
    %2473 = vmatpush1.msra.mxu0 0.0
    %2474 = vmatprep.subr.mxu0 0.0
    %2475 = vmatpush1.msra.mxu0 0.0
    %2476 = vmatprep.subr.mxu0 0.0
    %2477 = vmatpush1.msra.mxu0 0.0
    %2478 = vmatprep.subr.mxu0 0.0
    %2479 = vmatpush1.msra.mxu0 0.0
    %2480 = vmatprep.subr.mxu0 0.0
    %2481 = vmatpush1.msra.mxu0 0.0
    %2482 = vmatprep.subr.mxu0 0.0
    %2483 = vmatpush1.msra.mxu0 0.0
    %2484 = vmatprep.subr.mxu0 0.0
    %2485 = vmatpush1.msra.mxu0 0.0
    %2486 = vmatprep.subr.mxu0 0.0
    %2487 = vmatpush1.msra.mxu0 0.0
    %2488 = vmatprep.subr.mxu0 0.0
    %2489 = vmatpush1.msra.mxu0 0.0
    %2490 = vmatprep.mubr.f32.mxu0 0.0
    %2491 = vmatmul.mubr.f32.gmra.mrb[0].mxu0 %v2355
    %v2492 = vpop.f32.mrb[0].mxu0
    %v2493 = vadd.f32 %v72, %v2492
    %v2494 = vpop.f32.mrb[0].mxu0
    %2495 = vmatprep.mubr.f32.mxu0 0.0
    %2496 = vmatmul.mubr.f32.gmra.mrb[0].mxu0 %v2358
    %v2497 = vpop.f32.mrb[0].mxu0
    %v2498 = vadd.f32 %v72, %v2497
    %v2499 = vpop.f32.mrb[0].mxu0
    %2500 = vmatprep.mubr.f32.mxu0 0.0
    %2501 = vmatmul.mubr.f32.gmra.mrb[0].mxu0 %v2361
    %v2502 = vpop.f32.mrb[0].mxu0
    %v2503 = vadd.f32 %v72, %v2502
    %v2504 = vpop.f32.mrb[0].mxu0
    %2505 = vmatprep.mubr.f32.mxu0 0.0
    %2506 = vmatmul.mubr.f32.gmra.mrb[0].mxu0 %v2364
    %v2507 = vpop.f32.mrb[0].mxu0
    %v2508 = vadd.f32 %v72, %v2507
    %v2509 = vpop.f32.mrb[0].mxu0
    %2510 = vmatprep.mubr.f32.mxu0 0.0
    %2511 = vmatmul.mubr.f32.gmra.mrb[0].mxu0 %v2367
    %v2512 = vpop.f32.mrb[0].mxu0
    %v2513 = vadd.f32 %v72, %v2512
    %v2514 = vpop.f32.mrb[0].mxu0
    %2515 = vmatprep.mubr.f32.mxu0 0.0
    %2516 = vmatmul.mubr.f32.gmra.mrb[0].mxu0 %v2370
    %v2517 = vpop.f32.mrb[0].mxu0
    %v2518 = vadd.f32 %v72, %v2517
    %v2519 = vpop.f32.mrb[0].mxu0
    %2520 = vmatprep.mubr.f32.mxu0 0.0
    %2521 = vmatmul.mubr.f32.gmra.mrb[0].mxu0 %v2373
    %v2522 = vpop.f32.mrb[0].mxu0
    %v2523 = vadd.f32 %v72, %v2522
    %v2524 = vpop.f32.mrb[0].mxu0
    %2525 = vmatprep.mubr.f32.mxu0 0.0
    %2526 = vmatmul.mubr.f32.gmra.mrb[0].mxu0 %v2376
    %v2527 = vpop.f32.mrb[0].mxu0
    %v2528 = vadd.f32 %v72, %v2527
    %v2529 = vpop.f32.mrb[0].mxu0
    %2530 = vmatprep.mubr.f32.mxu0 0.0
    %2531 = vmatmul.mubr.f32.gmra.mrb[0].mxu0 %v2379
    %v2532 = vpop.f32.mrb[0].mxu0
    %v2533 = vadd.f32 %v72, %v2532
    %v2534 = vpop.f32.mrb[0].mxu0
    %2535 = vmatprep.mubr.f32.mxu0 0.0
    %2536 = vmatmul.mubr.f32.gmra.mrb[0].mxu0 %v2382
    %v2537 = vpop.f32.mrb[0].mxu0
    %v2538 = vadd.f32 %v72, %v2537
    %v2539 = vpop.f32.mrb[0].mxu0
    %2540 = vmatprep.mubr.f32.mxu0 0.0
    %2541 = vmatmul.mubr.f32.gmra.mrb[0].mxu0 %v2385
    %v2542 = vpop.f32.mrb[0].mxu0
    %v2543 = vadd.f32 %v72, %v2542
    %v2544 = vpop.f32.mrb[0].mxu0
    %2545 = vmatprep.mubr.f32.mxu0 0.0
    %2546 = vmatmul.mubr.f32.gmra.mrb[0].mxu0 %v2388
    %v2547 = vpop.f32.mrb[0].mxu0
    %v2548 = vadd.f32 %v72, %v2547
    %v2549 = vpop.f32.mrb[0].mxu0
    %2550 = vmatprep.mubr.f32.mxu0 0.0
    %2551 = vmatmul.mubr.f32.gmra.mrb[0].mxu0 %v2391
    %v2552 = vpop.f32.mrb[0].mxu0
    %v2553 = vadd.f32 %v72, %v2552
    %v2554 = vpop.f32.mrb[0].mxu0
    %2555 = vmatprep.mubr.f32.mxu0 0.0
    %2556 = vmatmul.mubr.f32.gmra.mrb[0].mxu0 %v2394
    %v2557 = vpop.f32.mrb[0].mxu0
    %v2558 = vadd.f32 %v72, %v2557
    %v2559 = vpop.f32.mrb[0].mxu0
    %2560 = vmatprep.mubr.f32.mxu0 0.0
    %2561 = vmatmul.mubr.f32.gmra.mrb[0].mxu0 %v2397
    %v2562 = vpop.f32.mrb[0].mxu0
    %v2563 = vadd.f32 %v72, %v2562
    %v2564 = vpop.f32.mrb[0].mxu0
    %2565 = vmatprep.mubr.f32.mxu0 0.0
    %2566 = vmatmul.mubr.f32.gmra.mrb[0].mxu0 %v2400
    %v2567 = vpop.f32.mrb[0].mxu0
    %v2568 = vadd.f32 %v72, %v2567
    %v2569 = vpop.f32.mrb[0].mxu0
    %2570 = vmatprep.mubr.f32.mxu0 0.0
    %2571 = vmatmul.mubr.f32.gmra.mrb[0].mxu0 %v2403
    %v2572 = vpop.f32.mrb[0].mxu0
    %v2573 = vadd.f32 %v72, %v2572
    %v2574 = vpop.f32.mrb[0].mxu0
    %2575 = vmatprep.mubr.f32.mxu0 0.0
    %2576 = vmatmul.mubr.f32.gmra.mrb[0].mxu0 %v2406
    %v2577 = vpop.f32.mrb[0].mxu0
    %v2578 = vadd.f32 %v72, %v2577
    %v2579 = vpop.f32.mrb[0].mxu0
    %2580 = vmatprep.mubr.f32.mxu0 0.0
    %2581 = vmatmul.mubr.f32.gmra.mrb[0].mxu0 %v2409
    %v2582 = vpop.f32.mrb[0].mxu0
    %v2583 = vadd.f32 %v72, %v2582
    %v2584 = vpop.f32.mrb[0].mxu0
    %2585 = vmatprep.mubr.f32.mxu0 0.0
    %2586 = vmatmul.mubr.f32.gmra.mrb[0].mxu0 %v2412
    %v2587 = vpop.f32.mrb[0].mxu0
    %v2588 = vadd.f32 %v72, %v2587
    %v2589 = vpop.f32.mrb[0].mxu0
    %2590 = vmatprep.mubr.f32.mxu0 0.0
    %2591 = vmatmul.mubr.f32.gmra.mrb[0].mxu0 %v2415
    %v2592 = vpop.f32.mrb[0].mxu0
    %v2593 = vadd.f32 %v72, %v2592
    %v2594 = vpop.f32.mrb[0].mxu0
    %2595 = vmatprep.mubr.f32.mxu0 0.0
    %2596 = vmatmul.mubr.f32.gmra.mrb[0].mxu0 %v2418
    %v2597 = vpop.f32.mrb[0].mxu0
    %v2598 = vadd.f32 %v72, %v2597
    %v2599 = vpop.f32.mrb[0].mxu0
    %2600 = vmatprep.mubr.f32.mxu0 0.0
    %2601 = vmatmul.mubr.f32.gmra.mrb[0].mxu0 %v2421
    %v2602 = vpop.f32.mrb[0].mxu0
    %v2603 = vadd.f32 %v72, %v2602
    %v2604 = vpop.f32.mrb[0].mxu0
    %2605 = vmatprep.mubr.f32.mxu0 0.0
    %2606 = vmatmul.mubr.f32.gmra.mrb[0].mxu0 %v2424
    %v2607 = vpop.f32.mrb[0].mxu0
    %v2608 = vadd.f32 %v72, %v2607
    %v2609 = vpop.f32.mrb[0].mxu0
    %2610 = vdwg.mxu0
    %v2611 = vmax.f32 %v2493, 0.0
    %v2612 = vmax.f32 %v2498, 0.0
    %v2613 = vmax.f32 %v2503, 0.0
    %v2614 = vmax.f32 %v2508, 0.0
    %v2615 = vmax.f32 %v2513, 0.0
    %v2616 = vmax.f32 %v2518, 0.0
    %v2617 = vmax.f32 %v2523, 0.0
    %v2618 = vmax.f32 %v2528, 0.0
    %v2619 = vmax.f32 %v2533, 0.0
    %v2620 = vmax.f32 %v2538, 0.0
    %v2621 = vmax.f32 %v2543, 0.0
    %v2622 = vmax.f32 %v2548, 0.0
    %v2623 = vmax.f32 %v2553, 0.0
    %v2624 = vmax.f32 %v2558, 0.0
    %v2625 = vmax.f32 %v2563, 0.0
    %v2626 = vmax.f32 %v2568, 0.0
    %v2627 = vmax.f32 %v2573, 0.0
    %v2628 = vmax.f32 %v2578, 0.0
    %v2629 = vmax.f32 %v2583, 0.0
    %v2630 = vmax.f32 %v2588, 0.0
    %v2631 = vmax.f32 %v2593, 0.0
    %v2632 = vmax.f32 %v2598, 0.0
    %v2633 = vmax.f32 %v2603, 0.0
    %v2634 = vmax.f32 %v2608, 0.0
    %v2635 = vmax.f32 %v2306, %v2611
    %v2636 = vmax.f32 %v2307, %v2612
    %v2637 = vmax.f32 %v2308, %v2613
    %v2638 = vmax.f32 %v2309, %v2614
    %v2639 = vmax.f32 %v2310, %v2615
    %v2640 = vmax.f32 %v2311, %v2616
    %v2641 = vmax.f32 %v2312, %v2617
    %v2642 = vmax.f32 %v2313, %v2618
    %v2643 = vmax.f32 %v2314, %v2619
    %v2644 = vmax.f32 %v2315, %v2620
    %v2645 = vmax.f32 %v2316, %v2621
    %v2646 = vmax.f32 %v2317, %v2622
    %v2647 = vmax.f32 %v2318, %v2623
    %v2648 = vmax.f32 %v2319, %v2624
    %v2649 = vmax.f32 %v2320, %v2625
    %v2650 = vmax.f32 %v2321, %v2626
    %v2651 = vmax.f32 %v2322, %v2627
    %v2652 = vmax.f32 %v2323, %v2628
    %v2653 = vmax.f32 %v2324, %v2629
    %v2654 = vmax.f32 %v2325, %v2630
    %v2655 = vmax.f32 %v2326, %v2631
    %v2656 = vmax.f32 %v2327, %v2632
    %v2657 = vmax.f32 %v2328, %v2633
    %v2658 = vmax.f32 %v2329, %v2634
    %s2659 = scalar_lea.vmem [#allocation2], 192
    %2660 = vst [vmem:[%s2659] sm:$0xff] %v2635
    %2661 = vst [vmem:[%s2659 + $0x8] sm:$0xff] %v2636
    %2662 = vst [vmem:[%s2659 + $0x10] sm:$0xff] %v2637
    %2663 = vst [vmem:[%s2659 + $0x18] sm:$0xff] %v2638
    %2664 = vst [vmem:[%s2659 + $0x20] sm:$0xff] %v2639
    %2665 = vst [vmem:[%s2659 + $0x28] sm:$0xff] %v2640
    %2666 = vst [vmem:[%s2659 + $0x30] sm:$0xff] %v2641
    %2667 = vst [vmem:[%s2659 + $0x38] sm:$0xff] %v2642
    %2668 = vst [vmem:[%s2659 + $0x40] sm:$0xff] %v2643
    %2669 = vst [vmem:[%s2659 + $0x48] sm:$0xff] %v2644
    %2670 = vst [vmem:[%s2659 + $0x50] sm:$0xff] %v2645
    %2671 = vst [vmem:[%s2659 + $0x58] sm:$0xff] %v2646
    %2672 = vst [vmem:[%s2659 + $0x60] sm:$0xff] %v2647
    %2673 = vst [vmem:[%s2659 + $0x68] sm:$0xff] %v2648
    %2674 = vst [vmem:[%s2659 + $0x70] sm:$0xff] %v2649
    %2675 = vst [vmem:[%s2659 + $0x78] sm:$0xff] %v2650
    %2676 = vst [vmem:[%s2659 + $0x80] sm:$0xff] %v2651
    %2677 = vst [vmem:[%s2659 + $0x88] sm:$0xff] %v2652
    %2678 = vst [vmem:[%s2659 + $0x90] sm:$0xff] %v2653
    %2679 = vst [vmem:[%s2659 + $0x98] sm:$0xff] %v2654
    %2680 = vst [vmem:[%s2659 + $0xa0] sm:$0xff] %v2655
    %2681 = vst [vmem:[%s2659 + $0xa8] sm:$0xff] %v2656
    %2682 = vst [vmem:[%s2659 + $0xb0] sm:$0xff] %v2657
    %2683 = vst [vmem:[%s2659 + $0xb8] sm:$0xff] %v2658
    %v2684 = vld [vmem:[%s4] sm:$0x1]
    %v2686 = vlaneseq
    %v2687 = vshrl.u32 %v2686, 7
    %v2688 = vsub.s32 0, %v2687
    %v2689 = vrot.slane %v2684, %v2688
    %v2691 = vadd.f32 %v2689, 0.0
    %v2692 = vld [vmem:[#allocation2] sm:$0xff]
    %v2693 = vld [vmem:[#allocation2 + $0x10] sm:$0xff]
    %v2694 = vld [vmem:[#allocation2 + $0x20] sm:$0xff]
    %v2695 = vld [vmem:[#allocation2 + $0x30] sm:$0xff]
    %v2696 = vld [vmem:[#allocation2 + $0x40] sm:$0xff]
    %v2697 = vld [vmem:[#allocation2 + $0x50] sm:$0xff]
    %v2698 = vld [vmem:[#allocation2 + $0x60] sm:$0xff]
    %v2699 = vld [vmem:[#allocation2 + $0x70] sm:$0xff]
    %v2700 = vld [vmem:[#allocation2 + $0xc0] sm:$0xff]
    %v2701 = vld [vmem:[#allocation2 + $0xd0] sm:$0xff]
    %v2702 = vld [vmem:[#allocation2 + $0xe0] sm:$0xff]
    %v2703 = vld [vmem:[#allocation2 + $0xf0] sm:$0xff]
    %v2704 = vld [vmem:[#allocation2 + $0x100] sm:$0xff]
    %v2705 = vld [vmem:[#allocation2 + $0x110] sm:$0xff]
    %v2706 = vld [vmem:[#allocation2 + $0x120] sm:$0xff]
    %v2707 = vld [vmem:[#allocation2 + $0x130] sm:$0xff]
    %v2708 = vld [vmem:[%s3] sm:$0xff]
    %v2709 = vld [vmem:[%s3 + $0x8] sm:$0xff]
    %v2710 = vld [vmem:[%s3 + $0x10] sm:$0xff]
    %v2711 = vld [vmem:[%s3 + $0x18] sm:$0xff]
    %v2712 = vld [vmem:[%s3 + $0x20] sm:$0xff]
    %v2713 = vld [vmem:[%s3 + $0x28] sm:$0xff]
    %v2714 = vld [vmem:[%s3 + $0x30] sm:$0xff]
    %v2715 = vld [vmem:[%s3 + $0x38] sm:$0xff]
    %v2716 = vld [vmem:[%s3 + $0x40] sm:$0xff]
    %v2717 = vld [vmem:[%s3 + $0x48] sm:$0xff]
    %v2718 = vld [vmem:[%s3 + $0x50] sm:$0xff]
    %v2719 = vld [vmem:[%s3 + $0x58] sm:$0xff]
    %v2720 = vld [vmem:[%s3 + $0x60] sm:$0xff]
    %v2721 = vld [vmem:[%s3 + $0x68] sm:$0xff]
    %v2722 = vld [vmem:[%s3 + $0x70] sm:$0xff]
    %v2723 = vld [vmem:[%s3 + $0x78] sm:$0xff]
    %2724 = vmatprep.subr.mxu0 0.0
    %2725 = vmatpush1.msra.mxu0 %v2708
    %2726 = vmatprep.subr.mxu0 0.0
    %2727 = vmatpush1.msra.mxu0 %v2709
    %2728 = vmatprep.subr.mxu0 0.0
    %2729 = vmatpush1.msra.mxu0 %v2710
    %2730 = vmatprep.subr.mxu0 0.0
    %2731 = vmatpush1.msra.mxu0 %v2711
    %2732 = vmatprep.subr.mxu0 0.0
    %2733 = vmatpush1.msra.mxu0 %v2712
    %2734 = vmatprep.subr.mxu0 0.0
    %2735 = vmatpush1.msra.mxu0 %v2713
    %2736 = vmatprep.subr.mxu0 0.0
    %2737 = vmatpush1.msra.mxu0 %v2714
    %2738 = vmatprep.subr.mxu0 0.0
    %2739 = vmatpush1.msra.mxu0 %v2715
    %2740 = vmatprep.subr.mxu0 0.0
    %2741 = vmatpush1.msra.mxu0 %v2716
    %2742 = vmatprep.subr.mxu0 0.0
    %2743 = vmatpush1.msra.mxu0 %v2717
    %2744 = vmatprep.subr.mxu0 0.0
    %2745 = vmatpush1.msra.mxu0 %v2718
    %2746 = vmatprep.subr.mxu0 0.0
    %2747 = vmatpush1.msra.mxu0 %v2719
    %2748 = vmatprep.subr.mxu0 0.0
    %2749 = vmatpush1.msra.mxu0 %v2720
    %2750 = vmatprep.subr.mxu0 0.0
    %2751 = vmatpush1.msra.mxu0 %v2721
    %2752 = vmatprep.subr.mxu0 0.0
    %2753 = vmatpush1.msra.mxu0 %v2722
    %2754 = vmatprep.subr.mxu0 0.0
    %2755 = vmatpush1.msra.mxu0 %v2723
    %2756 = vmatprep.subr.mxu0 0.0
    %2757 = vmatpush1.msra.mxu0 0.0
    %2758 = vmatprep.subr.mxu0 0.0
    %2759 = vmatpush1.msra.mxu0 0.0
    %2760 = vmatprep.subr.mxu0 0.0
    %2761 = vmatpush1.msra.mxu0 0.0
    %2762 = vmatprep.subr.mxu0 0.0
    %2763 = vmatpush1.msra.mxu0 0.0
    %2764 = vmatprep.subr.mxu0 0.0
    %2765 = vmatpush1.msra.mxu0 0.0
    %2766 = vmatprep.subr.mxu0 0.0
    %2767 = vmatpush1.msra.mxu0 0.0
    %2768 = vmatprep.subr.mxu0 0.0
    %2769 = vmatpush1.msra.mxu0 0.0
    %2770 = vmatprep.subr.mxu0 0.0
    %2771 = vmatpush1.msra.mxu0 0.0
    %2772 = vmatprep.subr.mxu0 0.0
    %2773 = vmatpush1.msra.mxu0 0.0
    %2774 = vmatprep.subr.mxu0 0.0
    %2775 = vmatpush1.msra.mxu0 0.0
    %2776 = vmatprep.subr.mxu0 0.0
    %2777 = vmatpush1.msra.mxu0 0.0
    %2778 = vmatprep.subr.mxu0 0.0
    %2779 = vmatpush1.msra.mxu0 0.0
    %2780 = vmatprep.subr.mxu0 0.0
    %2781 = vmatpush1.msra.mxu0 0.0
    %2782 = vmatprep.subr.mxu0 0.0
    %2783 = vmatpush1.msra.mxu0 0.0
    %2784 = vmatprep.subr.mxu0 0.0
    %2785 = vmatpush1.msra.mxu0 0.0
    %2786 = vmatprep.subr.mxu0 0.0
    %2787 = vmatpush1.msra.mxu0 0.0
    %2788 = vmatprep.mubr.f32.mxu0 0.0
    %2789 = vmatmul.mubr.f32.gmra.mrb[0].mxu0 %v2692
    %v2790 = vpop.f32.mrb[0].mxu0
    %v2791 = vadd.f32 0.0, %v2790
    %v2792 = vpop.f32.mrb[0].mxu0
    %2793 = vmatprep.mubr.f32.mxu0 0.0
    %2794 = vmatmul.mubr.f32.gmra.mrb[0].mxu0 %v2693
    %v2795 = vpop.f32.mrb[0].mxu0
    %v2796 = vadd.f32 0.0, %v2795
    %v2797 = vpop.f32.mrb[0].mxu0
    %2798 = vmatprep.mubr.f32.mxu0 0.0
    %2799 = vmatmul.mubr.f32.gmra.mrb[0].mxu0 %v2694
    %v2800 = vpop.f32.mrb[0].mxu0
    %v2801 = vadd.f32 0.0, %v2800
    %v2802 = vpop.f32.mrb[0].mxu0
    %2803 = vmatprep.mubr.f32.mxu0 0.0
    %2804 = vmatmul.mubr.f32.gmra.mrb[0].mxu0 %v2695
    %v2805 = vpop.f32.mrb[0].mxu0
    %v2806 = vadd.f32 0.0, %v2805
    %v2807 = vpop.f32.mrb[0].mxu0
    %2808 = vmatprep.mubr.f32.mxu0 0.0
    %2809 = vmatmul.mubr.f32.gmra.mrb[0].mxu0 %v2696
    %v2810 = vpop.f32.mrb[0].mxu0
    %v2811 = vadd.f32 0.0, %v2810
    %v2812 = vpop.f32.mrb[0].mxu0
    %2813 = vmatprep.mubr.f32.mxu0 0.0
    %2814 = vmatmul.mubr.f32.gmra.mrb[0].mxu0 %v2697
    %v2815 = vpop.f32.mrb[0].mxu0
    %v2816 = vadd.f32 0.0, %v2815
    %v2817 = vpop.f32.mrb[0].mxu0
    %2818 = vmatprep.mubr.f32.mxu0 0.0
    %2819 = vmatmul.mubr.f32.gmra.mrb[0].mxu0 %v2698
    %v2820 = vpop.f32.mrb[0].mxu0
    %v2821 = vadd.f32 0.0, %v2820
    %v2822 = vpop.f32.mrb[0].mxu0
    %2823 = vmatprep.mubr.f32.mxu0 0.0
    %2824 = vmatmul.mubr.f32.gmra.mrb[0].mxu0 %v2699
    %v2825 = vpop.f32.mrb[0].mxu0
    %v2826 = vadd.f32 0.0, %v2825
    %v2827 = vpop.f32.mrb[0].mxu0
    %2828 = vmatprep.mubr.f32.mxu0 0.0
    %2829 = vmatmul.mubr.f32.gmra.mrb[0].mxu0 %v2700
    %v2830 = vpop.f32.mrb[0].mxu0
    %v2831 = vadd.f32 0.0, %v2830
    %v2832 = vpop.f32.mrb[0].mxu0
    %2833 = vmatprep.mubr.f32.mxu0 0.0
    %2834 = vmatmul.mubr.f32.gmra.mrb[0].mxu0 %v2701
    %v2835 = vpop.f32.mrb[0].mxu0
    %v2836 = vadd.f32 0.0, %v2835
    %v2837 = vpop.f32.mrb[0].mxu0
    %2838 = vmatprep.mubr.f32.mxu0 0.0
    %2839 = vmatmul.mubr.f32.gmra.mrb[0].mxu0 %v2702
    %v2840 = vpop.f32.mrb[0].mxu0
    %v2841 = vadd.f32 0.0, %v2840
    %v2842 = vpop.f32.mrb[0].mxu0
    %2843 = vmatprep.mubr.f32.mxu0 0.0
    %2844 = vmatmul.mubr.f32.gmra.mrb[0].mxu0 %v2703
    %v2845 = vpop.f32.mrb[0].mxu0
    %v2846 = vadd.f32 0.0, %v2845
    %v2847 = vpop.f32.mrb[0].mxu0
    %2848 = vmatprep.mubr.f32.mxu0 0.0
    %2849 = vmatmul.mubr.f32.gmra.mrb[0].mxu0 %v2704
    %v2850 = vpop.f32.mrb[0].mxu0
    %v2851 = vadd.f32 0.0, %v2850
    %v2852 = vpop.f32.mrb[0].mxu0
    %2853 = vmatprep.mubr.f32.mxu0 0.0
    %2854 = vmatmul.mubr.f32.gmra.mrb[0].mxu0 %v2705
    %v2855 = vpop.f32.mrb[0].mxu0
    %v2856 = vadd.f32 0.0, %v2855
    %v2857 = vpop.f32.mrb[0].mxu0
    %2858 = vmatprep.mubr.f32.mxu0 0.0
    %2859 = vmatmul.mubr.f32.gmra.mrb[0].mxu0 %v2706
    %v2860 = vpop.f32.mrb[0].mxu0
    %v2861 = vadd.f32 0.0, %v2860
    %v2862 = vpop.f32.mrb[0].mxu0
    %2863 = vmatprep.mubr.f32.mxu0 0.0
    %2864 = vmatmul.mubr.f32.gmra.mrb[0].mxu0 %v2707
    %v2865 = vpop.f32.mrb[0].mxu0
    %v2866 = vadd.f32 0.0, %v2865
    %v2867 = vpop.f32.mrb[0].mxu0
    %2868 = vdwg.mxu0
    %v2869 = vadd.f32 %v2691, %v2791
    %v2870 = vadd.f32 %v2691, %v2796
    %v2871 = vadd.f32 %v2691, %v2801
    %v2872 = vadd.f32 %v2691, %v2806
    %v2873 = vadd.f32 %v2691, %v2811
    %v2874 = vadd.f32 %v2691, %v2816
    %v2875 = vadd.f32 %v2691, %v2821
    %v2876 = vadd.f32 %v2691, %v2826
    %v2877 = vadd.f32 %v2691, %v2831
    %v2878 = vadd.f32 %v2691, %v2836
    %v2879 = vadd.f32 %v2691, %v2841
    %v2880 = vadd.f32 %v2691, %v2846
    %v2881 = vadd.f32 %v2691, %v2851
    %v2882 = vadd.f32 %v2691, %v2856
    %v2883 = vadd.f32 %v2691, %v2861
    %v2884 = vadd.f32 %v2691, %v2866
    %v2885 = vld [vmem:[#allocation2 + $0x1] sm:$0xff]
    %v2886 = vld [vmem:[#allocation2 + $0x11] sm:$0xff]
    %v2887 = vld [vmem:[#allocation2 + $0x21] sm:$0xff]
    %v2888 = vld [vmem:[#allocation2 + $0x31] sm:$0xff]
    %v2889 = vld [vmem:[#allocation2 + $0x41] sm:$0xff]
    %v2890 = vld [vmem:[#allocation2 + $0x51] sm:$0xff]
    %v2891 = vld [vmem:[#allocation2 + $0x61] sm:$0xff]
    %v2892 = vld [vmem:[#allocation2 + $0x71] sm:$0xff]
    %v2893 = vld [vmem:[#allocation2 + $0xc1] sm:$0xff]
    %v2894 = vld [vmem:[#allocation2 + $0xd1] sm:$0xff]
    %v2895 = vld [vmem:[#allocation2 + $0xe1] sm:$0xff]
    %v2896 = vld [vmem:[#allocation2 + $0xf1] sm:$0xff]
    %v2897 = vld [vmem:[#allocation2 + $0x101] sm:$0xff]
    %v2898 = vld [vmem:[#allocation2 + $0x111] sm:$0xff]
    %v2899 = vld [vmem:[#allocation2 + $0x121] sm:$0xff]
    %v2900 = vld [vmem:[#allocation2 + $0x131] sm:$0xff]
    %s2901 = scalar_lea.vmem %s3, 128
    %v2902 = vld [vmem:[%s2901] sm:$0xff]
    %v2903 = vld [vmem:[%s2901 + $0x8] sm:$0xff]
    %v2904 = vld [vmem:[%s2901 + $0x10] sm:$0xff]
    %v2905 = vld [vmem:[%s2901 + $0x18] sm:$0xff]
    %v2906 = vld [vmem:[%s2901 + $0x20] sm:$0xff]
    %v2907 = vld [vmem:[%s2901 + $0x28] sm:$0xff]
    %v2908 = vld [vmem:[%s2901 + $0x30] sm:$0xff]
    %v2909 = vld [vmem:[%s2901 + $0x38] sm:$0xff]
    %v2910 = vld [vmem:[%s2901 + $0x40] sm:$0xff]
    %v2911 = vld [vmem:[%s2901 + $0x48] sm:$0xff]
    %v2912 = vld [vmem:[%s2901 + $0x50] sm:$0xff]
    %v2913 = vld [vmem:[%s2901 + $0x58] sm:$0xff]
    %v2914 = vld [vmem:[%s2901 + $0x60] sm:$0xff]
    %v2915 = vld [vmem:[%s2901 + $0x68] sm:$0xff]
    %v2916 = vld [vmem:[%s2901 + $0x70] sm:$0xff]
    %v2917 = vld [vmem:[%s2901 + $0x78] sm:$0xff]
    %2918 = vmatprep.subr.mxu0 0.0
    %2919 = vmatpush1.msra.mxu0 %v2902
    %2920 = vmatprep.subr.mxu0 0.0
    %2921 = vmatpush1.msra.mxu0 %v2903
    %2922 = vmatprep.subr.mxu0 0.0
    %2923 = vmatpush1.msra.mxu0 %v2904
    %2924 = vmatprep.subr.mxu0 0.0
    %2925 = vmatpush1.msra.mxu0 %v2905
    %2926 = vmatprep.subr.mxu0 0.0
    %2927 = vmatpush1.msra.mxu0 %v2906
    %2928 = vmatprep.subr.mxu0 0.0
    %2929 = vmatpush1.msra.mxu0 %v2907
    %2930 = vmatprep.subr.mxu0 0.0
    %2931 = vmatpush1.msra.mxu0 %v2908
    %2932 = vmatprep.subr.mxu0 0.0
    %2933 = vmatpush1.msra.mxu0 %v2909
    %2934 = vmatprep.subr.mxu0 0.0
    %2935 = vmatpush1.msra.mxu0 %v2910
    %2936 = vmatprep.subr.mxu0 0.0
    %2937 = vmatpush1.msra.mxu0 %v2911
    %2938 = vmatprep.subr.mxu0 0.0
    %2939 = vmatpush1.msra.mxu0 %v2912
    %2940 = vmatprep.subr.mxu0 0.0
    %2941 = vmatpush1.msra.mxu0 %v2913
    %2942 = vmatprep.subr.mxu0 0.0
    %2943 = vmatpush1.msra.mxu0 %v2914
    %2944 = vmatprep.subr.mxu0 0.0
    %2945 = vmatpush1.msra.mxu0 %v2915
    %2946 = vmatprep.subr.mxu0 0.0
    %2947 = vmatpush1.msra.mxu0 %v2916
    %2948 = vmatprep.subr.mxu0 0.0
    %2949 = vmatpush1.msra.mxu0 %v2917
    %2950 = vmatprep.subr.mxu0 0.0
    %2951 = vmatpush1.msra.mxu0 0.0
    %2952 = vmatprep.subr.mxu0 0.0
    %2953 = vmatpush1.msra.mxu0 0.0
    %2954 = vmatprep.subr.mxu0 0.0
    %2955 = vmatpush1.msra.mxu0 0.0
    %2956 = vmatprep.subr.mxu0 0.0
    %2957 = vmatpush1.msra.mxu0 0.0
    %2958 = vmatprep.subr.mxu0 0.0
    %2959 = vmatpush1.msra.mxu0 0.0
    %2960 = vmatprep.subr.mxu0 0.0
    %2961 = vmatpush1.msra.mxu0 0.0
    %2962 = vmatprep.subr.mxu0 0.0
    %2963 = vmatpush1.msra.mxu0 0.0
    %2964 = vmatprep.subr.mxu0 0.0
    %2965 = vmatpush1.msra.mxu0 0.0
    %2966 = vmatprep.subr.mxu0 0.0
    %2967 = vmatpush1.msra.mxu0 0.0
    %2968 = vmatprep.subr.mxu0 0.0
    %2969 = vmatpush1.msra.mxu0 0.0
    %2970 = vmatprep.subr.mxu0 0.0
    %2971 = vmatpush1.msra.mxu0 0.0
    %2972 = vmatprep.subr.mxu0 0.0
    %2973 = vmatpush1.msra.mxu0 0.0
    %2974 = vmatprep.subr.mxu0 0.0
    %2975 = vmatpush1.msra.mxu0 0.0
    %2976 = vmatprep.subr.mxu0 0.0
    %2977 = vmatpush1.msra.mxu0 0.0
    %2978 = vmatprep.subr.mxu0 0.0
    %2979 = vmatpush1.msra.mxu0 0.0
    %2980 = vmatprep.subr.mxu0 0.0
    %2981 = vmatpush1.msra.mxu0 0.0
    %2982 = vmatprep.mubr.f32.mxu0 0.0
    %2983 = vmatmul.mubr.f32.gmra.mrb[0].mxu0 %v2885
    %v2984 = vpop.f32.mrb[0].mxu0
    %v2985 = vadd.f32 0.0, %v2984
    %v2986 = vpop.f32.mrb[0].mxu0
    %2987 = vmatprep.mubr.f32.mxu0 0.0
    %2988 = vmatmul.mubr.f32.gmra.mrb[0].mxu0 %v2886
    %v2989 = vpop.f32.mrb[0].mxu0
    %v2990 = vadd.f32 0.0, %v2989
    %v2991 = vpop.f32.mrb[0].mxu0
    %2992 = vmatprep.mubr.f32.mxu0 0.0
    %2993 = vmatmul.mubr.f32.gmra.mrb[0].mxu0 %v2887
    %v2994 = vpop.f32.mrb[0].mxu0
    %v2995 = vadd.f32 0.0, %v2994
    %v2996 = vpop.f32.mrb[0].mxu0
    %2997 = vmatprep.mubr.f32.mxu0 0.0
    %2998 = vmatmul.mubr.f32.gmra.mrb[0].mxu0 %v2888
    %v2999 = vpop.f32.mrb[0].mxu0
    %v3000 = vadd.f32 0.0, %v2999
    %v3001 = vpop.f32.mrb[0].mxu0
    %3002 = vmatprep.mubr.f32.mxu0 0.0
    %3003 = vmatmul.mubr.f32.gmra.mrb[0].mxu0 %v2889
    %v3004 = vpop.f32.mrb[0].mxu0
    %v3005 = vadd.f32 0.0, %v3004
    %v3006 = vpop.f32.mrb[0].mxu0
    %3007 = vmatprep.mubr.f32.mxu0 0.0
    %3008 = vmatmul.mubr.f32.gmra.mrb[0].mxu0 %v2890
    %v3009 = vpop.f32.mrb[0].mxu0
    %v3010 = vadd.f32 0.0, %v3009
    %v3011 = vpop.f32.mrb[0].mxu0
    %3012 = vmatprep.mubr.f32.mxu0 0.0
    %3013 = vmatmul.mubr.f32.gmra.mrb[0].mxu0 %v2891
    %v3014 = vpop.f32.mrb[0].mxu0
    %v3015 = vadd.f32 0.0, %v3014
    %v3016 = vpop.f32.mrb[0].mxu0
    %3017 = vmatprep.mubr.f32.mxu0 0.0
    %3018 = vmatmul.mubr.f32.gmra.mrb[0].mxu0 %v2892
    %v3019 = vpop.f32.mrb[0].mxu0
    %v3020 = vadd.f32 0.0, %v3019
    %v3021 = vpop.f32.mrb[0].mxu0
    %3022 = vmatprep.mubr.f32.mxu0 0.0
    %3023 = vmatmul.mubr.f32.gmra.mrb[0].mxu0 %v2893
    %v3024 = vpop.f32.mrb[0].mxu0
    %v3025 = vadd.f32 0.0, %v3024
    %v3026 = vpop.f32.mrb[0].mxu0
    %3027 = vmatprep.mubr.f32.mxu0 0.0
    %3028 = vmatmul.mubr.f32.gmra.mrb[0].mxu0 %v2894
    %v3029 = vpop.f32.mrb[0].mxu0
    %v3030 = vadd.f32 0.0, %v3029
    %v3031 = vpop.f32.mrb[0].mxu0
    %3032 = vmatprep.mubr.f32.mxu0 0.0
    %3033 = vmatmul.mubr.f32.gmra.mrb[0].mxu0 %v2895
    %v3034 = vpop.f32.mrb[0].mxu0
    %v3035 = vadd.f32 0.0, %v3034
    %v3036 = vpop.f32.mrb[0].mxu0
    %3037 = vmatprep.mubr.f32.mxu0 0.0
    %3038 = vmatmul.mubr.f32.gmra.mrb[0].mxu0 %v2896
    %v3039 = vpop.f32.mrb[0].mxu0
    %v3040 = vadd.f32 0.0, %v3039
    %v3041 = vpop.f32.mrb[0].mxu0
    %3042 = vmatprep.mubr.f32.mxu0 0.0
    %3043 = vmatmul.mubr.f32.gmra.mrb[0].mxu0 %v2897
    %v3044 = vpop.f32.mrb[0].mxu0
    %v3045 = vadd.f32 0.0, %v3044
    %v3046 = vpop.f32.mrb[0].mxu0
    %3047 = vmatprep.mubr.f32.mxu0 0.0
    %3048 = vmatmul.mubr.f32.gmra.mrb[0].mxu0 %v2898
    %v3049 = vpop.f32.mrb[0].mxu0
    %v3050 = vadd.f32 0.0, %v3049
    %v3051 = vpop.f32.mrb[0].mxu0
    %3052 = vmatprep.mubr.f32.mxu0 0.0
    %3053 = vmatmul.mubr.f32.gmra.mrb[0].mxu0 %v2899
    %v3054 = vpop.f32.mrb[0].mxu0
    %v3055 = vadd.f32 0.0, %v3054
    %v3056 = vpop.f32.mrb[0].mxu0
    %3057 = vmatprep.mubr.f32.mxu0 0.0
    %3058 = vmatmul.mubr.f32.gmra.mrb[0].mxu0 %v2900
    %v3059 = vpop.f32.mrb[0].mxu0
    %v3060 = vadd.f32 0.0, %v3059
    %v3061 = vpop.f32.mrb[0].mxu0
    %3062 = vdwg.mxu0
    %v3063 = vadd.f32 %v2869, %v2985
    %v3064 = vadd.f32 %v2870, %v2990
    %v3065 = vadd.f32 %v2871, %v2995
    %v3066 = vadd.f32 %v2872, %v3000
    %v3067 = vadd.f32 %v2873, %v3005
    %v3068 = vadd.f32 %v2874, %v3010
    %v3069 = vadd.f32 %v2875, %v3015
    %v3070 = vadd.f32 %v2876, %v3020
    %v3071 = vadd.f32 %v2877, %v3025
    %v3072 = vadd.f32 %v2878, %v3030
    %v3073 = vadd.f32 %v2879, %v3035
    %v3074 = vadd.f32 %v2880, %v3040
    %v3075 = vadd.f32 %v2881, %v3045
    %v3076 = vadd.f32 %v2882, %v3050
    %v3077 = vadd.f32 %v2883, %v3055
    %v3078 = vadd.f32 %v2884, %v3060
    %v3079 = vld [vmem:[#allocation2 + $0x2] sm:$0xff]
    %v3080 = vld [vmem:[#allocation2 + $0x12] sm:$0xff]
    %v3081 = vld [vmem:[#allocation2 + $0x22] sm:$0xff]
    %v3082 = vld [vmem:[#allocation2 + $0x32] sm:$0xff]
    %v3083 = vld [vmem:[#allocation2 + $0x42] sm:$0xff]
    %v3084 = vld [vmem:[#allocation2 + $0x52] sm:$0xff]
    %v3085 = vld [vmem:[#allocation2 + $0x62] sm:$0xff]
    %v3086 = vld [vmem:[#allocation2 + $0x72] sm:$0xff]
    %v3087 = vld [vmem:[#allocation2 + $0xc2] sm:$0xff]
    %v3088 = vld [vmem:[#allocation2 + $0xd2] sm:$0xff]
    %v3089 = vld [vmem:[#allocation2 + $0xe2] sm:$0xff]
    %v3090 = vld [vmem:[#allocation2 + $0xf2] sm:$0xff]
    %v3091 = vld [vmem:[#allocation2 + $0x102] sm:$0xff]
    %v3092 = vld [vmem:[#allocation2 + $0x112] sm:$0xff]
    %v3093 = vld [vmem:[#allocation2 + $0x122] sm:$0xff]
    %v3094 = vld [vmem:[#allocation2 + $0x132] sm:$0xff]
    %s3095 = scalar_lea.vmem %s3, 256
    %v3096 = vld [vmem:[%s3095] sm:$0xff]
    %v3097 = vld [vmem:[%s3095 + $0x8] sm:$0xff]
    %v3098 = vld [vmem:[%s3095 + $0x10] sm:$0xff]
    %v3099 = vld [vmem:[%s3095 + $0x18] sm:$0xff]
    %v3100 = vld [vmem:[%s3095 + $0x20] sm:$0xff]
    %v3101 = vld [vmem:[%s3095 + $0x28] sm:$0xff]
    %v3102 = vld [vmem:[%s3095 + $0x30] sm:$0xff]
    %v3103 = vld [vmem:[%s3095 + $0x38] sm:$0xff]
    %v3104 = vld [vmem:[%s3095 + $0x40] sm:$0xff]
    %v3105 = vld [vmem:[%s3095 + $0x48] sm:$0xff]
    %v3106 = vld [vmem:[%s3095 + $0x50] sm:$0xff]
    %v3107 = vld [vmem:[%s3095 + $0x58] sm:$0xff]
    %v3108 = vld [vmem:[%s3095 + $0x60] sm:$0xff]
    %v3109 = vld [vmem:[%s3095 + $0x68] sm:$0xff]
    %v3110 = vld [vmem:[%s3095 + $0x70] sm:$0xff]
    %v3111 = vld [vmem:[%s3095 + $0x78] sm:$0xff]
    %3112 = vmatprep.subr.mxu0 0.0
    %3113 = vmatpush1.msra.mxu0 %v3096
    %3114 = vmatprep.subr.mxu0 0.0
    %3115 = vmatpush1.msra.mxu0 %v3097
    %3116 = vmatprep.subr.mxu0 0.0
    %3117 = vmatpush1.msra.mxu0 %v3098
    %3118 = vmatprep.subr.mxu0 0.0
    %3119 = vmatpush1.msra.mxu0 %v3099
    %3120 = vmatprep.subr.mxu0 0.0
    %3121 = vmatpush1.msra.mxu0 %v3100
    %3122 = vmatprep.subr.mxu0 0.0
    %3123 = vmatpush1.msra.mxu0 %v3101
    %3124 = vmatprep.subr.mxu0 0.0
    %3125 = vmatpush1.msra.mxu0 %v3102
    %3126 = vmatprep.subr.mxu0 0.0
    %3127 = vmatpush1.msra.mxu0 %v3103
    %3128 = vmatprep.subr.mxu0 0.0
    %3129 = vmatpush1.msra.mxu0 %v3104
    %3130 = vmatprep.subr.mxu0 0.0
    %3131 = vmatpush1.msra.mxu0 %v3105
    %3132 = vmatprep.subr.mxu0 0.0
    %3133 = vmatpush1.msra.mxu0 %v3106
    %3134 = vmatprep.subr.mxu0 0.0
    %3135 = vmatpush1.msra.mxu0 %v3107
    %3136 = vmatprep.subr.mxu0 0.0
    %3137 = vmatpush1.msra.mxu0 %v3108
    %3138 = vmatprep.subr.mxu0 0.0
    %3139 = vmatpush1.msra.mxu0 %v3109
    %3140 = vmatprep.subr.mxu0 0.0
    %3141 = vmatpush1.msra.mxu0 %v3110
    %3142 = vmatprep.subr.mxu0 0.0
    %3143 = vmatpush1.msra.mxu0 %v3111
    %3144 = vmatprep.subr.mxu0 0.0
    %3145 = vmatpush1.msra.mxu0 0.0
    %3146 = vmatprep.subr.mxu0 0.0
    %3147 = vmatpush1.msra.mxu0 0.0
    %3148 = vmatprep.subr.mxu0 0.0
    %3149 = vmatpush1.msra.mxu0 0.0
    %3150 = vmatprep.subr.mxu0 0.0
    %3151 = vmatpush1.msra.mxu0 0.0
    %3152 = vmatprep.subr.mxu0 0.0
    %3153 = vmatpush1.msra.mxu0 0.0
    %3154 = vmatprep.subr.mxu0 0.0
    %3155 = vmatpush1.msra.mxu0 0.0
    %3156 = vmatprep.subr.mxu0 0.0
    %3157 = vmatpush1.msra.mxu0 0.0
    %3158 = vmatprep.subr.mxu0 0.0
    %3159 = vmatpush1.msra.mxu0 0.0
    %3160 = vmatprep.subr.mxu0 0.0
    %3161 = vmatpush1.msra.mxu0 0.0
    %3162 = vmatprep.subr.mxu0 0.0
    %3163 = vmatpush1.msra.mxu0 0.0
    %3164 = vmatprep.subr.mxu0 0.0
    %3165 = vmatpush1.msra.mxu0 0.0
    %3166 = vmatprep.subr.mxu0 0.0
    %3167 = vmatpush1.msra.mxu0 0.0
    %3168 = vmatprep.subr.mxu0 0.0
    %3169 = vmatpush1.msra.mxu0 0.0
    %3170 = vmatprep.subr.mxu0 0.0
    %3171 = vmatpush1.msra.mxu0 0.0
    %3172 = vmatprep.subr.mxu0 0.0
    %3173 = vmatpush1.msra.mxu0 0.0
    %3174 = vmatprep.subr.mxu0 0.0
    %3175 = vmatpush1.msra.mxu0 0.0
    %3176 = vmatprep.mubr.f32.mxu0 0.0
    %3177 = vmatmul.mubr.f32.gmra.mrb[0].mxu0 %v3079
    %v3178 = vpop.f32.mrb[0].mxu0
    %v3179 = vadd.f32 0.0, %v3178
    %v3180 = vpop.f32.mrb[0].mxu0
    %3181 = vmatprep.mubr.f32.mxu0 0.0
    %3182 = vmatmul.mubr.f32.gmra.mrb[0].mxu0 %v3080
    %v3183 = vpop.f32.mrb[0].mxu0
    %v3184 = vadd.f32 0.0, %v3183
    %v3185 = vpop.f32.mrb[0].mxu0
    %3186 = vmatprep.mubr.f32.mxu0 0.0
    %3187 = vmatmul.mubr.f32.gmra.mrb[0].mxu0 %v3081
    %v3188 = vpop.f32.mrb[0].mxu0
    %v3189 = vadd.f32 0.0, %v3188
    %v3190 = vpop.f32.mrb[0].mxu0
    %3191 = vmatprep.mubr.f32.mxu0 0.0
    %3192 = vmatmul.mubr.f32.gmra.mrb[0].mxu0 %v3082
    %v3193 = vpop.f32.mrb[0].mxu0
    %v3194 = vadd.f32 0.0, %v3193
    %v3195 = vpop.f32.mrb[0].mxu0
    %3196 = vmatprep.mubr.f32.mxu0 0.0
    %3197 = vmatmul.mubr.f32.gmra.mrb[0].mxu0 %v3083
    %v3198 = vpop.f32.mrb[0].mxu0
    %v3199 = vadd.f32 0.0, %v3198
    %v3200 = vpop.f32.mrb[0].mxu0
    %3201 = vmatprep.mubr.f32.mxu0 0.0
    %3202 = vmatmul.mubr.f32.gmra.mrb[0].mxu0 %v3084
    %v3203 = vpop.f32.mrb[0].mxu0
    %v3204 = vadd.f32 0.0, %v3203
    %v3205 = vpop.f32.mrb[0].mxu0
    %3206 = vmatprep.mubr.f32.mxu0 0.0
    %3207 = vmatmul.mubr.f32.gmra.mrb[0].mxu0 %v3085
    %v3208 = vpop.f32.mrb[0].mxu0
    %v3209 = vadd.f32 0.0, %v3208
    %v3210 = vpop.f32.mrb[0].mxu0
    %3211 = vmatprep.mubr.f32.mxu0 0.0
    %3212 = vmatmul.mubr.f32.gmra.mrb[0].mxu0 %v3086
    %v3213 = vpop.f32.mrb[0].mxu0
    %v3214 = vadd.f32 0.0, %v3213
    %v3215 = vpop.f32.mrb[0].mxu0
    %3216 = vmatprep.mubr.f32.mxu0 0.0
    %3217 = vmatmul.mubr.f32.gmra.mrb[0].mxu0 %v3087
    %v3218 = vpop.f32.mrb[0].mxu0
    %v3219 = vadd.f32 0.0, %v3218
    %v3220 = vpop.f32.mrb[0].mxu0
    %3221 = vmatprep.mubr.f32.mxu0 0.0
    %3222 = vmatmul.mubr.f32.gmra.mrb[0].mxu0 %v3088
    %v3223 = vpop.f32.mrb[0].mxu0
    %v3224 = vadd.f32 0.0, %v3223
    %v3225 = vpop.f32.mrb[0].mxu0
    %3226 = vmatprep.mubr.f32.mxu0 0.0
    %3227 = vmatmul.mubr.f32.gmra.mrb[0].mxu0 %v3089
    %v3228 = vpop.f32.mrb[0].mxu0
    %v3229 = vadd.f32 0.0, %v3228
    %v3230 = vpop.f32.mrb[0].mxu0
    %3231 = vmatprep.mubr.f32.mxu0 0.0
    %3232 = vmatmul.mubr.f32.gmra.mrb[0].mxu0 %v3090
    %v3233 = vpop.f32.mrb[0].mxu0
    %v3234 = vadd.f32 0.0, %v3233
    %v3235 = vpop.f32.mrb[0].mxu0
    %3236 = vmatprep.mubr.f32.mxu0 0.0
    %3237 = vmatmul.mubr.f32.gmra.mrb[0].mxu0 %v3091
    %v3238 = vpop.f32.mrb[0].mxu0
    %v3239 = vadd.f32 0.0, %v3238
    %v3240 = vpop.f32.mrb[0].mxu0
    %3241 = vmatprep.mubr.f32.mxu0 0.0
    %3242 = vmatmul.mubr.f32.gmra.mrb[0].mxu0 %v3092
    %v3243 = vpop.f32.mrb[0].mxu0
    %v3244 = vadd.f32 0.0, %v3243
    %v3245 = vpop.f32.mrb[0].mxu0
    %3246 = vmatprep.mubr.f32.mxu0 0.0
    %3247 = vmatmul.mubr.f32.gmra.mrb[0].mxu0 %v3093
    %v3248 = vpop.f32.mrb[0].mxu0
    %v3249 = vadd.f32 0.0, %v3248
    %v3250 = vpop.f32.mrb[0].mxu0
    %3251 = vmatprep.mubr.f32.mxu0 0.0
    %3252 = vmatmul.mubr.f32.gmra.mrb[0].mxu0 %v3094
    %v3253 = vpop.f32.mrb[0].mxu0
    %v3254 = vadd.f32 0.0, %v3253
    %v3255 = vpop.f32.mrb[0].mxu0
    %3256 = vdwg.mxu0
    %v3257 = vadd.f32 %v3063, %v3179
    %v3258 = vadd.f32 %v3064, %v3184
    %v3259 = vadd.f32 %v3065, %v3189
    %v3260 = vadd.f32 %v3066, %v3194
    %v3261 = vadd.f32 %v3067, %v3199
    %v3262 = vadd.f32 %v3068, %v3204
    %v3263 = vadd.f32 %v3069, %v3209
    %v3264 = vadd.f32 %v3070, %v3214
    %v3265 = vadd.f32 %v3071, %v3219
    %v3266 = vadd.f32 %v3072, %v3224
    %v3267 = vadd.f32 %v3073, %v3229
    %v3268 = vadd.f32 %v3074, %v3234
    %v3269 = vadd.f32 %v3075, %v3239
    %v3270 = vadd.f32 %v3076, %v3244
    %v3271 = vadd.f32 %v3077, %v3249
    %v3272 = vadd.f32 %v3078, %v3254
    %v3273 = vld [vmem:[#allocation2 + $0x3] sm:$0xff]
    %v3274 = vld [vmem:[#allocation2 + $0x13] sm:$0xff]
    %v3275 = vld [vmem:[#allocation2 + $0x23] sm:$0xff]
    %v3276 = vld [vmem:[#allocation2 + $0x33] sm:$0xff]
    %v3277 = vld [vmem:[#allocation2 + $0x43] sm:$0xff]
    %v3278 = vld [vmem:[#allocation2 + $0x53] sm:$0xff]
    %v3279 = vld [vmem:[#allocation2 + $0x63] sm:$0xff]
    %v3280 = vld [vmem:[#allocation2 + $0x73] sm:$0xff]
    %v3281 = vld [vmem:[#allocation2 + $0xc3] sm:$0xff]
    %v3282 = vld [vmem:[#allocation2 + $0xd3] sm:$0xff]
    %v3283 = vld [vmem:[#allocation2 + $0xe3] sm:$0xff]
    %v3284 = vld [vmem:[#allocation2 + $0xf3] sm:$0xff]
    %v3285 = vld [vmem:[#allocation2 + $0x103] sm:$0xff]
    %v3286 = vld [vmem:[#allocation2 + $0x113] sm:$0xff]
    %v3287 = vld [vmem:[#allocation2 + $0x123] sm:$0xff]
    %v3288 = vld [vmem:[#allocation2 + $0x133] sm:$0xff]
    %s3289 = scalar_lea.vmem %s3, 384
    %v3290 = vld [vmem:[%s3289] sm:$0xff]
    %v3291 = vld [vmem:[%s3289 + $0x8] sm:$0xff]
    %v3292 = vld [vmem:[%s3289 + $0x10] sm:$0xff]
    %v3293 = vld [vmem:[%s3289 + $0x18] sm:$0xff]
    %v3294 = vld [vmem:[%s3289 + $0x20] sm:$0xff]
    %v3295 = vld [vmem:[%s3289 + $0x28] sm:$0xff]
    %v3296 = vld [vmem:[%s3289 + $0x30] sm:$0xff]
    %v3297 = vld [vmem:[%s3289 + $0x38] sm:$0xff]
    %v3298 = vld [vmem:[%s3289 + $0x40] sm:$0xff]
    %v3299 = vld [vmem:[%s3289 + $0x48] sm:$0xff]
    %v3300 = vld [vmem:[%s3289 + $0x50] sm:$0xff]
    %v3301 = vld [vmem:[%s3289 + $0x58] sm:$0xff]
    %v3302 = vld [vmem:[%s3289 + $0x60] sm:$0xff]
    %v3303 = vld [vmem:[%s3289 + $0x68] sm:$0xff]
    %v3304 = vld [vmem:[%s3289 + $0x70] sm:$0xff]
    %v3305 = vld [vmem:[%s3289 + $0x78] sm:$0xff]
    %3306 = vmatprep.subr.mxu0 0.0
    %3307 = vmatpush1.msra.mxu0 %v3290
    %3308 = vmatprep.subr.mxu0 0.0
    %3309 = vmatpush1.msra.mxu0 %v3291
    %3310 = vmatprep.subr.mxu0 0.0
    %3311 = vmatpush1.msra.mxu0 %v3292
    %3312 = vmatprep.subr.mxu0 0.0
    %3313 = vmatpush1.msra.mxu0 %v3293
    %3314 = vmatprep.subr.mxu0 0.0
    %3315 = vmatpush1.msra.mxu0 %v3294
    %3316 = vmatprep.subr.mxu0 0.0
    %3317 = vmatpush1.msra.mxu0 %v3295
    %3318 = vmatprep.subr.mxu0 0.0
    %3319 = vmatpush1.msra.mxu0 %v3296
    %3320 = vmatprep.subr.mxu0 0.0
    %3321 = vmatpush1.msra.mxu0 %v3297
    %3322 = vmatprep.subr.mxu0 0.0
    %3323 = vmatpush1.msra.mxu0 %v3298
    %3324 = vmatprep.subr.mxu0 0.0
    %3325 = vmatpush1.msra.mxu0 %v3299
    %3326 = vmatprep.subr.mxu0 0.0
    %3327 = vmatpush1.msra.mxu0 %v3300
    %3328 = vmatprep.subr.mxu0 0.0
    %3329 = vmatpush1.msra.mxu0 %v3301
    %3330 = vmatprep.subr.mxu0 0.0
    %3331 = vmatpush1.msra.mxu0 %v3302
    %3332 = vmatprep.subr.mxu0 0.0
    %3333 = vmatpush1.msra.mxu0 %v3303
    %3334 = vmatprep.subr.mxu0 0.0
    %3335 = vmatpush1.msra.mxu0 %v3304
    %3336 = vmatprep.subr.mxu0 0.0
    %3337 = vmatpush1.msra.mxu0 %v3305
    %3338 = vmatprep.subr.mxu0 0.0
    %3339 = vmatpush1.msra.mxu0 0.0
    %3340 = vmatprep.subr.mxu0 0.0
    %3341 = vmatpush1.msra.mxu0 0.0
    %3342 = vmatprep.subr.mxu0 0.0
    %3343 = vmatpush1.msra.mxu0 0.0
    %3344 = vmatprep.subr.mxu0 0.0
    %3345 = vmatpush1.msra.mxu0 0.0
    %3346 = vmatprep.subr.mxu0 0.0
    %3347 = vmatpush1.msra.mxu0 0.0
    %3348 = vmatprep.subr.mxu0 0.0
    %3349 = vmatpush1.msra.mxu0 0.0
    %3350 = vmatprep.subr.mxu0 0.0
    %3351 = vmatpush1.msra.mxu0 0.0
    %3352 = vmatprep.subr.mxu0 0.0
    %3353 = vmatpush1.msra.mxu0 0.0
    %3354 = vmatprep.subr.mxu0 0.0
    %3355 = vmatpush1.msra.mxu0 0.0
    %3356 = vmatprep.subr.mxu0 0.0
    %3357 = vmatpush1.msra.mxu0 0.0
    %3358 = vmatprep.subr.mxu0 0.0
    %3359 = vmatpush1.msra.mxu0 0.0
    %3360 = vmatprep.subr.mxu0 0.0
    %3361 = vmatpush1.msra.mxu0 0.0
    %3362 = vmatprep.subr.mxu0 0.0
    %3363 = vmatpush1.msra.mxu0 0.0
    %3364 = vmatprep.subr.mxu0 0.0
    %3365 = vmatpush1.msra.mxu0 0.0
    %3366 = vmatprep.subr.mxu0 0.0
    %3367 = vmatpush1.msra.mxu0 0.0
    %3368 = vmatprep.subr.mxu0 0.0
    %3369 = vmatpush1.msra.mxu0 0.0
    %3370 = vmatprep.mubr.f32.mxu0 0.0
    %3371 = vmatmul.mubr.f32.gmra.mrb[0].mxu0 %v3273
    %v3372 = vpop.f32.mrb[0].mxu0
    %v3373 = vadd.f32 0.0, %v3372
    %v3374 = vpop.f32.mrb[0].mxu0
    %3375 = vmatprep.mubr.f32.mxu0 0.0
    %3376 = vmatmul.mubr.f32.gmra.mrb[0].mxu0 %v3274
    %v3377 = vpop.f32.mrb[0].mxu0
    %v3378 = vadd.f32 0.0, %v3377
    %v3379 = vpop.f32.mrb[0].mxu0
    %3380 = vmatprep.mubr.f32.mxu0 0.0
    %3381 = vmatmul.mubr.f32.gmra.mrb[0].mxu0 %v3275
    %v3382 = vpop.f32.mrb[0].mxu0
    %v3383 = vadd.f32 0.0, %v3382
    %v3384 = vpop.f32.mrb[0].mxu0
    %3385 = vmatprep.mubr.f32.mxu0 0.0
    %3386 = vmatmul.mubr.f32.gmra.mrb[0].mxu0 %v3276
    %v3387 = vpop.f32.mrb[0].mxu0
    %v3388 = vadd.f32 0.0, %v3387
    %v3389 = vpop.f32.mrb[0].mxu0
    %3390 = vmatprep.mubr.f32.mxu0 0.0
    %3391 = vmatmul.mubr.f32.gmra.mrb[0].mxu0 %v3277
    %v3392 = vpop.f32.mrb[0].mxu0
    %v3393 = vadd.f32 0.0, %v3392
    %v3394 = vpop.f32.mrb[0].mxu0
    %3395 = vmatprep.mubr.f32.mxu0 0.0
    %3396 = vmatmul.mubr.f32.gmra.mrb[0].mxu0 %v3278
    %v3397 = vpop.f32.mrb[0].mxu0
    %v3398 = vadd.f32 0.0, %v3397
    %v3399 = vpop.f32.mrb[0].mxu0
    %3400 = vmatprep.mubr.f32.mxu0 0.0
    %3401 = vmatmul.mubr.f32.gmra.mrb[0].mxu0 %v3279
    %v3402 = vpop.f32.mrb[0].mxu0
    %v3403 = vadd.f32 0.0, %v3402
    %v3404 = vpop.f32.mrb[0].mxu0
    %3405 = vmatprep.mubr.f32.mxu0 0.0
    %3406 = vmatmul.mubr.f32.gmra.mrb[0].mxu0 %v3280
    %v3407 = vpop.f32.mrb[0].mxu0
    %v3408 = vadd.f32 0.0, %v3407
    %v3409 = vpop.f32.mrb[0].mxu0
    %3410 = vmatprep.mubr.f32.mxu0 0.0
    %3411 = vmatmul.mubr.f32.gmra.mrb[0].mxu0 %v3281
    %v3412 = vpop.f32.mrb[0].mxu0
    %v3413 = vadd.f32 0.0, %v3412
    %v3414 = vpop.f32.mrb[0].mxu0
    %3415 = vmatprep.mubr.f32.mxu0 0.0
    %3416 = vmatmul.mubr.f32.gmra.mrb[0].mxu0 %v3282
    %v3417 = vpop.f32.mrb[0].mxu0
    %v3418 = vadd.f32 0.0, %v3417
    %v3419 = vpop.f32.mrb[0].mxu0
    %3420 = vmatprep.mubr.f32.mxu0 0.0
    %3421 = vmatmul.mubr.f32.gmra.mrb[0].mxu0 %v3283
    %v3422 = vpop.f32.mrb[0].mxu0
    %v3423 = vadd.f32 0.0, %v3422
    %v3424 = vpop.f32.mrb[0].mxu0
    %3425 = vmatprep.mubr.f32.mxu0 0.0
    %3426 = vmatmul.mubr.f32.gmra.mrb[0].mxu0 %v3284
    %v3427 = vpop.f32.mrb[0].mxu0
    %v3428 = vadd.f32 0.0, %v3427
    %v3429 = vpop.f32.mrb[0].mxu0
    %3430 = vmatprep.mubr.f32.mxu0 0.0
    %3431 = vmatmul.mubr.f32.gmra.mrb[0].mxu0 %v3285
    %v3432 = vpop.f32.mrb[0].mxu0
    %v3433 = vadd.f32 0.0, %v3432
    %v3434 = vpop.f32.mrb[0].mxu0
    %3435 = vmatprep.mubr.f32.mxu0 0.0
    %3436 = vmatmul.mubr.f32.gmra.mrb[0].mxu0 %v3286
    %v3437 = vpop.f32.mrb[0].mxu0
    %v3438 = vadd.f32 0.0, %v3437
    %v3439 = vpop.f32.mrb[0].mxu0
    %3440 = vmatprep.mubr.f32.mxu0 0.0
    %3441 = vmatmul.mubr.f32.gmra.mrb[0].mxu0 %v3287
    %v3442 = vpop.f32.mrb[0].mxu0
    %v3443 = vadd.f32 0.0, %v3442
    %v3444 = vpop.f32.mrb[0].mxu0
    %3445 = vmatprep.mubr.f32.mxu0 0.0
    %3446 = vmatmul.mubr.f32.gmra.mrb[0].mxu0 %v3288
    %v3447 = vpop.f32.mrb[0].mxu0
    %v3448 = vadd.f32 0.0, %v3447
    %v3449 = vpop.f32.mrb[0].mxu0
    %3450 = vdwg.mxu0
    %v3451 = vadd.f32 %v3257, %v3373
    %v3452 = vadd.f32 %v3258, %v3378
    %v3453 = vadd.f32 %v3259, %v3383
    %v3454 = vadd.f32 %v3260, %v3388
    %v3455 = vadd.f32 %v3261, %v3393
    %v3456 = vadd.f32 %v3262, %v3398
    %v3457 = vadd.f32 %v3263, %v3403
    %v3458 = vadd.f32 %v3264, %v3408
    %v3459 = vadd.f32 %v3265, %v3413
    %v3460 = vadd.f32 %v3266, %v3418
    %v3461 = vadd.f32 %v3267, %v3423
    %v3462 = vadd.f32 %v3268, %v3428
    %v3463 = vadd.f32 %v3269, %v3433
    %v3464 = vadd.f32 %v3270, %v3438
    %v3465 = vadd.f32 %v3271, %v3443
    %v3466 = vadd.f32 %v3272, %v3448
    %v3467 = vld [vmem:[#allocation2 + $0x4] sm:$0xff]
    %v3468 = vld [vmem:[#allocation2 + $0x14] sm:$0xff]
    %v3469 = vld [vmem:[#allocation2 + $0x24] sm:$0xff]
    %v3470 = vld [vmem:[#allocation2 + $0x34] sm:$0xff]
    %v3471 = vld [vmem:[#allocation2 + $0x44] sm:$0xff]
    %v3472 = vld [vmem:[#allocation2 + $0x54] sm:$0xff]
    %v3473 = vld [vmem:[#allocation2 + $0x64] sm:$0xff]
    %v3474 = vld [vmem:[#allocation2 + $0x74] sm:$0xff]
    %v3475 = vld [vmem:[#allocation2 + $0xc4] sm:$0xff]
    %v3476 = vld [vmem:[#allocation2 + $0xd4] sm:$0xff]
    %v3477 = vld [vmem:[#allocation2 + $0xe4] sm:$0xff]
    %v3478 = vld [vmem:[#allocation2 + $0xf4] sm:$0xff]
    %v3479 = vld [vmem:[#allocation2 + $0x104] sm:$0xff]
    %v3480 = vld [vmem:[#allocation2 + $0x114] sm:$0xff]
    %v3481 = vld [vmem:[#allocation2 + $0x124] sm:$0xff]
    %v3482 = vld [vmem:[#allocation2 + $0x134] sm:$0xff]
    %s3483 = scalar_lea.vmem %s3, 512
    %v3484 = vld [vmem:[%s3483] sm:$0xff]
    %v3485 = vld [vmem:[%s3483 + $0x8] sm:$0xff]
    %v3486 = vld [vmem:[%s3483 + $0x10] sm:$0xff]
    %v3487 = vld [vmem:[%s3483 + $0x18] sm:$0xff]
    %v3488 = vld [vmem:[%s3483 + $0x20] sm:$0xff]
    %v3489 = vld [vmem:[%s3483 + $0x28] sm:$0xff]
    %v3490 = vld [vmem:[%s3483 + $0x30] sm:$0xff]
    %v3491 = vld [vmem:[%s3483 + $0x38] sm:$0xff]
    %v3492 = vld [vmem:[%s3483 + $0x40] sm:$0xff]
    %v3493 = vld [vmem:[%s3483 + $0x48] sm:$0xff]
    %v3494 = vld [vmem:[%s3483 + $0x50] sm:$0xff]
    %v3495 = vld [vmem:[%s3483 + $0x58] sm:$0xff]
    %v3496 = vld [vmem:[%s3483 + $0x60] sm:$0xff]
    %v3497 = vld [vmem:[%s3483 + $0x68] sm:$0xff]
    %v3498 = vld [vmem:[%s3483 + $0x70] sm:$0xff]
    %v3499 = vld [vmem:[%s3483 + $0x78] sm:$0xff]
    %3500 = vmatprep.subr.mxu0 0.0
    %3501 = vmatpush1.msra.mxu0 %v3484
    %3502 = vmatprep.subr.mxu0 0.0
    %3503 = vmatpush1.msra.mxu0 %v3485
    %3504 = vmatprep.subr.mxu0 0.0
    %3505 = vmatpush1.msra.mxu0 %v3486
    %3506 = vmatprep.subr.mxu0 0.0
    %3507 = vmatpush1.msra.mxu0 %v3487
    %3508 = vmatprep.subr.mxu0 0.0
    %3509 = vmatpush1.msra.mxu0 %v3488
    %3510 = vmatprep.subr.mxu0 0.0
    %3511 = vmatpush1.msra.mxu0 %v3489
    %3512 = vmatprep.subr.mxu0 0.0
    %3513 = vmatpush1.msra.mxu0 %v3490
    %3514 = vmatprep.subr.mxu0 0.0
    %3515 = vmatpush1.msra.mxu0 %v3491
    %3516 = vmatprep.subr.mxu0 0.0
    %3517 = vmatpush1.msra.mxu0 %v3492
    %3518 = vmatprep.subr.mxu0 0.0
    %3519 = vmatpush1.msra.mxu0 %v3493
    %3520 = vmatprep.subr.mxu0 0.0
    %3521 = vmatpush1.msra.mxu0 %v3494
    %3522 = vmatprep.subr.mxu0 0.0
    %3523 = vmatpush1.msra.mxu0 %v3495
    %3524 = vmatprep.subr.mxu0 0.0
    %3525 = vmatpush1.msra.mxu0 %v3496
    %3526 = vmatprep.subr.mxu0 0.0
    %3527 = vmatpush1.msra.mxu0 %v3497
    %3528 = vmatprep.subr.mxu0 0.0
    %3529 = vmatpush1.msra.mxu0 %v3498
    %3530 = vmatprep.subr.mxu0 0.0
    %3531 = vmatpush1.msra.mxu0 %v3499
    %3532 = vmatprep.subr.mxu0 0.0
    %3533 = vmatpush1.msra.mxu0 0.0
    %3534 = vmatprep.subr.mxu0 0.0
    %3535 = vmatpush1.msra.mxu0 0.0
    %3536 = vmatprep.subr.mxu0 0.0
    %3537 = vmatpush1.msra.mxu0 0.0
    %3538 = vmatprep.subr.mxu0 0.0
    %3539 = vmatpush1.msra.mxu0 0.0
    %3540 = vmatprep.subr.mxu0 0.0
    %3541 = vmatpush1.msra.mxu0 0.0
    %3542 = vmatprep.subr.mxu0 0.0
    %3543 = vmatpush1.msra.mxu0 0.0
    %3544 = vmatprep.subr.mxu0 0.0
    %3545 = vmatpush1.msra.mxu0 0.0
    %3546 = vmatprep.subr.mxu0 0.0
    %3547 = vmatpush1.msra.mxu0 0.0
    %3548 = vmatprep.subr.mxu0 0.0
    %3549 = vmatpush1.msra.mxu0 0.0
    %3550 = vmatprep.subr.mxu0 0.0
    %3551 = vmatpush1.msra.mxu0 0.0
    %3552 = vmatprep.subr.mxu0 0.0
    %3553 = vmatpush1.msra.mxu0 0.0
    %3554 = vmatprep.subr.mxu0 0.0
    %3555 = vmatpush1.msra.mxu0 0.0
    %3556 = vmatprep.subr.mxu0 0.0
    %3557 = vmatpush1.msra.mxu0 0.0
    %3558 = vmatprep.subr.mxu0 0.0
    %3559 = vmatpush1.msra.mxu0 0.0
    %3560 = vmatprep.subr.mxu0 0.0
    %3561 = vmatpush1.msra.mxu0 0.0
    %3562 = vmatprep.subr.mxu0 0.0
    %3563 = vmatpush1.msra.mxu0 0.0
    %3564 = vmatprep.mubr.f32.mxu0 0.0
    %3565 = vmatmul.mubr.f32.gmra.mrb[0].mxu0 %v3467
    %v3566 = vpop.f32.mrb[0].mxu0
    %v3567 = vadd.f32 0.0, %v3566
    %v3568 = vpop.f32.mrb[0].mxu0
    %3569 = vmatprep.mubr.f32.mxu0 0.0
    %3570 = vmatmul.mubr.f32.gmra.mrb[0].mxu0 %v3468
    %v3571 = vpop.f32.mrb[0].mxu0
    %v3572 = vadd.f32 0.0, %v3571
    %v3573 = vpop.f32.mrb[0].mxu0
    %3574 = vmatprep.mubr.f32.mxu0 0.0
    %3575 = vmatmul.mubr.f32.gmra.mrb[0].mxu0 %v3469
    %v3576 = vpop.f32.mrb[0].mxu0
    %v3577 = vadd.f32 0.0, %v3576
    %v3578 = vpop.f32.mrb[0].mxu0
    %3579 = vmatprep.mubr.f32.mxu0 0.0
    %3580 = vmatmul.mubr.f32.gmra.mrb[0].mxu0 %v3470
    %v3581 = vpop.f32.mrb[0].mxu0
    %v3582 = vadd.f32 0.0, %v3581
    %v3583 = vpop.f32.mrb[0].mxu0
    %3584 = vmatprep.mubr.f32.mxu0 0.0
    %3585 = vmatmul.mubr.f32.gmra.mrb[0].mxu0 %v3471
    %v3586 = vpop.f32.mrb[0].mxu0
    %v3587 = vadd.f32 0.0, %v3586
    %v3588 = vpop.f32.mrb[0].mxu0
    %3589 = vmatprep.mubr.f32.mxu0 0.0
    %3590 = vmatmul.mubr.f32.gmra.mrb[0].mxu0 %v3472
    %v3591 = vpop.f32.mrb[0].mxu0
    %v3592 = vadd.f32 0.0, %v3591
    %v3593 = vpop.f32.mrb[0].mxu0
    %3594 = vmatprep.mubr.f32.mxu0 0.0
    %3595 = vmatmul.mubr.f32.gmra.mrb[0].mxu0 %v3473
    %v3596 = vpop.f32.mrb[0].mxu0
    %v3597 = vadd.f32 0.0, %v3596
    %v3598 = vpop.f32.mrb[0].mxu0
    %3599 = vmatprep.mubr.f32.mxu0 0.0
    %3600 = vmatmul.mubr.f32.gmra.mrb[0].mxu0 %v3474
    %v3601 = vpop.f32.mrb[0].mxu0
    %v3602 = vadd.f32 0.0, %v3601
    %v3603 = vpop.f32.mrb[0].mxu0
    %3604 = vmatprep.mubr.f32.mxu0 0.0
    %3605 = vmatmul.mubr.f32.gmra.mrb[0].mxu0 %v3475
    %v3606 = vpop.f32.mrb[0].mxu0
    %v3607 = vadd.f32 0.0, %v3606
    %v3608 = vpop.f32.mrb[0].mxu0
    %3609 = vmatprep.mubr.f32.mxu0 0.0
    %3610 = vmatmul.mubr.f32.gmra.mrb[0].mxu0 %v3476
    %v3611 = vpop.f32.mrb[0].mxu0
    %v3612 = vadd.f32 0.0, %v3611
    %v3613 = vpop.f32.mrb[0].mxu0
    %3614 = vmatprep.mubr.f32.mxu0 0.0
    %3615 = vmatmul.mubr.f32.gmra.mrb[0].mxu0 %v3477
    %v3616 = vpop.f32.mrb[0].mxu0
    %v3617 = vadd.f32 0.0, %v3616
    %v3618 = vpop.f32.mrb[0].mxu0
    %3619 = vmatprep.mubr.f32.mxu0 0.0
    %3620 = vmatmul.mubr.f32.gmra.mrb[0].mxu0 %v3478
    %v3621 = vpop.f32.mrb[0].mxu0
    %v3622 = vadd.f32 0.0, %v3621
    %v3623 = vpop.f32.mrb[0].mxu0
    %3624 = vmatprep.mubr.f32.mxu0 0.0
    %3625 = vmatmul.mubr.f32.gmra.mrb[0].mxu0 %v3479
    %v3626 = vpop.f32.mrb[0].mxu0
    %v3627 = vadd.f32 0.0, %v3626
    %v3628 = vpop.f32.mrb[0].mxu0
    %3629 = vmatprep.mubr.f32.mxu0 0.0
    %3630 = vmatmul.mubr.f32.gmra.mrb[0].mxu0 %v3480
    %v3631 = vpop.f32.mrb[0].mxu0
    %v3632 = vadd.f32 0.0, %v3631
    %v3633 = vpop.f32.mrb[0].mxu0
    %3634 = vmatprep.mubr.f32.mxu0 0.0
    %3635 = vmatmul.mubr.f32.gmra.mrb[0].mxu0 %v3481
    %v3636 = vpop.f32.mrb[0].mxu0
    %v3637 = vadd.f32 0.0, %v3636
    %v3638 = vpop.f32.mrb[0].mxu0
    %3639 = vmatprep.mubr.f32.mxu0 0.0
    %3640 = vmatmul.mubr.f32.gmra.mrb[0].mxu0 %v3482
    %v3641 = vpop.f32.mrb[0].mxu0
    %v3642 = vadd.f32 0.0, %v3641
    %v3643 = vpop.f32.mrb[0].mxu0
    %3644 = vdwg.mxu0
    %v3645 = vadd.f32 %v3451, %v3567
    %v3646 = vadd.f32 %v3452, %v3572
    %v3647 = vadd.f32 %v3453, %v3577
    %v3648 = vadd.f32 %v3454, %v3582
    %v3649 = vadd.f32 %v3455, %v3587
    %v3650 = vadd.f32 %v3456, %v3592
    %v3651 = vadd.f32 %v3457, %v3597
    %v3652 = vadd.f32 %v3458, %v3602
    %v3653 = vadd.f32 %v3459, %v3607
    %v3654 = vadd.f32 %v3460, %v3612
    %v3655 = vadd.f32 %v3461, %v3617
    %v3656 = vadd.f32 %v3462, %v3622
    %v3657 = vadd.f32 %v3463, %v3627
    %v3658 = vadd.f32 %v3464, %v3632
    %v3659 = vadd.f32 %v3465, %v3637
    %v3660 = vadd.f32 %v3466, %v3642
    %s3661 = scalar_lea.vmem [#allocation2], 16
    %v3662 = vld [vmem:[%s3661] sm:$0xff]
    %v3663 = vld [vmem:[%s3661 + $0x10] sm:$0xff]
    %v3664 = vld [vmem:[%s3661 + $0x20] sm:$0xff]
    %v3665 = vld [vmem:[%s3661 + $0x30] sm:$0xff]
    %v3666 = vld [vmem:[%s3661 + $0x40] sm:$0xff]
    %v3667 = vld [vmem:[%s3661 + $0x50] sm:$0xff]
    %v3668 = vld [vmem:[%s3661 + $0x60] sm:$0xff]
    %v3669 = vld [vmem:[%s3661 + $0x70] sm:$0xff]
    %v3670 = vld [vmem:[%s3661 + $0xc0] sm:$0xff]
    %v3671 = vld [vmem:[%s3661 + $0xd0] sm:$0xff]
    %v3672 = vld [vmem:[%s3661 + $0xe0] sm:$0xff]
    %v3673 = vld [vmem:[%s3661 + $0xf0] sm:$0xff]
    %v3674 = vld [vmem:[%s3661 + $0x100] sm:$0xff]
    %v3675 = vld [vmem:[%s3661 + $0x110] sm:$0xff]
    %v3676 = vld [vmem:[%s3661 + $0x120] sm:$0xff]
    %v3677 = vld [vmem:[%s3661 + $0x130] sm:$0xff]
    %s3678 = scalar_lea.vmem %s3, 640
    %v3679 = vld [vmem:[%s3678] sm:$0xff]
    %v3680 = vld [vmem:[%s3678 + $0x8] sm:$0xff]
    %v3681 = vld [vmem:[%s3678 + $0x10] sm:$0xff]
    %v3682 = vld [vmem:[%s3678 + $0x18] sm:$0xff]
    %v3683 = vld [vmem:[%s3678 + $0x20] sm:$0xff]
    %v3684 = vld [vmem:[%s3678 + $0x28] sm:$0xff]
    %v3685 = vld [vmem:[%s3678 + $0x30] sm:$0xff]
    %v3686 = vld [vmem:[%s3678 + $0x38] sm:$0xff]
    %v3687 = vld [vmem:[%s3678 + $0x40] sm:$0xff]
    %v3688 = vld [vmem:[%s3678 + $0x48] sm:$0xff]
    %v3689 = vld [vmem:[%s3678 + $0x50] sm:$0xff]
    %v3690 = vld [vmem:[%s3678 + $0x58] sm:$0xff]
    %v3691 = vld [vmem:[%s3678 + $0x60] sm:$0xff]
    %v3692 = vld [vmem:[%s3678 + $0x68] sm:$0xff]
    %v3693 = vld [vmem:[%s3678 + $0x70] sm:$0xff]
    %v3694 = vld [vmem:[%s3678 + $0x78] sm:$0xff]
    %3695 = vmatprep.subr.mxu0 0.0
    %3696 = vmatpush1.msra.mxu0 %v3679
    %3697 = vmatprep.subr.mxu0 0.0
    %3698 = vmatpush1.msra.mxu0 %v3680
    %3699 = vmatprep.subr.mxu0 0.0
    %3700 = vmatpush1.msra.mxu0 %v3681
    %3701 = vmatprep.subr.mxu0 0.0
    %3702 = vmatpush1.msra.mxu0 %v3682
    %3703 = vmatprep.subr.mxu0 0.0
    %3704 = vmatpush1.msra.mxu0 %v3683
    %3705 = vmatprep.subr.mxu0 0.0
    %3706 = vmatpush1.msra.mxu0 %v3684
    %3707 = vmatprep.subr.mxu0 0.0
    %3708 = vmatpush1.msra.mxu0 %v3685
    %3709 = vmatprep.subr.mxu0 0.0
    %3710 = vmatpush1.msra.mxu0 %v3686
    %3711 = vmatprep.subr.mxu0 0.0
    %3712 = vmatpush1.msra.mxu0 %v3687
    %3713 = vmatprep.subr.mxu0 0.0
    %3714 = vmatpush1.msra.mxu0 %v3688
    %3715 = vmatprep.subr.mxu0 0.0
    %3716 = vmatpush1.msra.mxu0 %v3689
    %3717 = vmatprep.subr.mxu0 0.0
    %3718 = vmatpush1.msra.mxu0 %v3690
    %3719 = vmatprep.subr.mxu0 0.0
    %3720 = vmatpush1.msra.mxu0 %v3691
    %3721 = vmatprep.subr.mxu0 0.0
    %3722 = vmatpush1.msra.mxu0 %v3692
    %3723 = vmatprep.subr.mxu0 0.0
    %3724 = vmatpush1.msra.mxu0 %v3693
    %3725 = vmatprep.subr.mxu0 0.0
    %3726 = vmatpush1.msra.mxu0 %v3694
    %3727 = vmatprep.subr.mxu0 0.0
    %3728 = vmatpush1.msra.mxu0 0.0
    %3729 = vmatprep.subr.mxu0 0.0
    %3730 = vmatpush1.msra.mxu0 0.0
    %3731 = vmatprep.subr.mxu0 0.0
    %3732 = vmatpush1.msra.mxu0 0.0
    %3733 = vmatprep.subr.mxu0 0.0
    %3734 = vmatpush1.msra.mxu0 0.0
    %3735 = vmatprep.subr.mxu0 0.0
    %3736 = vmatpush1.msra.mxu0 0.0
    %3737 = vmatprep.subr.mxu0 0.0
    %3738 = vmatpush1.msra.mxu0 0.0
    %3739 = vmatprep.subr.mxu0 0.0
    %3740 = vmatpush1.msra.mxu0 0.0
    %3741 = vmatprep.subr.mxu0 0.0
    %3742 = vmatpush1.msra.mxu0 0.0
    %3743 = vmatprep.subr.mxu0 0.0
    %3744 = vmatpush1.msra.mxu0 0.0
    %3745 = vmatprep.subr.mxu0 0.0
    %3746 = vmatpush1.msra.mxu0 0.0
    %3747 = vmatprep.subr.mxu0 0.0
    %3748 = vmatpush1.msra.mxu0 0.0
    %3749 = vmatprep.subr.mxu0 0.0
    %3750 = vmatpush1.msra.mxu0 0.0
    %3751 = vmatprep.subr.mxu0 0.0
    %3752 = vmatpush1.msra.mxu0 0.0
    %3753 = vmatprep.subr.mxu0 0.0
    %3754 = vmatpush1.msra.mxu0 0.0
    %3755 = vmatprep.subr.mxu0 0.0
    %3756 = vmatpush1.msra.mxu0 0.0
    %3757 = vmatprep.subr.mxu0 0.0
    %3758 = vmatpush1.msra.mxu0 0.0
    %3759 = vmatprep.mubr.f32.mxu0 0.0
    %3760 = vmatmul.mubr.f32.gmra.mrb[0].mxu0 %v3662
    %v3761 = vpop.f32.mrb[0].mxu0
    %v3762 = vadd.f32 0.0, %v3761
    %v3763 = vpop.f32.mrb[0].mxu0
    %3764 = vmatprep.mubr.f32.mxu0 0.0
    %3765 = vmatmul.mubr.f32.gmra.mrb[0].mxu0 %v3663
    %v3766 = vpop.f32.mrb[0].mxu0
    %v3767 = vadd.f32 0.0, %v3766
    %v3768 = vpop.f32.mrb[0].mxu0
    %3769 = vmatprep.mubr.f32.mxu0 0.0
    %3770 = vmatmul.mubr.f32.gmra.mrb[0].mxu0 %v3664
    %v3771 = vpop.f32.mrb[0].mxu0
    %v3772 = vadd.f32 0.0, %v3771
    %v3773 = vpop.f32.mrb[0].mxu0
    %3774 = vmatprep.mubr.f32.mxu0 0.0
    %3775 = vmatmul.mubr.f32.gmra.mrb[0].mxu0 %v3665
    %v3776 = vpop.f32.mrb[0].mxu0
    %v3777 = vadd.f32 0.0, %v3776
    %v3778 = vpop.f32.mrb[0].mxu0
    %3779 = vmatprep.mubr.f32.mxu0 0.0
    %3780 = vmatmul.mubr.f32.gmra.mrb[0].mxu0 %v3666
    %v3781 = vpop.f32.mrb[0].mxu0
    %v3782 = vadd.f32 0.0, %v3781
    %v3783 = vpop.f32.mrb[0].mxu0
    %3784 = vmatprep.mubr.f32.mxu0 0.0
    %3785 = vmatmul.mubr.f32.gmra.mrb[0].mxu0 %v3667
    %v3786 = vpop.f32.mrb[0].mxu0
    %v3787 = vadd.f32 0.0, %v3786
    %v3788 = vpop.f32.mrb[0].mxu0
    %3789 = vmatprep.mubr.f32.mxu0 0.0
    %3790 = vmatmul.mubr.f32.gmra.mrb[0].mxu0 %v3668
    %v3791 = vpop.f32.mrb[0].mxu0
    %v3792 = vadd.f32 0.0, %v3791
    %v3793 = vpop.f32.mrb[0].mxu0
    %3794 = vmatprep.mubr.f32.mxu0 0.0
    %3795 = vmatmul.mubr.f32.gmra.mrb[0].mxu0 %v3669
    %v3796 = vpop.f32.mrb[0].mxu0
    %v3797 = vadd.f32 0.0, %v3796
    %v3798 = vpop.f32.mrb[0].mxu0
    %3799 = vmatprep.mubr.f32.mxu0 0.0
    %3800 = vmatmul.mubr.f32.gmra.mrb[0].mxu0 %v3670
    %v3801 = vpop.f32.mrb[0].mxu0
    %v3802 = vadd.f32 0.0, %v3801
    %v3803 = vpop.f32.mrb[0].mxu0
    %3804 = vmatprep.mubr.f32.mxu0 0.0
    %3805 = vmatmul.mubr.f32.gmra.mrb[0].mxu0 %v3671
    %v3806 = vpop.f32.mrb[0].mxu0
    %v3807 = vadd.f32 0.0, %v3806
    %v3808 = vpop.f32.mrb[0].mxu0
    %3809 = vmatprep.mubr.f32.mxu0 0.0
    %3810 = vmatmul.mubr.f32.gmra.mrb[0].mxu0 %v3672
    %v3811 = vpop.f32.mrb[0].mxu0
    %v3812 = vadd.f32 0.0, %v3811
    %v3813 = vpop.f32.mrb[0].mxu0
    %3814 = vmatprep.mubr.f32.mxu0 0.0
    %3815 = vmatmul.mubr.f32.gmra.mrb[0].mxu0 %v3673
    %v3816 = vpop.f32.mrb[0].mxu0
    %v3817 = vadd.f32 0.0, %v3816
    %v3818 = vpop.f32.mrb[0].mxu0
    %3819 = vmatprep.mubr.f32.mxu0 0.0
    %3820 = vmatmul.mubr.f32.gmra.mrb[0].mxu0 %v3674
    %v3821 = vpop.f32.mrb[0].mxu0
    %v3822 = vadd.f32 0.0, %v3821
    %v3823 = vpop.f32.mrb[0].mxu0
    %3824 = vmatprep.mubr.f32.mxu0 0.0
    %3825 = vmatmul.mubr.f32.gmra.mrb[0].mxu0 %v3675
    %v3826 = vpop.f32.mrb[0].mxu0
    %v3827 = vadd.f32 0.0, %v3826
    %v3828 = vpop.f32.mrb[0].mxu0
    %3829 = vmatprep.mubr.f32.mxu0 0.0
    %3830 = vmatmul.mubr.f32.gmra.mrb[0].mxu0 %v3676
    %v3831 = vpop.f32.mrb[0].mxu0
    %v3832 = vadd.f32 0.0, %v3831
    %v3833 = vpop.f32.mrb[0].mxu0
    %3834 = vmatprep.mubr.f32.mxu0 0.0
    %3835 = vmatmul.mubr.f32.gmra.mrb[0].mxu0 %v3677
    %v3836 = vpop.f32.mrb[0].mxu0
    %v3837 = vadd.f32 0.0, %v3836
    %v3838 = vpop.f32.mrb[0].mxu0
    %3839 = vdwg.mxu0
    %v3840 = vadd.f32 %v3645, %v3762
    %v3841 = vadd.f32 %v3646, %v3767
    %v3842 = vadd.f32 %v3647, %v3772
    %v3843 = vadd.f32 %v3648, %v3777
    %v3844 = vadd.f32 %v3649, %v3782
    %v3845 = vadd.f32 %v3650, %v3787
    %v3846 = vadd.f32 %v3651, %v3792
    %v3847 = vadd.f32 %v3652, %v3797
    %v3848 = vadd.f32 %v3653, %v3802
    %v3849 = vadd.f32 %v3654, %v3807
    %v3850 = vadd.f32 %v3655, %v3812
    %v3851 = vadd.f32 %v3656, %v3817
    %v3852 = vadd.f32 %v3657, %v3822
    %v3853 = vadd.f32 %v3658, %v3827
    %v3854 = vadd.f32 %v3659, %v3832
    %v3855 = vadd.f32 %v3660, %v3837
    %v3856 = vld [vmem:[%s3661 + $0x1] sm:$0xff]
    %v3857 = vld [vmem:[%s3661 + $0x11] sm:$0xff]
    %v3858 = vld [vmem:[%s3661 + $0x21] sm:$0xff]
    %v3859 = vld [vmem:[%s3661 + $0x31] sm:$0xff]
    %v3860 = vld [vmem:[%s3661 + $0x41] sm:$0xff]
    %v3861 = vld [vmem:[%s3661 + $0x51] sm:$0xff]
    %v3862 = vld [vmem:[%s3661 + $0x61] sm:$0xff]
    %v3863 = vld [vmem:[%s3661 + $0x71] sm:$0xff]
    %v3864 = vld [vmem:[%s3661 + $0xc1] sm:$0xff]
    %v3865 = vld [vmem:[%s3661 + $0xd1] sm:$0xff]
    %v3866 = vld [vmem:[%s3661 + $0xe1] sm:$0xff]
    %v3867 = vld [vmem:[%s3661 + $0xf1] sm:$0xff]
    %v3868 = vld [vmem:[%s3661 + $0x101] sm:$0xff]
    %v3869 = vld [vmem:[%s3661 + $0x111] sm:$0xff]
    %v3870 = vld [vmem:[%s3661 + $0x121] sm:$0xff]
    %v3871 = vld [vmem:[%s3661 + $0x131] sm:$0xff]
    %s3872 = scalar_lea.vmem %s3, 768
    %v3873 = vld [vmem:[%s3872] sm:$0xff]
    %v3874 = vld [vmem:[%s3872 + $0x8] sm:$0xff]
    %v3875 = vld [vmem:[%s3872 + $0x10] sm:$0xff]
    %v3876 = vld [vmem:[%s3872 + $0x18] sm:$0xff]
    %v3877 = vld [vmem:[%s3872 + $0x20] sm:$0xff]
    %v3878 = vld [vmem:[%s3872 + $0x28] sm:$0xff]
    %v3879 = vld [vmem:[%s3872 + $0x30] sm:$0xff]
    %v3880 = vld [vmem:[%s3872 + $0x38] sm:$0xff]
    %v3881 = vld [vmem:[%s3872 + $0x40] sm:$0xff]
    %v3882 = vld [vmem:[%s3872 + $0x48] sm:$0xff]
    %v3883 = vld [vmem:[%s3872 + $0x50] sm:$0xff]
    %v3884 = vld [vmem:[%s3872 + $0x58] sm:$0xff]
    %v3885 = vld [vmem:[%s3872 + $0x60] sm:$0xff]
    %v3886 = vld [vmem:[%s3872 + $0x68] sm:$0xff]
    %v3887 = vld [vmem:[%s3872 + $0x70] sm:$0xff]
    %v3888 = vld [vmem:[%s3872 + $0x78] sm:$0xff]
    %3889 = vmatprep.subr.mxu0 0.0
    %3890 = vmatpush1.msra.mxu0 %v3873
    %3891 = vmatprep.subr.mxu0 0.0
    %3892 = vmatpush1.msra.mxu0 %v3874
    %3893 = vmatprep.subr.mxu0 0.0
    %3894 = vmatpush1.msra.mxu0 %v3875
    %3895 = vmatprep.subr.mxu0 0.0
    %3896 = vmatpush1.msra.mxu0 %v3876
    %3897 = vmatprep.subr.mxu0 0.0
    %3898 = vmatpush1.msra.mxu0 %v3877
    %3899 = vmatprep.subr.mxu0 0.0
    %3900 = vmatpush1.msra.mxu0 %v3878
    %3901 = vmatprep.subr.mxu0 0.0
    %3902 = vmatpush1.msra.mxu0 %v3879
    %3903 = vmatprep.subr.mxu0 0.0
    %3904 = vmatpush1.msra.mxu0 %v3880
    %3905 = vmatprep.subr.mxu0 0.0
    %3906 = vmatpush1.msra.mxu0 %v3881
    %3907 = vmatprep.subr.mxu0 0.0
    %3908 = vmatpush1.msra.mxu0 %v3882
    %3909 = vmatprep.subr.mxu0 0.0
    %3910 = vmatpush1.msra.mxu0 %v3883
    %3911 = vmatprep.subr.mxu0 0.0
    %3912 = vmatpush1.msra.mxu0 %v3884
    %3913 = vmatprep.subr.mxu0 0.0
    %3914 = vmatpush1.msra.mxu0 %v3885
    %3915 = vmatprep.subr.mxu0 0.0
    %3916 = vmatpush1.msra.mxu0 %v3886
    %3917 = vmatprep.subr.mxu0 0.0
    %3918 = vmatpush1.msra.mxu0 %v3887
    %3919 = vmatprep.subr.mxu0 0.0
    %3920 = vmatpush1.msra.mxu0 %v3888
    %3921 = vmatprep.subr.mxu0 0.0
    %3922 = vmatpush1.msra.mxu0 0.0
    %3923 = vmatprep.subr.mxu0 0.0
    %3924 = vmatpush1.msra.mxu0 0.0
    %3925 = vmatprep.subr.mxu0 0.0
    %3926 = vmatpush1.msra.mxu0 0.0
    %3927 = vmatprep.subr.mxu0 0.0
    %3928 = vmatpush1.msra.mxu0 0.0
    %3929 = vmatprep.subr.mxu0 0.0
    %3930 = vmatpush1.msra.mxu0 0.0
    %3931 = vmatprep.subr.mxu0 0.0
    %3932 = vmatpush1.msra.mxu0 0.0
    %3933 = vmatprep.subr.mxu0 0.0
    %3934 = vmatpush1.msra.mxu0 0.0
    %3935 = vmatprep.subr.mxu0 0.0
    %3936 = vmatpush1.msra.mxu0 0.0
    %3937 = vmatprep.subr.mxu0 0.0
    %3938 = vmatpush1.msra.mxu0 0.0
    %3939 = vmatprep.subr.mxu0 0.0
    %3940 = vmatpush1.msra.mxu0 0.0
    %3941 = vmatprep.subr.mxu0 0.0
    %3942 = vmatpush1.msra.mxu0 0.0
    %3943 = vmatprep.subr.mxu0 0.0
    %3944 = vmatpush1.msra.mxu0 0.0
    %3945 = vmatprep.subr.mxu0 0.0
    %3946 = vmatpush1.msra.mxu0 0.0
    %3947 = vmatprep.subr.mxu0 0.0
    %3948 = vmatpush1.msra.mxu0 0.0
    %3949 = vmatprep.subr.mxu0 0.0
    %3950 = vmatpush1.msra.mxu0 0.0
    %3951 = vmatprep.subr.mxu0 0.0
    %3952 = vmatpush1.msra.mxu0 0.0
    %3953 = vmatprep.mubr.f32.mxu0 0.0
    %3954 = vmatmul.mubr.f32.gmra.mrb[0].mxu0 %v3856
    %v3955 = vpop.f32.mrb[0].mxu0
    %v3956 = vadd.f32 0.0, %v3955
    %v3957 = vpop.f32.mrb[0].mxu0
    %3958 = vmatprep.mubr.f32.mxu0 0.0
    %3959 = vmatmul.mubr.f32.gmra.mrb[0].mxu0 %v3857
    %v3960 = vpop.f32.mrb[0].mxu0
    %v3961 = vadd.f32 0.0, %v3960
    %v3962 = vpop.f32.mrb[0].mxu0
    %3963 = vmatprep.mubr.f32.mxu0 0.0
    %3964 = vmatmul.mubr.f32.gmra.mrb[0].mxu0 %v3858
    %v3965 = vpop.f32.mrb[0].mxu0
    %v3966 = vadd.f32 0.0, %v3965
    %v3967 = vpop.f32.mrb[0].mxu0
    %3968 = vmatprep.mubr.f32.mxu0 0.0
    %3969 = vmatmul.mubr.f32.gmra.mrb[0].mxu0 %v3859
    %v3970 = vpop.f32.mrb[0].mxu0
    %v3971 = vadd.f32 0.0, %v3970
    %v3972 = vpop.f32.mrb[0].mxu0
    %3973 = vmatprep.mubr.f32.mxu0 0.0
    %3974 = vmatmul.mubr.f32.gmra.mrb[0].mxu0 %v3860
    %v3975 = vpop.f32.mrb[0].mxu0
    %v3976 = vadd.f32 0.0, %v3975
    %v3977 = vpop.f32.mrb[0].mxu0
    %3978 = vmatprep.mubr.f32.mxu0 0.0
    %3979 = vmatmul.mubr.f32.gmra.mrb[0].mxu0 %v3861
    %v3980 = vpop.f32.mrb[0].mxu0
    %v3981 = vadd.f32 0.0, %v3980
    %v3982 = vpop.f32.mrb[0].mxu0
    %3983 = vmatprep.mubr.f32.mxu0 0.0
    %3984 = vmatmul.mubr.f32.gmra.mrb[0].mxu0 %v3862
    %v3985 = vpop.f32.mrb[0].mxu0
    %v3986 = vadd.f32 0.0, %v3985
    %v3987 = vpop.f32.mrb[0].mxu0
    %3988 = vmatprep.mubr.f32.mxu0 0.0
    %3989 = vmatmul.mubr.f32.gmra.mrb[0].mxu0 %v3863
    %v3990 = vpop.f32.mrb[0].mxu0
    %v3991 = vadd.f32 0.0, %v3990
    %v3992 = vpop.f32.mrb[0].mxu0
    %3993 = vmatprep.mubr.f32.mxu0 0.0
    %3994 = vmatmul.mubr.f32.gmra.mrb[0].mxu0 %v3864
    %v3995 = vpop.f32.mrb[0].mxu0
    %v3996 = vadd.f32 0.0, %v3995
    %v3997 = vpop.f32.mrb[0].mxu0
    %3998 = vmatprep.mubr.f32.mxu0 0.0
    %3999 = vmatmul.mubr.f32.gmra.mrb[0].mxu0 %v3865
    %v4000 = vpop.f32.mrb[0].mxu0
    %v4001 = vadd.f32 0.0, %v4000
    %v4002 = vpop.f32.mrb[0].mxu0
    %4003 = vmatprep.mubr.f32.mxu0 0.0
    %4004 = vmatmul.mubr.f32.gmra.mrb[0].mxu0 %v3866
    %v4005 = vpop.f32.mrb[0].mxu0
    %v4006 = vadd.f32 0.0, %v4005
    %v4007 = vpop.f32.mrb[0].mxu0
    %4008 = vmatprep.mubr.f32.mxu0 0.0
    %4009 = vmatmul.mubr.f32.gmra.mrb[0].mxu0 %v3867
    %v4010 = vpop.f32.mrb[0].mxu0
    %v4011 = vadd.f32 0.0, %v4010
    %v4012 = vpop.f32.mrb[0].mxu0
    %4013 = vmatprep.mubr.f32.mxu0 0.0
    %4014 = vmatmul.mubr.f32.gmra.mrb[0].mxu0 %v3868
    %v4015 = vpop.f32.mrb[0].mxu0
    %v4016 = vadd.f32 0.0, %v4015
    %v4017 = vpop.f32.mrb[0].mxu0
    %4018 = vmatprep.mubr.f32.mxu0 0.0
    %4019 = vmatmul.mubr.f32.gmra.mrb[0].mxu0 %v3869
    %v4020 = vpop.f32.mrb[0].mxu0
    %v4021 = vadd.f32 0.0, %v4020
    %v4022 = vpop.f32.mrb[0].mxu0
    %4023 = vmatprep.mubr.f32.mxu0 0.0
    %4024 = vmatmul.mubr.f32.gmra.mrb[0].mxu0 %v3870
    %v4025 = vpop.f32.mrb[0].mxu0
    %v4026 = vadd.f32 0.0, %v4025
    %v4027 = vpop.f32.mrb[0].mxu0
    %4028 = vmatprep.mubr.f32.mxu0 0.0
    %4029 = vmatmul.mubr.f32.gmra.mrb[0].mxu0 %v3871
    %v4030 = vpop.f32.mrb[0].mxu0
    %v4031 = vadd.f32 0.0, %v4030
    %v4032 = vpop.f32.mrb[0].mxu0
    %4033 = vdwg.mxu0
    %v4034 = vadd.f32 %v3840, %v3956
    %v4035 = vadd.f32 %v3841, %v3961
    %v4036 = vadd.f32 %v3842, %v3966
    %v4037 = vadd.f32 %v3843, %v3971
    %v4038 = vadd.f32 %v3844, %v3976
    %v4039 = vadd.f32 %v3845, %v3981
    %v4040 = vadd.f32 %v3846, %v3986
    %v4041 = vadd.f32 %v3847, %v3991
    %v4042 = vadd.f32 %v3848, %v3996
    %v4043 = vadd.f32 %v3849, %v4001
    %v4044 = vadd.f32 %v3850, %v4006
    %v4045 = vadd.f32 %v3851, %v4011
    %v4046 = vadd.f32 %v3852, %v4016
    %v4047 = vadd.f32 %v3853, %v4021
    %v4048 = vadd.f32 %v3854, %v4026
    %v4049 = vadd.f32 %v3855, %v4031
    %v4050 = vld [vmem:[%s3661 + $0x2] sm:$0xff]
    %v4051 = vld [vmem:[%s3661 + $0x12] sm:$0xff]
    %v4052 = vld [vmem:[%s3661 + $0x22] sm:$0xff]
    %v4053 = vld [vmem:[%s3661 + $0x32] sm:$0xff]
    %v4054 = vld [vmem:[%s3661 + $0x42] sm:$0xff]
    %v4055 = vld [vmem:[%s3661 + $0x52] sm:$0xff]
    %v4056 = vld [vmem:[%s3661 + $0x62] sm:$0xff]
    %v4057 = vld [vmem:[%s3661 + $0x72] sm:$0xff]
    %v4058 = vld [vmem:[%s3661 + $0xc2] sm:$0xff]
    %v4059 = vld [vmem:[%s3661 + $0xd2] sm:$0xff]
    %v4060 = vld [vmem:[%s3661 + $0xe2] sm:$0xff]
    %v4061 = vld [vmem:[%s3661 + $0xf2] sm:$0xff]
    %v4062 = vld [vmem:[%s3661 + $0x102] sm:$0xff]
    %v4063 = vld [vmem:[%s3661 + $0x112] sm:$0xff]
    %v4064 = vld [vmem:[%s3661 + $0x122] sm:$0xff]
    %v4065 = vld [vmem:[%s3661 + $0x132] sm:$0xff]
    %s4066 = scalar_lea.vmem %s3, 896
    %v4067 = vld [vmem:[%s4066] sm:$0xff]
    %v4068 = vld [vmem:[%s4066 + $0x8] sm:$0xff]
    %v4069 = vld [vmem:[%s4066 + $0x10] sm:$0xff]
    %v4070 = vld [vmem:[%s4066 + $0x18] sm:$0xff]
    %v4071 = vld [vmem:[%s4066 + $0x20] sm:$0xff]
    %v4072 = vld [vmem:[%s4066 + $0x28] sm:$0xff]
    %v4073 = vld [vmem:[%s4066 + $0x30] sm:$0xff]
    %v4074 = vld [vmem:[%s4066 + $0x38] sm:$0xff]
    %v4075 = vld [vmem:[%s4066 + $0x40] sm:$0xff]
    %v4076 = vld [vmem:[%s4066 + $0x48] sm:$0xff]
    %v4077 = vld [vmem:[%s4066 + $0x50] sm:$0xff]
    %v4078 = vld [vmem:[%s4066 + $0x58] sm:$0xff]
    %v4079 = vld [vmem:[%s4066 + $0x60] sm:$0xff]
    %v4080 = vld [vmem:[%s4066 + $0x68] sm:$0xff]
    %v4081 = vld [vmem:[%s4066 + $0x70] sm:$0xff]
    %v4082 = vld [vmem:[%s4066 + $0x78] sm:$0xff]
    %4083 = vmatprep.subr.mxu0 0.0
    %4084 = vmatpush1.msra.mxu0 %v4067
    %4085 = vmatprep.subr.mxu0 0.0
    %4086 = vmatpush1.msra.mxu0 %v4068
    %4087 = vmatprep.subr.mxu0 0.0
    %4088 = vmatpush1.msra.mxu0 %v4069
    %4089 = vmatprep.subr.mxu0 0.0
    %4090 = vmatpush1.msra.mxu0 %v4070
    %4091 = vmatprep.subr.mxu0 0.0
    %4092 = vmatpush1.msra.mxu0 %v4071
    %4093 = vmatprep.subr.mxu0 0.0
    %4094 = vmatpush1.msra.mxu0 %v4072
    %4095 = vmatprep.subr.mxu0 0.0
    %4096 = vmatpush1.msra.mxu0 %v4073
    %4097 = vmatprep.subr.mxu0 0.0
    %4098 = vmatpush1.msra.mxu0 %v4074
    %4099 = vmatprep.subr.mxu0 0.0
    %4100 = vmatpush1.msra.mxu0 %v4075
    %4101 = vmatprep.subr.mxu0 0.0
    %4102 = vmatpush1.msra.mxu0 %v4076
    %4103 = vmatprep.subr.mxu0 0.0
    %4104 = vmatpush1.msra.mxu0 %v4077
    %4105 = vmatprep.subr.mxu0 0.0
    %4106 = vmatpush1.msra.mxu0 %v4078
    %4107 = vmatprep.subr.mxu0 0.0
    %4108 = vmatpush1.msra.mxu0 %v4079
    %4109 = vmatprep.subr.mxu0 0.0
    %4110 = vmatpush1.msra.mxu0 %v4080
    %4111 = vmatprep.subr.mxu0 0.0
    %4112 = vmatpush1.msra.mxu0 %v4081
    %4113 = vmatprep.subr.mxu0 0.0
    %4114 = vmatpush1.msra.mxu0 %v4082
    %4115 = vmatprep.subr.mxu0 0.0
    %4116 = vmatpush1.msra.mxu0 0.0
    %4117 = vmatprep.subr.mxu0 0.0
    %4118 = vmatpush1.msra.mxu0 0.0
    %4119 = vmatprep.subr.mxu0 0.0
    %4120 = vmatpush1.msra.mxu0 0.0
    %4121 = vmatprep.subr.mxu0 0.0
    %4122 = vmatpush1.msra.mxu0 0.0
    %4123 = vmatprep.subr.mxu0 0.0
    %4124 = vmatpush1.msra.mxu0 0.0
    %4125 = vmatprep.subr.mxu0 0.0
    %4126 = vmatpush1.msra.mxu0 0.0
    %4127 = vmatprep.subr.mxu0 0.0
    %4128 = vmatpush1.msra.mxu0 0.0
    %4129 = vmatprep.subr.mxu0 0.0
    %4130 = vmatpush1.msra.mxu0 0.0
    %4131 = vmatprep.subr.mxu0 0.0
    %4132 = vmatpush1.msra.mxu0 0.0
    %4133 = vmatprep.subr.mxu0 0.0
    %4134 = vmatpush1.msra.mxu0 0.0
    %4135 = vmatprep.subr.mxu0 0.0
    %4136 = vmatpush1.msra.mxu0 0.0
    %4137 = vmatprep.subr.mxu0 0.0
    %4138 = vmatpush1.msra.mxu0 0.0
    %4139 = vmatprep.subr.mxu0 0.0
    %4140 = vmatpush1.msra.mxu0 0.0
    %4141 = vmatprep.subr.mxu0 0.0
    %4142 = vmatpush1.msra.mxu0 0.0
    %4143 = vmatprep.subr.mxu0 0.0
    %4144 = vmatpush1.msra.mxu0 0.0
    %4145 = vmatprep.subr.mxu0 0.0
    %4146 = vmatpush1.msra.mxu0 0.0
    %4147 = vmatprep.mubr.f32.mxu0 0.0
    %4148 = vmatmul.mubr.f32.gmra.mrb[0].mxu0 %v4050
    %v4149 = vpop.f32.mrb[0].mxu0
    %v4150 = vadd.f32 0.0, %v4149
    %v4151 = vpop.f32.mrb[0].mxu0
    %4152 = vmatprep.mubr.f32.mxu0 0.0
    %4153 = vmatmul.mubr.f32.gmra.mrb[0].mxu0 %v4051
    %v4154 = vpop.f32.mrb[0].mxu0
    %v4155 = vadd.f32 0.0, %v4154
    %v4156 = vpop.f32.mrb[0].mxu0
    %4157 = vmatprep.mubr.f32.mxu0 0.0
    %4158 = vmatmul.mubr.f32.gmra.mrb[0].mxu0 %v4052
    %v4159 = vpop.f32.mrb[0].mxu0
    %v4160 = vadd.f32 0.0, %v4159
    %v4161 = vpop.f32.mrb[0].mxu0
    %4162 = vmatprep.mubr.f32.mxu0 0.0
    %4163 = vmatmul.mubr.f32.gmra.mrb[0].mxu0 %v4053
    %v4164 = vpop.f32.mrb[0].mxu0
    %v4165 = vadd.f32 0.0, %v4164
    %v4166 = vpop.f32.mrb[0].mxu0
    %4167 = vmatprep.mubr.f32.mxu0 0.0
    %4168 = vmatmul.mubr.f32.gmra.mrb[0].mxu0 %v4054
    %v4169 = vpop.f32.mrb[0].mxu0
    %v4170 = vadd.f32 0.0, %v4169
    %v4171 = vpop.f32.mrb[0].mxu0
    %4172 = vmatprep.mubr.f32.mxu0 0.0
    %4173 = vmatmul.mubr.f32.gmra.mrb[0].mxu0 %v4055
    %v4174 = vpop.f32.mrb[0].mxu0
    %v4175 = vadd.f32 0.0, %v4174
    %v4176 = vpop.f32.mrb[0].mxu0
    %4177 = vmatprep.mubr.f32.mxu0 0.0
    %4178 = vmatmul.mubr.f32.gmra.mrb[0].mxu0 %v4056
    %v4179 = vpop.f32.mrb[0].mxu0
    %v4180 = vadd.f32 0.0, %v4179
    %v4181 = vpop.f32.mrb[0].mxu0
    %4182 = vmatprep.mubr.f32.mxu0 0.0
    %4183 = vmatmul.mubr.f32.gmra.mrb[0].mxu0 %v4057
    %v4184 = vpop.f32.mrb[0].mxu0
    %v4185 = vadd.f32 0.0, %v4184
    %v4186 = vpop.f32.mrb[0].mxu0
    %4187 = vmatprep.mubr.f32.mxu0 0.0
    %4188 = vmatmul.mubr.f32.gmra.mrb[0].mxu0 %v4058
    %v4189 = vpop.f32.mrb[0].mxu0
    %v4190 = vadd.f32 0.0, %v4189
    %v4191 = vpop.f32.mrb[0].mxu0
    %4192 = vmatprep.mubr.f32.mxu0 0.0
    %4193 = vmatmul.mubr.f32.gmra.mrb[0].mxu0 %v4059
    %v4194 = vpop.f32.mrb[0].mxu0
    %v4195 = vadd.f32 0.0, %v4194
    %v4196 = vpop.f32.mrb[0].mxu0
    %4197 = vmatprep.mubr.f32.mxu0 0.0
    %4198 = vmatmul.mubr.f32.gmra.mrb[0].mxu0 %v4060
    %v4199 = vpop.f32.mrb[0].mxu0
    %v4200 = vadd.f32 0.0, %v4199
    %v4201 = vpop.f32.mrb[0].mxu0
    %4202 = vmatprep.mubr.f32.mxu0 0.0
    %4203 = vmatmul.mubr.f32.gmra.mrb[0].mxu0 %v4061
    %v4204 = vpop.f32.mrb[0].mxu0
    %v4205 = vadd.f32 0.0, %v4204
    %v4206 = vpop.f32.mrb[0].mxu0
    %4207 = vmatprep.mubr.f32.mxu0 0.0
    %4208 = vmatmul.mubr.f32.gmra.mrb[0].mxu0 %v4062
    %v4209 = vpop.f32.mrb[0].mxu0
    %v4210 = vadd.f32 0.0, %v4209
    %v4211 = vpop.f32.mrb[0].mxu0
    %4212 = vmatprep.mubr.f32.mxu0 0.0
    %4213 = vmatmul.mubr.f32.gmra.mrb[0].mxu0 %v4063
    %v4214 = vpop.f32.mrb[0].mxu0
    %v4215 = vadd.f32 0.0, %v4214
    %v4216 = vpop.f32.mrb[0].mxu0
    %4217 = vmatprep.mubr.f32.mxu0 0.0
    %4218 = vmatmul.mubr.f32.gmra.mrb[0].mxu0 %v4064
    %v4219 = vpop.f32.mrb[0].mxu0
    %v4220 = vadd.f32 0.0, %v4219
    %v4221 = vpop.f32.mrb[0].mxu0
    %4222 = vmatprep.mubr.f32.mxu0 0.0
    %4223 = vmatmul.mubr.f32.gmra.mrb[0].mxu0 %v4065
    %v4224 = vpop.f32.mrb[0].mxu0
    %v4225 = vadd.f32 0.0, %v4224
    %v4226 = vpop.f32.mrb[0].mxu0
    %4227 = vdwg.mxu0
    %v4228 = vadd.f32 %v4034, %v4150
    %v4229 = vadd.f32 %v4035, %v4155
    %v4230 = vadd.f32 %v4036, %v4160
    %v4231 = vadd.f32 %v4037, %v4165
    %v4232 = vadd.f32 %v4038, %v4170
    %v4233 = vadd.f32 %v4039, %v4175
    %v4234 = vadd.f32 %v4040, %v4180
    %v4235 = vadd.f32 %v4041, %v4185
    %v4236 = vadd.f32 %v4042, %v4190
    %v4237 = vadd.f32 %v4043, %v4195
    %v4238 = vadd.f32 %v4044, %v4200
    %v4239 = vadd.f32 %v4045, %v4205
    %v4240 = vadd.f32 %v4046, %v4210
    %v4241 = vadd.f32 %v4047, %v4215
    %v4242 = vadd.f32 %v4048, %v4220
    %v4243 = vadd.f32 %v4049, %v4225
    %v4244 = vld [vmem:[%s3661 + $0x3] sm:$0xff]
    %v4245 = vld [vmem:[%s3661 + $0x13] sm:$0xff]
    %v4246 = vld [vmem:[%s3661 + $0x23] sm:$0xff]
    %v4247 = vld [vmem:[%s3661 + $0x33] sm:$0xff]
    %v4248 = vld [vmem:[%s3661 + $0x43] sm:$0xff]
    %v4249 = vld [vmem:[%s3661 + $0x53] sm:$0xff]
    %v4250 = vld [vmem:[%s3661 + $0x63] sm:$0xff]
    %v4251 = vld [vmem:[%s3661 + $0x73] sm:$0xff]
    %v4252 = vld [vmem:[%s3661 + $0xc3] sm:$0xff]
    %v4253 = vld [vmem:[%s3661 + $0xd3] sm:$0xff]
    %v4254 = vld [vmem:[%s3661 + $0xe3] sm:$0xff]
    %v4255 = vld [vmem:[%s3661 + $0xf3] sm:$0xff]
    %v4256 = vld [vmem:[%s3661 + $0x103] sm:$0xff]
    %v4257 = vld [vmem:[%s3661 + $0x113] sm:$0xff]
    %v4258 = vld [vmem:[%s3661 + $0x123] sm:$0xff]
    %v4259 = vld [vmem:[%s3661 + $0x133] sm:$0xff]
    %s4260 = scalar_lea.vmem %s3, 1024
    %v4261 = vld [vmem:[%s4260] sm:$0xff]
    %v4262 = vld [vmem:[%s4260 + $0x8] sm:$0xff]
    %v4263 = vld [vmem:[%s4260 + $0x10] sm:$0xff]
    %v4264 = vld [vmem:[%s4260 + $0x18] sm:$0xff]
    %v4265 = vld [vmem:[%s4260 + $0x20] sm:$0xff]
    %v4266 = vld [vmem:[%s4260 + $0x28] sm:$0xff]
    %v4267 = vld [vmem:[%s4260 + $0x30] sm:$0xff]
    %v4268 = vld [vmem:[%s4260 + $0x38] sm:$0xff]
    %v4269 = vld [vmem:[%s4260 + $0x40] sm:$0xff]
    %v4270 = vld [vmem:[%s4260 + $0x48] sm:$0xff]
    %v4271 = vld [vmem:[%s4260 + $0x50] sm:$0xff]
    %v4272 = vld [vmem:[%s4260 + $0x58] sm:$0xff]
    %v4273 = vld [vmem:[%s4260 + $0x60] sm:$0xff]
    %v4274 = vld [vmem:[%s4260 + $0x68] sm:$0xff]
    %v4275 = vld [vmem:[%s4260 + $0x70] sm:$0xff]
    %v4276 = vld [vmem:[%s4260 + $0x78] sm:$0xff]
    %4277 = vmatprep.subr.mxu0 0.0
    %4278 = vmatpush1.msra.mxu0 %v4261
    %4279 = vmatprep.subr.mxu0 0.0
    %4280 = vmatpush1.msra.mxu0 %v4262
    %4281 = vmatprep.subr.mxu0 0.0
    %4282 = vmatpush1.msra.mxu0 %v4263
    %4283 = vmatprep.subr.mxu0 0.0
    %4284 = vmatpush1.msra.mxu0 %v4264
    %4285 = vmatprep.subr.mxu0 0.0
    %4286 = vmatpush1.msra.mxu0 %v4265
    %4287 = vmatprep.subr.mxu0 0.0
    %4288 = vmatpush1.msra.mxu0 %v4266
    %4289 = vmatprep.subr.mxu0 0.0
    %4290 = vmatpush1.msra.mxu0 %v4267
    %4291 = vmatprep.subr.mxu0 0.0
    %4292 = vmatpush1.msra.mxu0 %v4268
    %4293 = vmatprep.subr.mxu0 0.0
    %4294 = vmatpush1.msra.mxu0 %v4269
    %4295 = vmatprep.subr.mxu0 0.0
    %4296 = vmatpush1.msra.mxu0 %v4270
    %4297 = vmatprep.subr.mxu0 0.0
    %4298 = vmatpush1.msra.mxu0 %v4271
    %4299 = vmatprep.subr.mxu0 0.0
    %4300 = vmatpush1.msra.mxu0 %v4272
    %4301 = vmatprep.subr.mxu0 0.0
    %4302 = vmatpush1.msra.mxu0 %v4273
    %4303 = vmatprep.subr.mxu0 0.0
    %4304 = vmatpush1.msra.mxu0 %v4274
    %4305 = vmatprep.subr.mxu0 0.0
    %4306 = vmatpush1.msra.mxu0 %v4275
    %4307 = vmatprep.subr.mxu0 0.0
    %4308 = vmatpush1.msra.mxu0 %v4276
    %4309 = vmatprep.subr.mxu0 0.0
    %4310 = vmatpush1.msra.mxu0 0.0
    %4311 = vmatprep.subr.mxu0 0.0
    %4312 = vmatpush1.msra.mxu0 0.0
    %4313 = vmatprep.subr.mxu0 0.0
    %4314 = vmatpush1.msra.mxu0 0.0
    %4315 = vmatprep.subr.mxu0 0.0
    %4316 = vmatpush1.msra.mxu0 0.0
    %4317 = vmatprep.subr.mxu0 0.0
    %4318 = vmatpush1.msra.mxu0 0.0
    %4319 = vmatprep.subr.mxu0 0.0
    %4320 = vmatpush1.msra.mxu0 0.0
    %4321 = vmatprep.subr.mxu0 0.0
    %4322 = vmatpush1.msra.mxu0 0.0
    %4323 = vmatprep.subr.mxu0 0.0
    %4324 = vmatpush1.msra.mxu0 0.0
    %4325 = vmatprep.subr.mxu0 0.0
    %4326 = vmatpush1.msra.mxu0 0.0
    %4327 = vmatprep.subr.mxu0 0.0
    %4328 = vmatpush1.msra.mxu0 0.0
    %4329 = vmatprep.subr.mxu0 0.0
    %4330 = vmatpush1.msra.mxu0 0.0
    %4331 = vmatprep.subr.mxu0 0.0
    %4332 = vmatpush1.msra.mxu0 0.0
    %4333 = vmatprep.subr.mxu0 0.0
    %4334 = vmatpush1.msra.mxu0 0.0
    %4335 = vmatprep.subr.mxu0 0.0
    %4336 = vmatpush1.msra.mxu0 0.0
    %4337 = vmatprep.subr.mxu0 0.0
    %4338 = vmatpush1.msra.mxu0 0.0
    %4339 = vmatprep.subr.mxu0 0.0
    %4340 = vmatpush1.msra.mxu0 0.0
    %4341 = vmatprep.mubr.f32.mxu0 0.0
    %4342 = vmatmul.mubr.f32.gmra.mrb[0].mxu0 %v4244
    %v4343 = vpop.f32.mrb[0].mxu0
    %v4344 = vadd.f32 0.0, %v4343
    %v4345 = vpop.f32.mrb[0].mxu0
    %4346 = vmatprep.mubr.f32.mxu0 0.0
    %4347 = vmatmul.mubr.f32.gmra.mrb[0].mxu0 %v4245
    %v4348 = vpop.f32.mrb[0].mxu0
    %v4349 = vadd.f32 0.0, %v4348
    %v4350 = vpop.f32.mrb[0].mxu0
    %4351 = vmatprep.mubr.f32.mxu0 0.0
    %4352 = vmatmul.mubr.f32.gmra.mrb[0].mxu0 %v4246
    %v4353 = vpop.f32.mrb[0].mxu0
    %v4354 = vadd.f32 0.0, %v4353
    %v4355 = vpop.f32.mrb[0].mxu0
    %4356 = vmatprep.mubr.f32.mxu0 0.0
    %4357 = vmatmul.mubr.f32.gmra.mrb[0].mxu0 %v4247
    %v4358 = vpop.f32.mrb[0].mxu0
    %v4359 = vadd.f32 0.0, %v4358
    %v4360 = vpop.f32.mrb[0].mxu0
    %4361 = vmatprep.mubr.f32.mxu0 0.0
    %4362 = vmatmul.mubr.f32.gmra.mrb[0].mxu0 %v4248
    %v4363 = vpop.f32.mrb[0].mxu0
    %v4364 = vadd.f32 0.0, %v4363
    %v4365 = vpop.f32.mrb[0].mxu0
    %4366 = vmatprep.mubr.f32.mxu0 0.0
    %4367 = vmatmul.mubr.f32.gmra.mrb[0].mxu0 %v4249
    %v4368 = vpop.f32.mrb[0].mxu0
    %v4369 = vadd.f32 0.0, %v4368
    %v4370 = vpop.f32.mrb[0].mxu0
    %4371 = vmatprep.mubr.f32.mxu0 0.0
    %4372 = vmatmul.mubr.f32.gmra.mrb[0].mxu0 %v4250
    %v4373 = vpop.f32.mrb[0].mxu0
    %v4374 = vadd.f32 0.0, %v4373
    %v4375 = vpop.f32.mrb[0].mxu0
    %4376 = vmatprep.mubr.f32.mxu0 0.0
    %4377 = vmatmul.mubr.f32.gmra.mrb[0].mxu0 %v4251
    %v4378 = vpop.f32.mrb[0].mxu0
    %v4379 = vadd.f32 0.0, %v4378
    %v4380 = vpop.f32.mrb[0].mxu0
    %4381 = vmatprep.mubr.f32.mxu0 0.0
    %4382 = vmatmul.mubr.f32.gmra.mrb[0].mxu0 %v4252
    %v4383 = vpop.f32.mrb[0].mxu0
    %v4384 = vadd.f32 0.0, %v4383
    %v4385 = vpop.f32.mrb[0].mxu0
    %4386 = vmatprep.mubr.f32.mxu0 0.0
    %4387 = vmatmul.mubr.f32.gmra.mrb[0].mxu0 %v4253
    %v4388 = vpop.f32.mrb[0].mxu0
    %v4389 = vadd.f32 0.0, %v4388
    %v4390 = vpop.f32.mrb[0].mxu0
    %4391 = vmatprep.mubr.f32.mxu0 0.0
    %4392 = vmatmul.mubr.f32.gmra.mrb[0].mxu0 %v4254
    %v4393 = vpop.f32.mrb[0].mxu0
    %v4394 = vadd.f32 0.0, %v4393
    %v4395 = vpop.f32.mrb[0].mxu0
    %4396 = vmatprep.mubr.f32.mxu0 0.0
    %4397 = vmatmul.mubr.f32.gmra.mrb[0].mxu0 %v4255
    %v4398 = vpop.f32.mrb[0].mxu0
    %v4399 = vadd.f32 0.0, %v4398
    %v4400 = vpop.f32.mrb[0].mxu0
    %4401 = vmatprep.mubr.f32.mxu0 0.0
    %4402 = vmatmul.mubr.f32.gmra.mrb[0].mxu0 %v4256
    %v4403 = vpop.f32.mrb[0].mxu0
    %v4404 = vadd.f32 0.0, %v4403
    %v4405 = vpop.f32.mrb[0].mxu0
    %4406 = vmatprep.mubr.f32.mxu0 0.0
    %4407 = vmatmul.mubr.f32.gmra.mrb[0].mxu0 %v4257
    %v4408 = vpop.f32.mrb[0].mxu0
    %v4409 = vadd.f32 0.0, %v4408
    %v4410 = vpop.f32.mrb[0].mxu0
    %4411 = vmatprep.mubr.f32.mxu0 0.0
    %4412 = vmatmul.mubr.f32.gmra.mrb[0].mxu0 %v4258
    %v4413 = vpop.f32.mrb[0].mxu0
    %v4414 = vadd.f32 0.0, %v4413
    %v4415 = vpop.f32.mrb[0].mxu0
    %4416 = vmatprep.mubr.f32.mxu0 0.0
    %4417 = vmatmul.mubr.f32.gmra.mrb[0].mxu0 %v4259
    %v4418 = vpop.f32.mrb[0].mxu0
    %v4419 = vadd.f32 0.0, %v4418
    %v4420 = vpop.f32.mrb[0].mxu0
    %4421 = vdwg.mxu0
    %v4422 = vadd.f32 %v4228, %v4344
    %v4423 = vadd.f32 %v4229, %v4349
    %v4424 = vadd.f32 %v4230, %v4354
    %v4425 = vadd.f32 %v4231, %v4359
    %v4426 = vadd.f32 %v4232, %v4364
    %v4427 = vadd.f32 %v4233, %v4369
    %v4428 = vadd.f32 %v4234, %v4374
    %v4429 = vadd.f32 %v4235, %v4379
    %v4430 = vadd.f32 %v4236, %v4384
    %v4431 = vadd.f32 %v4237, %v4389
    %v4432 = vadd.f32 %v4238, %v4394
    %v4433 = vadd.f32 %v4239, %v4399
    %v4434 = vadd.f32 %v4240, %v4404
    %v4435 = vadd.f32 %v4241, %v4409
    %v4436 = vadd.f32 %v4242, %v4414
    %v4437 = vadd.f32 %v4243, %v4419
    %v4438 = vld [vmem:[%s3661 + $0x4] sm:$0xff]
    %v4439 = vld [vmem:[%s3661 + $0x14] sm:$0xff]
    %v4440 = vld [vmem:[%s3661 + $0x24] sm:$0xff]
    %v4441 = vld [vmem:[%s3661 + $0x34] sm:$0xff]
    %v4442 = vld [vmem:[%s3661 + $0x44] sm:$0xff]
    %v4443 = vld [vmem:[%s3661 + $0x54] sm:$0xff]
    %v4444 = vld [vmem:[%s3661 + $0x64] sm:$0xff]
    %v4445 = vld [vmem:[%s3661 + $0x74] sm:$0xff]
    %v4446 = vld [vmem:[%s3661 + $0xc4] sm:$0xff]
    %v4447 = vld [vmem:[%s3661 + $0xd4] sm:$0xff]
    %v4448 = vld [vmem:[%s3661 + $0xe4] sm:$0xff]
    %v4449 = vld [vmem:[%s3661 + $0xf4] sm:$0xff]
    %v4450 = vld [vmem:[%s3661 + $0x104] sm:$0xff]
    %v4451 = vld [vmem:[%s3661 + $0x114] sm:$0xff]
    %v4452 = vld [vmem:[%s3661 + $0x124] sm:$0xff]
    %v4453 = vld [vmem:[%s3661 + $0x134] sm:$0xff]
    %s4454 = scalar_lea.vmem %s3, 1152
    %v4455 = vld [vmem:[%s4454] sm:$0xff]
    %v4456 = vld [vmem:[%s4454 + $0x8] sm:$0xff]
    %v4457 = vld [vmem:[%s4454 + $0x10] sm:$0xff]
    %v4458 = vld [vmem:[%s4454 + $0x18] sm:$0xff]
    %v4459 = vld [vmem:[%s4454 + $0x20] sm:$0xff]
    %v4460 = vld [vmem:[%s4454 + $0x28] sm:$0xff]
    %v4461 = vld [vmem:[%s4454 + $0x30] sm:$0xff]
    %v4462 = vld [vmem:[%s4454 + $0x38] sm:$0xff]
    %v4463 = vld [vmem:[%s4454 + $0x40] sm:$0xff]
    %v4464 = vld [vmem:[%s4454 + $0x48] sm:$0xff]
    %v4465 = vld [vmem:[%s4454 + $0x50] sm:$0xff]
    %v4466 = vld [vmem:[%s4454 + $0x58] sm:$0xff]
    %v4467 = vld [vmem:[%s4454 + $0x60] sm:$0xff]
    %v4468 = vld [vmem:[%s4454 + $0x68] sm:$0xff]
    %v4469 = vld [vmem:[%s4454 + $0x70] sm:$0xff]
    %v4470 = vld [vmem:[%s4454 + $0x78] sm:$0xff]
    %4471 = vmatprep.subr.mxu0 0.0
    %4472 = vmatpush1.msra.mxu0 %v4455
    %4473 = vmatprep.subr.mxu0 0.0
    %4474 = vmatpush1.msra.mxu0 %v4456
    %4475 = vmatprep.subr.mxu0 0.0
    %4476 = vmatpush1.msra.mxu0 %v4457
    %4477 = vmatprep.subr.mxu0 0.0
    %4478 = vmatpush1.msra.mxu0 %v4458
    %4479 = vmatprep.subr.mxu0 0.0
    %4480 = vmatpush1.msra.mxu0 %v4459
    %4481 = vmatprep.subr.mxu0 0.0
    %4482 = vmatpush1.msra.mxu0 %v4460
    %4483 = vmatprep.subr.mxu0 0.0
    %4484 = vmatpush1.msra.mxu0 %v4461
    %4485 = vmatprep.subr.mxu0 0.0
    %4486 = vmatpush1.msra.mxu0 %v4462
    %4487 = vmatprep.subr.mxu0 0.0
    %4488 = vmatpush1.msra.mxu0 %v4463
    %4489 = vmatprep.subr.mxu0 0.0
    %4490 = vmatpush1.msra.mxu0 %v4464
    %4491 = vmatprep.subr.mxu0 0.0
    %4492 = vmatpush1.msra.mxu0 %v4465
    %4493 = vmatprep.subr.mxu0 0.0
    %4494 = vmatpush1.msra.mxu0 %v4466
    %4495 = vmatprep.subr.mxu0 0.0
    %4496 = vmatpush1.msra.mxu0 %v4467
    %4497 = vmatprep.subr.mxu0 0.0
    %4498 = vmatpush1.msra.mxu0 %v4468
    %4499 = vmatprep.subr.mxu0 0.0
    %4500 = vmatpush1.msra.mxu0 %v4469
    %4501 = vmatprep.subr.mxu0 0.0
    %4502 = vmatpush1.msra.mxu0 %v4470
    %4503 = vmatprep.subr.mxu0 0.0
    %4504 = vmatpush1.msra.mxu0 0.0
    %4505 = vmatprep.subr.mxu0 0.0
    %4506 = vmatpush1.msra.mxu0 0.0
    %4507 = vmatprep.subr.mxu0 0.0
    %4508 = vmatpush1.msra.mxu0 0.0
    %4509 = vmatprep.subr.mxu0 0.0
    %4510 = vmatpush1.msra.mxu0 0.0
    %4511 = vmatprep.subr.mxu0 0.0
    %4512 = vmatpush1.msra.mxu0 0.0
    %4513 = vmatprep.subr.mxu0 0.0
    %4514 = vmatpush1.msra.mxu0 0.0
    %4515 = vmatprep.subr.mxu0 0.0
    %4516 = vmatpush1.msra.mxu0 0.0
    %4517 = vmatprep.subr.mxu0 0.0
    %4518 = vmatpush1.msra.mxu0 0.0
    %4519 = vmatprep.subr.mxu0 0.0
    %4520 = vmatpush1.msra.mxu0 0.0
    %4521 = vmatprep.subr.mxu0 0.0
    %4522 = vmatpush1.msra.mxu0 0.0
    %4523 = vmatprep.subr.mxu0 0.0
    %4524 = vmatpush1.msra.mxu0 0.0
    %4525 = vmatprep.subr.mxu0 0.0
    %4526 = vmatpush1.msra.mxu0 0.0
    %4527 = vmatprep.subr.mxu0 0.0
    %4528 = vmatpush1.msra.mxu0 0.0
    %4529 = vmatprep.subr.mxu0 0.0
    %4530 = vmatpush1.msra.mxu0 0.0
    %4531 = vmatprep.subr.mxu0 0.0
    %4532 = vmatpush1.msra.mxu0 0.0
    %4533 = vmatprep.subr.mxu0 0.0
    %4534 = vmatpush1.msra.mxu0 0.0
    %4535 = vmatprep.mubr.f32.mxu0 0.0
    %4536 = vmatmul.mubr.f32.gmra.mrb[0].mxu0 %v4438
    %v4537 = vpop.f32.mrb[0].mxu0
    %v4538 = vadd.f32 0.0, %v4537
    %v4539 = vpop.f32.mrb[0].mxu0
    %4540 = vmatprep.mubr.f32.mxu0 0.0
    %4541 = vmatmul.mubr.f32.gmra.mrb[0].mxu0 %v4439
    %v4542 = vpop.f32.mrb[0].mxu0
    %v4543 = vadd.f32 0.0, %v4542
    %v4544 = vpop.f32.mrb[0].mxu0
    %4545 = vmatprep.mubr.f32.mxu0 0.0
    %4546 = vmatmul.mubr.f32.gmra.mrb[0].mxu0 %v4440
    %v4547 = vpop.f32.mrb[0].mxu0
    %v4548 = vadd.f32 0.0, %v4547
    %v4549 = vpop.f32.mrb[0].mxu0
    %4550 = vmatprep.mubr.f32.mxu0 0.0
    %4551 = vmatmul.mubr.f32.gmra.mrb[0].mxu0 %v4441
    %v4552 = vpop.f32.mrb[0].mxu0
    %v4553 = vadd.f32 0.0, %v4552
    %v4554 = vpop.f32.mrb[0].mxu0
    %4555 = vmatprep.mubr.f32.mxu0 0.0
    %4556 = vmatmul.mubr.f32.gmra.mrb[0].mxu0 %v4442
    %v4557 = vpop.f32.mrb[0].mxu0
    %v4558 = vadd.f32 0.0, %v4557
    %v4559 = vpop.f32.mrb[0].mxu0
    %4560 = vmatprep.mubr.f32.mxu0 0.0
    %4561 = vmatmul.mubr.f32.gmra.mrb[0].mxu0 %v4443
    %v4562 = vpop.f32.mrb[0].mxu0
    %v4563 = vadd.f32 0.0, %v4562
    %v4564 = vpop.f32.mrb[0].mxu0
    %4565 = vmatprep.mubr.f32.mxu0 0.0
    %4566 = vmatmul.mubr.f32.gmra.mrb[0].mxu0 %v4444
    %v4567 = vpop.f32.mrb[0].mxu0
    %v4568 = vadd.f32 0.0, %v4567
    %v4569 = vpop.f32.mrb[0].mxu0
    %4570 = vmatprep.mubr.f32.mxu0 0.0
    %4571 = vmatmul.mubr.f32.gmra.mrb[0].mxu0 %v4445
    %v4572 = vpop.f32.mrb[0].mxu0
    %v4573 = vadd.f32 0.0, %v4572
    %v4574 = vpop.f32.mrb[0].mxu0
    %4575 = vmatprep.mubr.f32.mxu0 0.0
    %4576 = vmatmul.mubr.f32.gmra.mrb[0].mxu0 %v4446
    %v4577 = vpop.f32.mrb[0].mxu0
    %v4578 = vadd.f32 0.0, %v4577
    %v4579 = vpop.f32.mrb[0].mxu0
    %4580 = vmatprep.mubr.f32.mxu0 0.0
    %4581 = vmatmul.mubr.f32.gmra.mrb[0].mxu0 %v4447
    %v4582 = vpop.f32.mrb[0].mxu0
    %v4583 = vadd.f32 0.0, %v4582
    %v4584 = vpop.f32.mrb[0].mxu0
    %4585 = vmatprep.mubr.f32.mxu0 0.0
    %4586 = vmatmul.mubr.f32.gmra.mrb[0].mxu0 %v4448
    %v4587 = vpop.f32.mrb[0].mxu0
    %v4588 = vadd.f32 0.0, %v4587
    %v4589 = vpop.f32.mrb[0].mxu0
    %4590 = vmatprep.mubr.f32.mxu0 0.0
    %4591 = vmatmul.mubr.f32.gmra.mrb[0].mxu0 %v4449
    %v4592 = vpop.f32.mrb[0].mxu0
    %v4593 = vadd.f32 0.0, %v4592
    %v4594 = vpop.f32.mrb[0].mxu0
    %4595 = vmatprep.mubr.f32.mxu0 0.0
    %4596 = vmatmul.mubr.f32.gmra.mrb[0].mxu0 %v4450
    %v4597 = vpop.f32.mrb[0].mxu0
    %v4598 = vadd.f32 0.0, %v4597
    %v4599 = vpop.f32.mrb[0].mxu0
    %4600 = vmatprep.mubr.f32.mxu0 0.0
    %4601 = vmatmul.mubr.f32.gmra.mrb[0].mxu0 %v4451
    %v4602 = vpop.f32.mrb[0].mxu0
    %v4603 = vadd.f32 0.0, %v4602
    %v4604 = vpop.f32.mrb[0].mxu0
    %4605 = vmatprep.mubr.f32.mxu0 0.0
    %4606 = vmatmul.mubr.f32.gmra.mrb[0].mxu0 %v4452
    %v4607 = vpop.f32.mrb[0].mxu0
    %v4608 = vadd.f32 0.0, %v4607
    %v4609 = vpop.f32.mrb[0].mxu0
    %4610 = vmatprep.mubr.f32.mxu0 0.0
    %4611 = vmatmul.mubr.f32.gmra.mrb[0].mxu0 %v4453
    %v4612 = vpop.f32.mrb[0].mxu0
    %v4613 = vadd.f32 0.0, %v4612
    %v4614 = vpop.f32.mrb[0].mxu0
    %4615 = vdwg.mxu0
    %v4616 = vadd.f32 %v4422, %v4538
    %v4617 = vadd.f32 %v4423, %v4543
    %v4618 = vadd.f32 %v4424, %v4548
    %v4619 = vadd.f32 %v4425, %v4553
    %v4620 = vadd.f32 %v4426, %v4558
    %v4621 = vadd.f32 %v4427, %v4563
    %v4622 = vadd.f32 %v4428, %v4568
    %v4623 = vadd.f32 %v4429, %v4573
    %v4624 = vadd.f32 %v4430, %v4578
    %v4625 = vadd.f32 %v4431, %v4583
    %v4626 = vadd.f32 %v4432, %v4588
    %v4627 = vadd.f32 %v4433, %v4593
    %v4628 = vadd.f32 %v4434, %v4598
    %v4629 = vadd.f32 %v4435, %v4603
    %v4630 = vadd.f32 %v4436, %v4608
    %v4631 = vadd.f32 %v4437, %v4613
    %s4632 = scalar_lea.vmem [#allocation2], 32
    %v4633 = vld [vmem:[%s4632] sm:$0xff]
    %v4634 = vld [vmem:[%s4632 + $0x10] sm:$0xff]
    %v4635 = vld [vmem:[%s4632 + $0x20] sm:$0xff]
    %v4636 = vld [vmem:[%s4632 + $0x30] sm:$0xff]
    %v4637 = vld [vmem:[%s4632 + $0x40] sm:$0xff]
    %v4638 = vld [vmem:[%s4632 + $0x50] sm:$0xff]
    %v4639 = vld [vmem:[%s4632 + $0x60] sm:$0xff]
    %v4640 = vld [vmem:[%s4632 + $0x70] sm:$0xff]
    %v4641 = vld [vmem:[%s4632 + $0xc0] sm:$0xff]
    %v4642 = vld [vmem:[%s4632 + $0xd0] sm:$0xff]
    %v4643 = vld [vmem:[%s4632 + $0xe0] sm:$0xff]
    %v4644 = vld [vmem:[%s4632 + $0xf0] sm:$0xff]
    %v4645 = vld [vmem:[%s4632 + $0x100] sm:$0xff]
    %v4646 = vld [vmem:[%s4632 + $0x110] sm:$0xff]
    %v4647 = vld [vmem:[%s4632 + $0x120] sm:$0xff]
    %v4648 = vld [vmem:[%s4632 + $0x130] sm:$0xff]
    %s4649 = scalar_lea.vmem %s3, 1280
    %v4650 = vld [vmem:[%s4649] sm:$0xff]
    %v4651 = vld [vmem:[%s4649 + $0x8] sm:$0xff]
    %v4652 = vld [vmem:[%s4649 + $0x10] sm:$0xff]
    %v4653 = vld [vmem:[%s4649 + $0x18] sm:$0xff]
    %v4654 = vld [vmem:[%s4649 + $0x20] sm:$0xff]
    %v4655 = vld [vmem:[%s4649 + $0x28] sm:$0xff]
    %v4656 = vld [vmem:[%s4649 + $0x30] sm:$0xff]
    %v4657 = vld [vmem:[%s4649 + $0x38] sm:$0xff]
    %v4658 = vld [vmem:[%s4649 + $0x40] sm:$0xff]
    %v4659 = vld [vmem:[%s4649 + $0x48] sm:$0xff]
    %v4660 = vld [vmem:[%s4649 + $0x50] sm:$0xff]
    %v4661 = vld [vmem:[%s4649 + $0x58] sm:$0xff]
    %v4662 = vld [vmem:[%s4649 + $0x60] sm:$0xff]
    %v4663 = vld [vmem:[%s4649 + $0x68] sm:$0xff]
    %v4664 = vld [vmem:[%s4649 + $0x70] sm:$0xff]
    %v4665 = vld [vmem:[%s4649 + $0x78] sm:$0xff]
    %4666 = vmatprep.subr.mxu0 0.0
    %4667 = vmatpush1.msra.mxu0 %v4650
    %4668 = vmatprep.subr.mxu0 0.0
    %4669 = vmatpush1.msra.mxu0 %v4651
    %4670 = vmatprep.subr.mxu0 0.0
    %4671 = vmatpush1.msra.mxu0 %v4652
    %4672 = vmatprep.subr.mxu0 0.0
    %4673 = vmatpush1.msra.mxu0 %v4653
    %4674 = vmatprep.subr.mxu0 0.0
    %4675 = vmatpush1.msra.mxu0 %v4654
    %4676 = vmatprep.subr.mxu0 0.0
    %4677 = vmatpush1.msra.mxu0 %v4655
    %4678 = vmatprep.subr.mxu0 0.0
    %4679 = vmatpush1.msra.mxu0 %v4656
    %4680 = vmatprep.subr.mxu0 0.0
    %4681 = vmatpush1.msra.mxu0 %v4657
    %4682 = vmatprep.subr.mxu0 0.0
    %4683 = vmatpush1.msra.mxu0 %v4658
    %4684 = vmatprep.subr.mxu0 0.0
    %4685 = vmatpush1.msra.mxu0 %v4659
    %4686 = vmatprep.subr.mxu0 0.0
    %4687 = vmatpush1.msra.mxu0 %v4660
    %4688 = vmatprep.subr.mxu0 0.0
    %4689 = vmatpush1.msra.mxu0 %v4661
    %4690 = vmatprep.subr.mxu0 0.0
    %4691 = vmatpush1.msra.mxu0 %v4662
    %4692 = vmatprep.subr.mxu0 0.0
    %4693 = vmatpush1.msra.mxu0 %v4663
    %4694 = vmatprep.subr.mxu0 0.0
    %4695 = vmatpush1.msra.mxu0 %v4664
    %4696 = vmatprep.subr.mxu0 0.0
    %4697 = vmatpush1.msra.mxu0 %v4665
    %4698 = vmatprep.subr.mxu0 0.0
    %4699 = vmatpush1.msra.mxu0 0.0
    %4700 = vmatprep.subr.mxu0 0.0
    %4701 = vmatpush1.msra.mxu0 0.0
    %4702 = vmatprep.subr.mxu0 0.0
    %4703 = vmatpush1.msra.mxu0 0.0
    %4704 = vmatprep.subr.mxu0 0.0
    %4705 = vmatpush1.msra.mxu0 0.0
    %4706 = vmatprep.subr.mxu0 0.0
    %4707 = vmatpush1.msra.mxu0 0.0
    %4708 = vmatprep.subr.mxu0 0.0
    %4709 = vmatpush1.msra.mxu0 0.0
    %4710 = vmatprep.subr.mxu0 0.0
    %4711 = vmatpush1.msra.mxu0 0.0
    %4712 = vmatprep.subr.mxu0 0.0
    %4713 = vmatpush1.msra.mxu0 0.0
    %4714 = vmatprep.subr.mxu0 0.0
    %4715 = vmatpush1.msra.mxu0 0.0
    %4716 = vmatprep.subr.mxu0 0.0
    %4717 = vmatpush1.msra.mxu0 0.0
    %4718 = vmatprep.subr.mxu0 0.0
    %4719 = vmatpush1.msra.mxu0 0.0
    %4720 = vmatprep.subr.mxu0 0.0
    %4721 = vmatpush1.msra.mxu0 0.0
    %4722 = vmatprep.subr.mxu0 0.0
    %4723 = vmatpush1.msra.mxu0 0.0
    %4724 = vmatprep.subr.mxu0 0.0
    %4725 = vmatpush1.msra.mxu0 0.0
    %4726 = vmatprep.subr.mxu0 0.0
    %4727 = vmatpush1.msra.mxu0 0.0
    %4728 = vmatprep.subr.mxu0 0.0
    %4729 = vmatpush1.msra.mxu0 0.0
    %4730 = vmatprep.mubr.f32.mxu0 0.0
    %4731 = vmatmul.mubr.f32.gmra.mrb[0].mxu0 %v4633
    %v4732 = vpop.f32.mrb[0].mxu0
    %v4733 = vadd.f32 0.0, %v4732
    %v4734 = vpop.f32.mrb[0].mxu0
    %4735 = vmatprep.mubr.f32.mxu0 0.0
    %4736 = vmatmul.mubr.f32.gmra.mrb[0].mxu0 %v4634
    %v4737 = vpop.f32.mrb[0].mxu0
    %v4738 = vadd.f32 0.0, %v4737
    %v4739 = vpop.f32.mrb[0].mxu0
    %4740 = vmatprep.mubr.f32.mxu0 0.0
    %4741 = vmatmul.mubr.f32.gmra.mrb[0].mxu0 %v4635
    %v4742 = vpop.f32.mrb[0].mxu0
    %v4743 = vadd.f32 0.0, %v4742
    %v4744 = vpop.f32.mrb[0].mxu0
    %4745 = vmatprep.mubr.f32.mxu0 0.0
    %4746 = vmatmul.mubr.f32.gmra.mrb[0].mxu0 %v4636
    %v4747 = vpop.f32.mrb[0].mxu0
    %v4748 = vadd.f32 0.0, %v4747
    %v4749 = vpop.f32.mrb[0].mxu0
    %4750 = vmatprep.mubr.f32.mxu0 0.0
    %4751 = vmatmul.mubr.f32.gmra.mrb[0].mxu0 %v4637
    %v4752 = vpop.f32.mrb[0].mxu0
    %v4753 = vadd.f32 0.0, %v4752
    %v4754 = vpop.f32.mrb[0].mxu0
    %4755 = vmatprep.mubr.f32.mxu0 0.0
    %4756 = vmatmul.mubr.f32.gmra.mrb[0].mxu0 %v4638
    %v4757 = vpop.f32.mrb[0].mxu0
    %v4758 = vadd.f32 0.0, %v4757
    %v4759 = vpop.f32.mrb[0].mxu0
    %4760 = vmatprep.mubr.f32.mxu0 0.0
    %4761 = vmatmul.mubr.f32.gmra.mrb[0].mxu0 %v4639
    %v4762 = vpop.f32.mrb[0].mxu0
    %v4763 = vadd.f32 0.0, %v4762
    %v4764 = vpop.f32.mrb[0].mxu0
    %4765 = vmatprep.mubr.f32.mxu0 0.0
    %4766 = vmatmul.mubr.f32.gmra.mrb[0].mxu0 %v4640
    %v4767 = vpop.f32.mrb[0].mxu0
    %v4768 = vadd.f32 0.0, %v4767
    %v4769 = vpop.f32.mrb[0].mxu0
    %4770 = vmatprep.mubr.f32.mxu0 0.0
    %4771 = vmatmul.mubr.f32.gmra.mrb[0].mxu0 %v4641
    %v4772 = vpop.f32.mrb[0].mxu0
    %v4773 = vadd.f32 0.0, %v4772
    %v4774 = vpop.f32.mrb[0].mxu0
    %4775 = vmatprep.mubr.f32.mxu0 0.0
    %4776 = vmatmul.mubr.f32.gmra.mrb[0].mxu0 %v4642
    %v4777 = vpop.f32.mrb[0].mxu0
    %v4778 = vadd.f32 0.0, %v4777
    %v4779 = vpop.f32.mrb[0].mxu0
    %4780 = vmatprep.mubr.f32.mxu0 0.0
    %4781 = vmatmul.mubr.f32.gmra.mrb[0].mxu0 %v4643
    %v4782 = vpop.f32.mrb[0].mxu0
    %v4783 = vadd.f32 0.0, %v4782
    %v4784 = vpop.f32.mrb[0].mxu0
    %4785 = vmatprep.mubr.f32.mxu0 0.0
    %4786 = vmatmul.mubr.f32.gmra.mrb[0].mxu0 %v4644
    %v4787 = vpop.f32.mrb[0].mxu0
    %v4788 = vadd.f32 0.0, %v4787
    %v4789 = vpop.f32.mrb[0].mxu0
    %4790 = vmatprep.mubr.f32.mxu0 0.0
    %4791 = vmatmul.mubr.f32.gmra.mrb[0].mxu0 %v4645
    %v4792 = vpop.f32.mrb[0].mxu0
    %v4793 = vadd.f32 0.0, %v4792
    %v4794 = vpop.f32.mrb[0].mxu0
    %4795 = vmatprep.mubr.f32.mxu0 0.0
    %4796 = vmatmul.mubr.f32.gmra.mrb[0].mxu0 %v4646
    %v4797 = vpop.f32.mrb[0].mxu0
    %v4798 = vadd.f32 0.0, %v4797
    %v4799 = vpop.f32.mrb[0].mxu0
    %4800 = vmatprep.mubr.f32.mxu0 0.0
    %4801 = vmatmul.mubr.f32.gmra.mrb[0].mxu0 %v4647
    %v4802 = vpop.f32.mrb[0].mxu0
    %v4803 = vadd.f32 0.0, %v4802
    %v4804 = vpop.f32.mrb[0].mxu0
    %4805 = vmatprep.mubr.f32.mxu0 0.0
    %4806 = vmatmul.mubr.f32.gmra.mrb[0].mxu0 %v4648
    %v4807 = vpop.f32.mrb[0].mxu0
    %v4808 = vadd.f32 0.0, %v4807
    %v4809 = vpop.f32.mrb[0].mxu0
    %4810 = vdwg.mxu0
    %v4811 = vadd.f32 %v4616, %v4733
    %v4812 = vadd.f32 %v4617, %v4738
    %v4813 = vadd.f32 %v4618, %v4743
    %v4814 = vadd.f32 %v4619, %v4748
    %v4815 = vadd.f32 %v4620, %v4753
    %v4816 = vadd.f32 %v4621, %v4758
    %v4817 = vadd.f32 %v4622, %v4763
    %v4818 = vadd.f32 %v4623, %v4768
    %v4819 = vadd.f32 %v4624, %v4773
    %v4820 = vadd.f32 %v4625, %v4778
    %v4821 = vadd.f32 %v4626, %v4783
    %v4822 = vadd.f32 %v4627, %v4788
    %v4823 = vadd.f32 %v4628, %v4793
    %v4824 = vadd.f32 %v4629, %v4798
    %v4825 = vadd.f32 %v4630, %v4803
    %v4826 = vadd.f32 %v4631, %v4808
    %v4827 = vld [vmem:[%s4632 + $0x1] sm:$0xff]
    %v4828 = vld [vmem:[%s4632 + $0x11] sm:$0xff]
    %v4829 = vld [vmem:[%s4632 + $0x21] sm:$0xff]
    %v4830 = vld [vmem:[%s4632 + $0x31] sm:$0xff]
    %v4831 = vld [vmem:[%s4632 + $0x41] sm:$0xff]
    %v4832 = vld [vmem:[%s4632 + $0x51] sm:$0xff]
    %v4833 = vld [vmem:[%s4632 + $0x61] sm:$0xff]
    %v4834 = vld [vmem:[%s4632 + $0x71] sm:$0xff]
    %v4835 = vld [vmem:[%s4632 + $0xc1] sm:$0xff]
    %v4836 = vld [vmem:[%s4632 + $0xd1] sm:$0xff]
    %v4837 = vld [vmem:[%s4632 + $0xe1] sm:$0xff]
    %v4838 = vld [vmem:[%s4632 + $0xf1] sm:$0xff]
    %v4839 = vld [vmem:[%s4632 + $0x101] sm:$0xff]
    %v4840 = vld [vmem:[%s4632 + $0x111] sm:$0xff]
    %v4841 = vld [vmem:[%s4632 + $0x121] sm:$0xff]
    %v4842 = vld [vmem:[%s4632 + $0x131] sm:$0xff]
    %s4843 = scalar_lea.vmem %s3, 1408
    %v4844 = vld [vmem:[%s4843] sm:$0xff]
    %v4845 = vld [vmem:[%s4843 + $0x8] sm:$0xff]
    %v4846 = vld [vmem:[%s4843 + $0x10] sm:$0xff]
    %v4847 = vld [vmem:[%s4843 + $0x18] sm:$0xff]
    %v4848 = vld [vmem:[%s4843 + $0x20] sm:$0xff]
    %v4849 = vld [vmem:[%s4843 + $0x28] sm:$0xff]
    %v4850 = vld [vmem:[%s4843 + $0x30] sm:$0xff]
    %v4851 = vld [vmem:[%s4843 + $0x38] sm:$0xff]
    %v4852 = vld [vmem:[%s4843 + $0x40] sm:$0xff]
    %v4853 = vld [vmem:[%s4843 + $0x48] sm:$0xff]
    %v4854 = vld [vmem:[%s4843 + $0x50] sm:$0xff]
    %v4855 = vld [vmem:[%s4843 + $0x58] sm:$0xff]
    %v4856 = vld [vmem:[%s4843 + $0x60] sm:$0xff]
    %v4857 = vld [vmem:[%s4843 + $0x68] sm:$0xff]
    %v4858 = vld [vmem:[%s4843 + $0x70] sm:$0xff]
    %v4859 = vld [vmem:[%s4843 + $0x78] sm:$0xff]
    %4860 = vmatprep.subr.mxu0 0.0
    %4861 = vmatpush1.msra.mxu0 %v4844
    %4862 = vmatprep.subr.mxu0 0.0
    %4863 = vmatpush1.msra.mxu0 %v4845
    %4864 = vmatprep.subr.mxu0 0.0
    %4865 = vmatpush1.msra.mxu0 %v4846
    %4866 = vmatprep.subr.mxu0 0.0
    %4867 = vmatpush1.msra.mxu0 %v4847
    %4868 = vmatprep.subr.mxu0 0.0
    %4869 = vmatpush1.msra.mxu0 %v4848
    %4870 = vmatprep.subr.mxu0 0.0
    %4871 = vmatpush1.msra.mxu0 %v4849
    %4872 = vmatprep.subr.mxu0 0.0
    %4873 = vmatpush1.msra.mxu0 %v4850
    %4874 = vmatprep.subr.mxu0 0.0
    %4875 = vmatpush1.msra.mxu0 %v4851
    %4876 = vmatprep.subr.mxu0 0.0
    %4877 = vmatpush1.msra.mxu0 %v4852
    %4878 = vmatprep.subr.mxu0 0.0
    %4879 = vmatpush1.msra.mxu0 %v4853
    %4880 = vmatprep.subr.mxu0 0.0
    %4881 = vmatpush1.msra.mxu0 %v4854
    %4882 = vmatprep.subr.mxu0 0.0
    %4883 = vmatpush1.msra.mxu0 %v4855
    %4884 = vmatprep.subr.mxu0 0.0
    %4885 = vmatpush1.msra.mxu0 %v4856
    %4886 = vmatprep.subr.mxu0 0.0
    %4887 = vmatpush1.msra.mxu0 %v4857
    %4888 = vmatprep.subr.mxu0 0.0
    %4889 = vmatpush1.msra.mxu0 %v4858
    %4890 = vmatprep.subr.mxu0 0.0
    %4891 = vmatpush1.msra.mxu0 %v4859
    %4892 = vmatprep.subr.mxu0 0.0
    %4893 = vmatpush1.msra.mxu0 0.0
    %4894 = vmatprep.subr.mxu0 0.0
    %4895 = vmatpush1.msra.mxu0 0.0
    %4896 = vmatprep.subr.mxu0 0.0
    %4897 = vmatpush1.msra.mxu0 0.0
    %4898 = vmatprep.subr.mxu0 0.0
    %4899 = vmatpush1.msra.mxu0 0.0
    %4900 = vmatprep.subr.mxu0 0.0
    %4901 = vmatpush1.msra.mxu0 0.0
    %4902 = vmatprep.subr.mxu0 0.0
    %4903 = vmatpush1.msra.mxu0 0.0
    %4904 = vmatprep.subr.mxu0 0.0
    %4905 = vmatpush1.msra.mxu0 0.0
    %4906 = vmatprep.subr.mxu0 0.0
    %4907 = vmatpush1.msra.mxu0 0.0
    %4908 = vmatprep.subr.mxu0 0.0
    %4909 = vmatpush1.msra.mxu0 0.0
    %4910 = vmatprep.subr.mxu0 0.0
    %4911 = vmatpush1.msra.mxu0 0.0
    %4912 = vmatprep.subr.mxu0 0.0
    %4913 = vmatpush1.msra.mxu0 0.0
    %4914 = vmatprep.subr.mxu0 0.0
    %4915 = vmatpush1.msra.mxu0 0.0
    %4916 = vmatprep.subr.mxu0 0.0
    %4917 = vmatpush1.msra.mxu0 0.0
    %4918 = vmatprep.subr.mxu0 0.0
    %4919 = vmatpush1.msra.mxu0 0.0
    %4920 = vmatprep.subr.mxu0 0.0
    %4921 = vmatpush1.msra.mxu0 0.0
    %4922 = vmatprep.subr.mxu0 0.0
    %4923 = vmatpush1.msra.mxu0 0.0
    %4924 = vmatprep.mubr.f32.mxu0 0.0
    %4925 = vmatmul.mubr.f32.gmra.mrb[0].mxu0 %v4827
    %v4926 = vpop.f32.mrb[0].mxu0
    %v4927 = vadd.f32 0.0, %v4926
    %v4928 = vpop.f32.mrb[0].mxu0
    %4929 = vmatprep.mubr.f32.mxu0 0.0
    %4930 = vmatmul.mubr.f32.gmra.mrb[0].mxu0 %v4828
    %v4931 = vpop.f32.mrb[0].mxu0
    %v4932 = vadd.f32 0.0, %v4931
    %v4933 = vpop.f32.mrb[0].mxu0
    %4934 = vmatprep.mubr.f32.mxu0 0.0
    %4935 = vmatmul.mubr.f32.gmra.mrb[0].mxu0 %v4829
    %v4936 = vpop.f32.mrb[0].mxu0
    %v4937 = vadd.f32 0.0, %v4936
    %v4938 = vpop.f32.mrb[0].mxu0
    %4939 = vmatprep.mubr.f32.mxu0 0.0
    %4940 = vmatmul.mubr.f32.gmra.mrb[0].mxu0 %v4830
    %v4941 = vpop.f32.mrb[0].mxu0
    %v4942 = vadd.f32 0.0, %v4941
    %v4943 = vpop.f32.mrb[0].mxu0
    %4944 = vmatprep.mubr.f32.mxu0 0.0
    %4945 = vmatmul.mubr.f32.gmra.mrb[0].mxu0 %v4831
    %v4946 = vpop.f32.mrb[0].mxu0
    %v4947 = vadd.f32 0.0, %v4946
    %v4948 = vpop.f32.mrb[0].mxu0
    %4949 = vmatprep.mubr.f32.mxu0 0.0
    %4950 = vmatmul.mubr.f32.gmra.mrb[0].mxu0 %v4832
    %v4951 = vpop.f32.mrb[0].mxu0
    %v4952 = vadd.f32 0.0, %v4951
    %v4953 = vpop.f32.mrb[0].mxu0
    %4954 = vmatprep.mubr.f32.mxu0 0.0
    %4955 = vmatmul.mubr.f32.gmra.mrb[0].mxu0 %v4833
    %v4956 = vpop.f32.mrb[0].mxu0
    %v4957 = vadd.f32 0.0, %v4956
    %v4958 = vpop.f32.mrb[0].mxu0
    %4959 = vmatprep.mubr.f32.mxu0 0.0
    %4960 = vmatmul.mubr.f32.gmra.mrb[0].mxu0 %v4834
    %v4961 = vpop.f32.mrb[0].mxu0
    %v4962 = vadd.f32 0.0, %v4961
    %v4963 = vpop.f32.mrb[0].mxu0
    %4964 = vmatprep.mubr.f32.mxu0 0.0
    %4965 = vmatmul.mubr.f32.gmra.mrb[0].mxu0 %v4835
    %v4966 = vpop.f32.mrb[0].mxu0
    %v4967 = vadd.f32 0.0, %v4966
    %v4968 = vpop.f32.mrb[0].mxu0
    %4969 = vmatprep.mubr.f32.mxu0 0.0
    %4970 = vmatmul.mubr.f32.gmra.mrb[0].mxu0 %v4836
    %v4971 = vpop.f32.mrb[0].mxu0
    %v4972 = vadd.f32 0.0, %v4971
    %v4973 = vpop.f32.mrb[0].mxu0
    %4974 = vmatprep.mubr.f32.mxu0 0.0
    %4975 = vmatmul.mubr.f32.gmra.mrb[0].mxu0 %v4837
    %v4976 = vpop.f32.mrb[0].mxu0
    %v4977 = vadd.f32 0.0, %v4976
    %v4978 = vpop.f32.mrb[0].mxu0
    %4979 = vmatprep.mubr.f32.mxu0 0.0
    %4980 = vmatmul.mubr.f32.gmra.mrb[0].mxu0 %v4838
    %v4981 = vpop.f32.mrb[0].mxu0
    %v4982 = vadd.f32 0.0, %v4981
    %v4983 = vpop.f32.mrb[0].mxu0
    %4984 = vmatprep.mubr.f32.mxu0 0.0
    %4985 = vmatmul.mubr.f32.gmra.mrb[0].mxu0 %v4839
    %v4986 = vpop.f32.mrb[0].mxu0
    %v4987 = vadd.f32 0.0, %v4986
    %v4988 = vpop.f32.mrb[0].mxu0
    %4989 = vmatprep.mubr.f32.mxu0 0.0
    %4990 = vmatmul.mubr.f32.gmra.mrb[0].mxu0 %v4840
    %v4991 = vpop.f32.mrb[0].mxu0
    %v4992 = vadd.f32 0.0, %v4991
    %v4993 = vpop.f32.mrb[0].mxu0
    %4994 = vmatprep.mubr.f32.mxu0 0.0
    %4995 = vmatmul.mubr.f32.gmra.mrb[0].mxu0 %v4841
    %v4996 = vpop.f32.mrb[0].mxu0
    %v4997 = vadd.f32 0.0, %v4996
    %v4998 = vpop.f32.mrb[0].mxu0
    %4999 = vmatprep.mubr.f32.mxu0 0.0
    %5000 = vmatmul.mubr.f32.gmra.mrb[0].mxu0 %v4842
    %v5001 = vpop.f32.mrb[0].mxu0
    %v5002 = vadd.f32 0.0, %v5001
    %v5003 = vpop.f32.mrb[0].mxu0
    %5004 = vdwg.mxu0
    %v5005 = vadd.f32 %v4811, %v4927
    %v5006 = vadd.f32 %v4812, %v4932
    %v5007 = vadd.f32 %v4813, %v4937
    %v5008 = vadd.f32 %v4814, %v4942
    %v5009 = vadd.f32 %v4815, %v4947
    %v5010 = vadd.f32 %v4816, %v4952
    %v5011 = vadd.f32 %v4817, %v4957
    %v5012 = vadd.f32 %v4818, %v4962
    %v5013 = vadd.f32 %v4819, %v4967
    %v5014 = vadd.f32 %v4820, %v4972
    %v5015 = vadd.f32 %v4821, %v4977
    %v5016 = vadd.f32 %v4822, %v4982
    %v5017 = vadd.f32 %v4823, %v4987
    %v5018 = vadd.f32 %v4824, %v4992
    %v5019 = vadd.f32 %v4825, %v4997
    %v5020 = vadd.f32 %v4826, %v5002
    %v5021 = vld [vmem:[%s4632 + $0x2] sm:$0xff]
    %v5022 = vld [vmem:[%s4632 + $0x12] sm:$0xff]
    %v5023 = vld [vmem:[%s4632 + $0x22] sm:$0xff]
    %v5024 = vld [vmem:[%s4632 + $0x32] sm:$0xff]
    %v5025 = vld [vmem:[%s4632 + $0x42] sm:$0xff]
    %v5026 = vld [vmem:[%s4632 + $0x52] sm:$0xff]
    %v5027 = vld [vmem:[%s4632 + $0x62] sm:$0xff]
    %v5028 = vld [vmem:[%s4632 + $0x72] sm:$0xff]
    %v5029 = vld [vmem:[%s4632 + $0xc2] sm:$0xff]
    %v5030 = vld [vmem:[%s4632 + $0xd2] sm:$0xff]
    %v5031 = vld [vmem:[%s4632 + $0xe2] sm:$0xff]
    %v5032 = vld [vmem:[%s4632 + $0xf2] sm:$0xff]
    %v5033 = vld [vmem:[%s4632 + $0x102] sm:$0xff]
    %v5034 = vld [vmem:[%s4632 + $0x112] sm:$0xff]
    %v5035 = vld [vmem:[%s4632 + $0x122] sm:$0xff]
    %v5036 = vld [vmem:[%s4632 + $0x132] sm:$0xff]
    %s5037 = scalar_lea.vmem %s3, 1536
    %v5038 = vld [vmem:[%s5037] sm:$0xff]
    %v5039 = vld [vmem:[%s5037 + $0x8] sm:$0xff]
    %v5040 = vld [vmem:[%s5037 + $0x10] sm:$0xff]
    %v5041 = vld [vmem:[%s5037 + $0x18] sm:$0xff]
    %v5042 = vld [vmem:[%s5037 + $0x20] sm:$0xff]
    %v5043 = vld [vmem:[%s5037 + $0x28] sm:$0xff]
    %v5044 = vld [vmem:[%s5037 + $0x30] sm:$0xff]
    %v5045 = vld [vmem:[%s5037 + $0x38] sm:$0xff]
    %v5046 = vld [vmem:[%s5037 + $0x40] sm:$0xff]
    %v5047 = vld [vmem:[%s5037 + $0x48] sm:$0xff]
    %v5048 = vld [vmem:[%s5037 + $0x50] sm:$0xff]
    %v5049 = vld [vmem:[%s5037 + $0x58] sm:$0xff]
    %v5050 = vld [vmem:[%s5037 + $0x60] sm:$0xff]
    %v5051 = vld [vmem:[%s5037 + $0x68] sm:$0xff]
    %v5052 = vld [vmem:[%s5037 + $0x70] sm:$0xff]
    %v5053 = vld [vmem:[%s5037 + $0x78] sm:$0xff]
    %5054 = vmatprep.subr.mxu0 0.0
    %5055 = vmatpush1.msra.mxu0 %v5038
    %5056 = vmatprep.subr.mxu0 0.0
    %5057 = vmatpush1.msra.mxu0 %v5039
    %5058 = vmatprep.subr.mxu0 0.0
    %5059 = vmatpush1.msra.mxu0 %v5040
    %5060 = vmatprep.subr.mxu0 0.0
    %5061 = vmatpush1.msra.mxu0 %v5041
    %5062 = vmatprep.subr.mxu0 0.0
    %5063 = vmatpush1.msra.mxu0 %v5042
    %5064 = vmatprep.subr.mxu0 0.0
    %5065 = vmatpush1.msra.mxu0 %v5043
    %5066 = vmatprep.subr.mxu0 0.0
    %5067 = vmatpush1.msra.mxu0 %v5044
    %5068 = vmatprep.subr.mxu0 0.0
    %5069 = vmatpush1.msra.mxu0 %v5045
    %5070 = vmatprep.subr.mxu0 0.0
    %5071 = vmatpush1.msra.mxu0 %v5046
    %5072 = vmatprep.subr.mxu0 0.0
    %5073 = vmatpush1.msra.mxu0 %v5047
    %5074 = vmatprep.subr.mxu0 0.0
    %5075 = vmatpush1.msra.mxu0 %v5048
    %5076 = vmatprep.subr.mxu0 0.0
    %5077 = vmatpush1.msra.mxu0 %v5049
    %5078 = vmatprep.subr.mxu0 0.0
    %5079 = vmatpush1.msra.mxu0 %v5050
    %5080 = vmatprep.subr.mxu0 0.0
    %5081 = vmatpush1.msra.mxu0 %v5051
    %5082 = vmatprep.subr.mxu0 0.0
    %5083 = vmatpush1.msra.mxu0 %v5052
    %5084 = vmatprep.subr.mxu0 0.0
    %5085 = vmatpush1.msra.mxu0 %v5053
    %5086 = vmatprep.subr.mxu0 0.0
    %5087 = vmatpush1.msra.mxu0 0.0
    %5088 = vmatprep.subr.mxu0 0.0
    %5089 = vmatpush1.msra.mxu0 0.0
    %5090 = vmatprep.subr.mxu0 0.0
    %5091 = vmatpush1.msra.mxu0 0.0
    %5092 = vmatprep.subr.mxu0 0.0
    %5093 = vmatpush1.msra.mxu0 0.0
    %5094 = vmatprep.subr.mxu0 0.0
    %5095 = vmatpush1.msra.mxu0 0.0
    %5096 = vmatprep.subr.mxu0 0.0
    %5097 = vmatpush1.msra.mxu0 0.0
    %5098 = vmatprep.subr.mxu0 0.0
    %5099 = vmatpush1.msra.mxu0 0.0
    %5100 = vmatprep.subr.mxu0 0.0
    %5101 = vmatpush1.msra.mxu0 0.0
    %5102 = vmatprep.subr.mxu0 0.0
    %5103 = vmatpush1.msra.mxu0 0.0
    %5104 = vmatprep.subr.mxu0 0.0
    %5105 = vmatpush1.msra.mxu0 0.0
    %5106 = vmatprep.subr.mxu0 0.0
    %5107 = vmatpush1.msra.mxu0 0.0
    %5108 = vmatprep.subr.mxu0 0.0
    %5109 = vmatpush1.msra.mxu0 0.0
    %5110 = vmatprep.subr.mxu0 0.0
    %5111 = vmatpush1.msra.mxu0 0.0
    %5112 = vmatprep.subr.mxu0 0.0
    %5113 = vmatpush1.msra.mxu0 0.0
    %5114 = vmatprep.subr.mxu0 0.0
    %5115 = vmatpush1.msra.mxu0 0.0
    %5116 = vmatprep.subr.mxu0 0.0
    %5117 = vmatpush1.msra.mxu0 0.0
    %5118 = vmatprep.mubr.f32.mxu0 0.0
    %5119 = vmatmul.mubr.f32.gmra.mrb[0].mxu0 %v5021
    %v5120 = vpop.f32.mrb[0].mxu0
    %v5121 = vadd.f32 0.0, %v5120
    %v5122 = vpop.f32.mrb[0].mxu0
    %5123 = vmatprep.mubr.f32.mxu0 0.0
    %5124 = vmatmul.mubr.f32.gmra.mrb[0].mxu0 %v5022
    %v5125 = vpop.f32.mrb[0].mxu0
    %v5126 = vadd.f32 0.0, %v5125
    %v5127 = vpop.f32.mrb[0].mxu0
    %5128 = vmatprep.mubr.f32.mxu0 0.0
    %5129 = vmatmul.mubr.f32.gmra.mrb[0].mxu0 %v5023
    %v5130 = vpop.f32.mrb[0].mxu0
    %v5131 = vadd.f32 0.0, %v5130
    %v5132 = vpop.f32.mrb[0].mxu0
    %5133 = vmatprep.mubr.f32.mxu0 0.0
    %5134 = vmatmul.mubr.f32.gmra.mrb[0].mxu0 %v5024
    %v5135 = vpop.f32.mrb[0].mxu0
    %v5136 = vadd.f32 0.0, %v5135
    %v5137 = vpop.f32.mrb[0].mxu0
    %5138 = vmatprep.mubr.f32.mxu0 0.0
    %5139 = vmatmul.mubr.f32.gmra.mrb[0].mxu0 %v5025
    %v5140 = vpop.f32.mrb[0].mxu0
    %v5141 = vadd.f32 0.0, %v5140
    %v5142 = vpop.f32.mrb[0].mxu0
    %5143 = vmatprep.mubr.f32.mxu0 0.0
    %5144 = vmatmul.mubr.f32.gmra.mrb[0].mxu0 %v5026
    %v5145 = vpop.f32.mrb[0].mxu0
    %v5146 = vadd.f32 0.0, %v5145
    %v5147 = vpop.f32.mrb[0].mxu0
    %5148 = vmatprep.mubr.f32.mxu0 0.0
    %5149 = vmatmul.mubr.f32.gmra.mrb[0].mxu0 %v5027
    %v5150 = vpop.f32.mrb[0].mxu0
    %v5151 = vadd.f32 0.0, %v5150
    %v5152 = vpop.f32.mrb[0].mxu0
    %5153 = vmatprep.mubr.f32.mxu0 0.0
    %5154 = vmatmul.mubr.f32.gmra.mrb[0].mxu0 %v5028
    %v5155 = vpop.f32.mrb[0].mxu0
    %v5156 = vadd.f32 0.0, %v5155
    %v5157 = vpop.f32.mrb[0].mxu0
    %5158 = vmatprep.mubr.f32.mxu0 0.0
    %5159 = vmatmul.mubr.f32.gmra.mrb[0].mxu0 %v5029
    %v5160 = vpop.f32.mrb[0].mxu0
    %v5161 = vadd.f32 0.0, %v5160
    %v5162 = vpop.f32.mrb[0].mxu0
    %5163 = vmatprep.mubr.f32.mxu0 0.0
    %5164 = vmatmul.mubr.f32.gmra.mrb[0].mxu0 %v5030
    %v5165 = vpop.f32.mrb[0].mxu0
    %v5166 = vadd.f32 0.0, %v5165
    %v5167 = vpop.f32.mrb[0].mxu0
    %5168 = vmatprep.mubr.f32.mxu0 0.0
    %5169 = vmatmul.mubr.f32.gmra.mrb[0].mxu0 %v5031
    %v5170 = vpop.f32.mrb[0].mxu0
    %v5171 = vadd.f32 0.0, %v5170
    %v5172 = vpop.f32.mrb[0].mxu0
    %5173 = vmatprep.mubr.f32.mxu0 0.0
    %5174 = vmatmul.mubr.f32.gmra.mrb[0].mxu0 %v5032
    %v5175 = vpop.f32.mrb[0].mxu0
    %v5176 = vadd.f32 0.0, %v5175
    %v5177 = vpop.f32.mrb[0].mxu0
    %5178 = vmatprep.mubr.f32.mxu0 0.0
    %5179 = vmatmul.mubr.f32.gmra.mrb[0].mxu0 %v5033
    %v5180 = vpop.f32.mrb[0].mxu0
    %v5181 = vadd.f32 0.0, %v5180
    %v5182 = vpop.f32.mrb[0].mxu0
    %5183 = vmatprep.mubr.f32.mxu0 0.0
    %5184 = vmatmul.mubr.f32.gmra.mrb[0].mxu0 %v5034
    %v5185 = vpop.f32.mrb[0].mxu0
    %v5186 = vadd.f32 0.0, %v5185
    %v5187 = vpop.f32.mrb[0].mxu0
    %5188 = vmatprep.mubr.f32.mxu0 0.0
    %5189 = vmatmul.mubr.f32.gmra.mrb[0].mxu0 %v5035
    %v5190 = vpop.f32.mrb[0].mxu0
    %v5191 = vadd.f32 0.0, %v5190
    %v5192 = vpop.f32.mrb[0].mxu0
    %5193 = vmatprep.mubr.f32.mxu0 0.0
    %5194 = vmatmul.mubr.f32.gmra.mrb[0].mxu0 %v5036
    %v5195 = vpop.f32.mrb[0].mxu0
    %v5196 = vadd.f32 0.0, %v5195
    %v5197 = vpop.f32.mrb[0].mxu0
    %5198 = vdwg.mxu0
    %v5199 = vadd.f32 %v5005, %v5121
    %v5200 = vadd.f32 %v5006, %v5126
    %v5201 = vadd.f32 %v5007, %v5131
    %v5202 = vadd.f32 %v5008, %v5136
    %v5203 = vadd.f32 %v5009, %v5141
    %v5204 = vadd.f32 %v5010, %v5146
    %v5205 = vadd.f32 %v5011, %v5151
    %v5206 = vadd.f32 %v5012, %v5156
    %v5207 = vadd.f32 %v5013, %v5161
    %v5208 = vadd.f32 %v5014, %v5166
    %v5209 = vadd.f32 %v5015, %v5171
    %v5210 = vadd.f32 %v5016, %v5176
    %v5211 = vadd.f32 %v5017, %v5181
    %v5212 = vadd.f32 %v5018, %v5186
    %v5213 = vadd.f32 %v5019, %v5191
    %v5214 = vadd.f32 %v5020, %v5196
    %v5215 = vld [vmem:[%s4632 + $0x3] sm:$0xff]
    %v5216 = vld [vmem:[%s4632 + $0x13] sm:$0xff]
    %v5217 = vld [vmem:[%s4632 + $0x23] sm:$0xff]
    %v5218 = vld [vmem:[%s4632 + $0x33] sm:$0xff]
    %v5219 = vld [vmem:[%s4632 + $0x43] sm:$0xff]
    %v5220 = vld [vmem:[%s4632 + $0x53] sm:$0xff]
    %v5221 = vld [vmem:[%s4632 + $0x63] sm:$0xff]
    %v5222 = vld [vmem:[%s4632 + $0x73] sm:$0xff]
    %v5223 = vld [vmem:[%s4632 + $0xc3] sm:$0xff]
    %v5224 = vld [vmem:[%s4632 + $0xd3] sm:$0xff]
    %v5225 = vld [vmem:[%s4632 + $0xe3] sm:$0xff]
    %v5226 = vld [vmem:[%s4632 + $0xf3] sm:$0xff]
    %v5227 = vld [vmem:[%s4632 + $0x103] sm:$0xff]
    %v5228 = vld [vmem:[%s4632 + $0x113] sm:$0xff]
    %v5229 = vld [vmem:[%s4632 + $0x123] sm:$0xff]
    %v5230 = vld [vmem:[%s4632 + $0x133] sm:$0xff]
    %s5231 = scalar_lea.vmem %s3, 1664
    %v5232 = vld [vmem:[%s5231] sm:$0xff]
    %v5233 = vld [vmem:[%s5231 + $0x8] sm:$0xff]
    %v5234 = vld [vmem:[%s5231 + $0x10] sm:$0xff]
    %v5235 = vld [vmem:[%s5231 + $0x18] sm:$0xff]
    %v5236 = vld [vmem:[%s5231 + $0x20] sm:$0xff]
    %v5237 = vld [vmem:[%s5231 + $0x28] sm:$0xff]
    %v5238 = vld [vmem:[%s5231 + $0x30] sm:$0xff]
    %v5239 = vld [vmem:[%s5231 + $0x38] sm:$0xff]
    %v5240 = vld [vmem:[%s5231 + $0x40] sm:$0xff]
    %v5241 = vld [vmem:[%s5231 + $0x48] sm:$0xff]
    %v5242 = vld [vmem:[%s5231 + $0x50] sm:$0xff]
    %v5243 = vld [vmem:[%s5231 + $0x58] sm:$0xff]
    %v5244 = vld [vmem:[%s5231 + $0x60] sm:$0xff]
    %v5245 = vld [vmem:[%s5231 + $0x68] sm:$0xff]
    %v5246 = vld [vmem:[%s5231 + $0x70] sm:$0xff]
    %v5247 = vld [vmem:[%s5231 + $0x78] sm:$0xff]
    %5248 = vmatprep.subr.mxu0 0.0
    %5249 = vmatpush1.msra.mxu0 %v5232
    %5250 = vmatprep.subr.mxu0 0.0
    %5251 = vmatpush1.msra.mxu0 %v5233
    %5252 = vmatprep.subr.mxu0 0.0
    %5253 = vmatpush1.msra.mxu0 %v5234
    %5254 = vmatprep.subr.mxu0 0.0
    %5255 = vmatpush1.msra.mxu0 %v5235
    %5256 = vmatprep.subr.mxu0 0.0
    %5257 = vmatpush1.msra.mxu0 %v5236
    %5258 = vmatprep.subr.mxu0 0.0
    %5259 = vmatpush1.msra.mxu0 %v5237
    %5260 = vmatprep.subr.mxu0 0.0
    %5261 = vmatpush1.msra.mxu0 %v5238
    %5262 = vmatprep.subr.mxu0 0.0
    %5263 = vmatpush1.msra.mxu0 %v5239
    %5264 = vmatprep.subr.mxu0 0.0
    %5265 = vmatpush1.msra.mxu0 %v5240
    %5266 = vmatprep.subr.mxu0 0.0
    %5267 = vmatpush1.msra.mxu0 %v5241
    %5268 = vmatprep.subr.mxu0 0.0
    %5269 = vmatpush1.msra.mxu0 %v5242
    %5270 = vmatprep.subr.mxu0 0.0
    %5271 = vmatpush1.msra.mxu0 %v5243
    %5272 = vmatprep.subr.mxu0 0.0
    %5273 = vmatpush1.msra.mxu0 %v5244
    %5274 = vmatprep.subr.mxu0 0.0
    %5275 = vmatpush1.msra.mxu0 %v5245
    %5276 = vmatprep.subr.mxu0 0.0
    %5277 = vmatpush1.msra.mxu0 %v5246
    %5278 = vmatprep.subr.mxu0 0.0
    %5279 = vmatpush1.msra.mxu0 %v5247
    %5280 = vmatprep.subr.mxu0 0.0
    %5281 = vmatpush1.msra.mxu0 0.0
    %5282 = vmatprep.subr.mxu0 0.0
    %5283 = vmatpush1.msra.mxu0 0.0
    %5284 = vmatprep.subr.mxu0 0.0
    %5285 = vmatpush1.msra.mxu0 0.0
    %5286 = vmatprep.subr.mxu0 0.0
    %5287 = vmatpush1.msra.mxu0 0.0
    %5288 = vmatprep.subr.mxu0 0.0
    %5289 = vmatpush1.msra.mxu0 0.0
    %5290 = vmatprep.subr.mxu0 0.0
    %5291 = vmatpush1.msra.mxu0 0.0
    %5292 = vmatprep.subr.mxu0 0.0
    %5293 = vmatpush1.msra.mxu0 0.0
    %5294 = vmatprep.subr.mxu0 0.0
    %5295 = vmatpush1.msra.mxu0 0.0
    %5296 = vmatprep.subr.mxu0 0.0
    %5297 = vmatpush1.msra.mxu0 0.0
    %5298 = vmatprep.subr.mxu0 0.0
    %5299 = vmatpush1.msra.mxu0 0.0
    %5300 = vmatprep.subr.mxu0 0.0
    %5301 = vmatpush1.msra.mxu0 0.0
    %5302 = vmatprep.subr.mxu0 0.0
    %5303 = vmatpush1.msra.mxu0 0.0
    %5304 = vmatprep.subr.mxu0 0.0
    %5305 = vmatpush1.msra.mxu0 0.0
    %5306 = vmatprep.subr.mxu0 0.0
    %5307 = vmatpush1.msra.mxu0 0.0
    %5308 = vmatprep.subr.mxu0 0.0
    %5309 = vmatpush1.msra.mxu0 0.0
    %5310 = vmatprep.subr.mxu0 0.0
    %5311 = vmatpush1.msra.mxu0 0.0
    %5312 = vmatprep.mubr.f32.mxu0 0.0
    %5313 = vmatmul.mubr.f32.gmra.mrb[0].mxu0 %v5215
    %v5314 = vpop.f32.mrb[0].mxu0
    %v5315 = vadd.f32 0.0, %v5314
    %v5316 = vpop.f32.mrb[0].mxu0
    %5317 = vmatprep.mubr.f32.mxu0 0.0
    %5318 = vmatmul.mubr.f32.gmra.mrb[0].mxu0 %v5216
    %v5319 = vpop.f32.mrb[0].mxu0
    %v5320 = vadd.f32 0.0, %v5319
    %v5321 = vpop.f32.mrb[0].mxu0
    %5322 = vmatprep.mubr.f32.mxu0 0.0
    %5323 = vmatmul.mubr.f32.gmra.mrb[0].mxu0 %v5217
    %v5324 = vpop.f32.mrb[0].mxu0
    %v5325 = vadd.f32 0.0, %v5324
    %v5326 = vpop.f32.mrb[0].mxu0
    %5327 = vmatprep.mubr.f32.mxu0 0.0
    %5328 = vmatmul.mubr.f32.gmra.mrb[0].mxu0 %v5218
    %v5329 = vpop.f32.mrb[0].mxu0
    %v5330 = vadd.f32 0.0, %v5329
    %v5331 = vpop.f32.mrb[0].mxu0
    %5332 = vmatprep.mubr.f32.mxu0 0.0
    %5333 = vmatmul.mubr.f32.gmra.mrb[0].mxu0 %v5219
    %v5334 = vpop.f32.mrb[0].mxu0
    %v5335 = vadd.f32 0.0, %v5334
    %v5336 = vpop.f32.mrb[0].mxu0
    %5337 = vmatprep.mubr.f32.mxu0 0.0
    %5338 = vmatmul.mubr.f32.gmra.mrb[0].mxu0 %v5220
    %v5339 = vpop.f32.mrb[0].mxu0
    %v5340 = vadd.f32 0.0, %v5339
    %v5341 = vpop.f32.mrb[0].mxu0
    %5342 = vmatprep.mubr.f32.mxu0 0.0
    %5343 = vmatmul.mubr.f32.gmra.mrb[0].mxu0 %v5221
    %v5344 = vpop.f32.mrb[0].mxu0
    %v5345 = vadd.f32 0.0, %v5344
    %v5346 = vpop.f32.mrb[0].mxu0
    %5347 = vmatprep.mubr.f32.mxu0 0.0
    %5348 = vmatmul.mubr.f32.gmra.mrb[0].mxu0 %v5222
    %v5349 = vpop.f32.mrb[0].mxu0
    %v5350 = vadd.f32 0.0, %v5349
    %v5351 = vpop.f32.mrb[0].mxu0
    %5352 = vmatprep.mubr.f32.mxu0 0.0
    %5353 = vmatmul.mubr.f32.gmra.mrb[0].mxu0 %v5223
    %v5354 = vpop.f32.mrb[0].mxu0
    %v5355 = vadd.f32 0.0, %v5354
    %v5356 = vpop.f32.mrb[0].mxu0
    %5357 = vmatprep.mubr.f32.mxu0 0.0
    %5358 = vmatmul.mubr.f32.gmra.mrb[0].mxu0 %v5224
    %v5359 = vpop.f32.mrb[0].mxu0
    %v5360 = vadd.f32 0.0, %v5359
    %v5361 = vpop.f32.mrb[0].mxu0
    %5362 = vmatprep.mubr.f32.mxu0 0.0
    %5363 = vmatmul.mubr.f32.gmra.mrb[0].mxu0 %v5225
    %v5364 = vpop.f32.mrb[0].mxu0
    %v5365 = vadd.f32 0.0, %v5364
    %v5366 = vpop.f32.mrb[0].mxu0
    %5367 = vmatprep.mubr.f32.mxu0 0.0
    %5368 = vmatmul.mubr.f32.gmra.mrb[0].mxu0 %v5226
    %v5369 = vpop.f32.mrb[0].mxu0
    %v5370 = vadd.f32 0.0, %v5369
    %v5371 = vpop.f32.mrb[0].mxu0
    %5372 = vmatprep.mubr.f32.mxu0 0.0
    %5373 = vmatmul.mubr.f32.gmra.mrb[0].mxu0 %v5227
    %v5374 = vpop.f32.mrb[0].mxu0
    %v5375 = vadd.f32 0.0, %v5374
    %v5376 = vpop.f32.mrb[0].mxu0
    %5377 = vmatprep.mubr.f32.mxu0 0.0
    %5378 = vmatmul.mubr.f32.gmra.mrb[0].mxu0 %v5228
    %v5379 = vpop.f32.mrb[0].mxu0
    %v5380 = vadd.f32 0.0, %v5379
    %v5381 = vpop.f32.mrb[0].mxu0
    %5382 = vmatprep.mubr.f32.mxu0 0.0
    %5383 = vmatmul.mubr.f32.gmra.mrb[0].mxu0 %v5229
    %v5384 = vpop.f32.mrb[0].mxu0
    %v5385 = vadd.f32 0.0, %v5384
    %v5386 = vpop.f32.mrb[0].mxu0
    %5387 = vmatprep.mubr.f32.mxu0 0.0
    %5388 = vmatmul.mubr.f32.gmra.mrb[0].mxu0 %v5230
    %v5389 = vpop.f32.mrb[0].mxu0
    %v5390 = vadd.f32 0.0, %v5389
    %v5391 = vpop.f32.mrb[0].mxu0
    %5392 = vdwg.mxu0
    %v5393 = vadd.f32 %v5199, %v5315
    %v5394 = vadd.f32 %v5200, %v5320
    %v5395 = vadd.f32 %v5201, %v5325
    %v5396 = vadd.f32 %v5202, %v5330
    %v5397 = vadd.f32 %v5203, %v5335
    %v5398 = vadd.f32 %v5204, %v5340
    %v5399 = vadd.f32 %v5205, %v5345
    %v5400 = vadd.f32 %v5206, %v5350
    %v5401 = vadd.f32 %v5207, %v5355
    %v5402 = vadd.f32 %v5208, %v5360
    %v5403 = vadd.f32 %v5209, %v5365
    %v5404 = vadd.f32 %v5210, %v5370
    %v5405 = vadd.f32 %v5211, %v5375
    %v5406 = vadd.f32 %v5212, %v5380
    %v5407 = vadd.f32 %v5213, %v5385
    %v5408 = vadd.f32 %v5214, %v5390
    %v5409 = vld [vmem:[%s4632 + $0x4] sm:$0xff]
    %v5410 = vld [vmem:[%s4632 + $0x14] sm:$0xff]
    %v5411 = vld [vmem:[%s4632 + $0x24] sm:$0xff]
    %v5412 = vld [vmem:[%s4632 + $0x34] sm:$0xff]
    %v5413 = vld [vmem:[%s4632 + $0x44] sm:$0xff]
    %v5414 = vld [vmem:[%s4632 + $0x54] sm:$0xff]
    %v5415 = vld [vmem:[%s4632 + $0x64] sm:$0xff]
    %v5416 = vld [vmem:[%s4632 + $0x74] sm:$0xff]
    %v5417 = vld [vmem:[%s4632 + $0xc4] sm:$0xff]
    %v5418 = vld [vmem:[%s4632 + $0xd4] sm:$0xff]
    %v5419 = vld [vmem:[%s4632 + $0xe4] sm:$0xff]
    %v5420 = vld [vmem:[%s4632 + $0xf4] sm:$0xff]
    %v5421 = vld [vmem:[%s4632 + $0x104] sm:$0xff]
    %v5422 = vld [vmem:[%s4632 + $0x114] sm:$0xff]
    %v5423 = vld [vmem:[%s4632 + $0x124] sm:$0xff]
    %v5424 = vld [vmem:[%s4632 + $0x134] sm:$0xff]
    %s5425 = scalar_lea.vmem %s3, 1792
    %v5426 = vld [vmem:[%s5425] sm:$0xff]
    %v5427 = vld [vmem:[%s5425 + $0x8] sm:$0xff]
    %v5428 = vld [vmem:[%s5425 + $0x10] sm:$0xff]
    %v5429 = vld [vmem:[%s5425 + $0x18] sm:$0xff]
    %v5430 = vld [vmem:[%s5425 + $0x20] sm:$0xff]
    %v5431 = vld [vmem:[%s5425 + $0x28] sm:$0xff]
    %v5432 = vld [vmem:[%s5425 + $0x30] sm:$0xff]
    %v5433 = vld [vmem:[%s5425 + $0x38] sm:$0xff]
    %v5434 = vld [vmem:[%s5425 + $0x40] sm:$0xff]
    %v5435 = vld [vmem:[%s5425 + $0x48] sm:$0xff]
    %v5436 = vld [vmem:[%s5425 + $0x50] sm:$0xff]
    %v5437 = vld [vmem:[%s5425 + $0x58] sm:$0xff]
    %v5438 = vld [vmem:[%s5425 + $0x60] sm:$0xff]
    %v5439 = vld [vmem:[%s5425 + $0x68] sm:$0xff]
    %v5440 = vld [vmem:[%s5425 + $0x70] sm:$0xff]
    %v5441 = vld [vmem:[%s5425 + $0x78] sm:$0xff]
    %5442 = vmatprep.subr.mxu0 0.0
    %5443 = vmatpush1.msra.mxu0 %v5426
    %5444 = vmatprep.subr.mxu0 0.0
    %5445 = vmatpush1.msra.mxu0 %v5427
    %5446 = vmatprep.subr.mxu0 0.0
    %5447 = vmatpush1.msra.mxu0 %v5428
    %5448 = vmatprep.subr.mxu0 0.0
    %5449 = vmatpush1.msra.mxu0 %v5429
    %5450 = vmatprep.subr.mxu0 0.0
    %5451 = vmatpush1.msra.mxu0 %v5430
    %5452 = vmatprep.subr.mxu0 0.0
    %5453 = vmatpush1.msra.mxu0 %v5431
    %5454 = vmatprep.subr.mxu0 0.0
    %5455 = vmatpush1.msra.mxu0 %v5432
    %5456 = vmatprep.subr.mxu0 0.0
    %5457 = vmatpush1.msra.mxu0 %v5433
    %5458 = vmatprep.subr.mxu0 0.0
    %5459 = vmatpush1.msra.mxu0 %v5434
    %5460 = vmatprep.subr.mxu0 0.0
    %5461 = vmatpush1.msra.mxu0 %v5435
    %5462 = vmatprep.subr.mxu0 0.0
    %5463 = vmatpush1.msra.mxu0 %v5436
    %5464 = vmatprep.subr.mxu0 0.0
    %5465 = vmatpush1.msra.mxu0 %v5437
    %5466 = vmatprep.subr.mxu0 0.0
    %5467 = vmatpush1.msra.mxu0 %v5438
    %5468 = vmatprep.subr.mxu0 0.0
    %5469 = vmatpush1.msra.mxu0 %v5439
    %5470 = vmatprep.subr.mxu0 0.0
    %5471 = vmatpush1.msra.mxu0 %v5440
    %5472 = vmatprep.subr.mxu0 0.0
    %5473 = vmatpush1.msra.mxu0 %v5441
    %5474 = vmatprep.subr.mxu0 0.0
    %5475 = vmatpush1.msra.mxu0 0.0
    %5476 = vmatprep.subr.mxu0 0.0
    %5477 = vmatpush1.msra.mxu0 0.0
    %5478 = vmatprep.subr.mxu0 0.0
    %5479 = vmatpush1.msra.mxu0 0.0
    %5480 = vmatprep.subr.mxu0 0.0
    %5481 = vmatpush1.msra.mxu0 0.0
    %5482 = vmatprep.subr.mxu0 0.0
    %5483 = vmatpush1.msra.mxu0 0.0
    %5484 = vmatprep.subr.mxu0 0.0
    %5485 = vmatpush1.msra.mxu0 0.0
    %5486 = vmatprep.subr.mxu0 0.0
    %5487 = vmatpush1.msra.mxu0 0.0
    %5488 = vmatprep.subr.mxu0 0.0
    %5489 = vmatpush1.msra.mxu0 0.0
    %5490 = vmatprep.subr.mxu0 0.0
    %5491 = vmatpush1.msra.mxu0 0.0
    %5492 = vmatprep.subr.mxu0 0.0
    %5493 = vmatpush1.msra.mxu0 0.0
    %5494 = vmatprep.subr.mxu0 0.0
    %5495 = vmatpush1.msra.mxu0 0.0
    %5496 = vmatprep.subr.mxu0 0.0
    %5497 = vmatpush1.msra.mxu0 0.0
    %5498 = vmatprep.subr.mxu0 0.0
    %5499 = vmatpush1.msra.mxu0 0.0
    %5500 = vmatprep.subr.mxu0 0.0
    %5501 = vmatpush1.msra.mxu0 0.0
    %5502 = vmatprep.subr.mxu0 0.0
    %5503 = vmatpush1.msra.mxu0 0.0
    %5504 = vmatprep.subr.mxu0 0.0
    %5505 = vmatpush1.msra.mxu0 0.0
    %5506 = vmatprep.mubr.f32.mxu0 0.0
    %5507 = vmatmul.mubr.f32.gmra.mrb[0].mxu0 %v5409
    %v5508 = vpop.f32.mrb[0].mxu0
    %v5509 = vadd.f32 0.0, %v5508
    %v5510 = vpop.f32.mrb[0].mxu0
    %5511 = vmatprep.mubr.f32.mxu0 0.0
    %5512 = vmatmul.mubr.f32.gmra.mrb[0].mxu0 %v5410
    %v5513 = vpop.f32.mrb[0].mxu0
    %v5514 = vadd.f32 0.0, %v5513
    %v5515 = vpop.f32.mrb[0].mxu0
    %5516 = vmatprep.mubr.f32.mxu0 0.0
    %5517 = vmatmul.mubr.f32.gmra.mrb[0].mxu0 %v5411
    %v5518 = vpop.f32.mrb[0].mxu0
    %v5519 = vadd.f32 0.0, %v5518
    %v5520 = vpop.f32.mrb[0].mxu0
    %5521 = vmatprep.mubr.f32.mxu0 0.0
    %5522 = vmatmul.mubr.f32.gmra.mrb[0].mxu0 %v5412
    %v5523 = vpop.f32.mrb[0].mxu0
    %v5524 = vadd.f32 0.0, %v5523
    %v5525 = vpop.f32.mrb[0].mxu0
    %5526 = vmatprep.mubr.f32.mxu0 0.0
    %5527 = vmatmul.mubr.f32.gmra.mrb[0].mxu0 %v5413
    %v5528 = vpop.f32.mrb[0].mxu0
    %v5529 = vadd.f32 0.0, %v5528
    %v5530 = vpop.f32.mrb[0].mxu0
    %5531 = vmatprep.mubr.f32.mxu0 0.0
    %5532 = vmatmul.mubr.f32.gmra.mrb[0].mxu0 %v5414
    %v5533 = vpop.f32.mrb[0].mxu0
    %v5534 = vadd.f32 0.0, %v5533
    %v5535 = vpop.f32.mrb[0].mxu0
    %5536 = vmatprep.mubr.f32.mxu0 0.0
    %5537 = vmatmul.mubr.f32.gmra.mrb[0].mxu0 %v5415
    %v5538 = vpop.f32.mrb[0].mxu0
    %v5539 = vadd.f32 0.0, %v5538
    %v5540 = vpop.f32.mrb[0].mxu0
    %5541 = vmatprep.mubr.f32.mxu0 0.0
    %5542 = vmatmul.mubr.f32.gmra.mrb[0].mxu0 %v5416
    %v5543 = vpop.f32.mrb[0].mxu0
    %v5544 = vadd.f32 0.0, %v5543
    %v5545 = vpop.f32.mrb[0].mxu0
    %5546 = vmatprep.mubr.f32.mxu0 0.0
    %5547 = vmatmul.mubr.f32.gmra.mrb[0].mxu0 %v5417
    %v5548 = vpop.f32.mrb[0].mxu0
    %v5549 = vadd.f32 0.0, %v5548
    %v5550 = vpop.f32.mrb[0].mxu0
    %5551 = vmatprep.mubr.f32.mxu0 0.0
    %5552 = vmatmul.mubr.f32.gmra.mrb[0].mxu0 %v5418
    %v5553 = vpop.f32.mrb[0].mxu0
    %v5554 = vadd.f32 0.0, %v5553
    %v5555 = vpop.f32.mrb[0].mxu0
    %5556 = vmatprep.mubr.f32.mxu0 0.0
    %5557 = vmatmul.mubr.f32.gmra.mrb[0].mxu0 %v5419
    %v5558 = vpop.f32.mrb[0].mxu0
    %v5559 = vadd.f32 0.0, %v5558
    %v5560 = vpop.f32.mrb[0].mxu0
    %5561 = vmatprep.mubr.f32.mxu0 0.0
    %5562 = vmatmul.mubr.f32.gmra.mrb[0].mxu0 %v5420
    %v5563 = vpop.f32.mrb[0].mxu0
    %v5564 = vadd.f32 0.0, %v5563
    %v5565 = vpop.f32.mrb[0].mxu0
    %5566 = vmatprep.mubr.f32.mxu0 0.0
    %5567 = vmatmul.mubr.f32.gmra.mrb[0].mxu0 %v5421
    %v5568 = vpop.f32.mrb[0].mxu0
    %v5569 = vadd.f32 0.0, %v5568
    %v5570 = vpop.f32.mrb[0].mxu0
    %5571 = vmatprep.mubr.f32.mxu0 0.0
    %5572 = vmatmul.mubr.f32.gmra.mrb[0].mxu0 %v5422
    %v5573 = vpop.f32.mrb[0].mxu0
    %v5574 = vadd.f32 0.0, %v5573
    %v5575 = vpop.f32.mrb[0].mxu0
    %5576 = vmatprep.mubr.f32.mxu0 0.0
    %5577 = vmatmul.mubr.f32.gmra.mrb[0].mxu0 %v5423
    %v5578 = vpop.f32.mrb[0].mxu0
    %v5579 = vadd.f32 0.0, %v5578
    %v5580 = vpop.f32.mrb[0].mxu0
    %5581 = vmatprep.mubr.f32.mxu0 0.0
    %5582 = vmatmul.mubr.f32.gmra.mrb[0].mxu0 %v5424
    %v5583 = vpop.f32.mrb[0].mxu0
    %v5584 = vadd.f32 0.0, %v5583
    %v5585 = vpop.f32.mrb[0].mxu0
    %5586 = vdwg.mxu0
    %v5587 = vadd.f32 %v5393, %v5509
    %v5588 = vadd.f32 %v5394, %v5514
    %v5589 = vadd.f32 %v5395, %v5519
    %v5590 = vadd.f32 %v5396, %v5524
    %v5591 = vadd.f32 %v5397, %v5529
    %v5592 = vadd.f32 %v5398, %v5534
    %v5593 = vadd.f32 %v5399, %v5539
    %v5594 = vadd.f32 %v5400, %v5544
    %v5595 = vadd.f32 %v5401, %v5549
    %v5596 = vadd.f32 %v5402, %v5554
    %v5597 = vadd.f32 %v5403, %v5559
    %v5598 = vadd.f32 %v5404, %v5564
    %v5599 = vadd.f32 %v5405, %v5569
    %v5600 = vadd.f32 %v5406, %v5574
    %v5601 = vadd.f32 %v5407, %v5579
    %v5602 = vadd.f32 %v5408, %v5584
    %s5603 = scalar_lea.vmem [#allocation2], 48
    %v5604 = vld [vmem:[%s5603] sm:$0xff]
    %v5605 = vld [vmem:[%s5603 + $0x10] sm:$0xff]
    %v5606 = vld [vmem:[%s5603 + $0x20] sm:$0xff]
    %v5607 = vld [vmem:[%s5603 + $0x30] sm:$0xff]
    %v5608 = vld [vmem:[%s5603 + $0x40] sm:$0xff]
    %v5609 = vld [vmem:[%s5603 + $0x50] sm:$0xff]
    %v5610 = vld [vmem:[%s5603 + $0x60] sm:$0xff]
    %v5611 = vld [vmem:[%s5603 + $0x70] sm:$0xff]
    %v5612 = vld [vmem:[%s5603 + $0xc0] sm:$0xff]
    %v5613 = vld [vmem:[%s5603 + $0xd0] sm:$0xff]
    %v5614 = vld [vmem:[%s5603 + $0xe0] sm:$0xff]
    %v5615 = vld [vmem:[%s5603 + $0xf0] sm:$0xff]
    %v5616 = vld [vmem:[%s5603 + $0x100] sm:$0xff]
    %v5617 = vld [vmem:[%s5603 + $0x110] sm:$0xff]
    %v5618 = vld [vmem:[%s5603 + $0x120] sm:$0xff]
    %v5619 = vld [vmem:[%s5603 + $0x130] sm:$0xff]
    %s5620 = scalar_lea.vmem %s3, 1920
    %v5621 = vld [vmem:[%s5620] sm:$0xff]
    %v5622 = vld [vmem:[%s5620 + $0x8] sm:$0xff]
    %v5623 = vld [vmem:[%s5620 + $0x10] sm:$0xff]
    %v5624 = vld [vmem:[%s5620 + $0x18] sm:$0xff]
    %v5625 = vld [vmem:[%s5620 + $0x20] sm:$0xff]
    %v5626 = vld [vmem:[%s5620 + $0x28] sm:$0xff]
    %v5627 = vld [vmem:[%s5620 + $0x30] sm:$0xff]
    %v5628 = vld [vmem:[%s5620 + $0x38] sm:$0xff]
    %v5629 = vld [vmem:[%s5620 + $0x40] sm:$0xff]
    %v5630 = vld [vmem:[%s5620 + $0x48] sm:$0xff]
    %v5631 = vld [vmem:[%s5620 + $0x50] sm:$0xff]
    %v5632 = vld [vmem:[%s5620 + $0x58] sm:$0xff]
    %v5633 = vld [vmem:[%s5620 + $0x60] sm:$0xff]
    %v5634 = vld [vmem:[%s5620 + $0x68] sm:$0xff]
    %v5635 = vld [vmem:[%s5620 + $0x70] sm:$0xff]
    %v5636 = vld [vmem:[%s5620 + $0x78] sm:$0xff]
    %5637 = vmatprep.subr.mxu0 0.0
    %5638 = vmatpush1.msra.mxu0 %v5621
    %5639 = vmatprep.subr.mxu0 0.0
    %5640 = vmatpush1.msra.mxu0 %v5622
    %5641 = vmatprep.subr.mxu0 0.0
    %5642 = vmatpush1.msra.mxu0 %v5623
    %5643 = vmatprep.subr.mxu0 0.0
    %5644 = vmatpush1.msra.mxu0 %v5624
    %5645 = vmatprep.subr.mxu0 0.0
    %5646 = vmatpush1.msra.mxu0 %v5625
    %5647 = vmatprep.subr.mxu0 0.0
    %5648 = vmatpush1.msra.mxu0 %v5626
    %5649 = vmatprep.subr.mxu0 0.0
    %5650 = vmatpush1.msra.mxu0 %v5627
    %5651 = vmatprep.subr.mxu0 0.0
    %5652 = vmatpush1.msra.mxu0 %v5628
    %5653 = vmatprep.subr.mxu0 0.0
    %5654 = vmatpush1.msra.mxu0 %v5629
    %5655 = vmatprep.subr.mxu0 0.0
    %5656 = vmatpush1.msra.mxu0 %v5630
    %5657 = vmatprep.subr.mxu0 0.0
    %5658 = vmatpush1.msra.mxu0 %v5631
    %5659 = vmatprep.subr.mxu0 0.0
    %5660 = vmatpush1.msra.mxu0 %v5632
    %5661 = vmatprep.subr.mxu0 0.0
    %5662 = vmatpush1.msra.mxu0 %v5633
    %5663 = vmatprep.subr.mxu0 0.0
    %5664 = vmatpush1.msra.mxu0 %v5634
    %5665 = vmatprep.subr.mxu0 0.0
    %5666 = vmatpush1.msra.mxu0 %v5635
    %5667 = vmatprep.subr.mxu0 0.0
    %5668 = vmatpush1.msra.mxu0 %v5636
    %5669 = vmatprep.subr.mxu0 0.0
    %5670 = vmatpush1.msra.mxu0 0.0
    %5671 = vmatprep.subr.mxu0 0.0
    %5672 = vmatpush1.msra.mxu0 0.0
    %5673 = vmatprep.subr.mxu0 0.0
    %5674 = vmatpush1.msra.mxu0 0.0
    %5675 = vmatprep.subr.mxu0 0.0
    %5676 = vmatpush1.msra.mxu0 0.0
    %5677 = vmatprep.subr.mxu0 0.0
    %5678 = vmatpush1.msra.mxu0 0.0
    %5679 = vmatprep.subr.mxu0 0.0
    %5680 = vmatpush1.msra.mxu0 0.0
    %5681 = vmatprep.subr.mxu0 0.0
    %5682 = vmatpush1.msra.mxu0 0.0
    %5683 = vmatprep.subr.mxu0 0.0
    %5684 = vmatpush1.msra.mxu0 0.0
    %5685 = vmatprep.subr.mxu0 0.0
    %5686 = vmatpush1.msra.mxu0 0.0
    %5687 = vmatprep.subr.mxu0 0.0
    %5688 = vmatpush1.msra.mxu0 0.0
    %5689 = vmatprep.subr.mxu0 0.0
    %5690 = vmatpush1.msra.mxu0 0.0
    %5691 = vmatprep.subr.mxu0 0.0
    %5692 = vmatpush1.msra.mxu0 0.0
    %5693 = vmatprep.subr.mxu0 0.0
    %5694 = vmatpush1.msra.mxu0 0.0
    %5695 = vmatprep.subr.mxu0 0.0
    %5696 = vmatpush1.msra.mxu0 0.0
    %5697 = vmatprep.subr.mxu0 0.0
    %5698 = vmatpush1.msra.mxu0 0.0
    %5699 = vmatprep.subr.mxu0 0.0
    %5700 = vmatpush1.msra.mxu0 0.0
    %5701 = vmatprep.mubr.f32.mxu0 0.0
    %5702 = vmatmul.mubr.f32.gmra.mrb[0].mxu0 %v5604
    %v5703 = vpop.f32.mrb[0].mxu0
    %v5704 = vadd.f32 0.0, %v5703
    %v5705 = vpop.f32.mrb[0].mxu0
    %5706 = vmatprep.mubr.f32.mxu0 0.0
    %5707 = vmatmul.mubr.f32.gmra.mrb[0].mxu0 %v5605
    %v5708 = vpop.f32.mrb[0].mxu0
    %v5709 = vadd.f32 0.0, %v5708
    %v5710 = vpop.f32.mrb[0].mxu0
    %5711 = vmatprep.mubr.f32.mxu0 0.0
    %5712 = vmatmul.mubr.f32.gmra.mrb[0].mxu0 %v5606
    %v5713 = vpop.f32.mrb[0].mxu0
    %v5714 = vadd.f32 0.0, %v5713
    %v5715 = vpop.f32.mrb[0].mxu0
    %5716 = vmatprep.mubr.f32.mxu0 0.0
    %5717 = vmatmul.mubr.f32.gmra.mrb[0].mxu0 %v5607
    %v5718 = vpop.f32.mrb[0].mxu0
    %v5719 = vadd.f32 0.0, %v5718
    %v5720 = vpop.f32.mrb[0].mxu0
    %5721 = vmatprep.mubr.f32.mxu0 0.0
    %5722 = vmatmul.mubr.f32.gmra.mrb[0].mxu0 %v5608
    %v5723 = vpop.f32.mrb[0].mxu0
    %v5724 = vadd.f32 0.0, %v5723
    %v5725 = vpop.f32.mrb[0].mxu0
    %5726 = vmatprep.mubr.f32.mxu0 0.0
    %5727 = vmatmul.mubr.f32.gmra.mrb[0].mxu0 %v5609
    %v5728 = vpop.f32.mrb[0].mxu0
    %v5729 = vadd.f32 0.0, %v5728
    %v5730 = vpop.f32.mrb[0].mxu0
    %5731 = vmatprep.mubr.f32.mxu0 0.0
    %5732 = vmatmul.mubr.f32.gmra.mrb[0].mxu0 %v5610
    %v5733 = vpop.f32.mrb[0].mxu0
    %v5734 = vadd.f32 0.0, %v5733
    %v5735 = vpop.f32.mrb[0].mxu0
    %5736 = vmatprep.mubr.f32.mxu0 0.0
    %5737 = vmatmul.mubr.f32.gmra.mrb[0].mxu0 %v5611
    %v5738 = vpop.f32.mrb[0].mxu0
    %v5739 = vadd.f32 0.0, %v5738
    %v5740 = vpop.f32.mrb[0].mxu0
    %5741 = vmatprep.mubr.f32.mxu0 0.0
    %5742 = vmatmul.mubr.f32.gmra.mrb[0].mxu0 %v5612
    %v5743 = vpop.f32.mrb[0].mxu0
    %v5744 = vadd.f32 0.0, %v5743
    %v5745 = vpop.f32.mrb[0].mxu0
    %5746 = vmatprep.mubr.f32.mxu0 0.0
    %5747 = vmatmul.mubr.f32.gmra.mrb[0].mxu0 %v5613
    %v5748 = vpop.f32.mrb[0].mxu0
    %v5749 = vadd.f32 0.0, %v5748
    %v5750 = vpop.f32.mrb[0].mxu0
    %5751 = vmatprep.mubr.f32.mxu0 0.0
    %5752 = vmatmul.mubr.f32.gmra.mrb[0].mxu0 %v5614
    %v5753 = vpop.f32.mrb[0].mxu0
    %v5754 = vadd.f32 0.0, %v5753
    %v5755 = vpop.f32.mrb[0].mxu0
    %5756 = vmatprep.mubr.f32.mxu0 0.0
    %5757 = vmatmul.mubr.f32.gmra.mrb[0].mxu0 %v5615
    %v5758 = vpop.f32.mrb[0].mxu0
    %v5759 = vadd.f32 0.0, %v5758
    %v5760 = vpop.f32.mrb[0].mxu0
    %5761 = vmatprep.mubr.f32.mxu0 0.0
    %5762 = vmatmul.mubr.f32.gmra.mrb[0].mxu0 %v5616
    %v5763 = vpop.f32.mrb[0].mxu0
    %v5764 = vadd.f32 0.0, %v5763
    %v5765 = vpop.f32.mrb[0].mxu0
    %5766 = vmatprep.mubr.f32.mxu0 0.0
    %5767 = vmatmul.mubr.f32.gmra.mrb[0].mxu0 %v5617
    %v5768 = vpop.f32.mrb[0].mxu0
    %v5769 = vadd.f32 0.0, %v5768
    %v5770 = vpop.f32.mrb[0].mxu0
    %5771 = vmatprep.mubr.f32.mxu0 0.0
    %5772 = vmatmul.mubr.f32.gmra.mrb[0].mxu0 %v5618
    %v5773 = vpop.f32.mrb[0].mxu0
    %v5774 = vadd.f32 0.0, %v5773
    %v5775 = vpop.f32.mrb[0].mxu0
    %5776 = vmatprep.mubr.f32.mxu0 0.0
    %5777 = vmatmul.mubr.f32.gmra.mrb[0].mxu0 %v5619
    %v5778 = vpop.f32.mrb[0].mxu0
    %v5779 = vadd.f32 0.0, %v5778
    %v5780 = vpop.f32.mrb[0].mxu0
    %5781 = vdwg.mxu0
    %v5782 = vadd.f32 %v5587, %v5704
    %v5783 = vadd.f32 %v5588, %v5709
    %v5784 = vadd.f32 %v5589, %v5714
    %v5785 = vadd.f32 %v5590, %v5719
    %v5786 = vadd.f32 %v5591, %v5724
    %v5787 = vadd.f32 %v5592, %v5729
    %v5788 = vadd.f32 %v5593, %v5734
    %v5789 = vadd.f32 %v5594, %v5739
    %v5790 = vadd.f32 %v5595, %v5744
    %v5791 = vadd.f32 %v5596, %v5749
    %v5792 = vadd.f32 %v5597, %v5754
    %v5793 = vadd.f32 %v5598, %v5759
    %v5794 = vadd.f32 %v5599, %v5764
    %v5795 = vadd.f32 %v5600, %v5769
    %v5796 = vadd.f32 %v5601, %v5774
    %v5797 = vadd.f32 %v5602, %v5779
    %v5798 = vld [vmem:[%s5603 + $0x1] sm:$0xff]
    %v5799 = vld [vmem:[%s5603 + $0x11] sm:$0xff]
    %v5800 = vld [vmem:[%s5603 + $0x21] sm:$0xff]
    %v5801 = vld [vmem:[%s5603 + $0x31] sm:$0xff]
    %v5802 = vld [vmem:[%s5603 + $0x41] sm:$0xff]
    %v5803 = vld [vmem:[%s5603 + $0x51] sm:$0xff]
    %v5804 = vld [vmem:[%s5603 + $0x61] sm:$0xff]
    %v5805 = vld [vmem:[%s5603 + $0x71] sm:$0xff]
    %v5806 = vld [vmem:[%s5603 + $0xc1] sm:$0xff]
    %v5807 = vld [vmem:[%s5603 + $0xd1] sm:$0xff]
    %v5808 = vld [vmem:[%s5603 + $0xe1] sm:$0xff]
    %v5809 = vld [vmem:[%s5603 + $0xf1] sm:$0xff]
    %v5810 = vld [vmem:[%s5603 + $0x101] sm:$0xff]
    %v5811 = vld [vmem:[%s5603 + $0x111] sm:$0xff]
    %v5812 = vld [vmem:[%s5603 + $0x121] sm:$0xff]
    %v5813 = vld [vmem:[%s5603 + $0x131] sm:$0xff]
    %s5814 = scalar_lea.vmem %s3, 2048
    %v5815 = vld [vmem:[%s5814] sm:$0xff]
    %v5816 = vld [vmem:[%s5814 + $0x8] sm:$0xff]
    %v5817 = vld [vmem:[%s5814 + $0x10] sm:$0xff]
    %v5818 = vld [vmem:[%s5814 + $0x18] sm:$0xff]
    %v5819 = vld [vmem:[%s5814 + $0x20] sm:$0xff]
    %v5820 = vld [vmem:[%s5814 + $0x28] sm:$0xff]
    %v5821 = vld [vmem:[%s5814 + $0x30] sm:$0xff]
    %v5822 = vld [vmem:[%s5814 + $0x38] sm:$0xff]
    %v5823 = vld [vmem:[%s5814 + $0x40] sm:$0xff]
    %v5824 = vld [vmem:[%s5814 + $0x48] sm:$0xff]
    %v5825 = vld [vmem:[%s5814 + $0x50] sm:$0xff]
    %v5826 = vld [vmem:[%s5814 + $0x58] sm:$0xff]
    %v5827 = vld [vmem:[%s5814 + $0x60] sm:$0xff]
    %v5828 = vld [vmem:[%s5814 + $0x68] sm:$0xff]
    %v5829 = vld [vmem:[%s5814 + $0x70] sm:$0xff]
    %v5830 = vld [vmem:[%s5814 + $0x78] sm:$0xff]
    %5831 = vmatprep.subr.mxu0 0.0
    %5832 = vmatpush1.msra.mxu0 %v5815
    %5833 = vmatprep.subr.mxu0 0.0
    %5834 = vmatpush1.msra.mxu0 %v5816
    %5835 = vmatprep.subr.mxu0 0.0
    %5836 = vmatpush1.msra.mxu0 %v5817
    %5837 = vmatprep.subr.mxu0 0.0
    %5838 = vmatpush1.msra.mxu0 %v5818
    %5839 = vmatprep.subr.mxu0 0.0
    %5840 = vmatpush1.msra.mxu0 %v5819
    %5841 = vmatprep.subr.mxu0 0.0
    %5842 = vmatpush1.msra.mxu0 %v5820
    %5843 = vmatprep.subr.mxu0 0.0
    %5844 = vmatpush1.msra.mxu0 %v5821
    %5845 = vmatprep.subr.mxu0 0.0
    %5846 = vmatpush1.msra.mxu0 %v5822
    %5847 = vmatprep.subr.mxu0 0.0
    %5848 = vmatpush1.msra.mxu0 %v5823
    %5849 = vmatprep.subr.mxu0 0.0
    %5850 = vmatpush1.msra.mxu0 %v5824
    %5851 = vmatprep.subr.mxu0 0.0
    %5852 = vmatpush1.msra.mxu0 %v5825
    %5853 = vmatprep.subr.mxu0 0.0
    %5854 = vmatpush1.msra.mxu0 %v5826
    %5855 = vmatprep.subr.mxu0 0.0
    %5856 = vmatpush1.msra.mxu0 %v5827
    %5857 = vmatprep.subr.mxu0 0.0
    %5858 = vmatpush1.msra.mxu0 %v5828
    %5859 = vmatprep.subr.mxu0 0.0
    %5860 = vmatpush1.msra.mxu0 %v5829
    %5861 = vmatprep.subr.mxu0 0.0
    %5862 = vmatpush1.msra.mxu0 %v5830
    %5863 = vmatprep.subr.mxu0 0.0
    %5864 = vmatpush1.msra.mxu0 0.0
    %5865 = vmatprep.subr.mxu0 0.0
    %5866 = vmatpush1.msra.mxu0 0.0
    %5867 = vmatprep.subr.mxu0 0.0
    %5868 = vmatpush1.msra.mxu0 0.0
    %5869 = vmatprep.subr.mxu0 0.0
    %5870 = vmatpush1.msra.mxu0 0.0
    %5871 = vmatprep.subr.mxu0 0.0
    %5872 = vmatpush1.msra.mxu0 0.0
    %5873 = vmatprep.subr.mxu0 0.0
    %5874 = vmatpush1.msra.mxu0 0.0
    %5875 = vmatprep.subr.mxu0 0.0
    %5876 = vmatpush1.msra.mxu0 0.0
    %5877 = vmatprep.subr.mxu0 0.0
    %5878 = vmatpush1.msra.mxu0 0.0
    %5879 = vmatprep.subr.mxu0 0.0
    %5880 = vmatpush1.msra.mxu0 0.0
    %5881 = vmatprep.subr.mxu0 0.0
    %5882 = vmatpush1.msra.mxu0 0.0
    %5883 = vmatprep.subr.mxu0 0.0
    %5884 = vmatpush1.msra.mxu0 0.0
    %5885 = vmatprep.subr.mxu0 0.0
    %5886 = vmatpush1.msra.mxu0 0.0
    %5887 = vmatprep.subr.mxu0 0.0
    %5888 = vmatpush1.msra.mxu0 0.0
    %5889 = vmatprep.subr.mxu0 0.0
    %5890 = vmatpush1.msra.mxu0 0.0
    %5891 = vmatprep.subr.mxu0 0.0
    %5892 = vmatpush1.msra.mxu0 0.0
    %5893 = vmatprep.subr.mxu0 0.0
    %5894 = vmatpush1.msra.mxu0 0.0
    %5895 = vmatprep.mubr.f32.mxu0 0.0
    %5896 = vmatmul.mubr.f32.gmra.mrb[0].mxu0 %v5798
    %v5897 = vpop.f32.mrb[0].mxu0
    %v5898 = vadd.f32 0.0, %v5897
    %v5899 = vpop.f32.mrb[0].mxu0
    %5900 = vmatprep.mubr.f32.mxu0 0.0
    %5901 = vmatmul.mubr.f32.gmra.mrb[0].mxu0 %v5799
    %v5902 = vpop.f32.mrb[0].mxu0
    %v5903 = vadd.f32 0.0, %v5902
    %v5904 = vpop.f32.mrb[0].mxu0
    %5905 = vmatprep.mubr.f32.mxu0 0.0
    %5906 = vmatmul.mubr.f32.gmra.mrb[0].mxu0 %v5800
    %v5907 = vpop.f32.mrb[0].mxu0
    %v5908 = vadd.f32 0.0, %v5907
    %v5909 = vpop.f32.mrb[0].mxu0
    %5910 = vmatprep.mubr.f32.mxu0 0.0
    %5911 = vmatmul.mubr.f32.gmra.mrb[0].mxu0 %v5801
    %v5912 = vpop.f32.mrb[0].mxu0
    %v5913 = vadd.f32 0.0, %v5912
    %v5914 = vpop.f32.mrb[0].mxu0
    %5915 = vmatprep.mubr.f32.mxu0 0.0
    %5916 = vmatmul.mubr.f32.gmra.mrb[0].mxu0 %v5802
    %v5917 = vpop.f32.mrb[0].mxu0
    %v5918 = vadd.f32 0.0, %v5917
    %v5919 = vpop.f32.mrb[0].mxu0
    %5920 = vmatprep.mubr.f32.mxu0 0.0
    %5921 = vmatmul.mubr.f32.gmra.mrb[0].mxu0 %v5803
    %v5922 = vpop.f32.mrb[0].mxu0
    %v5923 = vadd.f32 0.0, %v5922
    %v5924 = vpop.f32.mrb[0].mxu0
    %5925 = vmatprep.mubr.f32.mxu0 0.0
    %5926 = vmatmul.mubr.f32.gmra.mrb[0].mxu0 %v5804
    %v5927 = vpop.f32.mrb[0].mxu0
    %v5928 = vadd.f32 0.0, %v5927
    %v5929 = vpop.f32.mrb[0].mxu0
    %5930 = vmatprep.mubr.f32.mxu0 0.0
    %5931 = vmatmul.mubr.f32.gmra.mrb[0].mxu0 %v5805
    %v5932 = vpop.f32.mrb[0].mxu0
    %v5933 = vadd.f32 0.0, %v5932
    %v5934 = vpop.f32.mrb[0].mxu0
    %5935 = vmatprep.mubr.f32.mxu0 0.0
    %5936 = vmatmul.mubr.f32.gmra.mrb[0].mxu0 %v5806
    %v5937 = vpop.f32.mrb[0].mxu0
    %v5938 = vadd.f32 0.0, %v5937
    %v5939 = vpop.f32.mrb[0].mxu0
    %5940 = vmatprep.mubr.f32.mxu0 0.0
    %5941 = vmatmul.mubr.f32.gmra.mrb[0].mxu0 %v5807
    %v5942 = vpop.f32.mrb[0].mxu0
    %v5943 = vadd.f32 0.0, %v5942
    %v5944 = vpop.f32.mrb[0].mxu0
    %5945 = vmatprep.mubr.f32.mxu0 0.0
    %5946 = vmatmul.mubr.f32.gmra.mrb[0].mxu0 %v5808
    %v5947 = vpop.f32.mrb[0].mxu0
    %v5948 = vadd.f32 0.0, %v5947
    %v5949 = vpop.f32.mrb[0].mxu0
    %5950 = vmatprep.mubr.f32.mxu0 0.0
    %5951 = vmatmul.mubr.f32.gmra.mrb[0].mxu0 %v5809
    %v5952 = vpop.f32.mrb[0].mxu0
    %v5953 = vadd.f32 0.0, %v5952
    %v5954 = vpop.f32.mrb[0].mxu0
    %5955 = vmatprep.mubr.f32.mxu0 0.0
    %5956 = vmatmul.mubr.f32.gmra.mrb[0].mxu0 %v5810
    %v5957 = vpop.f32.mrb[0].mxu0
    %v5958 = vadd.f32 0.0, %v5957
    %v5959 = vpop.f32.mrb[0].mxu0
    %5960 = vmatprep.mubr.f32.mxu0 0.0
    %5961 = vmatmul.mubr.f32.gmra.mrb[0].mxu0 %v5811
    %v5962 = vpop.f32.mrb[0].mxu0
    %v5963 = vadd.f32 0.0, %v5962
    %v5964 = vpop.f32.mrb[0].mxu0
    %5965 = vmatprep.mubr.f32.mxu0 0.0
    %5966 = vmatmul.mubr.f32.gmra.mrb[0].mxu0 %v5812
    %v5967 = vpop.f32.mrb[0].mxu0
    %v5968 = vadd.f32 0.0, %v5967
    %v5969 = vpop.f32.mrb[0].mxu0
    %5970 = vmatprep.mubr.f32.mxu0 0.0
    %5971 = vmatmul.mubr.f32.gmra.mrb[0].mxu0 %v5813
    %v5972 = vpop.f32.mrb[0].mxu0
    %v5973 = vadd.f32 0.0, %v5972
    %v5974 = vpop.f32.mrb[0].mxu0
    %5975 = vdwg.mxu0
    %v5976 = vadd.f32 %v5782, %v5898
    %v5977 = vadd.f32 %v5783, %v5903
    %v5978 = vadd.f32 %v5784, %v5908
    %v5979 = vadd.f32 %v5785, %v5913
    %v5980 = vadd.f32 %v5786, %v5918
    %v5981 = vadd.f32 %v5787, %v5923
    %v5982 = vadd.f32 %v5788, %v5928
    %v5983 = vadd.f32 %v5789, %v5933
    %v5984 = vadd.f32 %v5790, %v5938
    %v5985 = vadd.f32 %v5791, %v5943
    %v5986 = vadd.f32 %v5792, %v5948
    %v5987 = vadd.f32 %v5793, %v5953
    %v5988 = vadd.f32 %v5794, %v5958
    %v5989 = vadd.f32 %v5795, %v5963
    %v5990 = vadd.f32 %v5796, %v5968
    %v5991 = vadd.f32 %v5797, %v5973
    %v5992 = vld [vmem:[%s5603 + $0x2] sm:$0xff]
    %v5993 = vld [vmem:[%s5603 + $0x12] sm:$0xff]
    %v5994 = vld [vmem:[%s5603 + $0x22] sm:$0xff]
    %v5995 = vld [vmem:[%s5603 + $0x32] sm:$0xff]
    %v5996 = vld [vmem:[%s5603 + $0x42] sm:$0xff]
    %v5997 = vld [vmem:[%s5603 + $0x52] sm:$0xff]
    %v5998 = vld [vmem:[%s5603 + $0x62] sm:$0xff]
    %v5999 = vld [vmem:[%s5603 + $0x72] sm:$0xff]
    %v6000 = vld [vmem:[%s5603 + $0xc2] sm:$0xff]
    %v6001 = vld [vmem:[%s5603 + $0xd2] sm:$0xff]
    %v6002 = vld [vmem:[%s5603 + $0xe2] sm:$0xff]
    %v6003 = vld [vmem:[%s5603 + $0xf2] sm:$0xff]
    %v6004 = vld [vmem:[%s5603 + $0x102] sm:$0xff]
    %v6005 = vld [vmem:[%s5603 + $0x112] sm:$0xff]
    %v6006 = vld [vmem:[%s5603 + $0x122] sm:$0xff]
    %v6007 = vld [vmem:[%s5603 + $0x132] sm:$0xff]
    %s6008 = scalar_lea.vmem %s3, 2176
    %v6009 = vld [vmem:[%s6008] sm:$0xff]
    %v6010 = vld [vmem:[%s6008 + $0x8] sm:$0xff]
    %v6011 = vld [vmem:[%s6008 + $0x10] sm:$0xff]
    %v6012 = vld [vmem:[%s6008 + $0x18] sm:$0xff]
    %v6013 = vld [vmem:[%s6008 + $0x20] sm:$0xff]
    %v6014 = vld [vmem:[%s6008 + $0x28] sm:$0xff]
    %v6015 = vld [vmem:[%s6008 + $0x30] sm:$0xff]
    %v6016 = vld [vmem:[%s6008 + $0x38] sm:$0xff]
    %v6017 = vld [vmem:[%s6008 + $0x40] sm:$0xff]
    %v6018 = vld [vmem:[%s6008 + $0x48] sm:$0xff]
    %v6019 = vld [vmem:[%s6008 + $0x50] sm:$0xff]
    %v6020 = vld [vmem:[%s6008 + $0x58] sm:$0xff]
    %v6021 = vld [vmem:[%s6008 + $0x60] sm:$0xff]
    %v6022 = vld [vmem:[%s6008 + $0x68] sm:$0xff]
    %v6023 = vld [vmem:[%s6008 + $0x70] sm:$0xff]
    %v6024 = vld [vmem:[%s6008 + $0x78] sm:$0xff]
    %6025 = vmatprep.subr.mxu0 0.0
    %6026 = vmatpush1.msra.mxu0 %v6009
    %6027 = vmatprep.subr.mxu0 0.0
    %6028 = vmatpush1.msra.mxu0 %v6010
    %6029 = vmatprep.subr.mxu0 0.0
    %6030 = vmatpush1.msra.mxu0 %v6011
    %6031 = vmatprep.subr.mxu0 0.0
    %6032 = vmatpush1.msra.mxu0 %v6012
    %6033 = vmatprep.subr.mxu0 0.0
    %6034 = vmatpush1.msra.mxu0 %v6013
    %6035 = vmatprep.subr.mxu0 0.0
    %6036 = vmatpush1.msra.mxu0 %v6014
    %6037 = vmatprep.subr.mxu0 0.0
    %6038 = vmatpush1.msra.mxu0 %v6015
    %6039 = vmatprep.subr.mxu0 0.0
    %6040 = vmatpush1.msra.mxu0 %v6016
    %6041 = vmatprep.subr.mxu0 0.0
    %6042 = vmatpush1.msra.mxu0 %v6017
    %6043 = vmatprep.subr.mxu0 0.0
    %6044 = vmatpush1.msra.mxu0 %v6018
    %6045 = vmatprep.subr.mxu0 0.0
    %6046 = vmatpush1.msra.mxu0 %v6019
    %6047 = vmatprep.subr.mxu0 0.0
    %6048 = vmatpush1.msra.mxu0 %v6020
    %6049 = vmatprep.subr.mxu0 0.0
    %6050 = vmatpush1.msra.mxu0 %v6021
    %6051 = vmatprep.subr.mxu0 0.0
    %6052 = vmatpush1.msra.mxu0 %v6022
    %6053 = vmatprep.subr.mxu0 0.0
    %6054 = vmatpush1.msra.mxu0 %v6023
    %6055 = vmatprep.subr.mxu0 0.0
    %6056 = vmatpush1.msra.mxu0 %v6024
    %6057 = vmatprep.subr.mxu0 0.0
    %6058 = vmatpush1.msra.mxu0 0.0
    %6059 = vmatprep.subr.mxu0 0.0
    %6060 = vmatpush1.msra.mxu0 0.0
    %6061 = vmatprep.subr.mxu0 0.0
    %6062 = vmatpush1.msra.mxu0 0.0
    %6063 = vmatprep.subr.mxu0 0.0
    %6064 = vmatpush1.msra.mxu0 0.0
    %6065 = vmatprep.subr.mxu0 0.0
    %6066 = vmatpush1.msra.mxu0 0.0
    %6067 = vmatprep.subr.mxu0 0.0
    %6068 = vmatpush1.msra.mxu0 0.0
    %6069 = vmatprep.subr.mxu0 0.0
    %6070 = vmatpush1.msra.mxu0 0.0
    %6071 = vmatprep.subr.mxu0 0.0
    %6072 = vmatpush1.msra.mxu0 0.0
    %6073 = vmatprep.subr.mxu0 0.0
    %6074 = vmatpush1.msra.mxu0 0.0
    %6075 = vmatprep.subr.mxu0 0.0
    %6076 = vmatpush1.msra.mxu0 0.0
    %6077 = vmatprep.subr.mxu0 0.0
    %6078 = vmatpush1.msra.mxu0 0.0
    %6079 = vmatprep.subr.mxu0 0.0
    %6080 = vmatpush1.msra.mxu0 0.0
    %6081 = vmatprep.subr.mxu0 0.0
    %6082 = vmatpush1.msra.mxu0 0.0
    %6083 = vmatprep.subr.mxu0 0.0
    %6084 = vmatpush1.msra.mxu0 0.0
    %6085 = vmatprep.subr.mxu0 0.0
    %6086 = vmatpush1.msra.mxu0 0.0
    %6087 = vmatprep.subr.mxu0 0.0
    %6088 = vmatpush1.msra.mxu0 0.0
    %6089 = vmatprep.mubr.f32.mxu0 0.0
    %6090 = vmatmul.mubr.f32.gmra.mrb[0].mxu0 %v5992
    %v6091 = vpop.f32.mrb[0].mxu0
    %v6092 = vadd.f32 0.0, %v6091
    %v6093 = vpop.f32.mrb[0].mxu0
    %6094 = vmatprep.mubr.f32.mxu0 0.0
    %6095 = vmatmul.mubr.f32.gmra.mrb[0].mxu0 %v5993
    %v6096 = vpop.f32.mrb[0].mxu0
    %v6097 = vadd.f32 0.0, %v6096
    %v6098 = vpop.f32.mrb[0].mxu0
    %6099 = vmatprep.mubr.f32.mxu0 0.0
    %6100 = vmatmul.mubr.f32.gmra.mrb[0].mxu0 %v5994
    %v6101 = vpop.f32.mrb[0].mxu0
    %v6102 = vadd.f32 0.0, %v6101
    %v6103 = vpop.f32.mrb[0].mxu0
    %6104 = vmatprep.mubr.f32.mxu0 0.0
    %6105 = vmatmul.mubr.f32.gmra.mrb[0].mxu0 %v5995
    %v6106 = vpop.f32.mrb[0].mxu0
    %v6107 = vadd.f32 0.0, %v6106
    %v6108 = vpop.f32.mrb[0].mxu0
    %6109 = vmatprep.mubr.f32.mxu0 0.0
    %6110 = vmatmul.mubr.f32.gmra.mrb[0].mxu0 %v5996
    %v6111 = vpop.f32.mrb[0].mxu0
    %v6112 = vadd.f32 0.0, %v6111
    %v6113 = vpop.f32.mrb[0].mxu0
    %6114 = vmatprep.mubr.f32.mxu0 0.0
    %6115 = vmatmul.mubr.f32.gmra.mrb[0].mxu0 %v5997
    %v6116 = vpop.f32.mrb[0].mxu0
    %v6117 = vadd.f32 0.0, %v6116
    %v6118 = vpop.f32.mrb[0].mxu0
    %6119 = vmatprep.mubr.f32.mxu0 0.0
    %6120 = vmatmul.mubr.f32.gmra.mrb[0].mxu0 %v5998
    %v6121 = vpop.f32.mrb[0].mxu0
    %v6122 = vadd.f32 0.0, %v6121
    %v6123 = vpop.f32.mrb[0].mxu0
    %6124 = vmatprep.mubr.f32.mxu0 0.0
    %6125 = vmatmul.mubr.f32.gmra.mrb[0].mxu0 %v5999
    %v6126 = vpop.f32.mrb[0].mxu0
    %v6127 = vadd.f32 0.0, %v6126
    %v6128 = vpop.f32.mrb[0].mxu0
    %6129 = vmatprep.mubr.f32.mxu0 0.0
    %6130 = vmatmul.mubr.f32.gmra.mrb[0].mxu0 %v6000
    %v6131 = vpop.f32.mrb[0].mxu0
    %v6132 = vadd.f32 0.0, %v6131
    %v6133 = vpop.f32.mrb[0].mxu0
    %6134 = vmatprep.mubr.f32.mxu0 0.0
    %6135 = vmatmul.mubr.f32.gmra.mrb[0].mxu0 %v6001
    %v6136 = vpop.f32.mrb[0].mxu0
    %v6137 = vadd.f32 0.0, %v6136
    %v6138 = vpop.f32.mrb[0].mxu0
    %6139 = vmatprep.mubr.f32.mxu0 0.0
    %6140 = vmatmul.mubr.f32.gmra.mrb[0].mxu0 %v6002
    %v6141 = vpop.f32.mrb[0].mxu0
    %v6142 = vadd.f32 0.0, %v6141
    %v6143 = vpop.f32.mrb[0].mxu0
    %6144 = vmatprep.mubr.f32.mxu0 0.0
    %6145 = vmatmul.mubr.f32.gmra.mrb[0].mxu0 %v6003
    %v6146 = vpop.f32.mrb[0].mxu0
    %v6147 = vadd.f32 0.0, %v6146
    %v6148 = vpop.f32.mrb[0].mxu0
    %6149 = vmatprep.mubr.f32.mxu0 0.0
    %6150 = vmatmul.mubr.f32.gmra.mrb[0].mxu0 %v6004
    %v6151 = vpop.f32.mrb[0].mxu0
    %v6152 = vadd.f32 0.0, %v6151
    %v6153 = vpop.f32.mrb[0].mxu0
    %6154 = vmatprep.mubr.f32.mxu0 0.0
    %6155 = vmatmul.mubr.f32.gmra.mrb[0].mxu0 %v6005
    %v6156 = vpop.f32.mrb[0].mxu0
    %v6157 = vadd.f32 0.0, %v6156
    %v6158 = vpop.f32.mrb[0].mxu0
    %6159 = vmatprep.mubr.f32.mxu0 0.0
    %6160 = vmatmul.mubr.f32.gmra.mrb[0].mxu0 %v6006
    %v6161 = vpop.f32.mrb[0].mxu0
    %v6162 = vadd.f32 0.0, %v6161
    %v6163 = vpop.f32.mrb[0].mxu0
    %6164 = vmatprep.mubr.f32.mxu0 0.0
    %6165 = vmatmul.mubr.f32.gmra.mrb[0].mxu0 %v6007
    %v6166 = vpop.f32.mrb[0].mxu0
    %v6167 = vadd.f32 0.0, %v6166
    %v6168 = vpop.f32.mrb[0].mxu0
    %6169 = vdwg.mxu0
    %v6170 = vadd.f32 %v5976, %v6092
    %v6171 = vadd.f32 %v5977, %v6097
    %v6172 = vadd.f32 %v5978, %v6102
    %v6173 = vadd.f32 %v5979, %v6107
    %v6174 = vadd.f32 %v5980, %v6112
    %v6175 = vadd.f32 %v5981, %v6117
    %v6176 = vadd.f32 %v5982, %v6122
    %v6177 = vadd.f32 %v5983, %v6127
    %v6178 = vadd.f32 %v5984, %v6132
    %v6179 = vadd.f32 %v5985, %v6137
    %v6180 = vadd.f32 %v5986, %v6142
    %v6181 = vadd.f32 %v5987, %v6147
    %v6182 = vadd.f32 %v5988, %v6152
    %v6183 = vadd.f32 %v5989, %v6157
    %v6184 = vadd.f32 %v5990, %v6162
    %v6185 = vadd.f32 %v5991, %v6167
    %v6186 = vld [vmem:[%s5603 + $0x3] sm:$0xff]
    %v6187 = vld [vmem:[%s5603 + $0x13] sm:$0xff]
    %v6188 = vld [vmem:[%s5603 + $0x23] sm:$0xff]
    %v6189 = vld [vmem:[%s5603 + $0x33] sm:$0xff]
    %v6190 = vld [vmem:[%s5603 + $0x43] sm:$0xff]
    %v6191 = vld [vmem:[%s5603 + $0x53] sm:$0xff]
    %v6192 = vld [vmem:[%s5603 + $0x63] sm:$0xff]
    %v6193 = vld [vmem:[%s5603 + $0x73] sm:$0xff]
    %v6194 = vld [vmem:[%s5603 + $0xc3] sm:$0xff]
    %v6195 = vld [vmem:[%s5603 + $0xd3] sm:$0xff]
    %v6196 = vld [vmem:[%s5603 + $0xe3] sm:$0xff]
    %v6197 = vld [vmem:[%s5603 + $0xf3] sm:$0xff]
    %v6198 = vld [vmem:[%s5603 + $0x103] sm:$0xff]
    %v6199 = vld [vmem:[%s5603 + $0x113] sm:$0xff]
    %v6200 = vld [vmem:[%s5603 + $0x123] sm:$0xff]
    %v6201 = vld [vmem:[%s5603 + $0x133] sm:$0xff]
    %s6202 = scalar_lea.vmem %s3, 2304
    %v6203 = vld [vmem:[%s6202] sm:$0xff]
    %v6204 = vld [vmem:[%s6202 + $0x8] sm:$0xff]
    %v6205 = vld [vmem:[%s6202 + $0x10] sm:$0xff]
    %v6206 = vld [vmem:[%s6202 + $0x18] sm:$0xff]
    %v6207 = vld [vmem:[%s6202 + $0x20] sm:$0xff]
    %v6208 = vld [vmem:[%s6202 + $0x28] sm:$0xff]
    %v6209 = vld [vmem:[%s6202 + $0x30] sm:$0xff]
    %v6210 = vld [vmem:[%s6202 + $0x38] sm:$0xff]
    %v6211 = vld [vmem:[%s6202 + $0x40] sm:$0xff]
    %v6212 = vld [vmem:[%s6202 + $0x48] sm:$0xff]
    %v6213 = vld [vmem:[%s6202 + $0x50] sm:$0xff]
    %v6214 = vld [vmem:[%s6202 + $0x58] sm:$0xff]
    %v6215 = vld [vmem:[%s6202 + $0x60] sm:$0xff]
    %v6216 = vld [vmem:[%s6202 + $0x68] sm:$0xff]
    %v6217 = vld [vmem:[%s6202 + $0x70] sm:$0xff]
    %v6218 = vld [vmem:[%s6202 + $0x78] sm:$0xff]
    %6219 = vmatprep.subr.mxu0 0.0
    %6220 = vmatpush1.msra.mxu0 %v6203
    %6221 = vmatprep.subr.mxu0 0.0
    %6222 = vmatpush1.msra.mxu0 %v6204
    %6223 = vmatprep.subr.mxu0 0.0
    %6224 = vmatpush1.msra.mxu0 %v6205
    %6225 = vmatprep.subr.mxu0 0.0
    %6226 = vmatpush1.msra.mxu0 %v6206
    %6227 = vmatprep.subr.mxu0 0.0
    %6228 = vmatpush1.msra.mxu0 %v6207
    %6229 = vmatprep.subr.mxu0 0.0
    %6230 = vmatpush1.msra.mxu0 %v6208
    %6231 = vmatprep.subr.mxu0 0.0
    %6232 = vmatpush1.msra.mxu0 %v6209
    %6233 = vmatprep.subr.mxu0 0.0
    %6234 = vmatpush1.msra.mxu0 %v6210
    %6235 = vmatprep.subr.mxu0 0.0
    %6236 = vmatpush1.msra.mxu0 %v6211
    %6237 = vmatprep.subr.mxu0 0.0
    %6238 = vmatpush1.msra.mxu0 %v6212
    %6239 = vmatprep.subr.mxu0 0.0
    %6240 = vmatpush1.msra.mxu0 %v6213
    %6241 = vmatprep.subr.mxu0 0.0
    %6242 = vmatpush1.msra.mxu0 %v6214
    %6243 = vmatprep.subr.mxu0 0.0
    %6244 = vmatpush1.msra.mxu0 %v6215
    %6245 = vmatprep.subr.mxu0 0.0
    %6246 = vmatpush1.msra.mxu0 %v6216
    %6247 = vmatprep.subr.mxu0 0.0
    %6248 = vmatpush1.msra.mxu0 %v6217
    %6249 = vmatprep.subr.mxu0 0.0
    %6250 = vmatpush1.msra.mxu0 %v6218
    %6251 = vmatprep.subr.mxu0 0.0
    %6252 = vmatpush1.msra.mxu0 0.0
    %6253 = vmatprep.subr.mxu0 0.0
    %6254 = vmatpush1.msra.mxu0 0.0
    %6255 = vmatprep.subr.mxu0 0.0
    %6256 = vmatpush1.msra.mxu0 0.0
    %6257 = vmatprep.subr.mxu0 0.0
    %6258 = vmatpush1.msra.mxu0 0.0
    %6259 = vmatprep.subr.mxu0 0.0
    %6260 = vmatpush1.msra.mxu0 0.0
    %6261 = vmatprep.subr.mxu0 0.0
    %6262 = vmatpush1.msra.mxu0 0.0
    %6263 = vmatprep.subr.mxu0 0.0
    %6264 = vmatpush1.msra.mxu0 0.0
    %6265 = vmatprep.subr.mxu0 0.0
    %6266 = vmatpush1.msra.mxu0 0.0
    %6267 = vmatprep.subr.mxu0 0.0
    %6268 = vmatpush1.msra.mxu0 0.0
    %6269 = vmatprep.subr.mxu0 0.0
    %6270 = vmatpush1.msra.mxu0 0.0
    %6271 = vmatprep.subr.mxu0 0.0
    %6272 = vmatpush1.msra.mxu0 0.0
    %6273 = vmatprep.subr.mxu0 0.0
    %6274 = vmatpush1.msra.mxu0 0.0
    %6275 = vmatprep.subr.mxu0 0.0
    %6276 = vmatpush1.msra.mxu0 0.0
    %6277 = vmatprep.subr.mxu0 0.0
    %6278 = vmatpush1.msra.mxu0 0.0
    %6279 = vmatprep.subr.mxu0 0.0
    %6280 = vmatpush1.msra.mxu0 0.0
    %6281 = vmatprep.subr.mxu0 0.0
    %6282 = vmatpush1.msra.mxu0 0.0
    %6283 = vmatprep.mubr.f32.mxu0 0.0
    %6284 = vmatmul.mubr.f32.gmra.mrb[0].mxu0 %v6186
    %v6285 = vpop.f32.mrb[0].mxu0
    %v6286 = vadd.f32 0.0, %v6285
    %v6287 = vpop.f32.mrb[0].mxu0
    %6288 = vmatprep.mubr.f32.mxu0 0.0
    %6289 = vmatmul.mubr.f32.gmra.mrb[0].mxu0 %v6187
    %v6290 = vpop.f32.mrb[0].mxu0
    %v6291 = vadd.f32 0.0, %v6290
    %v6292 = vpop.f32.mrb[0].mxu0
    %6293 = vmatprep.mubr.f32.mxu0 0.0
    %6294 = vmatmul.mubr.f32.gmra.mrb[0].mxu0 %v6188
    %v6295 = vpop.f32.mrb[0].mxu0
    %v6296 = vadd.f32 0.0, %v6295
    %v6297 = vpop.f32.mrb[0].mxu0
    %6298 = vmatprep.mubr.f32.mxu0 0.0
    %6299 = vmatmul.mubr.f32.gmra.mrb[0].mxu0 %v6189
    %v6300 = vpop.f32.mrb[0].mxu0
    %v6301 = vadd.f32 0.0, %v6300
    %v6302 = vpop.f32.mrb[0].mxu0
    %6303 = vmatprep.mubr.f32.mxu0 0.0
    %6304 = vmatmul.mubr.f32.gmra.mrb[0].mxu0 %v6190
    %v6305 = vpop.f32.mrb[0].mxu0
    %v6306 = vadd.f32 0.0, %v6305
    %v6307 = vpop.f32.mrb[0].mxu0
    %6308 = vmatprep.mubr.f32.mxu0 0.0
    %6309 = vmatmul.mubr.f32.gmra.mrb[0].mxu0 %v6191
    %v6310 = vpop.f32.mrb[0].mxu0
    %v6311 = vadd.f32 0.0, %v6310
    %v6312 = vpop.f32.mrb[0].mxu0
    %6313 = vmatprep.mubr.f32.mxu0 0.0
    %6314 = vmatmul.mubr.f32.gmra.mrb[0].mxu0 %v6192
    %v6315 = vpop.f32.mrb[0].mxu0
    %v6316 = vadd.f32 0.0, %v6315
    %v6317 = vpop.f32.mrb[0].mxu0
    %6318 = vmatprep.mubr.f32.mxu0 0.0
    %6319 = vmatmul.mubr.f32.gmra.mrb[0].mxu0 %v6193
    %v6320 = vpop.f32.mrb[0].mxu0
    %v6321 = vadd.f32 0.0, %v6320
    %v6322 = vpop.f32.mrb[0].mxu0
    %6323 = vmatprep.mubr.f32.mxu0 0.0
    %6324 = vmatmul.mubr.f32.gmra.mrb[0].mxu0 %v6194
    %v6325 = vpop.f32.mrb[0].mxu0
    %v6326 = vadd.f32 0.0, %v6325
    %v6327 = vpop.f32.mrb[0].mxu0
    %6328 = vmatprep.mubr.f32.mxu0 0.0
    %6329 = vmatmul.mubr.f32.gmra.mrb[0].mxu0 %v6195
    %v6330 = vpop.f32.mrb[0].mxu0
    %v6331 = vadd.f32 0.0, %v6330
    %v6332 = vpop.f32.mrb[0].mxu0
    %6333 = vmatprep.mubr.f32.mxu0 0.0
    %6334 = vmatmul.mubr.f32.gmra.mrb[0].mxu0 %v6196
    %v6335 = vpop.f32.mrb[0].mxu0
    %v6336 = vadd.f32 0.0, %v6335
    %v6337 = vpop.f32.mrb[0].mxu0
    %6338 = vmatprep.mubr.f32.mxu0 0.0
    %6339 = vmatmul.mubr.f32.gmra.mrb[0].mxu0 %v6197
    %v6340 = vpop.f32.mrb[0].mxu0
    %v6341 = vadd.f32 0.0, %v6340
    %v6342 = vpop.f32.mrb[0].mxu0
    %6343 = vmatprep.mubr.f32.mxu0 0.0
    %6344 = vmatmul.mubr.f32.gmra.mrb[0].mxu0 %v6198
    %v6345 = vpop.f32.mrb[0].mxu0
    %v6346 = vadd.f32 0.0, %v6345
    %v6347 = vpop.f32.mrb[0].mxu0
    %6348 = vmatprep.mubr.f32.mxu0 0.0
    %6349 = vmatmul.mubr.f32.gmra.mrb[0].mxu0 %v6199
    %v6350 = vpop.f32.mrb[0].mxu0
    %v6351 = vadd.f32 0.0, %v6350
    %v6352 = vpop.f32.mrb[0].mxu0
    %6353 = vmatprep.mubr.f32.mxu0 0.0
    %6354 = vmatmul.mubr.f32.gmra.mrb[0].mxu0 %v6200
    %v6355 = vpop.f32.mrb[0].mxu0
    %v6356 = vadd.f32 0.0, %v6355
    %v6357 = vpop.f32.mrb[0].mxu0
    %6358 = vmatprep.mubr.f32.mxu0 0.0
    %6359 = vmatmul.mubr.f32.gmra.mrb[0].mxu0 %v6201
    %v6360 = vpop.f32.mrb[0].mxu0
    %v6361 = vadd.f32 0.0, %v6360
    %v6362 = vpop.f32.mrb[0].mxu0
    %6363 = vdwg.mxu0
    %v6364 = vadd.f32 %v6170, %v6286
    %v6365 = vadd.f32 %v6171, %v6291
    %v6366 = vadd.f32 %v6172, %v6296
    %v6367 = vadd.f32 %v6173, %v6301
    %v6368 = vadd.f32 %v6174, %v6306
    %v6369 = vadd.f32 %v6175, %v6311
    %v6370 = vadd.f32 %v6176, %v6316
    %v6371 = vadd.f32 %v6177, %v6321
    %v6372 = vadd.f32 %v6178, %v6326
    %v6373 = vadd.f32 %v6179, %v6331
    %v6374 = vadd.f32 %v6180, %v6336
    %v6375 = vadd.f32 %v6181, %v6341
    %v6376 = vadd.f32 %v6182, %v6346
    %v6377 = vadd.f32 %v6183, %v6351
    %v6378 = vadd.f32 %v6184, %v6356
    %v6379 = vadd.f32 %v6185, %v6361
    %v6380 = vld [vmem:[%s5603 + $0x4] sm:$0xff]
    %v6381 = vld [vmem:[%s5603 + $0x14] sm:$0xff]
    %v6382 = vld [vmem:[%s5603 + $0x24] sm:$0xff]
    %v6383 = vld [vmem:[%s5603 + $0x34] sm:$0xff]
    %v6384 = vld [vmem:[%s5603 + $0x44] sm:$0xff]
    %v6385 = vld [vmem:[%s5603 + $0x54] sm:$0xff]
    %v6386 = vld [vmem:[%s5603 + $0x64] sm:$0xff]
    %v6387 = vld [vmem:[%s5603 + $0x74] sm:$0xff]
    %v6388 = vld [vmem:[%s5603 + $0xc4] sm:$0xff]
    %v6389 = vld [vmem:[%s5603 + $0xd4] sm:$0xff]
    %v6390 = vld [vmem:[%s5603 + $0xe4] sm:$0xff]
    %v6391 = vld [vmem:[%s5603 + $0xf4] sm:$0xff]
    %v6392 = vld [vmem:[%s5603 + $0x104] sm:$0xff]
    %v6393 = vld [vmem:[%s5603 + $0x114] sm:$0xff]
    %v6394 = vld [vmem:[%s5603 + $0x124] sm:$0xff]
    %v6395 = vld [vmem:[%s5603 + $0x134] sm:$0xff]
    %s6396 = scalar_lea.vmem %s3, 2432
    %v6397 = vld [vmem:[%s6396] sm:$0xff]
    %v6398 = vld [vmem:[%s6396 + $0x8] sm:$0xff]
    %v6399 = vld [vmem:[%s6396 + $0x10] sm:$0xff]
    %v6400 = vld [vmem:[%s6396 + $0x18] sm:$0xff]
    %v6401 = vld [vmem:[%s6396 + $0x20] sm:$0xff]
    %v6402 = vld [vmem:[%s6396 + $0x28] sm:$0xff]
    %v6403 = vld [vmem:[%s6396 + $0x30] sm:$0xff]
    %v6404 = vld [vmem:[%s6396 + $0x38] sm:$0xff]
    %v6405 = vld [vmem:[%s6396 + $0x40] sm:$0xff]
    %v6406 = vld [vmem:[%s6396 + $0x48] sm:$0xff]
    %v6407 = vld [vmem:[%s6396 + $0x50] sm:$0xff]
    %v6408 = vld [vmem:[%s6396 + $0x58] sm:$0xff]
    %v6409 = vld [vmem:[%s6396 + $0x60] sm:$0xff]
    %v6410 = vld [vmem:[%s6396 + $0x68] sm:$0xff]
    %v6411 = vld [vmem:[%s6396 + $0x70] sm:$0xff]
    %v6412 = vld [vmem:[%s6396 + $0x78] sm:$0xff]
    %6413 = vmatprep.subr.mxu0 0.0
    %6414 = vmatpush1.msra.mxu0 %v6397
    %6415 = vmatprep.subr.mxu0 0.0
    %6416 = vmatpush1.msra.mxu0 %v6398
    %6417 = vmatprep.subr.mxu0 0.0
    %6418 = vmatpush1.msra.mxu0 %v6399
    %6419 = vmatprep.subr.mxu0 0.0
    %6420 = vmatpush1.msra.mxu0 %v6400
    %6421 = vmatprep.subr.mxu0 0.0
    %6422 = vmatpush1.msra.mxu0 %v6401
    %6423 = vmatprep.subr.mxu0 0.0
    %6424 = vmatpush1.msra.mxu0 %v6402
    %6425 = vmatprep.subr.mxu0 0.0
    %6426 = vmatpush1.msra.mxu0 %v6403
    %6427 = vmatprep.subr.mxu0 0.0
    %6428 = vmatpush1.msra.mxu0 %v6404
    %6429 = vmatprep.subr.mxu0 0.0
    %6430 = vmatpush1.msra.mxu0 %v6405
    %6431 = vmatprep.subr.mxu0 0.0
    %6432 = vmatpush1.msra.mxu0 %v6406
    %6433 = vmatprep.subr.mxu0 0.0
    %6434 = vmatpush1.msra.mxu0 %v6407
    %6435 = vmatprep.subr.mxu0 0.0
    %6436 = vmatpush1.msra.mxu0 %v6408
    %6437 = vmatprep.subr.mxu0 0.0
    %6438 = vmatpush1.msra.mxu0 %v6409
    %6439 = vmatprep.subr.mxu0 0.0
    %6440 = vmatpush1.msra.mxu0 %v6410
    %6441 = vmatprep.subr.mxu0 0.0
    %6442 = vmatpush1.msra.mxu0 %v6411
    %6443 = vmatprep.subr.mxu0 0.0
    %6444 = vmatpush1.msra.mxu0 %v6412
    %6445 = vmatprep.subr.mxu0 0.0
    %6446 = vmatpush1.msra.mxu0 0.0
    %6447 = vmatprep.subr.mxu0 0.0
    %6448 = vmatpush1.msra.mxu0 0.0
    %6449 = vmatprep.subr.mxu0 0.0
    %6450 = vmatpush1.msra.mxu0 0.0
    %6451 = vmatprep.subr.mxu0 0.0
    %6452 = vmatpush1.msra.mxu0 0.0
    %6453 = vmatprep.subr.mxu0 0.0
    %6454 = vmatpush1.msra.mxu0 0.0
    %6455 = vmatprep.subr.mxu0 0.0
    %6456 = vmatpush1.msra.mxu0 0.0
    %6457 = vmatprep.subr.mxu0 0.0
    %6458 = vmatpush1.msra.mxu0 0.0
    %6459 = vmatprep.subr.mxu0 0.0
    %6460 = vmatpush1.msra.mxu0 0.0
    %6461 = vmatprep.subr.mxu0 0.0
    %6462 = vmatpush1.msra.mxu0 0.0
    %6463 = vmatprep.subr.mxu0 0.0
    %6464 = vmatpush1.msra.mxu0 0.0
    %6465 = vmatprep.subr.mxu0 0.0
    %6466 = vmatpush1.msra.mxu0 0.0
    %6467 = vmatprep.subr.mxu0 0.0
    %6468 = vmatpush1.msra.mxu0 0.0
    %6469 = vmatprep.subr.mxu0 0.0
    %6470 = vmatpush1.msra.mxu0 0.0
    %6471 = vmatprep.subr.mxu0 0.0
    %6472 = vmatpush1.msra.mxu0 0.0
    %6473 = vmatprep.subr.mxu0 0.0
    %6474 = vmatpush1.msra.mxu0 0.0
    %6475 = vmatprep.subr.mxu0 0.0
    %6476 = vmatpush1.msra.mxu0 0.0
    %6477 = vmatprep.mubr.f32.mxu0 0.0
    %6478 = vmatmul.mubr.f32.gmra.mrb[0].mxu0 %v6380
    %v6479 = vpop.f32.mrb[0].mxu0
    %v6480 = vadd.f32 0.0, %v6479
    %v6481 = vpop.f32.mrb[0].mxu0
    %6482 = vmatprep.mubr.f32.mxu0 0.0
    %6483 = vmatmul.mubr.f32.gmra.mrb[0].mxu0 %v6381
    %v6484 = vpop.f32.mrb[0].mxu0
    %v6485 = vadd.f32 0.0, %v6484
    %v6486 = vpop.f32.mrb[0].mxu0
    %6487 = vmatprep.mubr.f32.mxu0 0.0
    %6488 = vmatmul.mubr.f32.gmra.mrb[0].mxu0 %v6382
    %v6489 = vpop.f32.mrb[0].mxu0
    %v6490 = vadd.f32 0.0, %v6489
    %v6491 = vpop.f32.mrb[0].mxu0
    %6492 = vmatprep.mubr.f32.mxu0 0.0
    %6493 = vmatmul.mubr.f32.gmra.mrb[0].mxu0 %v6383
    %v6494 = vpop.f32.mrb[0].mxu0
    %v6495 = vadd.f32 0.0, %v6494
    %v6496 = vpop.f32.mrb[0].mxu0
    %6497 = vmatprep.mubr.f32.mxu0 0.0
    %6498 = vmatmul.mubr.f32.gmra.mrb[0].mxu0 %v6384
    %v6499 = vpop.f32.mrb[0].mxu0
    %v6500 = vadd.f32 0.0, %v6499
    %v6501 = vpop.f32.mrb[0].mxu0
    %6502 = vmatprep.mubr.f32.mxu0 0.0
    %6503 = vmatmul.mubr.f32.gmra.mrb[0].mxu0 %v6385
    %v6504 = vpop.f32.mrb[0].mxu0
    %v6505 = vadd.f32 0.0, %v6504
    %v6506 = vpop.f32.mrb[0].mxu0
    %6507 = vmatprep.mubr.f32.mxu0 0.0
    %6508 = vmatmul.mubr.f32.gmra.mrb[0].mxu0 %v6386
    %v6509 = vpop.f32.mrb[0].mxu0
    %v6510 = vadd.f32 0.0, %v6509
    %v6511 = vpop.f32.mrb[0].mxu0
    %6512 = vmatprep.mubr.f32.mxu0 0.0
    %6513 = vmatmul.mubr.f32.gmra.mrb[0].mxu0 %v6387
    %v6514 = vpop.f32.mrb[0].mxu0
    %v6515 = vadd.f32 0.0, %v6514
    %v6516 = vpop.f32.mrb[0].mxu0
    %6517 = vmatprep.mubr.f32.mxu0 0.0
    %6518 = vmatmul.mubr.f32.gmra.mrb[0].mxu0 %v6388
    %v6519 = vpop.f32.mrb[0].mxu0
    %v6520 = vadd.f32 0.0, %v6519
    %v6521 = vpop.f32.mrb[0].mxu0
    %6522 = vmatprep.mubr.f32.mxu0 0.0
    %6523 = vmatmul.mubr.f32.gmra.mrb[0].mxu0 %v6389
    %v6524 = vpop.f32.mrb[0].mxu0
    %v6525 = vadd.f32 0.0, %v6524
    %v6526 = vpop.f32.mrb[0].mxu0
    %6527 = vmatprep.mubr.f32.mxu0 0.0
    %6528 = vmatmul.mubr.f32.gmra.mrb[0].mxu0 %v6390
    %v6529 = vpop.f32.mrb[0].mxu0
    %v6530 = vadd.f32 0.0, %v6529
    %v6531 = vpop.f32.mrb[0].mxu0
    %6532 = vmatprep.mubr.f32.mxu0 0.0
    %6533 = vmatmul.mubr.f32.gmra.mrb[0].mxu0 %v6391
    %v6534 = vpop.f32.mrb[0].mxu0
    %v6535 = vadd.f32 0.0, %v6534
    %v6536 = vpop.f32.mrb[0].mxu0
    %6537 = vmatprep.mubr.f32.mxu0 0.0
    %6538 = vmatmul.mubr.f32.gmra.mrb[0].mxu0 %v6392
    %v6539 = vpop.f32.mrb[0].mxu0
    %v6540 = vadd.f32 0.0, %v6539
    %v6541 = vpop.f32.mrb[0].mxu0
    %6542 = vmatprep.mubr.f32.mxu0 0.0
    %6543 = vmatmul.mubr.f32.gmra.mrb[0].mxu0 %v6393
    %v6544 = vpop.f32.mrb[0].mxu0
    %v6545 = vadd.f32 0.0, %v6544
    %v6546 = vpop.f32.mrb[0].mxu0
    %6547 = vmatprep.mubr.f32.mxu0 0.0
    %6548 = vmatmul.mubr.f32.gmra.mrb[0].mxu0 %v6394
    %v6549 = vpop.f32.mrb[0].mxu0
    %v6550 = vadd.f32 0.0, %v6549
    %v6551 = vpop.f32.mrb[0].mxu0
    %6552 = vmatprep.mubr.f32.mxu0 0.0
    %6553 = vmatmul.mubr.f32.gmra.mrb[0].mxu0 %v6395
    %v6554 = vpop.f32.mrb[0].mxu0
    %v6555 = vadd.f32 0.0, %v6554
    %v6556 = vpop.f32.mrb[0].mxu0
    %6557 = vdwg.mxu0
    %v6558 = vadd.f32 %v6364, %v6480
    %v6559 = vadd.f32 %v6365, %v6485
    %v6560 = vadd.f32 %v6366, %v6490
    %v6561 = vadd.f32 %v6367, %v6495
    %v6562 = vadd.f32 %v6368, %v6500
    %v6563 = vadd.f32 %v6369, %v6505
    %v6564 = vadd.f32 %v6370, %v6510
    %v6565 = vadd.f32 %v6371, %v6515
    %v6566 = vadd.f32 %v6372, %v6520
    %v6567 = vadd.f32 %v6373, %v6525
    %v6568 = vadd.f32 %v6374, %v6530
    %v6569 = vadd.f32 %v6375, %v6535
    %v6570 = vadd.f32 %v6376, %v6540
    %v6571 = vadd.f32 %v6377, %v6545
    %v6572 = vadd.f32 %v6378, %v6550
    %v6573 = vadd.f32 %v6379, %v6555
    %s6574 = scalar_lea.vmem [#allocation2], 64
    %v6575 = vld [vmem:[%s6574] sm:$0xff]
    %v6576 = vld [vmem:[%s6574 + $0x10] sm:$0xff]
    %v6577 = vld [vmem:[%s6574 + $0x20] sm:$0xff]
    %v6578 = vld [vmem:[%s6574 + $0x30] sm:$0xff]
    %v6579 = vld [vmem:[%s6574 + $0x40] sm:$0xff]
    %v6580 = vld [vmem:[%s6574 + $0x50] sm:$0xff]
    %v6581 = vld [vmem:[%s6574 + $0x60] sm:$0xff]
    %v6582 = vld [vmem:[%s6574 + $0x70] sm:$0xff]
    %v6583 = vld [vmem:[%s6574 + $0xc0] sm:$0xff]
    %v6584 = vld [vmem:[%s6574 + $0xd0] sm:$0xff]
    %v6585 = vld [vmem:[%s6574 + $0xe0] sm:$0xff]
    %v6586 = vld [vmem:[%s6574 + $0xf0] sm:$0xff]
    %v6587 = vld [vmem:[%s6574 + $0x100] sm:$0xff]
    %v6588 = vld [vmem:[%s6574 + $0x110] sm:$0xff]
    %v6589 = vld [vmem:[%s6574 + $0x120] sm:$0xff]
    %v6590 = vld [vmem:[%s6574 + $0x130] sm:$0xff]
    %s6591 = scalar_lea.vmem %s3, 2560
    %v6592 = vld [vmem:[%s6591] sm:$0xff]
    %v6593 = vld [vmem:[%s6591 + $0x8] sm:$0xff]
    %v6594 = vld [vmem:[%s6591 + $0x10] sm:$0xff]
    %v6595 = vld [vmem:[%s6591 + $0x18] sm:$0xff]
    %v6596 = vld [vmem:[%s6591 + $0x20] sm:$0xff]
    %v6597 = vld [vmem:[%s6591 + $0x28] sm:$0xff]
    %v6598 = vld [vmem:[%s6591 + $0x30] sm:$0xff]
    %v6599 = vld [vmem:[%s6591 + $0x38] sm:$0xff]
    %v6600 = vld [vmem:[%s6591 + $0x40] sm:$0xff]
    %v6601 = vld [vmem:[%s6591 + $0x48] sm:$0xff]
    %v6602 = vld [vmem:[%s6591 + $0x50] sm:$0xff]
    %v6603 = vld [vmem:[%s6591 + $0x58] sm:$0xff]
    %v6604 = vld [vmem:[%s6591 + $0x60] sm:$0xff]
    %v6605 = vld [vmem:[%s6591 + $0x68] sm:$0xff]
    %v6606 = vld [vmem:[%s6591 + $0x70] sm:$0xff]
    %v6607 = vld [vmem:[%s6591 + $0x78] sm:$0xff]
    %6608 = vmatprep.subr.mxu0 0.0
    %6609 = vmatpush1.msra.mxu0 %v6592
    %6610 = vmatprep.subr.mxu0 0.0
    %6611 = vmatpush1.msra.mxu0 %v6593
    %6612 = vmatprep.subr.mxu0 0.0
    %6613 = vmatpush1.msra.mxu0 %v6594
    %6614 = vmatprep.subr.mxu0 0.0
    %6615 = vmatpush1.msra.mxu0 %v6595
    %6616 = vmatprep.subr.mxu0 0.0
    %6617 = vmatpush1.msra.mxu0 %v6596
    %6618 = vmatprep.subr.mxu0 0.0
    %6619 = vmatpush1.msra.mxu0 %v6597
    %6620 = vmatprep.subr.mxu0 0.0
    %6621 = vmatpush1.msra.mxu0 %v6598
    %6622 = vmatprep.subr.mxu0 0.0
    %6623 = vmatpush1.msra.mxu0 %v6599
    %6624 = vmatprep.subr.mxu0 0.0
    %6625 = vmatpush1.msra.mxu0 %v6600
    %6626 = vmatprep.subr.mxu0 0.0
    %6627 = vmatpush1.msra.mxu0 %v6601
    %6628 = vmatprep.subr.mxu0 0.0
    %6629 = vmatpush1.msra.mxu0 %v6602
    %6630 = vmatprep.subr.mxu0 0.0
    %6631 = vmatpush1.msra.mxu0 %v6603
    %6632 = vmatprep.subr.mxu0 0.0
    %6633 = vmatpush1.msra.mxu0 %v6604
    %6634 = vmatprep.subr.mxu0 0.0
    %6635 = vmatpush1.msra.mxu0 %v6605
    %6636 = vmatprep.subr.mxu0 0.0
    %6637 = vmatpush1.msra.mxu0 %v6606
    %6638 = vmatprep.subr.mxu0 0.0
    %6639 = vmatpush1.msra.mxu0 %v6607
    %6640 = vmatprep.subr.mxu0 0.0
    %6641 = vmatpush1.msra.mxu0 0.0
    %6642 = vmatprep.subr.mxu0 0.0
    %6643 = vmatpush1.msra.mxu0 0.0
    %6644 = vmatprep.subr.mxu0 0.0
    %6645 = vmatpush1.msra.mxu0 0.0
    %6646 = vmatprep.subr.mxu0 0.0
    %6647 = vmatpush1.msra.mxu0 0.0
    %6648 = vmatprep.subr.mxu0 0.0
    %6649 = vmatpush1.msra.mxu0 0.0
    %6650 = vmatprep.subr.mxu0 0.0
    %6651 = vmatpush1.msra.mxu0 0.0
    %6652 = vmatprep.subr.mxu0 0.0
    %6653 = vmatpush1.msra.mxu0 0.0
    %6654 = vmatprep.subr.mxu0 0.0
    %6655 = vmatpush1.msra.mxu0 0.0
    %6656 = vmatprep.subr.mxu0 0.0
    %6657 = vmatpush1.msra.mxu0 0.0
    %6658 = vmatprep.subr.mxu0 0.0
    %6659 = vmatpush1.msra.mxu0 0.0
    %6660 = vmatprep.subr.mxu0 0.0
    %6661 = vmatpush1.msra.mxu0 0.0
    %6662 = vmatprep.subr.mxu0 0.0
    %6663 = vmatpush1.msra.mxu0 0.0
    %6664 = vmatprep.subr.mxu0 0.0
    %6665 = vmatpush1.msra.mxu0 0.0
    %6666 = vmatprep.subr.mxu0 0.0
    %6667 = vmatpush1.msra.mxu0 0.0
    %6668 = vmatprep.subr.mxu0 0.0
    %6669 = vmatpush1.msra.mxu0 0.0
    %6670 = vmatprep.subr.mxu0 0.0
    %6671 = vmatpush1.msra.mxu0 0.0
    %6672 = vmatprep.mubr.f32.mxu0 0.0
    %6673 = vmatmul.mubr.f32.gmra.mrb[0].mxu0 %v6575
    %v6674 = vpop.f32.mrb[0].mxu0
    %v6675 = vadd.f32 0.0, %v6674
    %v6676 = vpop.f32.mrb[0].mxu0
    %6677 = vmatprep.mubr.f32.mxu0 0.0
    %6678 = vmatmul.mubr.f32.gmra.mrb[0].mxu0 %v6576
    %v6679 = vpop.f32.mrb[0].mxu0
    %v6680 = vadd.f32 0.0, %v6679
    %v6681 = vpop.f32.mrb[0].mxu0
    %6682 = vmatprep.mubr.f32.mxu0 0.0
    %6683 = vmatmul.mubr.f32.gmra.mrb[0].mxu0 %v6577
    %v6684 = vpop.f32.mrb[0].mxu0
    %v6685 = vadd.f32 0.0, %v6684
    %v6686 = vpop.f32.mrb[0].mxu0
    %6687 = vmatprep.mubr.f32.mxu0 0.0
    %6688 = vmatmul.mubr.f32.gmra.mrb[0].mxu0 %v6578
    %v6689 = vpop.f32.mrb[0].mxu0
    %v6690 = vadd.f32 0.0, %v6689
    %v6691 = vpop.f32.mrb[0].mxu0
    %6692 = vmatprep.mubr.f32.mxu0 0.0
    %6693 = vmatmul.mubr.f32.gmra.mrb[0].mxu0 %v6579
    %v6694 = vpop.f32.mrb[0].mxu0
    %v6695 = vadd.f32 0.0, %v6694
    %v6696 = vpop.f32.mrb[0].mxu0
    %6697 = vmatprep.mubr.f32.mxu0 0.0
    %6698 = vmatmul.mubr.f32.gmra.mrb[0].mxu0 %v6580
    %v6699 = vpop.f32.mrb[0].mxu0
    %v6700 = vadd.f32 0.0, %v6699
    %v6701 = vpop.f32.mrb[0].mxu0
    %6702 = vmatprep.mubr.f32.mxu0 0.0
    %6703 = vmatmul.mubr.f32.gmra.mrb[0].mxu0 %v6581
    %v6704 = vpop.f32.mrb[0].mxu0
    %v6705 = vadd.f32 0.0, %v6704
    %v6706 = vpop.f32.mrb[0].mxu0
    %6707 = vmatprep.mubr.f32.mxu0 0.0
    %6708 = vmatmul.mubr.f32.gmra.mrb[0].mxu0 %v6582
    %v6709 = vpop.f32.mrb[0].mxu0
    %v6710 = vadd.f32 0.0, %v6709
    %v6711 = vpop.f32.mrb[0].mxu0
    %6712 = vmatprep.mubr.f32.mxu0 0.0
    %6713 = vmatmul.mubr.f32.gmra.mrb[0].mxu0 %v6583
    %v6714 = vpop.f32.mrb[0].mxu0
    %v6715 = vadd.f32 0.0, %v6714
    %v6716 = vpop.f32.mrb[0].mxu0
    %6717 = vmatprep.mubr.f32.mxu0 0.0
    %6718 = vmatmul.mubr.f32.gmra.mrb[0].mxu0 %v6584
    %v6719 = vpop.f32.mrb[0].mxu0
    %v6720 = vadd.f32 0.0, %v6719
    %v6721 = vpop.f32.mrb[0].mxu0
    %6722 = vmatprep.mubr.f32.mxu0 0.0
    %6723 = vmatmul.mubr.f32.gmra.mrb[0].mxu0 %v6585
    %v6724 = vpop.f32.mrb[0].mxu0
    %v6725 = vadd.f32 0.0, %v6724
    %v6726 = vpop.f32.mrb[0].mxu0
    %6727 = vmatprep.mubr.f32.mxu0 0.0
    %6728 = vmatmul.mubr.f32.gmra.mrb[0].mxu0 %v6586
    %v6729 = vpop.f32.mrb[0].mxu0
    %v6730 = vadd.f32 0.0, %v6729
    %v6731 = vpop.f32.mrb[0].mxu0
    %6732 = vmatprep.mubr.f32.mxu0 0.0
    %6733 = vmatmul.mubr.f32.gmra.mrb[0].mxu0 %v6587
    %v6734 = vpop.f32.mrb[0].mxu0
    %v6735 = vadd.f32 0.0, %v6734
    %v6736 = vpop.f32.mrb[0].mxu0
    %6737 = vmatprep.mubr.f32.mxu0 0.0
    %6738 = vmatmul.mubr.f32.gmra.mrb[0].mxu0 %v6588
    %v6739 = vpop.f32.mrb[0].mxu0
    %v6740 = vadd.f32 0.0, %v6739
    %v6741 = vpop.f32.mrb[0].mxu0
    %6742 = vmatprep.mubr.f32.mxu0 0.0
    %6743 = vmatmul.mubr.f32.gmra.mrb[0].mxu0 %v6589
    %v6744 = vpop.f32.mrb[0].mxu0
    %v6745 = vadd.f32 0.0, %v6744
    %v6746 = vpop.f32.mrb[0].mxu0
    %6747 = vmatprep.mubr.f32.mxu0 0.0
    %6748 = vmatmul.mubr.f32.gmra.mrb[0].mxu0 %v6590
    %v6749 = vpop.f32.mrb[0].mxu0
    %v6750 = vadd.f32 0.0, %v6749
    %v6751 = vpop.f32.mrb[0].mxu0
    %6752 = vdwg.mxu0
    %v6753 = vadd.f32 %v6558, %v6675
    %v6754 = vadd.f32 %v6559, %v6680
    %v6755 = vadd.f32 %v6560, %v6685
    %v6756 = vadd.f32 %v6561, %v6690
    %v6757 = vadd.f32 %v6562, %v6695
    %v6758 = vadd.f32 %v6563, %v6700
    %v6759 = vadd.f32 %v6564, %v6705
    %v6760 = vadd.f32 %v6565, %v6710
    %v6761 = vadd.f32 %v6566, %v6715
    %v6762 = vadd.f32 %v6567, %v6720
    %v6763 = vadd.f32 %v6568, %v6725
    %v6764 = vadd.f32 %v6569, %v6730
    %v6765 = vadd.f32 %v6570, %v6735
    %v6766 = vadd.f32 %v6571, %v6740
    %v6767 = vadd.f32 %v6572, %v6745
    %v6768 = vadd.f32 %v6573, %v6750
    %v6769 = vld [vmem:[%s6574 + $0x1] sm:$0xff]
    %v6770 = vld [vmem:[%s6574 + $0x11] sm:$0xff]
    %v6771 = vld [vmem:[%s6574 + $0x21] sm:$0xff]
    %v6772 = vld [vmem:[%s6574 + $0x31] sm:$0xff]
    %v6773 = vld [vmem:[%s6574 + $0x41] sm:$0xff]
    %v6774 = vld [vmem:[%s6574 + $0x51] sm:$0xff]
    %v6775 = vld [vmem:[%s6574 + $0x61] sm:$0xff]
    %v6776 = vld [vmem:[%s6574 + $0x71] sm:$0xff]
    %v6777 = vld [vmem:[%s6574 + $0xc1] sm:$0xff]
    %v6778 = vld [vmem:[%s6574 + $0xd1] sm:$0xff]
    %v6779 = vld [vmem:[%s6574 + $0xe1] sm:$0xff]
    %v6780 = vld [vmem:[%s6574 + $0xf1] sm:$0xff]
    %v6781 = vld [vmem:[%s6574 + $0x101] sm:$0xff]
    %v6782 = vld [vmem:[%s6574 + $0x111] sm:$0xff]
    %v6783 = vld [vmem:[%s6574 + $0x121] sm:$0xff]
    %v6784 = vld [vmem:[%s6574 + $0x131] sm:$0xff]
    %s6785 = scalar_lea.vmem %s3, 2688
    %v6786 = vld [vmem:[%s6785] sm:$0xff]
    %v6787 = vld [vmem:[%s6785 + $0x8] sm:$0xff]
    %v6788 = vld [vmem:[%s6785 + $0x10] sm:$0xff]
    %v6789 = vld [vmem:[%s6785 + $0x18] sm:$0xff]
    %v6790 = vld [vmem:[%s6785 + $0x20] sm:$0xff]
    %v6791 = vld [vmem:[%s6785 + $0x28] sm:$0xff]
    %v6792 = vld [vmem:[%s6785 + $0x30] sm:$0xff]
    %v6793 = vld [vmem:[%s6785 + $0x38] sm:$0xff]
    %v6794 = vld [vmem:[%s6785 + $0x40] sm:$0xff]
    %v6795 = vld [vmem:[%s6785 + $0x48] sm:$0xff]
    %v6796 = vld [vmem:[%s6785 + $0x50] sm:$0xff]
    %v6797 = vld [vmem:[%s6785 + $0x58] sm:$0xff]
    %v6798 = vld [vmem:[%s6785 + $0x60] sm:$0xff]
    %v6799 = vld [vmem:[%s6785 + $0x68] sm:$0xff]
    %v6800 = vld [vmem:[%s6785 + $0x70] sm:$0xff]
    %v6801 = vld [vmem:[%s6785 + $0x78] sm:$0xff]
    %6802 = vmatprep.subr.mxu0 0.0
    %6803 = vmatpush1.msra.mxu0 %v6786
    %6804 = vmatprep.subr.mxu0 0.0
    %6805 = vmatpush1.msra.mxu0 %v6787
    %6806 = vmatprep.subr.mxu0 0.0
    %6807 = vmatpush1.msra.mxu0 %v6788
    %6808 = vmatprep.subr.mxu0 0.0
    %6809 = vmatpush1.msra.mxu0 %v6789
    %6810 = vmatprep.subr.mxu0 0.0
    %6811 = vmatpush1.msra.mxu0 %v6790
    %6812 = vmatprep.subr.mxu0 0.0
    %6813 = vmatpush1.msra.mxu0 %v6791
    %6814 = vmatprep.subr.mxu0 0.0
    %6815 = vmatpush1.msra.mxu0 %v6792
    %6816 = vmatprep.subr.mxu0 0.0
    %6817 = vmatpush1.msra.mxu0 %v6793
    %6818 = vmatprep.subr.mxu0 0.0
    %6819 = vmatpush1.msra.mxu0 %v6794
    %6820 = vmatprep.subr.mxu0 0.0
    %6821 = vmatpush1.msra.mxu0 %v6795
    %6822 = vmatprep.subr.mxu0 0.0
    %6823 = vmatpush1.msra.mxu0 %v6796
    %6824 = vmatprep.subr.mxu0 0.0
    %6825 = vmatpush1.msra.mxu0 %v6797
    %6826 = vmatprep.subr.mxu0 0.0
    %6827 = vmatpush1.msra.mxu0 %v6798
    %6828 = vmatprep.subr.mxu0 0.0
    %6829 = vmatpush1.msra.mxu0 %v6799
    %6830 = vmatprep.subr.mxu0 0.0
    %6831 = vmatpush1.msra.mxu0 %v6800
    %6832 = vmatprep.subr.mxu0 0.0
    %6833 = vmatpush1.msra.mxu0 %v6801
    %6834 = vmatprep.subr.mxu0 0.0
    %6835 = vmatpush1.msra.mxu0 0.0
    %6836 = vmatprep.subr.mxu0 0.0
    %6837 = vmatpush1.msra.mxu0 0.0
    %6838 = vmatprep.subr.mxu0 0.0
    %6839 = vmatpush1.msra.mxu0 0.0
    %6840 = vmatprep.subr.mxu0 0.0
    %6841 = vmatpush1.msra.mxu0 0.0
    %6842 = vmatprep.subr.mxu0 0.0
    %6843 = vmatpush1.msra.mxu0 0.0
    %6844 = vmatprep.subr.mxu0 0.0
    %6845 = vmatpush1.msra.mxu0 0.0
    %6846 = vmatprep.subr.mxu0 0.0
    %6847 = vmatpush1.msra.mxu0 0.0
    %6848 = vmatprep.subr.mxu0 0.0
    %6849 = vmatpush1.msra.mxu0 0.0
    %6850 = vmatprep.subr.mxu0 0.0
    %6851 = vmatpush1.msra.mxu0 0.0
    %6852 = vmatprep.subr.mxu0 0.0
    %6853 = vmatpush1.msra.mxu0 0.0
    %6854 = vmatprep.subr.mxu0 0.0
    %6855 = vmatpush1.msra.mxu0 0.0
    %6856 = vmatprep.subr.mxu0 0.0
    %6857 = vmatpush1.msra.mxu0 0.0
    %6858 = vmatprep.subr.mxu0 0.0
    %6859 = vmatpush1.msra.mxu0 0.0
    %6860 = vmatprep.subr.mxu0 0.0
    %6861 = vmatpush1.msra.mxu0 0.0
    %6862 = vmatprep.subr.mxu0 0.0
    %6863 = vmatpush1.msra.mxu0 0.0
    %6864 = vmatprep.subr.mxu0 0.0
    %6865 = vmatpush1.msra.mxu0 0.0
    %6866 = vmatprep.mubr.f32.mxu0 0.0
    %6867 = vmatmul.mubr.f32.gmra.mrb[0].mxu0 %v6769
    %v6868 = vpop.f32.mrb[0].mxu0
    %v6869 = vadd.f32 0.0, %v6868
    %v6870 = vpop.f32.mrb[0].mxu0
    %6871 = vmatprep.mubr.f32.mxu0 0.0
    %6872 = vmatmul.mubr.f32.gmra.mrb[0].mxu0 %v6770
    %v6873 = vpop.f32.mrb[0].mxu0
    %v6874 = vadd.f32 0.0, %v6873
    %v6875 = vpop.f32.mrb[0].mxu0
    %6876 = vmatprep.mubr.f32.mxu0 0.0
    %6877 = vmatmul.mubr.f32.gmra.mrb[0].mxu0 %v6771
    %v6878 = vpop.f32.mrb[0].mxu0
    %v6879 = vadd.f32 0.0, %v6878
    %v6880 = vpop.f32.mrb[0].mxu0
    %6881 = vmatprep.mubr.f32.mxu0 0.0
    %6882 = vmatmul.mubr.f32.gmra.mrb[0].mxu0 %v6772
    %v6883 = vpop.f32.mrb[0].mxu0
    %v6884 = vadd.f32 0.0, %v6883
    %v6885 = vpop.f32.mrb[0].mxu0
    %6886 = vmatprep.mubr.f32.mxu0 0.0
    %6887 = vmatmul.mubr.f32.gmra.mrb[0].mxu0 %v6773
    %v6888 = vpop.f32.mrb[0].mxu0
    %v6889 = vadd.f32 0.0, %v6888
    %v6890 = vpop.f32.mrb[0].mxu0
    %6891 = vmatprep.mubr.f32.mxu0 0.0
    %6892 = vmatmul.mubr.f32.gmra.mrb[0].mxu0 %v6774
    %v6893 = vpop.f32.mrb[0].mxu0
    %v6894 = vadd.f32 0.0, %v6893
    %v6895 = vpop.f32.mrb[0].mxu0
    %6896 = vmatprep.mubr.f32.mxu0 0.0
    %6897 = vmatmul.mubr.f32.gmra.mrb[0].mxu0 %v6775
    %v6898 = vpop.f32.mrb[0].mxu0
    %v6899 = vadd.f32 0.0, %v6898
    %v6900 = vpop.f32.mrb[0].mxu0
    %6901 = vmatprep.mubr.f32.mxu0 0.0
    %6902 = vmatmul.mubr.f32.gmra.mrb[0].mxu0 %v6776
    %v6903 = vpop.f32.mrb[0].mxu0
    %v6904 = vadd.f32 0.0, %v6903
    %v6905 = vpop.f32.mrb[0].mxu0
    %6906 = vmatprep.mubr.f32.mxu0 0.0
    %6907 = vmatmul.mubr.f32.gmra.mrb[0].mxu0 %v6777
    %v6908 = vpop.f32.mrb[0].mxu0
    %v6909 = vadd.f32 0.0, %v6908
    %v6910 = vpop.f32.mrb[0].mxu0
    %6911 = vmatprep.mubr.f32.mxu0 0.0
    %6912 = vmatmul.mubr.f32.gmra.mrb[0].mxu0 %v6778
    %v6913 = vpop.f32.mrb[0].mxu0
    %v6914 = vadd.f32 0.0, %v6913
    %v6915 = vpop.f32.mrb[0].mxu0
    %6916 = vmatprep.mubr.f32.mxu0 0.0
    %6917 = vmatmul.mubr.f32.gmra.mrb[0].mxu0 %v6779
    %v6918 = vpop.f32.mrb[0].mxu0
    %v6919 = vadd.f32 0.0, %v6918
    %v6920 = vpop.f32.mrb[0].mxu0
    %6921 = vmatprep.mubr.f32.mxu0 0.0
    %6922 = vmatmul.mubr.f32.gmra.mrb[0].mxu0 %v6780
    %v6923 = vpop.f32.mrb[0].mxu0
    %v6924 = vadd.f32 0.0, %v6923
    %v6925 = vpop.f32.mrb[0].mxu0
    %6926 = vmatprep.mubr.f32.mxu0 0.0
    %6927 = vmatmul.mubr.f32.gmra.mrb[0].mxu0 %v6781
    %v6928 = vpop.f32.mrb[0].mxu0
    %v6929 = vadd.f32 0.0, %v6928
    %v6930 = vpop.f32.mrb[0].mxu0
    %6931 = vmatprep.mubr.f32.mxu0 0.0
    %6932 = vmatmul.mubr.f32.gmra.mrb[0].mxu0 %v6782
    %v6933 = vpop.f32.mrb[0].mxu0
    %v6934 = vadd.f32 0.0, %v6933
    %v6935 = vpop.f32.mrb[0].mxu0
    %6936 = vmatprep.mubr.f32.mxu0 0.0
    %6937 = vmatmul.mubr.f32.gmra.mrb[0].mxu0 %v6783
    %v6938 = vpop.f32.mrb[0].mxu0
    %v6939 = vadd.f32 0.0, %v6938
    %v6940 = vpop.f32.mrb[0].mxu0
    %6941 = vmatprep.mubr.f32.mxu0 0.0
    %6942 = vmatmul.mubr.f32.gmra.mrb[0].mxu0 %v6784
    %v6943 = vpop.f32.mrb[0].mxu0
    %v6944 = vadd.f32 0.0, %v6943
    %v6945 = vpop.f32.mrb[0].mxu0
    %6946 = vdwg.mxu0
    %v6947 = vadd.f32 %v6753, %v6869
    %v6948 = vadd.f32 %v6754, %v6874
    %v6949 = vadd.f32 %v6755, %v6879
    %v6950 = vadd.f32 %v6756, %v6884
    %v6951 = vadd.f32 %v6757, %v6889
    %v6952 = vadd.f32 %v6758, %v6894
    %v6953 = vadd.f32 %v6759, %v6899
    %v6954 = vadd.f32 %v6760, %v6904
    %v6955 = vadd.f32 %v6761, %v6909
    %v6956 = vadd.f32 %v6762, %v6914
    %v6957 = vadd.f32 %v6763, %v6919
    %v6958 = vadd.f32 %v6764, %v6924
    %v6959 = vadd.f32 %v6765, %v6929
    %v6960 = vadd.f32 %v6766, %v6934
    %v6961 = vadd.f32 %v6767, %v6939
    %v6962 = vadd.f32 %v6768, %v6944
    %v6963 = vld [vmem:[%s6574 + $0x2] sm:$0xff]
    %v6964 = vld [vmem:[%s6574 + $0x12] sm:$0xff]
    %v6965 = vld [vmem:[%s6574 + $0x22] sm:$0xff]
    %v6966 = vld [vmem:[%s6574 + $0x32] sm:$0xff]
    %v6967 = vld [vmem:[%s6574 + $0x42] sm:$0xff]
    %v6968 = vld [vmem:[%s6574 + $0x52] sm:$0xff]
    %v6969 = vld [vmem:[%s6574 + $0x62] sm:$0xff]
    %v6970 = vld [vmem:[%s6574 + $0x72] sm:$0xff]
    %v6971 = vld [vmem:[%s6574 + $0xc2] sm:$0xff]
    %v6972 = vld [vmem:[%s6574 + $0xd2] sm:$0xff]
    %v6973 = vld [vmem:[%s6574 + $0xe2] sm:$0xff]
    %v6974 = vld [vmem:[%s6574 + $0xf2] sm:$0xff]
    %v6975 = vld [vmem:[%s6574 + $0x102] sm:$0xff]
    %v6976 = vld [vmem:[%s6574 + $0x112] sm:$0xff]
    %v6977 = vld [vmem:[%s6574 + $0x122] sm:$0xff]
    %v6978 = vld [vmem:[%s6574 + $0x132] sm:$0xff]
    %s6979 = scalar_lea.vmem %s3, 2816
    %v6980 = vld [vmem:[%s6979] sm:$0xff]
    %v6981 = vld [vmem:[%s6979 + $0x8] sm:$0xff]
    %v6982 = vld [vmem:[%s6979 + $0x10] sm:$0xff]
    %v6983 = vld [vmem:[%s6979 + $0x18] sm:$0xff]
    %v6984 = vld [vmem:[%s6979 + $0x20] sm:$0xff]
    %v6985 = vld [vmem:[%s6979 + $0x28] sm:$0xff]
    %v6986 = vld [vmem:[%s6979 + $0x30] sm:$0xff]
    %v6987 = vld [vmem:[%s6979 + $0x38] sm:$0xff]
    %v6988 = vld [vmem:[%s6979 + $0x40] sm:$0xff]
    %v6989 = vld [vmem:[%s6979 + $0x48] sm:$0xff]
    %v6990 = vld [vmem:[%s6979 + $0x50] sm:$0xff]
    %v6991 = vld [vmem:[%s6979 + $0x58] sm:$0xff]
    %v6992 = vld [vmem:[%s6979 + $0x60] sm:$0xff]
    %v6993 = vld [vmem:[%s6979 + $0x68] sm:$0xff]
    %v6994 = vld [vmem:[%s6979 + $0x70] sm:$0xff]
    %v6995 = vld [vmem:[%s6979 + $0x78] sm:$0xff]
    %6996 = vmatprep.subr.mxu0 0.0
    %6997 = vmatpush1.msra.mxu0 %v6980
    %6998 = vmatprep.subr.mxu0 0.0
    %6999 = vmatpush1.msra.mxu0 %v6981
    %7000 = vmatprep.subr.mxu0 0.0
    %7001 = vmatpush1.msra.mxu0 %v6982
    %7002 = vmatprep.subr.mxu0 0.0
    %7003 = vmatpush1.msra.mxu0 %v6983
    %7004 = vmatprep.subr.mxu0 0.0
    %7005 = vmatpush1.msra.mxu0 %v6984
    %7006 = vmatprep.subr.mxu0 0.0
    %7007 = vmatpush1.msra.mxu0 %v6985
    %7008 = vmatprep.subr.mxu0 0.0
    %7009 = vmatpush1.msra.mxu0 %v6986
    %7010 = vmatprep.subr.mxu0 0.0
    %7011 = vmatpush1.msra.mxu0 %v6987
    %7012 = vmatprep.subr.mxu0 0.0
    %7013 = vmatpush1.msra.mxu0 %v6988
    %7014 = vmatprep.subr.mxu0 0.0
    %7015 = vmatpush1.msra.mxu0 %v6989
    %7016 = vmatprep.subr.mxu0 0.0
    %7017 = vmatpush1.msra.mxu0 %v6990
    %7018 = vmatprep.subr.mxu0 0.0
    %7019 = vmatpush1.msra.mxu0 %v6991
    %7020 = vmatprep.subr.mxu0 0.0
    %7021 = vmatpush1.msra.mxu0 %v6992
    %7022 = vmatprep.subr.mxu0 0.0
    %7023 = vmatpush1.msra.mxu0 %v6993
    %7024 = vmatprep.subr.mxu0 0.0
    %7025 = vmatpush1.msra.mxu0 %v6994
    %7026 = vmatprep.subr.mxu0 0.0
    %7027 = vmatpush1.msra.mxu0 %v6995
    %7028 = vmatprep.subr.mxu0 0.0
    %7029 = vmatpush1.msra.mxu0 0.0
    %7030 = vmatprep.subr.mxu0 0.0
    %7031 = vmatpush1.msra.mxu0 0.0
    %7032 = vmatprep.subr.mxu0 0.0
    %7033 = vmatpush1.msra.mxu0 0.0
    %7034 = vmatprep.subr.mxu0 0.0
    %7035 = vmatpush1.msra.mxu0 0.0
    %7036 = vmatprep.subr.mxu0 0.0
    %7037 = vmatpush1.msra.mxu0 0.0
    %7038 = vmatprep.subr.mxu0 0.0
    %7039 = vmatpush1.msra.mxu0 0.0
    %7040 = vmatprep.subr.mxu0 0.0
    %7041 = vmatpush1.msra.mxu0 0.0
    %7042 = vmatprep.subr.mxu0 0.0
    %7043 = vmatpush1.msra.mxu0 0.0
    %7044 = vmatprep.subr.mxu0 0.0
    %7045 = vmatpush1.msra.mxu0 0.0
    %7046 = vmatprep.subr.mxu0 0.0
    %7047 = vmatpush1.msra.mxu0 0.0
    %7048 = vmatprep.subr.mxu0 0.0
    %7049 = vmatpush1.msra.mxu0 0.0
    %7050 = vmatprep.subr.mxu0 0.0
    %7051 = vmatpush1.msra.mxu0 0.0
    %7052 = vmatprep.subr.mxu0 0.0
    %7053 = vmatpush1.msra.mxu0 0.0
    %7054 = vmatprep.subr.mxu0 0.0
    %7055 = vmatpush1.msra.mxu0 0.0
    %7056 = vmatprep.subr.mxu0 0.0
    %7057 = vmatpush1.msra.mxu0 0.0
    %7058 = vmatprep.subr.mxu0 0.0
    %7059 = vmatpush1.msra.mxu0 0.0
    %7060 = vmatprep.mubr.f32.mxu0 0.0
    %7061 = vmatmul.mubr.f32.gmra.mrb[0].mxu0 %v6963
    %v7062 = vpop.f32.mrb[0].mxu0
    %v7063 = vadd.f32 0.0, %v7062
    %v7064 = vpop.f32.mrb[0].mxu0
    %7065 = vmatprep.mubr.f32.mxu0 0.0
    %7066 = vmatmul.mubr.f32.gmra.mrb[0].mxu0 %v6964
    %v7067 = vpop.f32.mrb[0].mxu0
    %v7068 = vadd.f32 0.0, %v7067
    %v7069 = vpop.f32.mrb[0].mxu0
    %7070 = vmatprep.mubr.f32.mxu0 0.0
    %7071 = vmatmul.mubr.f32.gmra.mrb[0].mxu0 %v6965
    %v7072 = vpop.f32.mrb[0].mxu0
    %v7073 = vadd.f32 0.0, %v7072
    %v7074 = vpop.f32.mrb[0].mxu0
    %7075 = vmatprep.mubr.f32.mxu0 0.0
    %7076 = vmatmul.mubr.f32.gmra.mrb[0].mxu0 %v6966
    %v7077 = vpop.f32.mrb[0].mxu0
    %v7078 = vadd.f32 0.0, %v7077
    %v7079 = vpop.f32.mrb[0].mxu0
    %7080 = vmatprep.mubr.f32.mxu0 0.0
    %7081 = vmatmul.mubr.f32.gmra.mrb[0].mxu0 %v6967
    %v7082 = vpop.f32.mrb[0].mxu0
    %v7083 = vadd.f32 0.0, %v7082
    %v7084 = vpop.f32.mrb[0].mxu0
    %7085 = vmatprep.mubr.f32.mxu0 0.0
    %7086 = vmatmul.mubr.f32.gmra.mrb[0].mxu0 %v6968
    %v7087 = vpop.f32.mrb[0].mxu0
    %v7088 = vadd.f32 0.0, %v7087
    %v7089 = vpop.f32.mrb[0].mxu0
    %7090 = vmatprep.mubr.f32.mxu0 0.0
    %7091 = vmatmul.mubr.f32.gmra.mrb[0].mxu0 %v6969
    %v7092 = vpop.f32.mrb[0].mxu0
    %v7093 = vadd.f32 0.0, %v7092
    %v7094 = vpop.f32.mrb[0].mxu0
    %7095 = vmatprep.mubr.f32.mxu0 0.0
    %7096 = vmatmul.mubr.f32.gmra.mrb[0].mxu0 %v6970
    %v7097 = vpop.f32.mrb[0].mxu0
    %v7098 = vadd.f32 0.0, %v7097
    %v7099 = vpop.f32.mrb[0].mxu0
    %7100 = vmatprep.mubr.f32.mxu0 0.0
    %7101 = vmatmul.mubr.f32.gmra.mrb[0].mxu0 %v6971
    %v7102 = vpop.f32.mrb[0].mxu0
    %v7103 = vadd.f32 0.0, %v7102
    %v7104 = vpop.f32.mrb[0].mxu0
    %7105 = vmatprep.mubr.f32.mxu0 0.0
    %7106 = vmatmul.mubr.f32.gmra.mrb[0].mxu0 %v6972
    %v7107 = vpop.f32.mrb[0].mxu0
    %v7108 = vadd.f32 0.0, %v7107
    %v7109 = vpop.f32.mrb[0].mxu0
    %7110 = vmatprep.mubr.f32.mxu0 0.0
    %7111 = vmatmul.mubr.f32.gmra.mrb[0].mxu0 %v6973
    %v7112 = vpop.f32.mrb[0].mxu0
    %v7113 = vadd.f32 0.0, %v7112
    %v7114 = vpop.f32.mrb[0].mxu0
    %7115 = vmatprep.mubr.f32.mxu0 0.0
    %7116 = vmatmul.mubr.f32.gmra.mrb[0].mxu0 %v6974
    %v7117 = vpop.f32.mrb[0].mxu0
    %v7118 = vadd.f32 0.0, %v7117
    %v7119 = vpop.f32.mrb[0].mxu0
    %7120 = vmatprep.mubr.f32.mxu0 0.0
    %7121 = vmatmul.mubr.f32.gmra.mrb[0].mxu0 %v6975
    %v7122 = vpop.f32.mrb[0].mxu0
    %v7123 = vadd.f32 0.0, %v7122
    %v7124 = vpop.f32.mrb[0].mxu0
    %7125 = vmatprep.mubr.f32.mxu0 0.0
    %7126 = vmatmul.mubr.f32.gmra.mrb[0].mxu0 %v6976
    %v7127 = vpop.f32.mrb[0].mxu0
    %v7128 = vadd.f32 0.0, %v7127
    %v7129 = vpop.f32.mrb[0].mxu0
    %7130 = vmatprep.mubr.f32.mxu0 0.0
    %7131 = vmatmul.mubr.f32.gmra.mrb[0].mxu0 %v6977
    %v7132 = vpop.f32.mrb[0].mxu0
    %v7133 = vadd.f32 0.0, %v7132
    %v7134 = vpop.f32.mrb[0].mxu0
    %7135 = vmatprep.mubr.f32.mxu0 0.0
    %7136 = vmatmul.mubr.f32.gmra.mrb[0].mxu0 %v6978
    %v7137 = vpop.f32.mrb[0].mxu0
    %v7138 = vadd.f32 0.0, %v7137
    %v7139 = vpop.f32.mrb[0].mxu0
    %7140 = vdwg.mxu0
    %v7141 = vadd.f32 %v6947, %v7063
    %v7142 = vadd.f32 %v6948, %v7068
    %v7143 = vadd.f32 %v6949, %v7073
    %v7144 = vadd.f32 %v6950, %v7078
    %v7145 = vadd.f32 %v6951, %v7083
    %v7146 = vadd.f32 %v6952, %v7088
    %v7147 = vadd.f32 %v6953, %v7093
    %v7148 = vadd.f32 %v6954, %v7098
    %v7149 = vadd.f32 %v6955, %v7103
    %v7150 = vadd.f32 %v6956, %v7108
    %v7151 = vadd.f32 %v6957, %v7113
    %v7152 = vadd.f32 %v6958, %v7118
    %v7153 = vadd.f32 %v6959, %v7123
    %v7154 = vadd.f32 %v6960, %v7128
    %v7155 = vadd.f32 %v6961, %v7133
    %v7156 = vadd.f32 %v6962, %v7138
    %v7157 = vld [vmem:[%s6574 + $0x3] sm:$0xff]
    %v7158 = vld [vmem:[%s6574 + $0x13] sm:$0xff]
    %v7159 = vld [vmem:[%s6574 + $0x23] sm:$0xff]
    %v7160 = vld [vmem:[%s6574 + $0x33] sm:$0xff]
    %v7161 = vld [vmem:[%s6574 + $0x43] sm:$0xff]
    %v7162 = vld [vmem:[%s6574 + $0x53] sm:$0xff]
    %v7163 = vld [vmem:[%s6574 + $0x63] sm:$0xff]
    %v7164 = vld [vmem:[%s6574 + $0x73] sm:$0xff]
    %v7165 = vld [vmem:[%s6574 + $0xc3] sm:$0xff]
    %v7166 = vld [vmem:[%s6574 + $0xd3] sm:$0xff]
    %v7167 = vld [vmem:[%s6574 + $0xe3] sm:$0xff]
    %v7168 = vld [vmem:[%s6574 + $0xf3] sm:$0xff]
    %v7169 = vld [vmem:[%s6574 + $0x103] sm:$0xff]
    %v7170 = vld [vmem:[%s6574 + $0x113] sm:$0xff]
    %v7171 = vld [vmem:[%s6574 + $0x123] sm:$0xff]
    %v7172 = vld [vmem:[%s6574 + $0x133] sm:$0xff]
    %s7173 = scalar_lea.vmem %s3, 2944
    %v7174 = vld [vmem:[%s7173] sm:$0xff]
    %v7175 = vld [vmem:[%s7173 + $0x8] sm:$0xff]
    %v7176 = vld [vmem:[%s7173 + $0x10] sm:$0xff]
    %v7177 = vld [vmem:[%s7173 + $0x18] sm:$0xff]
    %v7178 = vld [vmem:[%s7173 + $0x20] sm:$0xff]
    %v7179 = vld [vmem:[%s7173 + $0x28] sm:$0xff]
    %v7180 = vld [vmem:[%s7173 + $0x30] sm:$0xff]
    %v7181 = vld [vmem:[%s7173 + $0x38] sm:$0xff]
    %v7182 = vld [vmem:[%s7173 + $0x40] sm:$0xff]
    %v7183 = vld [vmem:[%s7173 + $0x48] sm:$0xff]
    %v7184 = vld [vmem:[%s7173 + $0x50] sm:$0xff]
    %v7185 = vld [vmem:[%s7173 + $0x58] sm:$0xff]
    %v7186 = vld [vmem:[%s7173 + $0x60] sm:$0xff]
    %v7187 = vld [vmem:[%s7173 + $0x68] sm:$0xff]
    %v7188 = vld [vmem:[%s7173 + $0x70] sm:$0xff]
    %v7189 = vld [vmem:[%s7173 + $0x78] sm:$0xff]
    %7190 = vmatprep.subr.mxu0 0.0
    %7191 = vmatpush1.msra.mxu0 %v7174
    %7192 = vmatprep.subr.mxu0 0.0
    %7193 = vmatpush1.msra.mxu0 %v7175
    %7194 = vmatprep.subr.mxu0 0.0
    %7195 = vmatpush1.msra.mxu0 %v7176
    %7196 = vmatprep.subr.mxu0 0.0
    %7197 = vmatpush1.msra.mxu0 %v7177
    %7198 = vmatprep.subr.mxu0 0.0
    %7199 = vmatpush1.msra.mxu0 %v7178
    %7200 = vmatprep.subr.mxu0 0.0
    %7201 = vmatpush1.msra.mxu0 %v7179
    %7202 = vmatprep.subr.mxu0 0.0
    %7203 = vmatpush1.msra.mxu0 %v7180
    %7204 = vmatprep.subr.mxu0 0.0
    %7205 = vmatpush1.msra.mxu0 %v7181
    %7206 = vmatprep.subr.mxu0 0.0
    %7207 = vmatpush1.msra.mxu0 %v7182
    %7208 = vmatprep.subr.mxu0 0.0
    %7209 = vmatpush1.msra.mxu0 %v7183
    %7210 = vmatprep.subr.mxu0 0.0
    %7211 = vmatpush1.msra.mxu0 %v7184
    %7212 = vmatprep.subr.mxu0 0.0
    %7213 = vmatpush1.msra.mxu0 %v7185
    %7214 = vmatprep.subr.mxu0 0.0
    %7215 = vmatpush1.msra.mxu0 %v7186
    %7216 = vmatprep.subr.mxu0 0.0
    %7217 = vmatpush1.msra.mxu0 %v7187
    %7218 = vmatprep.subr.mxu0 0.0
    %7219 = vmatpush1.msra.mxu0 %v7188
    %7220 = vmatprep.subr.mxu0 0.0
    %7221 = vmatpush1.msra.mxu0 %v7189
    %7222 = vmatprep.subr.mxu0 0.0
    %7223 = vmatpush1.msra.mxu0 0.0
    %7224 = vmatprep.subr.mxu0 0.0
    %7225 = vmatpush1.msra.mxu0 0.0
    %7226 = vmatprep.subr.mxu0 0.0
    %7227 = vmatpush1.msra.mxu0 0.0
    %7228 = vmatprep.subr.mxu0 0.0
    %7229 = vmatpush1.msra.mxu0 0.0
    %7230 = vmatprep.subr.mxu0 0.0
    %7231 = vmatpush1.msra.mxu0 0.0
    %7232 = vmatprep.subr.mxu0 0.0
    %7233 = vmatpush1.msra.mxu0 0.0
    %7234 = vmatprep.subr.mxu0 0.0
    %7235 = vmatpush1.msra.mxu0 0.0
    %7236 = vmatprep.subr.mxu0 0.0
    %7237 = vmatpush1.msra.mxu0 0.0
    %7238 = vmatprep.subr.mxu0 0.0
    %7239 = vmatpush1.msra.mxu0 0.0
    %7240 = vmatprep.subr.mxu0 0.0
    %7241 = vmatpush1.msra.mxu0 0.0
    %7242 = vmatprep.subr.mxu0 0.0
    %7243 = vmatpush1.msra.mxu0 0.0
    %7244 = vmatprep.subr.mxu0 0.0
    %7245 = vmatpush1.msra.mxu0 0.0
    %7246 = vmatprep.subr.mxu0 0.0
    %7247 = vmatpush1.msra.mxu0 0.0
    %7248 = vmatprep.subr.mxu0 0.0
    %7249 = vmatpush1.msra.mxu0 0.0
    %7250 = vmatprep.subr.mxu0 0.0
    %7251 = vmatpush1.msra.mxu0 0.0
    %7252 = vmatprep.subr.mxu0 0.0
    %7253 = vmatpush1.msra.mxu0 0.0
    %7254 = vmatprep.mubr.f32.mxu0 0.0
    %7255 = vmatmul.mubr.f32.gmra.mrb[0].mxu0 %v7157
    %v7256 = vpop.f32.mrb[0].mxu0
    %v7257 = vadd.f32 0.0, %v7256
    %v7258 = vpop.f32.mrb[0].mxu0
    %7259 = vmatprep.mubr.f32.mxu0 0.0
    %7260 = vmatmul.mubr.f32.gmra.mrb[0].mxu0 %v7158
    %v7261 = vpop.f32.mrb[0].mxu0
    %v7262 = vadd.f32 0.0, %v7261
    %v7263 = vpop.f32.mrb[0].mxu0
    %7264 = vmatprep.mubr.f32.mxu0 0.0
    %7265 = vmatmul.mubr.f32.gmra.mrb[0].mxu0 %v7159
    %v7266 = vpop.f32.mrb[0].mxu0
    %v7267 = vadd.f32 0.0, %v7266
    %v7268 = vpop.f32.mrb[0].mxu0
    %7269 = vmatprep.mubr.f32.mxu0 0.0
    %7270 = vmatmul.mubr.f32.gmra.mrb[0].mxu0 %v7160
    %v7271 = vpop.f32.mrb[0].mxu0
    %v7272 = vadd.f32 0.0, %v7271
    %v7273 = vpop.f32.mrb[0].mxu0
    %7274 = vmatprep.mubr.f32.mxu0 0.0
    %7275 = vmatmul.mubr.f32.gmra.mrb[0].mxu0 %v7161
    %v7276 = vpop.f32.mrb[0].mxu0
    %v7277 = vadd.f32 0.0, %v7276
    %v7278 = vpop.f32.mrb[0].mxu0
    %7279 = vmatprep.mubr.f32.mxu0 0.0
    %7280 = vmatmul.mubr.f32.gmra.mrb[0].mxu0 %v7162
    %v7281 = vpop.f32.mrb[0].mxu0
    %v7282 = vadd.f32 0.0, %v7281
    %v7283 = vpop.f32.mrb[0].mxu0
    %7284 = vmatprep.mubr.f32.mxu0 0.0
    %7285 = vmatmul.mubr.f32.gmra.mrb[0].mxu0 %v7163
    %v7286 = vpop.f32.mrb[0].mxu0
    %v7287 = vadd.f32 0.0, %v7286
    %v7288 = vpop.f32.mrb[0].mxu0
    %7289 = vmatprep.mubr.f32.mxu0 0.0
    %7290 = vmatmul.mubr.f32.gmra.mrb[0].mxu0 %v7164
    %v7291 = vpop.f32.mrb[0].mxu0
    %v7292 = vadd.f32 0.0, %v7291
    %v7293 = vpop.f32.mrb[0].mxu0
    %7294 = vmatprep.mubr.f32.mxu0 0.0
    %7295 = vmatmul.mubr.f32.gmra.mrb[0].mxu0 %v7165
    %v7296 = vpop.f32.mrb[0].mxu0
    %v7297 = vadd.f32 0.0, %v7296
    %v7298 = vpop.f32.mrb[0].mxu0
    %7299 = vmatprep.mubr.f32.mxu0 0.0
    %7300 = vmatmul.mubr.f32.gmra.mrb[0].mxu0 %v7166
    %v7301 = vpop.f32.mrb[0].mxu0
    %v7302 = vadd.f32 0.0, %v7301
    %v7303 = vpop.f32.mrb[0].mxu0
    %7304 = vmatprep.mubr.f32.mxu0 0.0
    %7305 = vmatmul.mubr.f32.gmra.mrb[0].mxu0 %v7167
    %v7306 = vpop.f32.mrb[0].mxu0
    %v7307 = vadd.f32 0.0, %v7306
    %v7308 = vpop.f32.mrb[0].mxu0
    %7309 = vmatprep.mubr.f32.mxu0 0.0
    %7310 = vmatmul.mubr.f32.gmra.mrb[0].mxu0 %v7168
    %v7311 = vpop.f32.mrb[0].mxu0
    %v7312 = vadd.f32 0.0, %v7311
    %v7313 = vpop.f32.mrb[0].mxu0
    %7314 = vmatprep.mubr.f32.mxu0 0.0
    %7315 = vmatmul.mubr.f32.gmra.mrb[0].mxu0 %v7169
    %v7316 = vpop.f32.mrb[0].mxu0
    %v7317 = vadd.f32 0.0, %v7316
    %v7318 = vpop.f32.mrb[0].mxu0
    %7319 = vmatprep.mubr.f32.mxu0 0.0
    %7320 = vmatmul.mubr.f32.gmra.mrb[0].mxu0 %v7170
    %v7321 = vpop.f32.mrb[0].mxu0
    %v7322 = vadd.f32 0.0, %v7321
    %v7323 = vpop.f32.mrb[0].mxu0
    %7324 = vmatprep.mubr.f32.mxu0 0.0
    %7325 = vmatmul.mubr.f32.gmra.mrb[0].mxu0 %v7171
    %v7326 = vpop.f32.mrb[0].mxu0
    %v7327 = vadd.f32 0.0, %v7326
    %v7328 = vpop.f32.mrb[0].mxu0
    %7329 = vmatprep.mubr.f32.mxu0 0.0
    %7330 = vmatmul.mubr.f32.gmra.mrb[0].mxu0 %v7172
    %v7331 = vpop.f32.mrb[0].mxu0
    %v7332 = vadd.f32 0.0, %v7331
    %v7333 = vpop.f32.mrb[0].mxu0
    %7334 = vdwg.mxu0
    %v7335 = vadd.f32 %v7141, %v7257
    %v7336 = vadd.f32 %v7142, %v7262
    %v7337 = vadd.f32 %v7143, %v7267
    %v7338 = vadd.f32 %v7144, %v7272
    %v7339 = vadd.f32 %v7145, %v7277
    %v7340 = vadd.f32 %v7146, %v7282
    %v7341 = vadd.f32 %v7147, %v7287
    %v7342 = vadd.f32 %v7148, %v7292
    %v7343 = vadd.f32 %v7149, %v7297
    %v7344 = vadd.f32 %v7150, %v7302
    %v7345 = vadd.f32 %v7151, %v7307
    %v7346 = vadd.f32 %v7152, %v7312
    %v7347 = vadd.f32 %v7153, %v7317
    %v7348 = vadd.f32 %v7154, %v7322
    %v7349 = vadd.f32 %v7155, %v7327
    %v7350 = vadd.f32 %v7156, %v7332
    %v7351 = vld [vmem:[%s6574 + $0x4] sm:$0xff]
    %v7352 = vld [vmem:[%s6574 + $0x14] sm:$0xff]
    %v7353 = vld [vmem:[%s6574 + $0x24] sm:$0xff]
    %v7354 = vld [vmem:[%s6574 + $0x34] sm:$0xff]
    %v7355 = vld [vmem:[%s6574 + $0x44] sm:$0xff]
    %v7356 = vld [vmem:[%s6574 + $0x54] sm:$0xff]
    %v7357 = vld [vmem:[%s6574 + $0x64] sm:$0xff]
    %v7358 = vld [vmem:[%s6574 + $0x74] sm:$0xff]
    %v7359 = vld [vmem:[%s6574 + $0xc4] sm:$0xff]
    %v7360 = vld [vmem:[%s6574 + $0xd4] sm:$0xff]
    %v7361 = vld [vmem:[%s6574 + $0xe4] sm:$0xff]
    %v7362 = vld [vmem:[%s6574 + $0xf4] sm:$0xff]
    %v7363 = vld [vmem:[%s6574 + $0x104] sm:$0xff]
    %v7364 = vld [vmem:[%s6574 + $0x114] sm:$0xff]
    %v7365 = vld [vmem:[%s6574 + $0x124] sm:$0xff]
    %v7366 = vld [vmem:[%s6574 + $0x134] sm:$0xff]
    %s7367 = scalar_lea.vmem %s3, 3072
    %v7368 = vld [vmem:[%s7367] sm:$0xff]
    %v7369 = vld [vmem:[%s7367 + $0x8] sm:$0xff]
    %v7370 = vld [vmem:[%s7367 + $0x10] sm:$0xff]
    %v7371 = vld [vmem:[%s7367 + $0x18] sm:$0xff]
    %v7372 = vld [vmem:[%s7367 + $0x20] sm:$0xff]
    %v7373 = vld [vmem:[%s7367 + $0x28] sm:$0xff]
    %v7374 = vld [vmem:[%s7367 + $0x30] sm:$0xff]
    %v7375 = vld [vmem:[%s7367 + $0x38] sm:$0xff]
    %v7376 = vld [vmem:[%s7367 + $0x40] sm:$0xff]
    %v7377 = vld [vmem:[%s7367 + $0x48] sm:$0xff]
    %v7378 = vld [vmem:[%s7367 + $0x50] sm:$0xff]
    %v7379 = vld [vmem:[%s7367 + $0x58] sm:$0xff]
    %v7380 = vld [vmem:[%s7367 + $0x60] sm:$0xff]
    %v7381 = vld [vmem:[%s7367 + $0x68] sm:$0xff]
    %v7382 = vld [vmem:[%s7367 + $0x70] sm:$0xff]
    %v7383 = vld [vmem:[%s7367 + $0x78] sm:$0xff]
    %7384 = vmatprep.subr.mxu0 0.0
    %7385 = vmatpush1.msra.mxu0 %v7368
    %7386 = vmatprep.subr.mxu0 0.0
    %7387 = vmatpush1.msra.mxu0 %v7369
    %7388 = vmatprep.subr.mxu0 0.0
    %7389 = vmatpush1.msra.mxu0 %v7370
    %7390 = vmatprep.subr.mxu0 0.0
    %7391 = vmatpush1.msra.mxu0 %v7371
    %7392 = vmatprep.subr.mxu0 0.0
    %7393 = vmatpush1.msra.mxu0 %v7372
    %7394 = vmatprep.subr.mxu0 0.0
    %7395 = vmatpush1.msra.mxu0 %v7373
    %7396 = vmatprep.subr.mxu0 0.0
    %7397 = vmatpush1.msra.mxu0 %v7374
    %7398 = vmatprep.subr.mxu0 0.0
    %7399 = vmatpush1.msra.mxu0 %v7375
    %7400 = vmatprep.subr.mxu0 0.0
    %7401 = vmatpush1.msra.mxu0 %v7376
    %7402 = vmatprep.subr.mxu0 0.0
    %7403 = vmatpush1.msra.mxu0 %v7377
    %7404 = vmatprep.subr.mxu0 0.0
    %7405 = vmatpush1.msra.mxu0 %v7378
    %7406 = vmatprep.subr.mxu0 0.0
    %7407 = vmatpush1.msra.mxu0 %v7379
    %7408 = vmatprep.subr.mxu0 0.0
    %7409 = vmatpush1.msra.mxu0 %v7380
    %7410 = vmatprep.subr.mxu0 0.0
    %7411 = vmatpush1.msra.mxu0 %v7381
    %7412 = vmatprep.subr.mxu0 0.0
    %7413 = vmatpush1.msra.mxu0 %v7382
    %7414 = vmatprep.subr.mxu0 0.0
    %7415 = vmatpush1.msra.mxu0 %v7383
    %7416 = vmatprep.subr.mxu0 0.0
    %7417 = vmatpush1.msra.mxu0 0.0
    %7418 = vmatprep.subr.mxu0 0.0
    %7419 = vmatpush1.msra.mxu0 0.0
    %7420 = vmatprep.subr.mxu0 0.0
    %7421 = vmatpush1.msra.mxu0 0.0
    %7422 = vmatprep.subr.mxu0 0.0
    %7423 = vmatpush1.msra.mxu0 0.0
    %7424 = vmatprep.subr.mxu0 0.0
    %7425 = vmatpush1.msra.mxu0 0.0
    %7426 = vmatprep.subr.mxu0 0.0
    %7427 = vmatpush1.msra.mxu0 0.0
    %7428 = vmatprep.subr.mxu0 0.0
    %7429 = vmatpush1.msra.mxu0 0.0
    %7430 = vmatprep.subr.mxu0 0.0
    %7431 = vmatpush1.msra.mxu0 0.0
    %7432 = vmatprep.subr.mxu0 0.0
    %7433 = vmatpush1.msra.mxu0 0.0
    %7434 = vmatprep.subr.mxu0 0.0
    %7435 = vmatpush1.msra.mxu0 0.0
    %7436 = vmatprep.subr.mxu0 0.0
    %7437 = vmatpush1.msra.mxu0 0.0
    %7438 = vmatprep.subr.mxu0 0.0
    %7439 = vmatpush1.msra.mxu0 0.0
    %7440 = vmatprep.subr.mxu0 0.0
    %7441 = vmatpush1.msra.mxu0 0.0
    %7442 = vmatprep.subr.mxu0 0.0
    %7443 = vmatpush1.msra.mxu0 0.0
    %7444 = vmatprep.subr.mxu0 0.0
    %7445 = vmatpush1.msra.mxu0 0.0
    %7446 = vmatprep.subr.mxu0 0.0
    %7447 = vmatpush1.msra.mxu0 0.0
    %7448 = vmatprep.mubr.f32.mxu0 0.0
    %7449 = vmatmul.mubr.f32.gmra.mrb[0].mxu0 %v7351
    %v7450 = vpop.f32.mrb[0].mxu0
    %v7451 = vadd.f32 0.0, %v7450
    %v7452 = vpop.f32.mrb[0].mxu0
    %7453 = vmatprep.mubr.f32.mxu0 0.0
    %7454 = vmatmul.mubr.f32.gmra.mrb[0].mxu0 %v7352
    %v7455 = vpop.f32.mrb[0].mxu0
    %v7456 = vadd.f32 0.0, %v7455
    %v7457 = vpop.f32.mrb[0].mxu0
    %7458 = vmatprep.mubr.f32.mxu0 0.0
    %7459 = vmatmul.mubr.f32.gmra.mrb[0].mxu0 %v7353
    %v7460 = vpop.f32.mrb[0].mxu0
    %v7461 = vadd.f32 0.0, %v7460
    %v7462 = vpop.f32.mrb[0].mxu0
    %7463 = vmatprep.mubr.f32.mxu0 0.0
    %7464 = vmatmul.mubr.f32.gmra.mrb[0].mxu0 %v7354
    %v7465 = vpop.f32.mrb[0].mxu0
    %v7466 = vadd.f32 0.0, %v7465
    %v7467 = vpop.f32.mrb[0].mxu0
    %7468 = vmatprep.mubr.f32.mxu0 0.0
    %7469 = vmatmul.mubr.f32.gmra.mrb[0].mxu0 %v7355
    %v7470 = vpop.f32.mrb[0].mxu0
    %v7471 = vadd.f32 0.0, %v7470
    %v7472 = vpop.f32.mrb[0].mxu0
    %7473 = vmatprep.mubr.f32.mxu0 0.0
    %7474 = vmatmul.mubr.f32.gmra.mrb[0].mxu0 %v7356
    %v7475 = vpop.f32.mrb[0].mxu0
    %v7476 = vadd.f32 0.0, %v7475
    %v7477 = vpop.f32.mrb[0].mxu0
    %7478 = vmatprep.mubr.f32.mxu0 0.0
    %7479 = vmatmul.mubr.f32.gmra.mrb[0].mxu0 %v7357
    %v7480 = vpop.f32.mrb[0].mxu0
    %v7481 = vadd.f32 0.0, %v7480
    %v7482 = vpop.f32.mrb[0].mxu0
    %7483 = vmatprep.mubr.f32.mxu0 0.0
    %7484 = vmatmul.mubr.f32.gmra.mrb[0].mxu0 %v7358
    %v7485 = vpop.f32.mrb[0].mxu0
    %v7486 = vadd.f32 0.0, %v7485
    %v7487 = vpop.f32.mrb[0].mxu0
    %7488 = vmatprep.mubr.f32.mxu0 0.0
    %7489 = vmatmul.mubr.f32.gmra.mrb[0].mxu0 %v7359
    %v7490 = vpop.f32.mrb[0].mxu0
    %v7491 = vadd.f32 0.0, %v7490
    %v7492 = vpop.f32.mrb[0].mxu0
    %7493 = vmatprep.mubr.f32.mxu0 0.0
    %7494 = vmatmul.mubr.f32.gmra.mrb[0].mxu0 %v7360
    %v7495 = vpop.f32.mrb[0].mxu0
    %v7496 = vadd.f32 0.0, %v7495
    %v7497 = vpop.f32.mrb[0].mxu0
    %7498 = vmatprep.mubr.f32.mxu0 0.0
    %7499 = vmatmul.mubr.f32.gmra.mrb[0].mxu0 %v7361
    %v7500 = vpop.f32.mrb[0].mxu0
    %v7501 = vadd.f32 0.0, %v7500
    %v7502 = vpop.f32.mrb[0].mxu0
    %7503 = vmatprep.mubr.f32.mxu0 0.0
    %7504 = vmatmul.mubr.f32.gmra.mrb[0].mxu0 %v7362
    %v7505 = vpop.f32.mrb[0].mxu0
    %v7506 = vadd.f32 0.0, %v7505
    %v7507 = vpop.f32.mrb[0].mxu0
    %7508 = vmatprep.mubr.f32.mxu0 0.0
    %7509 = vmatmul.mubr.f32.gmra.mrb[0].mxu0 %v7363
    %v7510 = vpop.f32.mrb[0].mxu0
    %v7511 = vadd.f32 0.0, %v7510
    %v7512 = vpop.f32.mrb[0].mxu0
    %7513 = vmatprep.mubr.f32.mxu0 0.0
    %7514 = vmatmul.mubr.f32.gmra.mrb[0].mxu0 %v7364
    %v7515 = vpop.f32.mrb[0].mxu0
    %v7516 = vadd.f32 0.0, %v7515
    %v7517 = vpop.f32.mrb[0].mxu0
    %7518 = vmatprep.mubr.f32.mxu0 0.0
    %7519 = vmatmul.mubr.f32.gmra.mrb[0].mxu0 %v7365
    %v7520 = vpop.f32.mrb[0].mxu0
    %v7521 = vadd.f32 0.0, %v7520
    %v7522 = vpop.f32.mrb[0].mxu0
    %7523 = vmatprep.mubr.f32.mxu0 0.0
    %7524 = vmatmul.mubr.f32.gmra.mrb[0].mxu0 %v7366
    %v7525 = vpop.f32.mrb[0].mxu0
    %v7526 = vadd.f32 0.0, %v7525
    %v7527 = vpop.f32.mrb[0].mxu0
    %7528 = vdwg.mxu0
    %v7529 = vadd.f32 %v7335, %v7451
    %v7530 = vadd.f32 %v7336, %v7456
    %v7531 = vadd.f32 %v7337, %v7461
    %v7532 = vadd.f32 %v7338, %v7466
    %v7533 = vadd.f32 %v7339, %v7471
    %v7534 = vadd.f32 %v7340, %v7476
    %v7535 = vadd.f32 %v7341, %v7481
    %v7536 = vadd.f32 %v7342, %v7486
    %v7537 = vadd.f32 %v7343, %v7491
    %v7538 = vadd.f32 %v7344, %v7496
    %v7539 = vadd.f32 %v7345, %v7501
    %v7540 = vadd.f32 %v7346, %v7506
    %v7541 = vadd.f32 %v7347, %v7511
    %v7542 = vadd.f32 %v7348, %v7516
    %v7543 = vadd.f32 %v7349, %v7521
    %v7544 = vadd.f32 %v7350, %v7526
    %v7545 = vmax.f32 %v7529, 0.0
    %v7546 = vmax.f32 %v7530, 0.0
    %v7547 = vmax.f32 %v7531, 0.0
    %v7548 = vmax.f32 %v7532, 0.0
    %v7549 = vmax.f32 %v7533, 0.0
    %v7550 = vmax.f32 %v7534, 0.0
    %v7551 = vmax.f32 %v7535, 0.0
    %v7552 = vmax.f32 %v7536, 0.0
    %v7553 = vmax.f32 %v7537, 0.0
    %v7554 = vmax.f32 %v7538, 0.0
    %v7555 = vmax.f32 %v7539, 0.0
    %v7556 = vmax.f32 %v7540, 0.0
    %v7557 = vmax.f32 %v7541, 0.0
    %v7558 = vmax.f32 %v7542, 0.0
    %v7559 = vmax.f32 %v7543, 0.0
    %v7560 = vmax.f32 %v7544, 0.0
    %7561 = vst [vmem:[#allocation3] sm:$0xff] %v7545
    %7562 = vst [vmem:[#allocation3 + $0x8] sm:$0xff] %v7546
    %7563 = vst [vmem:[#allocation3 + $0x10] sm:$0xff] %v7547
    %7564 = vst [vmem:[#allocation3 + $0x18] sm:$0xff] %v7548
    %7565 = vst [vmem:[#allocation3 + $0x20] sm:$0xff] %v7549
    %7566 = vst [vmem:[#allocation3 + $0x28] sm:$0xff] %v7550
    %7567 = vst [vmem:[#allocation3 + $0x30] sm:$0xff] %v7551
    %7568 = vst [vmem:[#allocation3 + $0x38] sm:$0xff] %v7552
    %7569 = vst [vmem:[#allocation3 + $0x40] sm:$0xff] %v7553
    %7570 = vst [vmem:[#allocation3 + $0x48] sm:$0xff] %v7554
    %7571 = vst [vmem:[#allocation3 + $0x50] sm:$0xff] %v7555
    %7572 = vst [vmem:[#allocation3 + $0x58] sm:$0xff] %v7556
    %7573 = vst [vmem:[#allocation3 + $0x60] sm:$0xff] %v7557
    %7574 = vst [vmem:[#allocation3 + $0x68] sm:$0xff] %v7558
    %7575 = vst [vmem:[#allocation3 + $0x70] sm:$0xff] %v7559
    %7576 = vst [vmem:[#allocation3 + $0x78] sm:$0xff] %v7560
    %v7577 = vld [vmem:[%s6] sm:$0x1]
    %v7579 = vlaneseq
    %v7580 = vshrl.u32 %v7579, 7
    %v7581 = vsub.s32 0, %v7580
    %v7582 = vrot.slane %v7577, %v7581
    %v7584 = vadd.f32 %v7582, 0.0
    %v7585 = vld [vmem:[#allocation3] sm:$0x1]
    %v7586 = vld [vmem:[#allocation3 + $0x40] sm:$0x1]
    %v7587 = vld [vmem:[#allocation3 + $0x1] sm:$0x1]
    %v7588 = vld [vmem:[#allocation3 + $0x41] sm:$0x1]
    %v7589 = vmax.f32 %v7585, %v7587
    %v7590 = vmax.f32 %v7586, %v7588
    %s7591 = scalar_lea.vmem [#allocation3], 8
    %v7592 = vld [vmem:[%s7591] sm:$0x1]
    %v7593 = vld [vmem:[%s7591 + $0x40] sm:$0x1]
    %v7594 = vld [vmem:[%s7591 + $0x1] sm:$0x1]
    %v7595 = vld [vmem:[%s7591 + $0x41] sm:$0x1]
    %v7596 = vmax.f32 %v7592, %v7594
    %v7597 = vmax.f32 %v7593, %v7595
    %v7598 = vmax.f32 %v7589, %v7596
    %v7599 = vmax.f32 %v7590, %v7597
    %v7600 = vld [vmem:[%s5] sm:$0xff]
    %v7601 = vld [vmem:[%s5 + $0x8] sm:$0xff]
    %v7602 = vld [vmem:[%s5 + $0x10] sm:$0xff]
    %v7603 = vld [vmem:[%s5 + $0x18] sm:$0xff]
    %v7604 = vld [vmem:[%s5 + $0x20] sm:$0xff]
    %v7605 = vld [vmem:[%s5 + $0x28] sm:$0xff]
    %v7606 = vld [vmem:[%s5 + $0x30] sm:$0xff]
    %v7607 = vld [vmem:[%s5 + $0x38] sm:$0xff]
    %v7608 = vld [vmem:[%s5 + $0x40] sm:$0xff]
    %v7609 = vld [vmem:[%s5 + $0x48] sm:$0xff]
    %v7610 = vld [vmem:[%s5 + $0x50] sm:$0xff]
    %v7611 = vld [vmem:[%s5 + $0x58] sm:$0xff]
    %v7612 = vld [vmem:[%s5 + $0x60] sm:$0xff]
    %v7613 = vld [vmem:[%s5 + $0x68] sm:$0xff]
    %v7614 = vld [vmem:[%s5 + $0x70] sm:$0xff]
    %v7615 = vld [vmem:[%s5 + $0x78] sm:$0xff]
    %v7618 = vrot.slane %v7599, 7
    %vm7619 = vcmask 1041409
    %v7620 = vsel %vm7619, %v7618, %v7598
    %7622 = vmatprep.subr.mxu0 0.0
    %7623 = vmatpush1.msra.mxu0 %v7600
    %7624 = vmatprep.subr.mxu0 0.0
    %7625 = vmatpush1.msra.mxu0 %v7601
    %7626 = vmatprep.subr.mxu0 0.0
    %7627 = vmatpush1.msra.mxu0 %v7602
    %7628 = vmatprep.subr.mxu0 0.0
    %7629 = vmatpush1.msra.mxu0 %v7603
    %7630 = vmatprep.subr.mxu0 0.0
    %7631 = vmatpush1.msra.mxu0 %v7604
    %7632 = vmatprep.subr.mxu0 0.0
    %7633 = vmatpush1.msra.mxu0 %v7605
    %7634 = vmatprep.subr.mxu0 0.0
    %7635 = vmatpush1.msra.mxu0 %v7606
    %7636 = vmatprep.subr.mxu0 0.0
    %7637 = vmatpush1.msra.mxu0 %v7607
    %7638 = vmatprep.subr.mxu0 0.0
    %7639 = vmatpush1.msra.mxu0 %v7608
    %7640 = vmatprep.subr.mxu0 0.0
    %7641 = vmatpush1.msra.mxu0 %v7609
    %7642 = vmatprep.subr.mxu0 0.0
    %7643 = vmatpush1.msra.mxu0 %v7610
    %7644 = vmatprep.subr.mxu0 0.0
    %7645 = vmatpush1.msra.mxu0 %v7611
    %7646 = vmatprep.subr.mxu0 0.0
    %7647 = vmatpush1.msra.mxu0 %v7612
    %7648 = vmatprep.subr.mxu0 0.0
    %7649 = vmatpush1.msra.mxu0 %v7613
    %7650 = vmatprep.subr.mxu0 0.0
    %7651 = vmatpush1.msra.mxu0 %v7614
    %7652 = vmatprep.subr.mxu0 0.0
    %7653 = vmatpush1.msra.mxu0 %v7615
    %7654 = vmatprep.subr.mxu0 0.0
    %7655 = vmatpush1.msra.mxu0 0.0
    %7656 = vmatprep.subr.mxu0 0.0
    %7657 = vmatpush1.msra.mxu0 0.0
    %7658 = vmatprep.subr.mxu0 0.0
    %7659 = vmatpush1.msra.mxu0 0.0
    %7660 = vmatprep.subr.mxu0 0.0
    %7661 = vmatpush1.msra.mxu0 0.0
    %7662 = vmatprep.subr.mxu0 0.0
    %7663 = vmatpush1.msra.mxu0 0.0
    %7664 = vmatprep.subr.mxu0 0.0
    %7665 = vmatpush1.msra.mxu0 0.0
    %7666 = vmatprep.subr.mxu0 0.0
    %7667 = vmatpush1.msra.mxu0 0.0
    %7668 = vmatprep.subr.mxu0 0.0
    %7669 = vmatpush1.msra.mxu0 0.0
    %7670 = vmatprep.subr.mxu0 0.0
    %7671 = vmatpush1.msra.mxu0 0.0
    %7672 = vmatprep.subr.mxu0 0.0
    %7673 = vmatpush1.msra.mxu0 0.0
    %7674 = vmatprep.subr.mxu0 0.0
    %7675 = vmatpush1.msra.mxu0 0.0
    %7676 = vmatprep.subr.mxu0 0.0
    %7677 = vmatpush1.msra.mxu0 0.0
    %7678 = vmatprep.subr.mxu0 0.0
    %7679 = vmatpush1.msra.mxu0 0.0
    %7680 = vmatprep.subr.mxu0 0.0
    %7681 = vmatpush1.msra.mxu0 0.0
    %7682 = vmatprep.subr.mxu0 0.0
    %7683 = vmatpush1.msra.mxu0 0.0
    %7684 = vmatprep.subr.mxu0 0.0
    %7685 = vmatpush1.msra.mxu0 0.0
    %7686 = vmatprep.mubr.f32.mxu0 0.0
    %7687 = vmatmul.mubr.f32.gmra.mrb[0].mxu0 %v7620
    %v7688 = vpop.f32.mrb[0].mxu0
    %v7689 = vadd.f32 0.0, %v7688
    %v7690 = vpop.f32.mrb[0].mxu0
    %7691 = vdwg.mxu0
    %v7692 = vadd.f32 %v7584, %v7689
    %v7693 = vld [vmem:[#allocation3 + $0x2] sm:$0x1]
    %v7694 = vld [vmem:[#allocation3 + $0x42] sm:$0x1]
    %v7695 = vld [vmem:[#allocation3 + $0x3] sm:$0x1]
    %v7696 = vld [vmem:[#allocation3 + $0x43] sm:$0x1]
    %v7697 = vmax.f32 %v7693, %v7695
    %v7698 = vmax.f32 %v7694, %v7696
    %v7699 = vld [vmem:[%s7591 + $0x2] sm:$0x1]
    %v7700 = vld [vmem:[%s7591 + $0x42] sm:$0x1]
    %v7701 = vld [vmem:[%s7591 + $0x3] sm:$0x1]
    %v7702 = vld [vmem:[%s7591 + $0x43] sm:$0x1]
    %v7703 = vmax.f32 %v7699, %v7701
    %v7704 = vmax.f32 %v7700, %v7702
    %v7705 = vmax.f32 %v7697, %v7703
    %v7706 = vmax.f32 %v7698, %v7704
    %s7707 = scalar_lea.vmem %s5, 128
    %v7708 = vld [vmem:[%s7707] sm:$0xff]
    %v7709 = vld [vmem:[%s7707 + $0x8] sm:$0xff]
    %v7710 = vld [vmem:[%s7707 + $0x10] sm:$0xff]
    %v7711 = vld [vmem:[%s7707 + $0x18] sm:$0xff]
    %v7712 = vld [vmem:[%s7707 + $0x20] sm:$0xff]
    %v7713 = vld [vmem:[%s7707 + $0x28] sm:$0xff]
    %v7714 = vld [vmem:[%s7707 + $0x30] sm:$0xff]
    %v7715 = vld [vmem:[%s7707 + $0x38] sm:$0xff]
    %v7716 = vld [vmem:[%s7707 + $0x40] sm:$0xff]
    %v7717 = vld [vmem:[%s7707 + $0x48] sm:$0xff]
    %v7718 = vld [vmem:[%s7707 + $0x50] sm:$0xff]
    %v7719 = vld [vmem:[%s7707 + $0x58] sm:$0xff]
    %v7720 = vld [vmem:[%s7707 + $0x60] sm:$0xff]
    %v7721 = vld [vmem:[%s7707 + $0x68] sm:$0xff]
    %v7722 = vld [vmem:[%s7707 + $0x70] sm:$0xff]
    %v7723 = vld [vmem:[%s7707 + $0x78] sm:$0xff]
    %v7726 = vrot.slane %v7706, 7
    %v7727 = vsel %vm7619, %v7726, %v7705
    %7729 = vmatprep.subr.mxu0 0.0
    %7730 = vmatpush1.msra.mxu0 %v7708
    %7731 = vmatprep.subr.mxu0 0.0
    %7732 = vmatpush1.msra.mxu0 %v7709
    %7733 = vmatprep.subr.mxu0 0.0
    %7734 = vmatpush1.msra.mxu0 %v7710
    %7735 = vmatprep.subr.mxu0 0.0
    %7736 = vmatpush1.msra.mxu0 %v7711
    %7737 = vmatprep.subr.mxu0 0.0
    %7738 = vmatpush1.msra.mxu0 %v7712
    %7739 = vmatprep.subr.mxu0 0.0
    %7740 = vmatpush1.msra.mxu0 %v7713
    %7741 = vmatprep.subr.mxu0 0.0
    %7742 = vmatpush1.msra.mxu0 %v7714
    %7743 = vmatprep.subr.mxu0 0.0
    %7744 = vmatpush1.msra.mxu0 %v7715
    %7745 = vmatprep.subr.mxu0 0.0
    %7746 = vmatpush1.msra.mxu0 %v7716
    %7747 = vmatprep.subr.mxu0 0.0
    %7748 = vmatpush1.msra.mxu0 %v7717
    %7749 = vmatprep.subr.mxu0 0.0
    %7750 = vmatpush1.msra.mxu0 %v7718
    %7751 = vmatprep.subr.mxu0 0.0
    %7752 = vmatpush1.msra.mxu0 %v7719
    %7753 = vmatprep.subr.mxu0 0.0
    %7754 = vmatpush1.msra.mxu0 %v7720
    %7755 = vmatprep.subr.mxu0 0.0
    %7756 = vmatpush1.msra.mxu0 %v7721
    %7757 = vmatprep.subr.mxu0 0.0
    %7758 = vmatpush1.msra.mxu0 %v7722
    %7759 = vmatprep.subr.mxu0 0.0
    %7760 = vmatpush1.msra.mxu0 %v7723
    %7761 = vmatprep.subr.mxu0 0.0
    %7762 = vmatpush1.msra.mxu0 0.0
    %7763 = vmatprep.subr.mxu0 0.0
    %7764 = vmatpush1.msra.mxu0 0.0
    %7765 = vmatprep.subr.mxu0 0.0
    %7766 = vmatpush1.msra.mxu0 0.0
    %7767 = vmatprep.subr.mxu0 0.0
    %7768 = vmatpush1.msra.mxu0 0.0
    %7769 = vmatprep.subr.mxu0 0.0
    %7770 = vmatpush1.msra.mxu0 0.0
    %7771 = vmatprep.subr.mxu0 0.0
    %7772 = vmatpush1.msra.mxu0 0.0
    %7773 = vmatprep.subr.mxu0 0.0
    %7774 = vmatpush1.msra.mxu0 0.0
    %7775 = vmatprep.subr.mxu0 0.0
    %7776 = vmatpush1.msra.mxu0 0.0
    %7777 = vmatprep.subr.mxu0 0.0
    %7778 = vmatpush1.msra.mxu0 0.0
    %7779 = vmatprep.subr.mxu0 0.0
    %7780 = vmatpush1.msra.mxu0 0.0
    %7781 = vmatprep.subr.mxu0 0.0
    %7782 = vmatpush1.msra.mxu0 0.0
    %7783 = vmatprep.subr.mxu0 0.0
    %7784 = vmatpush1.msra.mxu0 0.0
    %7785 = vmatprep.subr.mxu0 0.0
    %7786 = vmatpush1.msra.mxu0 0.0
    %7787 = vmatprep.subr.mxu0 0.0
    %7788 = vmatpush1.msra.mxu0 0.0
    %7789 = vmatprep.subr.mxu0 0.0
    %7790 = vmatpush1.msra.mxu0 0.0
    %7791 = vmatprep.subr.mxu0 0.0
    %7792 = vmatpush1.msra.mxu0 0.0
    %7793 = vmatprep.mubr.f32.mxu0 0.0
    %7794 = vmatmul.mubr.f32.gmra.mrb[0].mxu0 %v7727
    %v7795 = vpop.f32.mrb[0].mxu0
    %v7796 = vadd.f32 0.0, %v7795
    %v7797 = vpop.f32.mrb[0].mxu0
    %7798 = vdwg.mxu0
    %v7799 = vadd.f32 %v7692, %v7796
    %v7800 = vld [vmem:[#allocation3 + $0x4] sm:$0x1]
    %v7801 = vld [vmem:[#allocation3 + $0x44] sm:$0x1]
    %v7802 = vld [vmem:[#allocation3 + $0x5] sm:$0x1]
    %v7803 = vld [vmem:[#allocation3 + $0x45] sm:$0x1]
    %v7804 = vmax.f32 %v7800, %v7802
    %v7805 = vmax.f32 %v7801, %v7803
    %v7806 = vld [vmem:[%s7591 + $0x4] sm:$0x1]
    %v7807 = vld [vmem:[%s7591 + $0x44] sm:$0x1]
    %v7808 = vld [vmem:[%s7591 + $0x5] sm:$0x1]
    %v7809 = vld [vmem:[%s7591 + $0x45] sm:$0x1]
    %v7810 = vmax.f32 %v7806, %v7808
    %v7811 = vmax.f32 %v7807, %v7809
    %v7812 = vmax.f32 %v7804, %v7810
    %v7813 = vmax.f32 %v7805, %v7811
    %s7814 = scalar_lea.vmem %s5, 256
    %v7815 = vld [vmem:[%s7814] sm:$0xff]
    %v7816 = vld [vmem:[%s7814 + $0x8] sm:$0xff]
    %v7817 = vld [vmem:[%s7814 + $0x10] sm:$0xff]
    %v7818 = vld [vmem:[%s7814 + $0x18] sm:$0xff]
    %v7819 = vld [vmem:[%s7814 + $0x20] sm:$0xff]
    %v7820 = vld [vmem:[%s7814 + $0x28] sm:$0xff]
    %v7821 = vld [vmem:[%s7814 + $0x30] sm:$0xff]
    %v7822 = vld [vmem:[%s7814 + $0x38] sm:$0xff]
    %v7823 = vld [vmem:[%s7814 + $0x40] sm:$0xff]
    %v7824 = vld [vmem:[%s7814 + $0x48] sm:$0xff]
    %v7825 = vld [vmem:[%s7814 + $0x50] sm:$0xff]
    %v7826 = vld [vmem:[%s7814 + $0x58] sm:$0xff]
    %v7827 = vld [vmem:[%s7814 + $0x60] sm:$0xff]
    %v7828 = vld [vmem:[%s7814 + $0x68] sm:$0xff]
    %v7829 = vld [vmem:[%s7814 + $0x70] sm:$0xff]
    %v7830 = vld [vmem:[%s7814 + $0x78] sm:$0xff]
    %v7833 = vrot.slane %v7813, 7
    %v7834 = vsel %vm7619, %v7833, %v7812
    %7836 = vmatprep.subr.mxu0 0.0
    %7837 = vmatpush1.msra.mxu0 %v7815
    %7838 = vmatprep.subr.mxu0 0.0
    %7839 = vmatpush1.msra.mxu0 %v7816
    %7840 = vmatprep.subr.mxu0 0.0
    %7841 = vmatpush1.msra.mxu0 %v7817
    %7842 = vmatprep.subr.mxu0 0.0
    %7843 = vmatpush1.msra.mxu0 %v7818
    %7844 = vmatprep.subr.mxu0 0.0
    %7845 = vmatpush1.msra.mxu0 %v7819
    %7846 = vmatprep.subr.mxu0 0.0
    %7847 = vmatpush1.msra.mxu0 %v7820
    %7848 = vmatprep.subr.mxu0 0.0
    %7849 = vmatpush1.msra.mxu0 %v7821
    %7850 = vmatprep.subr.mxu0 0.0
    %7851 = vmatpush1.msra.mxu0 %v7822
    %7852 = vmatprep.subr.mxu0 0.0
    %7853 = vmatpush1.msra.mxu0 %v7823
    %7854 = vmatprep.subr.mxu0 0.0
    %7855 = vmatpush1.msra.mxu0 %v7824
    %7856 = vmatprep.subr.mxu0 0.0
    %7857 = vmatpush1.msra.mxu0 %v7825
    %7858 = vmatprep.subr.mxu0 0.0
    %7859 = vmatpush1.msra.mxu0 %v7826
    %7860 = vmatprep.subr.mxu0 0.0
    %7861 = vmatpush1.msra.mxu0 %v7827
    %7862 = vmatprep.subr.mxu0 0.0
    %7863 = vmatpush1.msra.mxu0 %v7828
    %7864 = vmatprep.subr.mxu0 0.0
    %7865 = vmatpush1.msra.mxu0 %v7829
    %7866 = vmatprep.subr.mxu0 0.0
    %7867 = vmatpush1.msra.mxu0 %v7830
    %7868 = vmatprep.subr.mxu0 0.0
    %7869 = vmatpush1.msra.mxu0 0.0
    %7870 = vmatprep.subr.mxu0 0.0
    %7871 = vmatpush1.msra.mxu0 0.0
    %7872 = vmatprep.subr.mxu0 0.0
    %7873 = vmatpush1.msra.mxu0 0.0
    %7874 = vmatprep.subr.mxu0 0.0
    %7875 = vmatpush1.msra.mxu0 0.0
    %7876 = vmatprep.subr.mxu0 0.0
    %7877 = vmatpush1.msra.mxu0 0.0
    %7878 = vmatprep.subr.mxu0 0.0
    %7879 = vmatpush1.msra.mxu0 0.0
    %7880 = vmatprep.subr.mxu0 0.0
    %7881 = vmatpush1.msra.mxu0 0.0
    %7882 = vmatprep.subr.mxu0 0.0
    %7883 = vmatpush1.msra.mxu0 0.0
    %7884 = vmatprep.subr.mxu0 0.0
    %7885 = vmatpush1.msra.mxu0 0.0
    %7886 = vmatprep.subr.mxu0 0.0
    %7887 = vmatpush1.msra.mxu0 0.0
    %7888 = vmatprep.subr.mxu0 0.0
    %7889 = vmatpush1.msra.mxu0 0.0
    %7890 = vmatprep.subr.mxu0 0.0
    %7891 = vmatpush1.msra.mxu0 0.0
    %7892 = vmatprep.subr.mxu0 0.0
    %7893 = vmatpush1.msra.mxu0 0.0
    %7894 = vmatprep.subr.mxu0 0.0
    %7895 = vmatpush1.msra.mxu0 0.0
    %7896 = vmatprep.subr.mxu0 0.0
    %7897 = vmatpush1.msra.mxu0 0.0
    %7898 = vmatprep.subr.mxu0 0.0
    %7899 = vmatpush1.msra.mxu0 0.0
    %7900 = vmatprep.mubr.f32.mxu0 0.0
    %7901 = vmatmul.mubr.f32.gmra.mrb[0].mxu0 %v7834
    %v7902 = vpop.f32.mrb[0].mxu0
    %v7903 = vadd.f32 0.0, %v7902
    %v7904 = vpop.f32.mrb[0].mxu0
    %7905 = vdwg.mxu0
    %v7906 = vadd.f32 %v7799, %v7903
    %v7907 = vld [vmem:[#allocation3 + $0x6] sm:$0x1]
    %v7908 = vld [vmem:[#allocation3 + $0x46] sm:$0x1]
    %v7909 = vld [vmem:[#allocation3 + $0x7] sm:$0x1]
    %v7910 = vld [vmem:[#allocation3 + $0x47] sm:$0x1]
    %v7911 = vmax.f32 %v7907, %v7909
    %v7912 = vmax.f32 %v7908, %v7910
    %v7913 = vld [vmem:[%s7591 + $0x6] sm:$0x1]
    %v7914 = vld [vmem:[%s7591 + $0x46] sm:$0x1]
    %v7915 = vld [vmem:[%s7591 + $0x7] sm:$0x1]
    %v7916 = vld [vmem:[%s7591 + $0x47] sm:$0x1]
    %v7917 = vmax.f32 %v7913, %v7915
    %v7918 = vmax.f32 %v7914, %v7916
    %v7919 = vmax.f32 %v7911, %v7917
    %v7920 = vmax.f32 %v7912, %v7918
    %s7921 = scalar_lea.vmem %s5, 384
    %v7922 = vld [vmem:[%s7921] sm:$0xff]
    %v7923 = vld [vmem:[%s7921 + $0x8] sm:$0xff]
    %v7924 = vld [vmem:[%s7921 + $0x10] sm:$0xff]
    %v7925 = vld [vmem:[%s7921 + $0x18] sm:$0xff]
    %v7926 = vld [vmem:[%s7921 + $0x20] sm:$0xff]
    %v7927 = vld [vmem:[%s7921 + $0x28] sm:$0xff]
    %v7928 = vld [vmem:[%s7921 + $0x30] sm:$0xff]
    %v7929 = vld [vmem:[%s7921 + $0x38] sm:$0xff]
    %v7930 = vld [vmem:[%s7921 + $0x40] sm:$0xff]
    %v7931 = vld [vmem:[%s7921 + $0x48] sm:$0xff]
    %v7932 = vld [vmem:[%s7921 + $0x50] sm:$0xff]
    %v7933 = vld [vmem:[%s7921 + $0x58] sm:$0xff]
    %v7934 = vld [vmem:[%s7921 + $0x60] sm:$0xff]
    %v7935 = vld [vmem:[%s7921 + $0x68] sm:$0xff]
    %v7936 = vld [vmem:[%s7921 + $0x70] sm:$0xff]
    %v7937 = vld [vmem:[%s7921 + $0x78] sm:$0xff]
    %v7940 = vrot.slane %v7920, 7
    %v7941 = vsel %vm7619, %v7940, %v7919
    %7943 = vmatprep.subr.mxu0 0.0
    %7944 = vmatpush1.msra.mxu0 %v7922
    %7945 = vmatprep.subr.mxu0 0.0
    %7946 = vmatpush1.msra.mxu0 %v7923
    %7947 = vmatprep.subr.mxu0 0.0
    %7948 = vmatpush1.msra.mxu0 %v7924
    %7949 = vmatprep.subr.mxu0 0.0
    %7950 = vmatpush1.msra.mxu0 %v7925
    %7951 = vmatprep.subr.mxu0 0.0
    %7952 = vmatpush1.msra.mxu0 %v7926
    %7953 = vmatprep.subr.mxu0 0.0
    %7954 = vmatpush1.msra.mxu0 %v7927
    %7955 = vmatprep.subr.mxu0 0.0
    %7956 = vmatpush1.msra.mxu0 %v7928
    %7957 = vmatprep.subr.mxu0 0.0
    %7958 = vmatpush1.msra.mxu0 %v7929
    %7959 = vmatprep.subr.mxu0 0.0
    %7960 = vmatpush1.msra.mxu0 %v7930
    %7961 = vmatprep.subr.mxu0 0.0
    %7962 = vmatpush1.msra.mxu0 %v7931
    %7963 = vmatprep.subr.mxu0 0.0
    %7964 = vmatpush1.msra.mxu0 %v7932
    %7965 = vmatprep.subr.mxu0 0.0
    %7966 = vmatpush1.msra.mxu0 %v7933
    %7967 = vmatprep.subr.mxu0 0.0
    %7968 = vmatpush1.msra.mxu0 %v7934
    %7969 = vmatprep.subr.mxu0 0.0
    %7970 = vmatpush1.msra.mxu0 %v7935
    %7971 = vmatprep.subr.mxu0 0.0
    %7972 = vmatpush1.msra.mxu0 %v7936
    %7973 = vmatprep.subr.mxu0 0.0
    %7974 = vmatpush1.msra.mxu0 %v7937
    %7975 = vmatprep.subr.mxu0 0.0
    %7976 = vmatpush1.msra.mxu0 0.0
    %7977 = vmatprep.subr.mxu0 0.0
    %7978 = vmatpush1.msra.mxu0 0.0
    %7979 = vmatprep.subr.mxu0 0.0
    %7980 = vmatpush1.msra.mxu0 0.0
    %7981 = vmatprep.subr.mxu0 0.0
    %7982 = vmatpush1.msra.mxu0 0.0
    %7983 = vmatprep.subr.mxu0 0.0
    %7984 = vmatpush1.msra.mxu0 0.0
    %7985 = vmatprep.subr.mxu0 0.0
    %7986 = vmatpush1.msra.mxu0 0.0
    %7987 = vmatprep.subr.mxu0 0.0
    %7988 = vmatpush1.msra.mxu0 0.0
    %7989 = vmatprep.subr.mxu0 0.0
    %7990 = vmatpush1.msra.mxu0 0.0
    %7991 = vmatprep.subr.mxu0 0.0
    %7992 = vmatpush1.msra.mxu0 0.0
    %7993 = vmatprep.subr.mxu0 0.0
    %7994 = vmatpush1.msra.mxu0 0.0
    %7995 = vmatprep.subr.mxu0 0.0
    %7996 = vmatpush1.msra.mxu0 0.0
    %7997 = vmatprep.subr.mxu0 0.0
    %7998 = vmatpush1.msra.mxu0 0.0
    %7999 = vmatprep.subr.mxu0 0.0
    %8000 = vmatpush1.msra.mxu0 0.0
    %8001 = vmatprep.subr.mxu0 0.0
    %8002 = vmatpush1.msra.mxu0 0.0
    %8003 = vmatprep.subr.mxu0 0.0
    %8004 = vmatpush1.msra.mxu0 0.0
    %8005 = vmatprep.subr.mxu0 0.0
    %8006 = vmatpush1.msra.mxu0 0.0
    %8007 = vmatprep.mubr.f32.mxu0 0.0
    %8008 = vmatmul.mubr.f32.gmra.mrb[0].mxu0 %v7941
    %v8009 = vpop.f32.mrb[0].mxu0
    %v8010 = vadd.f32 0.0, %v8009
    %v8011 = vpop.f32.mrb[0].mxu0
    %8012 = vdwg.mxu0
    %v8013 = vadd.f32 %v7906, %v8010
    %s8014 = scalar_lea.vmem [#allocation3], 16
    %v8015 = vld [vmem:[%s8014] sm:$0x1]
    %v8016 = vld [vmem:[%s8014 + $0x40] sm:$0x1]
    %v8017 = vld [vmem:[%s8014 + $0x1] sm:$0x1]
    %v8018 = vld [vmem:[%s8014 + $0x41] sm:$0x1]
    %v8019 = vmax.f32 %v8015, %v8017
    %v8020 = vmax.f32 %v8016, %v8018
    %s8021 = scalar_lea.vmem [#allocation3], 24
    %v8022 = vld [vmem:[%s8021] sm:$0x1]
    %v8023 = vld [vmem:[%s8021 + $0x40] sm:$0x1]
    %v8024 = vld [vmem:[%s8021 + $0x1] sm:$0x1]
    %v8025 = vld [vmem:[%s8021 + $0x41] sm:$0x1]
    %v8026 = vmax.f32 %v8022, %v8024
    %v8027 = vmax.f32 %v8023, %v8025
    %v8028 = vmax.f32 %v8019, %v8026
    %v8029 = vmax.f32 %v8020, %v8027
    %s8030 = scalar_lea.vmem %s5, 512
    %v8031 = vld [vmem:[%s8030] sm:$0xff]
    %v8032 = vld [vmem:[%s8030 + $0x8] sm:$0xff]
    %v8033 = vld [vmem:[%s8030 + $0x10] sm:$0xff]
    %v8034 = vld [vmem:[%s8030 + $0x18] sm:$0xff]
    %v8035 = vld [vmem:[%s8030 + $0x20] sm:$0xff]
    %v8036 = vld [vmem:[%s8030 + $0x28] sm:$0xff]
    %v8037 = vld [vmem:[%s8030 + $0x30] sm:$0xff]
    %v8038 = vld [vmem:[%s8030 + $0x38] sm:$0xff]
    %v8039 = vld [vmem:[%s8030 + $0x40] sm:$0xff]
    %v8040 = vld [vmem:[%s8030 + $0x48] sm:$0xff]
    %v8041 = vld [vmem:[%s8030 + $0x50] sm:$0xff]
    %v8042 = vld [vmem:[%s8030 + $0x58] sm:$0xff]
    %v8043 = vld [vmem:[%s8030 + $0x60] sm:$0xff]
    %v8044 = vld [vmem:[%s8030 + $0x68] sm:$0xff]
    %v8045 = vld [vmem:[%s8030 + $0x70] sm:$0xff]
    %v8046 = vld [vmem:[%s8030 + $0x78] sm:$0xff]
    %v8049 = vrot.slane %v8029, 7
    %v8050 = vsel %vm7619, %v8049, %v8028
    %8052 = vmatprep.subr.mxu0 0.0
    %8053 = vmatpush1.msra.mxu0 %v8031
    %8054 = vmatprep.subr.mxu0 0.0
    %8055 = vmatpush1.msra.mxu0 %v8032
    %8056 = vmatprep.subr.mxu0 0.0
    %8057 = vmatpush1.msra.mxu0 %v8033
    %8058 = vmatprep.subr.mxu0 0.0
    %8059 = vmatpush1.msra.mxu0 %v8034
    %8060 = vmatprep.subr.mxu0 0.0
    %8061 = vmatpush1.msra.mxu0 %v8035
    %8062 = vmatprep.subr.mxu0 0.0
    %8063 = vmatpush1.msra.mxu0 %v8036
    %8064 = vmatprep.subr.mxu0 0.0
    %8065 = vmatpush1.msra.mxu0 %v8037
    %8066 = vmatprep.subr.mxu0 0.0
    %8067 = vmatpush1.msra.mxu0 %v8038
    %8068 = vmatprep.subr.mxu0 0.0
    %8069 = vmatpush1.msra.mxu0 %v8039
    %8070 = vmatprep.subr.mxu0 0.0
    %8071 = vmatpush1.msra.mxu0 %v8040
    %8072 = vmatprep.subr.mxu0 0.0
    %8073 = vmatpush1.msra.mxu0 %v8041
    %8074 = vmatprep.subr.mxu0 0.0
    %8075 = vmatpush1.msra.mxu0 %v8042
    %8076 = vmatprep.subr.mxu0 0.0
    %8077 = vmatpush1.msra.mxu0 %v8043
    %8078 = vmatprep.subr.mxu0 0.0
    %8079 = vmatpush1.msra.mxu0 %v8044
    %8080 = vmatprep.subr.mxu0 0.0
    %8081 = vmatpush1.msra.mxu0 %v8045
    %8082 = vmatprep.subr.mxu0 0.0
    %8083 = vmatpush1.msra.mxu0 %v8046
    %8084 = vmatprep.subr.mxu0 0.0
    %8085 = vmatpush1.msra.mxu0 0.0
    %8086 = vmatprep.subr.mxu0 0.0
    %8087 = vmatpush1.msra.mxu0 0.0
    %8088 = vmatprep.subr.mxu0 0.0
    %8089 = vmatpush1.msra.mxu0 0.0
    %8090 = vmatprep.subr.mxu0 0.0
    %8091 = vmatpush1.msra.mxu0 0.0
    %8092 = vmatprep.subr.mxu0 0.0
    %8093 = vmatpush1.msra.mxu0 0.0
    %8094 = vmatprep.subr.mxu0 0.0
    %8095 = vmatpush1.msra.mxu0 0.0
    %8096 = vmatprep.subr.mxu0 0.0
    %8097 = vmatpush1.msra.mxu0 0.0
    %8098 = vmatprep.subr.mxu0 0.0
    %8099 = vmatpush1.msra.mxu0 0.0
    %8100 = vmatprep.subr.mxu0 0.0
    %8101 = vmatpush1.msra.mxu0 0.0
    %8102 = vmatprep.subr.mxu0 0.0
    %8103 = vmatpush1.msra.mxu0 0.0
    %8104 = vmatprep.subr.mxu0 0.0
    %8105 = vmatpush1.msra.mxu0 0.0
    %8106 = vmatprep.subr.mxu0 0.0
    %8107 = vmatpush1.msra.mxu0 0.0
    %8108 = vmatprep.subr.mxu0 0.0
    %8109 = vmatpush1.msra.mxu0 0.0
    %8110 = vmatprep.subr.mxu0 0.0
    %8111 = vmatpush1.msra.mxu0 0.0
    %8112 = vmatprep.subr.mxu0 0.0
    %8113 = vmatpush1.msra.mxu0 0.0
    %8114 = vmatprep.subr.mxu0 0.0
    %8115 = vmatpush1.msra.mxu0 0.0
    %8116 = vmatprep.mubr.f32.mxu0 0.0
    %8117 = vmatmul.mubr.f32.gmra.mrb[0].mxu0 %v8050
    %v8118 = vpop.f32.mrb[0].mxu0
    %v8119 = vadd.f32 0.0, %v8118
    %v8120 = vpop.f32.mrb[0].mxu0
    %8121 = vdwg.mxu0
    %v8122 = vadd.f32 %v8013, %v8119
    %v8123 = vld [vmem:[%s8014 + $0x2] sm:$0x1]
    %v8124 = vld [vmem:[%s8014 + $0x42] sm:$0x1]
    %v8125 = vld [vmem:[%s8014 + $0x3] sm:$0x1]
    %v8126 = vld [vmem:[%s8014 + $0x43] sm:$0x1]
    %v8127 = vmax.f32 %v8123, %v8125
    %v8128 = vmax.f32 %v8124, %v8126
    %v8129 = vld [vmem:[%s8021 + $0x2] sm:$0x1]
    %v8130 = vld [vmem:[%s8021 + $0x42] sm:$0x1]
    %v8131 = vld [vmem:[%s8021 + $0x3] sm:$0x1]
    %v8132 = vld [vmem:[%s8021 + $0x43] sm:$0x1]
    %v8133 = vmax.f32 %v8129, %v8131
    %v8134 = vmax.f32 %v8130, %v8132
    %v8135 = vmax.f32 %v8127, %v8133
    %v8136 = vmax.f32 %v8128, %v8134
    %s8137 = scalar_lea.vmem %s5, 640
    %v8138 = vld [vmem:[%s8137] sm:$0xff]
    %v8139 = vld [vmem:[%s8137 + $0x8] sm:$0xff]
    %v8140 = vld [vmem:[%s8137 + $0x10] sm:$0xff]
    %v8141 = vld [vmem:[%s8137 + $0x18] sm:$0xff]
    %v8142 = vld [vmem:[%s8137 + $0x20] sm:$0xff]
    %v8143 = vld [vmem:[%s8137 + $0x28] sm:$0xff]
    %v8144 = vld [vmem:[%s8137 + $0x30] sm:$0xff]
    %v8145 = vld [vmem:[%s8137 + $0x38] sm:$0xff]
    %v8146 = vld [vmem:[%s8137 + $0x40] sm:$0xff]
    %v8147 = vld [vmem:[%s8137 + $0x48] sm:$0xff]
    %v8148 = vld [vmem:[%s8137 + $0x50] sm:$0xff]
    %v8149 = vld [vmem:[%s8137 + $0x58] sm:$0xff]
    %v8150 = vld [vmem:[%s8137 + $0x60] sm:$0xff]
    %v8151 = vld [vmem:[%s8137 + $0x68] sm:$0xff]
    %v8152 = vld [vmem:[%s8137 + $0x70] sm:$0xff]
    %v8153 = vld [vmem:[%s8137 + $0x78] sm:$0xff]
    %v8156 = vrot.slane %v8136, 7
    %v8157 = vsel %vm7619, %v8156, %v8135
    %8159 = vmatprep.subr.mxu0 0.0
    %8160 = vmatpush1.msra.mxu0 %v8138
    %8161 = vmatprep.subr.mxu0 0.0
    %8162 = vmatpush1.msra.mxu0 %v8139
    %8163 = vmatprep.subr.mxu0 0.0
    %8164 = vmatpush1.msra.mxu0 %v8140
    %8165 = vmatprep.subr.mxu0 0.0
    %8166 = vmatpush1.msra.mxu0 %v8141
    %8167 = vmatprep.subr.mxu0 0.0
    %8168 = vmatpush1.msra.mxu0 %v8142
    %8169 = vmatprep.subr.mxu0 0.0
    %8170 = vmatpush1.msra.mxu0 %v8143
    %8171 = vmatprep.subr.mxu0 0.0
    %8172 = vmatpush1.msra.mxu0 %v8144
    %8173 = vmatprep.subr.mxu0 0.0
    %8174 = vmatpush1.msra.mxu0 %v8145
    %8175 = vmatprep.subr.mxu0 0.0
    %8176 = vmatpush1.msra.mxu0 %v8146
    %8177 = vmatprep.subr.mxu0 0.0
    %8178 = vmatpush1.msra.mxu0 %v8147
    %8179 = vmatprep.subr.mxu0 0.0
    %8180 = vmatpush1.msra.mxu0 %v8148
    %8181 = vmatprep.subr.mxu0 0.0
    %8182 = vmatpush1.msra.mxu0 %v8149
    %8183 = vmatprep.subr.mxu0 0.0
    %8184 = vmatpush1.msra.mxu0 %v8150
    %8185 = vmatprep.subr.mxu0 0.0
    %8186 = vmatpush1.msra.mxu0 %v8151
    %8187 = vmatprep.subr.mxu0 0.0
    %8188 = vmatpush1.msra.mxu0 %v8152
    %8189 = vmatprep.subr.mxu0 0.0
    %8190 = vmatpush1.msra.mxu0 %v8153
    %8191 = vmatprep.subr.mxu0 0.0
    %8192 = vmatpush1.msra.mxu0 0.0
    %8193 = vmatprep.subr.mxu0 0.0
    %8194 = vmatpush1.msra.mxu0 0.0
    %8195 = vmatprep.subr.mxu0 0.0
    %8196 = vmatpush1.msra.mxu0 0.0
    %8197 = vmatprep.subr.mxu0 0.0
    %8198 = vmatpush1.msra.mxu0 0.0
    %8199 = vmatprep.subr.mxu0 0.0
    %8200 = vmatpush1.msra.mxu0 0.0
    %8201 = vmatprep.subr.mxu0 0.0
    %8202 = vmatpush1.msra.mxu0 0.0
    %8203 = vmatprep.subr.mxu0 0.0
    %8204 = vmatpush1.msra.mxu0 0.0
    %8205 = vmatprep.subr.mxu0 0.0
    %8206 = vmatpush1.msra.mxu0 0.0
    %8207 = vmatprep.subr.mxu0 0.0
    %8208 = vmatpush1.msra.mxu0 0.0
    %8209 = vmatprep.subr.mxu0 0.0
    %8210 = vmatpush1.msra.mxu0 0.0
    %8211 = vmatprep.subr.mxu0 0.0
    %8212 = vmatpush1.msra.mxu0 0.0
    %8213 = vmatprep.subr.mxu0 0.0
    %8214 = vmatpush1.msra.mxu0 0.0
    %8215 = vmatprep.subr.mxu0 0.0
    %8216 = vmatpush1.msra.mxu0 0.0
    %8217 = vmatprep.subr.mxu0 0.0
    %8218 = vmatpush1.msra.mxu0 0.0
    %8219 = vmatprep.subr.mxu0 0.0
    %8220 = vmatpush1.msra.mxu0 0.0
    %8221 = vmatprep.subr.mxu0 0.0
    %8222 = vmatpush1.msra.mxu0 0.0
    %8223 = vmatprep.mubr.f32.mxu0 0.0
    %8224 = vmatmul.mubr.f32.gmra.mrb[0].mxu0 %v8157
    %v8225 = vpop.f32.mrb[0].mxu0
    %v8226 = vadd.f32 0.0, %v8225
    %v8227 = vpop.f32.mrb[0].mxu0
    %8228 = vdwg.mxu0
    %v8229 = vadd.f32 %v8122, %v8226
    %v8230 = vld [vmem:[%s8014 + $0x4] sm:$0x1]
    %v8231 = vld [vmem:[%s8014 + $0x44] sm:$0x1]
    %v8232 = vld [vmem:[%s8014 + $0x5] sm:$0x1]
    %v8233 = vld [vmem:[%s8014 + $0x45] sm:$0x1]
    %v8234 = vmax.f32 %v8230, %v8232
    %v8235 = vmax.f32 %v8231, %v8233
    %v8236 = vld [vmem:[%s8021 + $0x4] sm:$0x1]
    %v8237 = vld [vmem:[%s8021 + $0x44] sm:$0x1]
    %v8238 = vld [vmem:[%s8021 + $0x5] sm:$0x1]
    %v8239 = vld [vmem:[%s8021 + $0x45] sm:$0x1]
    %v8240 = vmax.f32 %v8236, %v8238
    %v8241 = vmax.f32 %v8237, %v8239
    %v8242 = vmax.f32 %v8234, %v8240
    %v8243 = vmax.f32 %v8235, %v8241
    %s8244 = scalar_lea.vmem %s5, 768
    %v8245 = vld [vmem:[%s8244] sm:$0xff]
    %v8246 = vld [vmem:[%s8244 + $0x8] sm:$0xff]
    %v8247 = vld [vmem:[%s8244 + $0x10] sm:$0xff]
    %v8248 = vld [vmem:[%s8244 + $0x18] sm:$0xff]
    %v8249 = vld [vmem:[%s8244 + $0x20] sm:$0xff]
    %v8250 = vld [vmem:[%s8244 + $0x28] sm:$0xff]
    %v8251 = vld [vmem:[%s8244 + $0x30] sm:$0xff]
    %v8252 = vld [vmem:[%s8244 + $0x38] sm:$0xff]
    %v8253 = vld [vmem:[%s8244 + $0x40] sm:$0xff]
    %v8254 = vld [vmem:[%s8244 + $0x48] sm:$0xff]
    %v8255 = vld [vmem:[%s8244 + $0x50] sm:$0xff]
    %v8256 = vld [vmem:[%s8244 + $0x58] sm:$0xff]
    %v8257 = vld [vmem:[%s8244 + $0x60] sm:$0xff]
    %v8258 = vld [vmem:[%s8244 + $0x68] sm:$0xff]
    %v8259 = vld [vmem:[%s8244 + $0x70] sm:$0xff]
    %v8260 = vld [vmem:[%s8244 + $0x78] sm:$0xff]
    %v8263 = vrot.slane %v8243, 7
    %v8264 = vsel %vm7619, %v8263, %v8242
    %8266 = vmatprep.subr.mxu0 0.0
    %8267 = vmatpush1.msra.mxu0 %v8245
    %8268 = vmatprep.subr.mxu0 0.0
    %8269 = vmatpush1.msra.mxu0 %v8246
    %8270 = vmatprep.subr.mxu0 0.0
    %8271 = vmatpush1.msra.mxu0 %v8247
    %8272 = vmatprep.subr.mxu0 0.0
    %8273 = vmatpush1.msra.mxu0 %v8248
    %8274 = vmatprep.subr.mxu0 0.0
    %8275 = vmatpush1.msra.mxu0 %v8249
    %8276 = vmatprep.subr.mxu0 0.0
    %8277 = vmatpush1.msra.mxu0 %v8250
    %8278 = vmatprep.subr.mxu0 0.0
    %8279 = vmatpush1.msra.mxu0 %v8251
    %8280 = vmatprep.subr.mxu0 0.0
    %8281 = vmatpush1.msra.mxu0 %v8252
    %8282 = vmatprep.subr.mxu0 0.0
    %8283 = vmatpush1.msra.mxu0 %v8253
    %8284 = vmatprep.subr.mxu0 0.0
    %8285 = vmatpush1.msra.mxu0 %v8254
    %8286 = vmatprep.subr.mxu0 0.0
    %8287 = vmatpush1.msra.mxu0 %v8255
    %8288 = vmatprep.subr.mxu0 0.0
    %8289 = vmatpush1.msra.mxu0 %v8256
    %8290 = vmatprep.subr.mxu0 0.0
    %8291 = vmatpush1.msra.mxu0 %v8257
    %8292 = vmatprep.subr.mxu0 0.0
    %8293 = vmatpush1.msra.mxu0 %v8258
    %8294 = vmatprep.subr.mxu0 0.0
    %8295 = vmatpush1.msra.mxu0 %v8259
    %8296 = vmatprep.subr.mxu0 0.0
    %8297 = vmatpush1.msra.mxu0 %v8260
    %8298 = vmatprep.subr.mxu0 0.0
    %8299 = vmatpush1.msra.mxu0 0.0
    %8300 = vmatprep.subr.mxu0 0.0
    %8301 = vmatpush1.msra.mxu0 0.0
    %8302 = vmatprep.subr.mxu0 0.0
    %8303 = vmatpush1.msra.mxu0 0.0
    %8304 = vmatprep.subr.mxu0 0.0
    %8305 = vmatpush1.msra.mxu0 0.0
    %8306 = vmatprep.subr.mxu0 0.0
    %8307 = vmatpush1.msra.mxu0 0.0
    %8308 = vmatprep.subr.mxu0 0.0
    %8309 = vmatpush1.msra.mxu0 0.0
    %8310 = vmatprep.subr.mxu0 0.0
    %8311 = vmatpush1.msra.mxu0 0.0
    %8312 = vmatprep.subr.mxu0 0.0
    %8313 = vmatpush1.msra.mxu0 0.0
    %8314 = vmatprep.subr.mxu0 0.0
    %8315 = vmatpush1.msra.mxu0 0.0
    %8316 = vmatprep.subr.mxu0 0.0
    %8317 = vmatpush1.msra.mxu0 0.0
    %8318 = vmatprep.subr.mxu0 0.0
    %8319 = vmatpush1.msra.mxu0 0.0
    %8320 = vmatprep.subr.mxu0 0.0
    %8321 = vmatpush1.msra.mxu0 0.0
    %8322 = vmatprep.subr.mxu0 0.0
    %8323 = vmatpush1.msra.mxu0 0.0
    %8324 = vmatprep.subr.mxu0 0.0
    %8325 = vmatpush1.msra.mxu0 0.0
    %8326 = vmatprep.subr.mxu0 0.0
    %8327 = vmatpush1.msra.mxu0 0.0
    %8328 = vmatprep.subr.mxu0 0.0
    %8329 = vmatpush1.msra.mxu0 0.0
    %8330 = vmatprep.mubr.f32.mxu0 0.0
    %8331 = vmatmul.mubr.f32.gmra.mrb[0].mxu0 %v8264
    %v8332 = vpop.f32.mrb[0].mxu0
    %v8333 = vadd.f32 0.0, %v8332
    %v8334 = vpop.f32.mrb[0].mxu0
    %8335 = vdwg.mxu0
    %v8336 = vadd.f32 %v8229, %v8333
    %v8337 = vld [vmem:[%s8014 + $0x6] sm:$0x1]
    %v8338 = vld [vmem:[%s8014 + $0x46] sm:$0x1]
    %v8339 = vld [vmem:[%s8014 + $0x7] sm:$0x1]
    %v8340 = vld [vmem:[%s8014 + $0x47] sm:$0x1]
    %v8341 = vmax.f32 %v8337, %v8339
    %v8342 = vmax.f32 %v8338, %v8340
    %v8343 = vld [vmem:[%s8021 + $0x6] sm:$0x1]
    %v8344 = vld [vmem:[%s8021 + $0x46] sm:$0x1]
    %v8345 = vld [vmem:[%s8021 + $0x7] sm:$0x1]
    %v8346 = vld [vmem:[%s8021 + $0x47] sm:$0x1]
    %v8347 = vmax.f32 %v8343, %v8345
    %v8348 = vmax.f32 %v8344, %v8346
    %v8349 = vmax.f32 %v8341, %v8347
    %v8350 = vmax.f32 %v8342, %v8348
    %s8351 = scalar_lea.vmem %s5, 896
    %v8352 = vld [vmem:[%s8351] sm:$0xff]
    %v8353 = vld [vmem:[%s8351 + $0x8] sm:$0xff]
    %v8354 = vld [vmem:[%s8351 + $0x10] sm:$0xff]
    %v8355 = vld [vmem:[%s8351 + $0x18] sm:$0xff]
    %v8356 = vld [vmem:[%s8351 + $0x20] sm:$0xff]
    %v8357 = vld [vmem:[%s8351 + $0x28] sm:$0xff]
    %v8358 = vld [vmem:[%s8351 + $0x30] sm:$0xff]
    %v8359 = vld [vmem:[%s8351 + $0x38] sm:$0xff]
    %v8360 = vld [vmem:[%s8351 + $0x40] sm:$0xff]
    %v8361 = vld [vmem:[%s8351 + $0x48] sm:$0xff]
    %v8362 = vld [vmem:[%s8351 + $0x50] sm:$0xff]
    %v8363 = vld [vmem:[%s8351 + $0x58] sm:$0xff]
    %v8364 = vld [vmem:[%s8351 + $0x60] sm:$0xff]
    %v8365 = vld [vmem:[%s8351 + $0x68] sm:$0xff]
    %v8366 = vld [vmem:[%s8351 + $0x70] sm:$0xff]
    %v8367 = vld [vmem:[%s8351 + $0x78] sm:$0xff]
    %v8370 = vrot.slane %v8350, 7
    %v8371 = vsel %vm7619, %v8370, %v8349
    %8373 = vmatprep.subr.mxu0 0.0
    %8374 = vmatpush1.msra.mxu0 %v8352
    %8375 = vmatprep.subr.mxu0 0.0
    %8376 = vmatpush1.msra.mxu0 %v8353
    %8377 = vmatprep.subr.mxu0 0.0
    %8378 = vmatpush1.msra.mxu0 %v8354
    %8379 = vmatprep.subr.mxu0 0.0
    %8380 = vmatpush1.msra.mxu0 %v8355
    %8381 = vmatprep.subr.mxu0 0.0
    %8382 = vmatpush1.msra.mxu0 %v8356
    %8383 = vmatprep.subr.mxu0 0.0
    %8384 = vmatpush1.msra.mxu0 %v8357
    %8385 = vmatprep.subr.mxu0 0.0
    %8386 = vmatpush1.msra.mxu0 %v8358
    %8387 = vmatprep.subr.mxu0 0.0
    %8388 = vmatpush1.msra.mxu0 %v8359
    %8389 = vmatprep.subr.mxu0 0.0
    %8390 = vmatpush1.msra.mxu0 %v8360
    %8391 = vmatprep.subr.mxu0 0.0
    %8392 = vmatpush1.msra.mxu0 %v8361
    %8393 = vmatprep.subr.mxu0 0.0
    %8394 = vmatpush1.msra.mxu0 %v8362
    %8395 = vmatprep.subr.mxu0 0.0
    %8396 = vmatpush1.msra.mxu0 %v8363
    %8397 = vmatprep.subr.mxu0 0.0
    %8398 = vmatpush1.msra.mxu0 %v8364
    %8399 = vmatprep.subr.mxu0 0.0
    %8400 = vmatpush1.msra.mxu0 %v8365
    %8401 = vmatprep.subr.mxu0 0.0
    %8402 = vmatpush1.msra.mxu0 %v8366
    %8403 = vmatprep.subr.mxu0 0.0
    %8404 = vmatpush1.msra.mxu0 %v8367
    %8405 = vmatprep.subr.mxu0 0.0
    %8406 = vmatpush1.msra.mxu0 0.0
    %8407 = vmatprep.subr.mxu0 0.0
    %8408 = vmatpush1.msra.mxu0 0.0
    %8409 = vmatprep.subr.mxu0 0.0
    %8410 = vmatpush1.msra.mxu0 0.0
    %8411 = vmatprep.subr.mxu0 0.0
    %8412 = vmatpush1.msra.mxu0 0.0
    %8413 = vmatprep.subr.mxu0 0.0
    %8414 = vmatpush1.msra.mxu0 0.0
    %8415 = vmatprep.subr.mxu0 0.0
    %8416 = vmatpush1.msra.mxu0 0.0
    %8417 = vmatprep.subr.mxu0 0.0
    %8418 = vmatpush1.msra.mxu0 0.0
    %8419 = vmatprep.subr.mxu0 0.0
    %8420 = vmatpush1.msra.mxu0 0.0
    %8421 = vmatprep.subr.mxu0 0.0
    %8422 = vmatpush1.msra.mxu0 0.0
    %8423 = vmatprep.subr.mxu0 0.0
    %8424 = vmatpush1.msra.mxu0 0.0
    %8425 = vmatprep.subr.mxu0 0.0
    %8426 = vmatpush1.msra.mxu0 0.0
    %8427 = vmatprep.subr.mxu0 0.0
    %8428 = vmatpush1.msra.mxu0 0.0
    %8429 = vmatprep.subr.mxu0 0.0
    %8430 = vmatpush1.msra.mxu0 0.0
    %8431 = vmatprep.subr.mxu0 0.0
    %8432 = vmatpush1.msra.mxu0 0.0
    %8433 = vmatprep.subr.mxu0 0.0
    %8434 = vmatpush1.msra.mxu0 0.0
    %8435 = vmatprep.subr.mxu0 0.0
    %8436 = vmatpush1.msra.mxu0 0.0
    %8437 = vmatprep.mubr.f32.mxu0 0.0
    %8438 = vmatmul.mubr.f32.gmra.mrb[0].mxu0 %v8371
    %v8439 = vpop.f32.mrb[0].mxu0
    %v8440 = vadd.f32 0.0, %v8439
    %v8441 = vpop.f32.mrb[0].mxu0
    %8442 = vdwg.mxu0
    %v8443 = vadd.f32 %v8336, %v8440
    %s8444 = scalar_lea.vmem [#allocation3], 32
    %v8445 = vld [vmem:[%s8444] sm:$0x1]
    %v8446 = vld [vmem:[%s8444 + $0x40] sm:$0x1]
    %v8447 = vld [vmem:[%s8444 + $0x1] sm:$0x1]
    %v8448 = vld [vmem:[%s8444 + $0x41] sm:$0x1]
    %v8449 = vmax.f32 %v8445, %v8447
    %v8450 = vmax.f32 %v8446, %v8448
    %s8451 = scalar_lea.vmem [#allocation3], 40
    %v8452 = vld [vmem:[%s8451] sm:$0x1]
    %v8453 = vld [vmem:[%s8451 + $0x40] sm:$0x1]
    %v8454 = vld [vmem:[%s8451 + $0x1] sm:$0x1]
    %v8455 = vld [vmem:[%s8451 + $0x41] sm:$0x1]
    %v8456 = vmax.f32 %v8452, %v8454
    %v8457 = vmax.f32 %v8453, %v8455
    %v8458 = vmax.f32 %v8449, %v8456
    %v8459 = vmax.f32 %v8450, %v8457
    %s8460 = scalar_lea.vmem %s5, 1024
    %v8461 = vld [vmem:[%s8460] sm:$0xff]
    %v8462 = vld [vmem:[%s8460 + $0x8] sm:$0xff]
    %v8463 = vld [vmem:[%s8460 + $0x10] sm:$0xff]
    %v8464 = vld [vmem:[%s8460 + $0x18] sm:$0xff]
    %v8465 = vld [vmem:[%s8460 + $0x20] sm:$0xff]
    %v8466 = vld [vmem:[%s8460 + $0x28] sm:$0xff]
    %v8467 = vld [vmem:[%s8460 + $0x30] sm:$0xff]
    %v8468 = vld [vmem:[%s8460 + $0x38] sm:$0xff]
    %v8469 = vld [vmem:[%s8460 + $0x40] sm:$0xff]
    %v8470 = vld [vmem:[%s8460 + $0x48] sm:$0xff]
    %v8471 = vld [vmem:[%s8460 + $0x50] sm:$0xff]
    %v8472 = vld [vmem:[%s8460 + $0x58] sm:$0xff]
    %v8473 = vld [vmem:[%s8460 + $0x60] sm:$0xff]
    %v8474 = vld [vmem:[%s8460 + $0x68] sm:$0xff]
    %v8475 = vld [vmem:[%s8460 + $0x70] sm:$0xff]
    %v8476 = vld [vmem:[%s8460 + $0x78] sm:$0xff]
    %v8479 = vrot.slane %v8459, 7
    %v8480 = vsel %vm7619, %v8479, %v8458
    %8482 = vmatprep.subr.mxu0 0.0
    %8483 = vmatpush1.msra.mxu0 %v8461
    %8484 = vmatprep.subr.mxu0 0.0
    %8485 = vmatpush1.msra.mxu0 %v8462
    %8486 = vmatprep.subr.mxu0 0.0
    %8487 = vmatpush1.msra.mxu0 %v8463
    %8488 = vmatprep.subr.mxu0 0.0
    %8489 = vmatpush1.msra.mxu0 %v8464
    %8490 = vmatprep.subr.mxu0 0.0
    %8491 = vmatpush1.msra.mxu0 %v8465
    %8492 = vmatprep.subr.mxu0 0.0
    %8493 = vmatpush1.msra.mxu0 %v8466
    %8494 = vmatprep.subr.mxu0 0.0
    %8495 = vmatpush1.msra.mxu0 %v8467
    %8496 = vmatprep.subr.mxu0 0.0
    %8497 = vmatpush1.msra.mxu0 %v8468
    %8498 = vmatprep.subr.mxu0 0.0
    %8499 = vmatpush1.msra.mxu0 %v8469
    %8500 = vmatprep.subr.mxu0 0.0
    %8501 = vmatpush1.msra.mxu0 %v8470
    %8502 = vmatprep.subr.mxu0 0.0
    %8503 = vmatpush1.msra.mxu0 %v8471
    %8504 = vmatprep.subr.mxu0 0.0
    %8505 = vmatpush1.msra.mxu0 %v8472
    %8506 = vmatprep.subr.mxu0 0.0
    %8507 = vmatpush1.msra.mxu0 %v8473
    %8508 = vmatprep.subr.mxu0 0.0
    %8509 = vmatpush1.msra.mxu0 %v8474
    %8510 = vmatprep.subr.mxu0 0.0
    %8511 = vmatpush1.msra.mxu0 %v8475
    %8512 = vmatprep.subr.mxu0 0.0
    %8513 = vmatpush1.msra.mxu0 %v8476
    %8514 = vmatprep.subr.mxu0 0.0
    %8515 = vmatpush1.msra.mxu0 0.0
    %8516 = vmatprep.subr.mxu0 0.0
    %8517 = vmatpush1.msra.mxu0 0.0
    %8518 = vmatprep.subr.mxu0 0.0
    %8519 = vmatpush1.msra.mxu0 0.0
    %8520 = vmatprep.subr.mxu0 0.0
    %8521 = vmatpush1.msra.mxu0 0.0
    %8522 = vmatprep.subr.mxu0 0.0
    %8523 = vmatpush1.msra.mxu0 0.0
    %8524 = vmatprep.subr.mxu0 0.0
    %8525 = vmatpush1.msra.mxu0 0.0
    %8526 = vmatprep.subr.mxu0 0.0
    %8527 = vmatpush1.msra.mxu0 0.0
    %8528 = vmatprep.subr.mxu0 0.0
    %8529 = vmatpush1.msra.mxu0 0.0
    %8530 = vmatprep.subr.mxu0 0.0
    %8531 = vmatpush1.msra.mxu0 0.0
    %8532 = vmatprep.subr.mxu0 0.0
    %8533 = vmatpush1.msra.mxu0 0.0
    %8534 = vmatprep.subr.mxu0 0.0
    %8535 = vmatpush1.msra.mxu0 0.0
    %8536 = vmatprep.subr.mxu0 0.0
    %8537 = vmatpush1.msra.mxu0 0.0
    %8538 = vmatprep.subr.mxu0 0.0
    %8539 = vmatpush1.msra.mxu0 0.0
    %8540 = vmatprep.subr.mxu0 0.0
    %8541 = vmatpush1.msra.mxu0 0.0
    %8542 = vmatprep.subr.mxu0 0.0
    %8543 = vmatpush1.msra.mxu0 0.0
    %8544 = vmatprep.subr.mxu0 0.0
    %8545 = vmatpush1.msra.mxu0 0.0
    %8546 = vmatprep.mubr.f32.mxu0 0.0
    %8547 = vmatmul.mubr.f32.gmra.mrb[0].mxu0 %v8480
    %v8548 = vpop.f32.mrb[0].mxu0
    %v8549 = vadd.f32 0.0, %v8548
    %v8550 = vpop.f32.mrb[0].mxu0
    %8551 = vdwg.mxu0
    %v8552 = vadd.f32 %v8443, %v8549
    %v8553 = vld [vmem:[%s8444 + $0x2] sm:$0x1]
    %v8554 = vld [vmem:[%s8444 + $0x42] sm:$0x1]
    %v8555 = vld [vmem:[%s8444 + $0x3] sm:$0x1]
    %v8556 = vld [vmem:[%s8444 + $0x43] sm:$0x1]
    %v8557 = vmax.f32 %v8553, %v8555
    %v8558 = vmax.f32 %v8554, %v8556
    %v8559 = vld [vmem:[%s8451 + $0x2] sm:$0x1]
    %v8560 = vld [vmem:[%s8451 + $0x42] sm:$0x1]
    %v8561 = vld [vmem:[%s8451 + $0x3] sm:$0x1]
    %v8562 = vld [vmem:[%s8451 + $0x43] sm:$0x1]
    %v8563 = vmax.f32 %v8559, %v8561
    %v8564 = vmax.f32 %v8560, %v8562
    %v8565 = vmax.f32 %v8557, %v8563
    %v8566 = vmax.f32 %v8558, %v8564
    %s8567 = scalar_lea.vmem %s5, 1152
    %v8568 = vld [vmem:[%s8567] sm:$0xff]
    %v8569 = vld [vmem:[%s8567 + $0x8] sm:$0xff]
    %v8570 = vld [vmem:[%s8567 + $0x10] sm:$0xff]
    %v8571 = vld [vmem:[%s8567 + $0x18] sm:$0xff]
    %v8572 = vld [vmem:[%s8567 + $0x20] sm:$0xff]
    %v8573 = vld [vmem:[%s8567 + $0x28] sm:$0xff]
    %v8574 = vld [vmem:[%s8567 + $0x30] sm:$0xff]
    %v8575 = vld [vmem:[%s8567 + $0x38] sm:$0xff]
    %v8576 = vld [vmem:[%s8567 + $0x40] sm:$0xff]
    %v8577 = vld [vmem:[%s8567 + $0x48] sm:$0xff]
    %v8578 = vld [vmem:[%s8567 + $0x50] sm:$0xff]
    %v8579 = vld [vmem:[%s8567 + $0x58] sm:$0xff]
    %v8580 = vld [vmem:[%s8567 + $0x60] sm:$0xff]
    %v8581 = vld [vmem:[%s8567 + $0x68] sm:$0xff]
    %v8582 = vld [vmem:[%s8567 + $0x70] sm:$0xff]
    %v8583 = vld [vmem:[%s8567 + $0x78] sm:$0xff]
    %v8586 = vrot.slane %v8566, 7
    %v8587 = vsel %vm7619, %v8586, %v8565
    %8589 = vmatprep.subr.mxu0 0.0
    %8590 = vmatpush1.msra.mxu0 %v8568
    %8591 = vmatprep.subr.mxu0 0.0
    %8592 = vmatpush1.msra.mxu0 %v8569
    %8593 = vmatprep.subr.mxu0 0.0
    %8594 = vmatpush1.msra.mxu0 %v8570
    %8595 = vmatprep.subr.mxu0 0.0
    %8596 = vmatpush1.msra.mxu0 %v8571
    %8597 = vmatprep.subr.mxu0 0.0
    %8598 = vmatpush1.msra.mxu0 %v8572
    %8599 = vmatprep.subr.mxu0 0.0
    %8600 = vmatpush1.msra.mxu0 %v8573
    %8601 = vmatprep.subr.mxu0 0.0
    %8602 = vmatpush1.msra.mxu0 %v8574
    %8603 = vmatprep.subr.mxu0 0.0
    %8604 = vmatpush1.msra.mxu0 %v8575
    %8605 = vmatprep.subr.mxu0 0.0
    %8606 = vmatpush1.msra.mxu0 %v8576
    %8607 = vmatprep.subr.mxu0 0.0
    %8608 = vmatpush1.msra.mxu0 %v8577
    %8609 = vmatprep.subr.mxu0 0.0
    %8610 = vmatpush1.msra.mxu0 %v8578
    %8611 = vmatprep.subr.mxu0 0.0
    %8612 = vmatpush1.msra.mxu0 %v8579
    %8613 = vmatprep.subr.mxu0 0.0
    %8614 = vmatpush1.msra.mxu0 %v8580
    %8615 = vmatprep.subr.mxu0 0.0
    %8616 = vmatpush1.msra.mxu0 %v8581
    %8617 = vmatprep.subr.mxu0 0.0
    %8618 = vmatpush1.msra.mxu0 %v8582
    %8619 = vmatprep.subr.mxu0 0.0
    %8620 = vmatpush1.msra.mxu0 %v8583
    %8621 = vmatprep.subr.mxu0 0.0
    %8622 = vmatpush1.msra.mxu0 0.0
    %8623 = vmatprep.subr.mxu0 0.0
    %8624 = vmatpush1.msra.mxu0 0.0
    %8625 = vmatprep.subr.mxu0 0.0
    %8626 = vmatpush1.msra.mxu0 0.0
    %8627 = vmatprep.subr.mxu0 0.0
    %8628 = vmatpush1.msra.mxu0 0.0
    %8629 = vmatprep.subr.mxu0 0.0
    %8630 = vmatpush1.msra.mxu0 0.0
    %8631 = vmatprep.subr.mxu0 0.0
    %8632 = vmatpush1.msra.mxu0 0.0
    %8633 = vmatprep.subr.mxu0 0.0
    %8634 = vmatpush1.msra.mxu0 0.0
    %8635 = vmatprep.subr.mxu0 0.0
    %8636 = vmatpush1.msra.mxu0 0.0
    %8637 = vmatprep.subr.mxu0 0.0
    %8638 = vmatpush1.msra.mxu0 0.0
    %8639 = vmatprep.subr.mxu0 0.0
    %8640 = vmatpush1.msra.mxu0 0.0
    %8641 = vmatprep.subr.mxu0 0.0
    %8642 = vmatpush1.msra.mxu0 0.0
    %8643 = vmatprep.subr.mxu0 0.0
    %8644 = vmatpush1.msra.mxu0 0.0
    %8645 = vmatprep.subr.mxu0 0.0
    %8646 = vmatpush1.msra.mxu0 0.0
    %8647 = vmatprep.subr.mxu0 0.0
    %8648 = vmatpush1.msra.mxu0 0.0
    %8649 = vmatprep.subr.mxu0 0.0
    %8650 = vmatpush1.msra.mxu0 0.0
    %8651 = vmatprep.subr.mxu0 0.0
    %8652 = vmatpush1.msra.mxu0 0.0
    %8653 = vmatprep.mubr.f32.mxu0 0.0
    %8654 = vmatmul.mubr.f32.gmra.mrb[0].mxu0 %v8587
    %v8655 = vpop.f32.mrb[0].mxu0
    %v8656 = vadd.f32 0.0, %v8655
    %v8657 = vpop.f32.mrb[0].mxu0
    %8658 = vdwg.mxu0
    %v8659 = vadd.f32 %v8552, %v8656
    %v8660 = vld [vmem:[%s8444 + $0x4] sm:$0x1]
    %v8661 = vld [vmem:[%s8444 + $0x44] sm:$0x1]
    %v8662 = vld [vmem:[%s8444 + $0x5] sm:$0x1]
    %v8663 = vld [vmem:[%s8444 + $0x45] sm:$0x1]
    %v8664 = vmax.f32 %v8660, %v8662
    %v8665 = vmax.f32 %v8661, %v8663
    %v8666 = vld [vmem:[%s8451 + $0x4] sm:$0x1]
    %v8667 = vld [vmem:[%s8451 + $0x44] sm:$0x1]
    %v8668 = vld [vmem:[%s8451 + $0x5] sm:$0x1]
    %v8669 = vld [vmem:[%s8451 + $0x45] sm:$0x1]
    %v8670 = vmax.f32 %v8666, %v8668
    %v8671 = vmax.f32 %v8667, %v8669
    %v8672 = vmax.f32 %v8664, %v8670
    %v8673 = vmax.f32 %v8665, %v8671
    %s8674 = scalar_lea.vmem %s5, 1280
    %v8675 = vld [vmem:[%s8674] sm:$0xff]
    %v8676 = vld [vmem:[%s8674 + $0x8] sm:$0xff]
    %v8677 = vld [vmem:[%s8674 + $0x10] sm:$0xff]
    %v8678 = vld [vmem:[%s8674 + $0x18] sm:$0xff]
    %v8679 = vld [vmem:[%s8674 + $0x20] sm:$0xff]
    %v8680 = vld [vmem:[%s8674 + $0x28] sm:$0xff]
    %v8681 = vld [vmem:[%s8674 + $0x30] sm:$0xff]
    %v8682 = vld [vmem:[%s8674 + $0x38] sm:$0xff]
    %v8683 = vld [vmem:[%s8674 + $0x40] sm:$0xff]
    %v8684 = vld [vmem:[%s8674 + $0x48] sm:$0xff]
    %v8685 = vld [vmem:[%s8674 + $0x50] sm:$0xff]
    %v8686 = vld [vmem:[%s8674 + $0x58] sm:$0xff]
    %v8687 = vld [vmem:[%s8674 + $0x60] sm:$0xff]
    %v8688 = vld [vmem:[%s8674 + $0x68] sm:$0xff]
    %v8689 = vld [vmem:[%s8674 + $0x70] sm:$0xff]
    %v8690 = vld [vmem:[%s8674 + $0x78] sm:$0xff]
    %v8693 = vrot.slane %v8673, 7
    %v8694 = vsel %vm7619, %v8693, %v8672
    %8696 = vmatprep.subr.mxu0 0.0
    %8697 = vmatpush1.msra.mxu0 %v8675
    %8698 = vmatprep.subr.mxu0 0.0
    %8699 = vmatpush1.msra.mxu0 %v8676
    %8700 = vmatprep.subr.mxu0 0.0
    %8701 = vmatpush1.msra.mxu0 %v8677
    %8702 = vmatprep.subr.mxu0 0.0
    %8703 = vmatpush1.msra.mxu0 %v8678
    %8704 = vmatprep.subr.mxu0 0.0
    %8705 = vmatpush1.msra.mxu0 %v8679
    %8706 = vmatprep.subr.mxu0 0.0
    %8707 = vmatpush1.msra.mxu0 %v8680
    %8708 = vmatprep.subr.mxu0 0.0
    %8709 = vmatpush1.msra.mxu0 %v8681
    %8710 = vmatprep.subr.mxu0 0.0
    %8711 = vmatpush1.msra.mxu0 %v8682
    %8712 = vmatprep.subr.mxu0 0.0
    %8713 = vmatpush1.msra.mxu0 %v8683
    %8714 = vmatprep.subr.mxu0 0.0
    %8715 = vmatpush1.msra.mxu0 %v8684
    %8716 = vmatprep.subr.mxu0 0.0
    %8717 = vmatpush1.msra.mxu0 %v8685
    %8718 = vmatprep.subr.mxu0 0.0
    %8719 = vmatpush1.msra.mxu0 %v8686
    %8720 = vmatprep.subr.mxu0 0.0
    %8721 = vmatpush1.msra.mxu0 %v8687
    %8722 = vmatprep.subr.mxu0 0.0
    %8723 = vmatpush1.msra.mxu0 %v8688
    %8724 = vmatprep.subr.mxu0 0.0
    %8725 = vmatpush1.msra.mxu0 %v8689
    %8726 = vmatprep.subr.mxu0 0.0
    %8727 = vmatpush1.msra.mxu0 %v8690
    %8728 = vmatprep.subr.mxu0 0.0
    %8729 = vmatpush1.msra.mxu0 0.0
    %8730 = vmatprep.subr.mxu0 0.0
    %8731 = vmatpush1.msra.mxu0 0.0
    %8732 = vmatprep.subr.mxu0 0.0
    %8733 = vmatpush1.msra.mxu0 0.0
    %8734 = vmatprep.subr.mxu0 0.0
    %8735 = vmatpush1.msra.mxu0 0.0
    %8736 = vmatprep.subr.mxu0 0.0
    %8737 = vmatpush1.msra.mxu0 0.0
    %8738 = vmatprep.subr.mxu0 0.0
    %8739 = vmatpush1.msra.mxu0 0.0
    %8740 = vmatprep.subr.mxu0 0.0
    %8741 = vmatpush1.msra.mxu0 0.0
    %8742 = vmatprep.subr.mxu0 0.0
    %8743 = vmatpush1.msra.mxu0 0.0
    %8744 = vmatprep.subr.mxu0 0.0
    %8745 = vmatpush1.msra.mxu0 0.0
    %8746 = vmatprep.subr.mxu0 0.0
    %8747 = vmatpush1.msra.mxu0 0.0
    %8748 = vmatprep.subr.mxu0 0.0
    %8749 = vmatpush1.msra.mxu0 0.0
    %8750 = vmatprep.subr.mxu0 0.0
    %8751 = vmatpush1.msra.mxu0 0.0
    %8752 = vmatprep.subr.mxu0 0.0
    %8753 = vmatpush1.msra.mxu0 0.0
    %8754 = vmatprep.subr.mxu0 0.0
    %8755 = vmatpush1.msra.mxu0 0.0
    %8756 = vmatprep.subr.mxu0 0.0
    %8757 = vmatpush1.msra.mxu0 0.0
    %8758 = vmatprep.subr.mxu0 0.0
    %8759 = vmatpush1.msra.mxu0 0.0
    %8760 = vmatprep.mubr.f32.mxu0 0.0
    %8761 = vmatmul.mubr.f32.gmra.mrb[0].mxu0 %v8694
    %v8762 = vpop.f32.mrb[0].mxu0
    %v8763 = vadd.f32 0.0, %v8762
    %v8764 = vpop.f32.mrb[0].mxu0
    %8765 = vdwg.mxu0
    %v8766 = vadd.f32 %v8659, %v8763
    %v8767 = vld [vmem:[%s8444 + $0x6] sm:$0x1]
    %v8768 = vld [vmem:[%s8444 + $0x46] sm:$0x1]
    %v8769 = vld [vmem:[%s8444 + $0x7] sm:$0x1]
    %v8770 = vld [vmem:[%s8444 + $0x47] sm:$0x1]
    %v8771 = vmax.f32 %v8767, %v8769
    %v8772 = vmax.f32 %v8768, %v8770
    %v8773 = vld [vmem:[%s8451 + $0x6] sm:$0x1]
    %v8774 = vld [vmem:[%s8451 + $0x46] sm:$0x1]
    %v8775 = vld [vmem:[%s8451 + $0x7] sm:$0x1]
    %v8776 = vld [vmem:[%s8451 + $0x47] sm:$0x1]
    %v8777 = vmax.f32 %v8773, %v8775
    %v8778 = vmax.f32 %v8774, %v8776
    %v8779 = vmax.f32 %v8771, %v8777
    %v8780 = vmax.f32 %v8772, %v8778
    %s8781 = scalar_lea.vmem %s5, 1408
    %v8782 = vld [vmem:[%s8781] sm:$0xff]
    %v8783 = vld [vmem:[%s8781 + $0x8] sm:$0xff]
    %v8784 = vld [vmem:[%s8781 + $0x10] sm:$0xff]
    %v8785 = vld [vmem:[%s8781 + $0x18] sm:$0xff]
    %v8786 = vld [vmem:[%s8781 + $0x20] sm:$0xff]
    %v8787 = vld [vmem:[%s8781 + $0x28] sm:$0xff]
    %v8788 = vld [vmem:[%s8781 + $0x30] sm:$0xff]
    %v8789 = vld [vmem:[%s8781 + $0x38] sm:$0xff]
    %v8790 = vld [vmem:[%s8781 + $0x40] sm:$0xff]
    %v8791 = vld [vmem:[%s8781 + $0x48] sm:$0xff]
    %v8792 = vld [vmem:[%s8781 + $0x50] sm:$0xff]
    %v8793 = vld [vmem:[%s8781 + $0x58] sm:$0xff]
    %v8794 = vld [vmem:[%s8781 + $0x60] sm:$0xff]
    %v8795 = vld [vmem:[%s8781 + $0x68] sm:$0xff]
    %v8796 = vld [vmem:[%s8781 + $0x70] sm:$0xff]
    %v8797 = vld [vmem:[%s8781 + $0x78] sm:$0xff]
    %v8800 = vrot.slane %v8780, 7
    %v8801 = vsel %vm7619, %v8800, %v8779
    %8803 = vmatprep.subr.mxu0 0.0
    %8804 = vmatpush1.msra.mxu0 %v8782
    %8805 = vmatprep.subr.mxu0 0.0
    %8806 = vmatpush1.msra.mxu0 %v8783
    %8807 = vmatprep.subr.mxu0 0.0
    %8808 = vmatpush1.msra.mxu0 %v8784
    %8809 = vmatprep.subr.mxu0 0.0
    %8810 = vmatpush1.msra.mxu0 %v8785
    %8811 = vmatprep.subr.mxu0 0.0
    %8812 = vmatpush1.msra.mxu0 %v8786
    %8813 = vmatprep.subr.mxu0 0.0
    %8814 = vmatpush1.msra.mxu0 %v8787
    %8815 = vmatprep.subr.mxu0 0.0
    %8816 = vmatpush1.msra.mxu0 %v8788
    %8817 = vmatprep.subr.mxu0 0.0
    %8818 = vmatpush1.msra.mxu0 %v8789
    %8819 = vmatprep.subr.mxu0 0.0
    %8820 = vmatpush1.msra.mxu0 %v8790
    %8821 = vmatprep.subr.mxu0 0.0
    %8822 = vmatpush1.msra.mxu0 %v8791
    %8823 = vmatprep.subr.mxu0 0.0
    %8824 = vmatpush1.msra.mxu0 %v8792
    %8825 = vmatprep.subr.mxu0 0.0
    %8826 = vmatpush1.msra.mxu0 %v8793
    %8827 = vmatprep.subr.mxu0 0.0
    %8828 = vmatpush1.msra.mxu0 %v8794
    %8829 = vmatprep.subr.mxu0 0.0
    %8830 = vmatpush1.msra.mxu0 %v8795
    %8831 = vmatprep.subr.mxu0 0.0
    %8832 = vmatpush1.msra.mxu0 %v8796
    %8833 = vmatprep.subr.mxu0 0.0
    %8834 = vmatpush1.msra.mxu0 %v8797
    %8835 = vmatprep.subr.mxu0 0.0
    %8836 = vmatpush1.msra.mxu0 0.0
    %8837 = vmatprep.subr.mxu0 0.0
    %8838 = vmatpush1.msra.mxu0 0.0
    %8839 = vmatprep.subr.mxu0 0.0
    %8840 = vmatpush1.msra.mxu0 0.0
    %8841 = vmatprep.subr.mxu0 0.0
    %8842 = vmatpush1.msra.mxu0 0.0
    %8843 = vmatprep.subr.mxu0 0.0
    %8844 = vmatpush1.msra.mxu0 0.0
    %8845 = vmatprep.subr.mxu0 0.0
    %8846 = vmatpush1.msra.mxu0 0.0
    %8847 = vmatprep.subr.mxu0 0.0
    %8848 = vmatpush1.msra.mxu0 0.0
    %8849 = vmatprep.subr.mxu0 0.0
    %8850 = vmatpush1.msra.mxu0 0.0
    %8851 = vmatprep.subr.mxu0 0.0
    %8852 = vmatpush1.msra.mxu0 0.0
    %8853 = vmatprep.subr.mxu0 0.0
    %8854 = vmatpush1.msra.mxu0 0.0
    %8855 = vmatprep.subr.mxu0 0.0
    %8856 = vmatpush1.msra.mxu0 0.0
    %8857 = vmatprep.subr.mxu0 0.0
    %8858 = vmatpush1.msra.mxu0 0.0
    %8859 = vmatprep.subr.mxu0 0.0
    %8860 = vmatpush1.msra.mxu0 0.0
    %8861 = vmatprep.subr.mxu0 0.0
    %8862 = vmatpush1.msra.mxu0 0.0
    %8863 = vmatprep.subr.mxu0 0.0
    %8864 = vmatpush1.msra.mxu0 0.0
    %8865 = vmatprep.subr.mxu0 0.0
    %8866 = vmatpush1.msra.mxu0 0.0
    %8867 = vmatprep.mubr.f32.mxu0 0.0
    %8868 = vmatmul.mubr.f32.gmra.mrb[0].mxu0 %v8801
    %v8869 = vpop.f32.mrb[0].mxu0
    %v8870 = vadd.f32 0.0, %v8869
    %v8871 = vpop.f32.mrb[0].mxu0
    %8872 = vdwg.mxu0
    %v8873 = vadd.f32 %v8766, %v8870
    %s8874 = scalar_lea.vmem [#allocation3], 48
    %v8875 = vld [vmem:[%s8874] sm:$0x1]
    %v8876 = vld [vmem:[%s8874 + $0x40] sm:$0x1]
    %v8877 = vld [vmem:[%s8874 + $0x1] sm:$0x1]
    %v8878 = vld [vmem:[%s8874 + $0x41] sm:$0x1]
    %v8879 = vmax.f32 %v8875, %v8877
    %v8880 = vmax.f32 %v8876, %v8878
    %s8881 = scalar_lea.vmem [#allocation3], 56
    %v8882 = vld [vmem:[%s8881] sm:$0x1]
    %v8883 = vld [vmem:[%s8881 + $0x40] sm:$0x1]
    %v8884 = vld [vmem:[%s8881 + $0x1] sm:$0x1]
    %v8885 = vld [vmem:[%s8881 + $0x41] sm:$0x1]
    %v8886 = vmax.f32 %v8882, %v8884
    %v8887 = vmax.f32 %v8883, %v8885
    %v8888 = vmax.f32 %v8879, %v8886
    %v8889 = vmax.f32 %v8880, %v8887
    %s8890 = scalar_lea.vmem %s5, 1536
    %v8891 = vld [vmem:[%s8890] sm:$0xff]
    %v8892 = vld [vmem:[%s8890 + $0x8] sm:$0xff]
    %v8893 = vld [vmem:[%s8890 + $0x10] sm:$0xff]
    %v8894 = vld [vmem:[%s8890 + $0x18] sm:$0xff]
    %v8895 = vld [vmem:[%s8890 + $0x20] sm:$0xff]
    %v8896 = vld [vmem:[%s8890 + $0x28] sm:$0xff]
    %v8897 = vld [vmem:[%s8890 + $0x30] sm:$0xff]
    %v8898 = vld [vmem:[%s8890 + $0x38] sm:$0xff]
    %v8899 = vld [vmem:[%s8890 + $0x40] sm:$0xff]
    %v8900 = vld [vmem:[%s8890 + $0x48] sm:$0xff]
    %v8901 = vld [vmem:[%s8890 + $0x50] sm:$0xff]
    %v8902 = vld [vmem:[%s8890 + $0x58] sm:$0xff]
    %v8903 = vld [vmem:[%s8890 + $0x60] sm:$0xff]
    %v8904 = vld [vmem:[%s8890 + $0x68] sm:$0xff]
    %v8905 = vld [vmem:[%s8890 + $0x70] sm:$0xff]
    %v8906 = vld [vmem:[%s8890 + $0x78] sm:$0xff]
    %v8909 = vrot.slane %v8889, 7
    %v8910 = vsel %vm7619, %v8909, %v8888
    %8912 = vmatprep.subr.mxu0 0.0
    %8913 = vmatpush1.msra.mxu0 %v8891
    %8914 = vmatprep.subr.mxu0 0.0
    %8915 = vmatpush1.msra.mxu0 %v8892
    %8916 = vmatprep.subr.mxu0 0.0
    %8917 = vmatpush1.msra.mxu0 %v8893
    %8918 = vmatprep.subr.mxu0 0.0
    %8919 = vmatpush1.msra.mxu0 %v8894
    %8920 = vmatprep.subr.mxu0 0.0
    %8921 = vmatpush1.msra.mxu0 %v8895
    %8922 = vmatprep.subr.mxu0 0.0
    %8923 = vmatpush1.msra.mxu0 %v8896
    %8924 = vmatprep.subr.mxu0 0.0
    %8925 = vmatpush1.msra.mxu0 %v8897
    %8926 = vmatprep.subr.mxu0 0.0
    %8927 = vmatpush1.msra.mxu0 %v8898
    %8928 = vmatprep.subr.mxu0 0.0
    %8929 = vmatpush1.msra.mxu0 %v8899
    %8930 = vmatprep.subr.mxu0 0.0
    %8931 = vmatpush1.msra.mxu0 %v8900
    %8932 = vmatprep.subr.mxu0 0.0
    %8933 = vmatpush1.msra.mxu0 %v8901
    %8934 = vmatprep.subr.mxu0 0.0
    %8935 = vmatpush1.msra.mxu0 %v8902
    %8936 = vmatprep.subr.mxu0 0.0
    %8937 = vmatpush1.msra.mxu0 %v8903
    %8938 = vmatprep.subr.mxu0 0.0
    %8939 = vmatpush1.msra.mxu0 %v8904
    %8940 = vmatprep.subr.mxu0 0.0
    %8941 = vmatpush1.msra.mxu0 %v8905
    %8942 = vmatprep.subr.mxu0 0.0
    %8943 = vmatpush1.msra.mxu0 %v8906
    %8944 = vmatprep.subr.mxu0 0.0
    %8945 = vmatpush1.msra.mxu0 0.0
    %8946 = vmatprep.subr.mxu0 0.0
    %8947 = vmatpush1.msra.mxu0 0.0
    %8948 = vmatprep.subr.mxu0 0.0
    %8949 = vmatpush1.msra.mxu0 0.0
    %8950 = vmatprep.subr.mxu0 0.0
    %8951 = vmatpush1.msra.mxu0 0.0
    %8952 = vmatprep.subr.mxu0 0.0
    %8953 = vmatpush1.msra.mxu0 0.0
    %8954 = vmatprep.subr.mxu0 0.0
    %8955 = vmatpush1.msra.mxu0 0.0
    %8956 = vmatprep.subr.mxu0 0.0
    %8957 = vmatpush1.msra.mxu0 0.0
    %8958 = vmatprep.subr.mxu0 0.0
    %8959 = vmatpush1.msra.mxu0 0.0
    %8960 = vmatprep.subr.mxu0 0.0
    %8961 = vmatpush1.msra.mxu0 0.0
    %8962 = vmatprep.subr.mxu0 0.0
    %8963 = vmatpush1.msra.mxu0 0.0
    %8964 = vmatprep.subr.mxu0 0.0
    %8965 = vmatpush1.msra.mxu0 0.0
    %8966 = vmatprep.subr.mxu0 0.0
    %8967 = vmatpush1.msra.mxu0 0.0
    %8968 = vmatprep.subr.mxu0 0.0
    %8969 = vmatpush1.msra.mxu0 0.0
    %8970 = vmatprep.subr.mxu0 0.0
    %8971 = vmatpush1.msra.mxu0 0.0
    %8972 = vmatprep.subr.mxu0 0.0
    %8973 = vmatpush1.msra.mxu0 0.0
    %8974 = vmatprep.subr.mxu0 0.0
    %8975 = vmatpush1.msra.mxu0 0.0
    %8976 = vmatprep.mubr.f32.mxu0 0.0
    %8977 = vmatmul.mubr.f32.gmra.mrb[0].mxu0 %v8910
    %v8978 = vpop.f32.mrb[0].mxu0
    %v8979 = vadd.f32 0.0, %v8978
    %v8980 = vpop.f32.mrb[0].mxu0
    %8981 = vdwg.mxu0
    %v8982 = vadd.f32 %v8873, %v8979
    %v8983 = vld [vmem:[%s8874 + $0x2] sm:$0x1]
    %v8984 = vld [vmem:[%s8874 + $0x42] sm:$0x1]
    %v8985 = vld [vmem:[%s8874 + $0x3] sm:$0x1]
    %v8986 = vld [vmem:[%s8874 + $0x43] sm:$0x1]
    %v8987 = vmax.f32 %v8983, %v8985
    %v8988 = vmax.f32 %v8984, %v8986
    %v8989 = vld [vmem:[%s8881 + $0x2] sm:$0x1]
    %v8990 = vld [vmem:[%s8881 + $0x42] sm:$0x1]
    %v8991 = vld [vmem:[%s8881 + $0x3] sm:$0x1]
    %v8992 = vld [vmem:[%s8881 + $0x43] sm:$0x1]
    %v8993 = vmax.f32 %v8989, %v8991
    %v8994 = vmax.f32 %v8990, %v8992
    %v8995 = vmax.f32 %v8987, %v8993
    %v8996 = vmax.f32 %v8988, %v8994
    %s8997 = scalar_lea.vmem %s5, 1664
    %v8998 = vld [vmem:[%s8997] sm:$0xff]
    %v8999 = vld [vmem:[%s8997 + $0x8] sm:$0xff]
    %v9000 = vld [vmem:[%s8997 + $0x10] sm:$0xff]
    %v9001 = vld [vmem:[%s8997 + $0x18] sm:$0xff]
    %v9002 = vld [vmem:[%s8997 + $0x20] sm:$0xff]
    %v9003 = vld [vmem:[%s8997 + $0x28] sm:$0xff]
    %v9004 = vld [vmem:[%s8997 + $0x30] sm:$0xff]
    %v9005 = vld [vmem:[%s8997 + $0x38] sm:$0xff]
    %v9006 = vld [vmem:[%s8997 + $0x40] sm:$0xff]
    %v9007 = vld [vmem:[%s8997 + $0x48] sm:$0xff]
    %v9008 = vld [vmem:[%s8997 + $0x50] sm:$0xff]
    %v9009 = vld [vmem:[%s8997 + $0x58] sm:$0xff]
    %v9010 = vld [vmem:[%s8997 + $0x60] sm:$0xff]
    %v9011 = vld [vmem:[%s8997 + $0x68] sm:$0xff]
    %v9012 = vld [vmem:[%s8997 + $0x70] sm:$0xff]
    %v9013 = vld [vmem:[%s8997 + $0x78] sm:$0xff]
    %v9016 = vrot.slane %v8996, 7
    %v9017 = vsel %vm7619, %v9016, %v8995
    %9019 = vmatprep.subr.mxu0 0.0
    %9020 = vmatpush1.msra.mxu0 %v8998
    %9021 = vmatprep.subr.mxu0 0.0
    %9022 = vmatpush1.msra.mxu0 %v8999
    %9023 = vmatprep.subr.mxu0 0.0
    %9024 = vmatpush1.msra.mxu0 %v9000
    %9025 = vmatprep.subr.mxu0 0.0
    %9026 = vmatpush1.msra.mxu0 %v9001
    %9027 = vmatprep.subr.mxu0 0.0
    %9028 = vmatpush1.msra.mxu0 %v9002
    %9029 = vmatprep.subr.mxu0 0.0
    %9030 = vmatpush1.msra.mxu0 %v9003
    %9031 = vmatprep.subr.mxu0 0.0
    %9032 = vmatpush1.msra.mxu0 %v9004
    %9033 = vmatprep.subr.mxu0 0.0
    %9034 = vmatpush1.msra.mxu0 %v9005
    %9035 = vmatprep.subr.mxu0 0.0
    %9036 = vmatpush1.msra.mxu0 %v9006
    %9037 = vmatprep.subr.mxu0 0.0
    %9038 = vmatpush1.msra.mxu0 %v9007
    %9039 = vmatprep.subr.mxu0 0.0
    %9040 = vmatpush1.msra.mxu0 %v9008
    %9041 = vmatprep.subr.mxu0 0.0
    %9042 = vmatpush1.msra.mxu0 %v9009
    %9043 = vmatprep.subr.mxu0 0.0
    %9044 = vmatpush1.msra.mxu0 %v9010
    %9045 = vmatprep.subr.mxu0 0.0
    %9046 = vmatpush1.msra.mxu0 %v9011
    %9047 = vmatprep.subr.mxu0 0.0
    %9048 = vmatpush1.msra.mxu0 %v9012
    %9049 = vmatprep.subr.mxu0 0.0
    %9050 = vmatpush1.msra.mxu0 %v9013
    %9051 = vmatprep.subr.mxu0 0.0
    %9052 = vmatpush1.msra.mxu0 0.0
    %9053 = vmatprep.subr.mxu0 0.0
    %9054 = vmatpush1.msra.mxu0 0.0
    %9055 = vmatprep.subr.mxu0 0.0
    %9056 = vmatpush1.msra.mxu0 0.0
    %9057 = vmatprep.subr.mxu0 0.0
    %9058 = vmatpush1.msra.mxu0 0.0
    %9059 = vmatprep.subr.mxu0 0.0
    %9060 = vmatpush1.msra.mxu0 0.0
    %9061 = vmatprep.subr.mxu0 0.0
    %9062 = vmatpush1.msra.mxu0 0.0
    %9063 = vmatprep.subr.mxu0 0.0
    %9064 = vmatpush1.msra.mxu0 0.0
    %9065 = vmatprep.subr.mxu0 0.0
    %9066 = vmatpush1.msra.mxu0 0.0
    %9067 = vmatprep.subr.mxu0 0.0
    %9068 = vmatpush1.msra.mxu0 0.0
    %9069 = vmatprep.subr.mxu0 0.0
    %9070 = vmatpush1.msra.mxu0 0.0
    %9071 = vmatprep.subr.mxu0 0.0
    %9072 = vmatpush1.msra.mxu0 0.0
    %9073 = vmatprep.subr.mxu0 0.0
    %9074 = vmatpush1.msra.mxu0 0.0
    %9075 = vmatprep.subr.mxu0 0.0
    %9076 = vmatpush1.msra.mxu0 0.0
    %9077 = vmatprep.subr.mxu0 0.0
    %9078 = vmatpush1.msra.mxu0 0.0
    %9079 = vmatprep.subr.mxu0 0.0
    %9080 = vmatpush1.msra.mxu0 0.0
    %9081 = vmatprep.subr.mxu0 0.0
    %9082 = vmatpush1.msra.mxu0 0.0
    %9083 = vmatprep.mubr.f32.mxu0 0.0
    %9084 = vmatmul.mubr.f32.gmra.mrb[0].mxu0 %v9017
    %v9085 = vpop.f32.mrb[0].mxu0
    %v9086 = vadd.f32 0.0, %v9085
    %v9087 = vpop.f32.mrb[0].mxu0
    %9088 = vdwg.mxu0
    %v9089 = vadd.f32 %v8982, %v9086
    %v9090 = vld [vmem:[%s8874 + $0x4] sm:$0x1]
    %v9091 = vld [vmem:[%s8874 + $0x44] sm:$0x1]
    %v9092 = vld [vmem:[%s8874 + $0x5] sm:$0x1]
    %v9093 = vld [vmem:[%s8874 + $0x45] sm:$0x1]
    %v9094 = vmax.f32 %v9090, %v9092
    %v9095 = vmax.f32 %v9091, %v9093
    %v9096 = vld [vmem:[%s8881 + $0x4] sm:$0x1]
    %v9097 = vld [vmem:[%s8881 + $0x44] sm:$0x1]
    %v9098 = vld [vmem:[%s8881 + $0x5] sm:$0x1]
    %v9099 = vld [vmem:[%s8881 + $0x45] sm:$0x1]
    %v9100 = vmax.f32 %v9096, %v9098
    %v9101 = vmax.f32 %v9097, %v9099
    %v9102 = vmax.f32 %v9094, %v9100
    %v9103 = vmax.f32 %v9095, %v9101
    %s9104 = scalar_lea.vmem %s5, 1792
    %v9105 = vld [vmem:[%s9104] sm:$0xff]
    %v9106 = vld [vmem:[%s9104 + $0x8] sm:$0xff]
    %v9107 = vld [vmem:[%s9104 + $0x10] sm:$0xff]
    %v9108 = vld [vmem:[%s9104 + $0x18] sm:$0xff]
    %v9109 = vld [vmem:[%s9104 + $0x20] sm:$0xff]
    %v9110 = vld [vmem:[%s9104 + $0x28] sm:$0xff]
    %v9111 = vld [vmem:[%s9104 + $0x30] sm:$0xff]
    %v9112 = vld [vmem:[%s9104 + $0x38] sm:$0xff]
    %v9113 = vld [vmem:[%s9104 + $0x40] sm:$0xff]
    %v9114 = vld [vmem:[%s9104 + $0x48] sm:$0xff]
    %v9115 = vld [vmem:[%s9104 + $0x50] sm:$0xff]
    %v9116 = vld [vmem:[%s9104 + $0x58] sm:$0xff]
    %v9117 = vld [vmem:[%s9104 + $0x60] sm:$0xff]
    %v9118 = vld [vmem:[%s9104 + $0x68] sm:$0xff]
    %v9119 = vld [vmem:[%s9104 + $0x70] sm:$0xff]
    %v9120 = vld [vmem:[%s9104 + $0x78] sm:$0xff]
    %v9123 = vrot.slane %v9103, 7
    %v9124 = vsel %vm7619, %v9123, %v9102
    %9126 = vmatprep.subr.mxu0 0.0
    %9127 = vmatpush1.msra.mxu0 %v9105
    %9128 = vmatprep.subr.mxu0 0.0
    %9129 = vmatpush1.msra.mxu0 %v9106
    %9130 = vmatprep.subr.mxu0 0.0
    %9131 = vmatpush1.msra.mxu0 %v9107
    %9132 = vmatprep.subr.mxu0 0.0
    %9133 = vmatpush1.msra.mxu0 %v9108
    %9134 = vmatprep.subr.mxu0 0.0
    %9135 = vmatpush1.msra.mxu0 %v9109
    %9136 = vmatprep.subr.mxu0 0.0
    %9137 = vmatpush1.msra.mxu0 %v9110
    %9138 = vmatprep.subr.mxu0 0.0
    %9139 = vmatpush1.msra.mxu0 %v9111
    %9140 = vmatprep.subr.mxu0 0.0
    %9141 = vmatpush1.msra.mxu0 %v9112
    %9142 = vmatprep.subr.mxu0 0.0
    %9143 = vmatpush1.msra.mxu0 %v9113
    %9144 = vmatprep.subr.mxu0 0.0
    %9145 = vmatpush1.msra.mxu0 %v9114
    %9146 = vmatprep.subr.mxu0 0.0
    %9147 = vmatpush1.msra.mxu0 %v9115
    %9148 = vmatprep.subr.mxu0 0.0
    %9149 = vmatpush1.msra.mxu0 %v9116
    %9150 = vmatprep.subr.mxu0 0.0
    %9151 = vmatpush1.msra.mxu0 %v9117
    %9152 = vmatprep.subr.mxu0 0.0
    %9153 = vmatpush1.msra.mxu0 %v9118
    %9154 = vmatprep.subr.mxu0 0.0
    %9155 = vmatpush1.msra.mxu0 %v9119
    %9156 = vmatprep.subr.mxu0 0.0
    %9157 = vmatpush1.msra.mxu0 %v9120
    %9158 = vmatprep.subr.mxu0 0.0
    %9159 = vmatpush1.msra.mxu0 0.0
    %9160 = vmatprep.subr.mxu0 0.0
    %9161 = vmatpush1.msra.mxu0 0.0
    %9162 = vmatprep.subr.mxu0 0.0
    %9163 = vmatpush1.msra.mxu0 0.0
    %9164 = vmatprep.subr.mxu0 0.0
    %9165 = vmatpush1.msra.mxu0 0.0
    %9166 = vmatprep.subr.mxu0 0.0
    %9167 = vmatpush1.msra.mxu0 0.0
    %9168 = vmatprep.subr.mxu0 0.0
    %9169 = vmatpush1.msra.mxu0 0.0
    %9170 = vmatprep.subr.mxu0 0.0
    %9171 = vmatpush1.msra.mxu0 0.0
    %9172 = vmatprep.subr.mxu0 0.0
    %9173 = vmatpush1.msra.mxu0 0.0
    %9174 = vmatprep.subr.mxu0 0.0
    %9175 = vmatpush1.msra.mxu0 0.0
    %9176 = vmatprep.subr.mxu0 0.0
    %9177 = vmatpush1.msra.mxu0 0.0
    %9178 = vmatprep.subr.mxu0 0.0
    %9179 = vmatpush1.msra.mxu0 0.0
    %9180 = vmatprep.subr.mxu0 0.0
    %9181 = vmatpush1.msra.mxu0 0.0
    %9182 = vmatprep.subr.mxu0 0.0
    %9183 = vmatpush1.msra.mxu0 0.0
    %9184 = vmatprep.subr.mxu0 0.0
    %9185 = vmatpush1.msra.mxu0 0.0
    %9186 = vmatprep.subr.mxu0 0.0
    %9187 = vmatpush1.msra.mxu0 0.0
    %9188 = vmatprep.subr.mxu0 0.0
    %9189 = vmatpush1.msra.mxu0 0.0
    %9190 = vmatprep.mubr.f32.mxu0 0.0
    %9191 = vmatmul.mubr.f32.gmra.mrb[0].mxu0 %v9124
    %v9192 = vpop.f32.mrb[0].mxu0
    %v9193 = vadd.f32 0.0, %v9192
    %v9194 = vpop.f32.mrb[0].mxu0
    %9195 = vdwg.mxu0
    %v9196 = vadd.f32 %v9089, %v9193
    %v9197 = vld [vmem:[%s8874 + $0x6] sm:$0x1]
    %v9198 = vld [vmem:[%s8874 + $0x46] sm:$0x1]
    %v9199 = vld [vmem:[%s8874 + $0x7] sm:$0x1]
    %v9200 = vld [vmem:[%s8874 + $0x47] sm:$0x1]
    %v9201 = vmax.f32 %v9197, %v9199
    %v9202 = vmax.f32 %v9198, %v9200
    %v9203 = vld [vmem:[%s8881 + $0x6] sm:$0x1]
    %v9204 = vld [vmem:[%s8881 + $0x46] sm:$0x1]
    %v9205 = vld [vmem:[%s8881 + $0x7] sm:$0x1]
    %v9206 = vld [vmem:[%s8881 + $0x47] sm:$0x1]
    %v9207 = vmax.f32 %v9203, %v9205
    %v9208 = vmax.f32 %v9204, %v9206
    %v9209 = vmax.f32 %v9201, %v9207
    %v9210 = vmax.f32 %v9202, %v9208
    %s9211 = scalar_lea.vmem %s5, 1920
    %v9212 = vld [vmem:[%s9211] sm:$0xff]
    %v9213 = vld [vmem:[%s9211 + $0x8] sm:$0xff]
    %v9214 = vld [vmem:[%s9211 + $0x10] sm:$0xff]
    %v9215 = vld [vmem:[%s9211 + $0x18] sm:$0xff]
    %v9216 = vld [vmem:[%s9211 + $0x20] sm:$0xff]
    %v9217 = vld [vmem:[%s9211 + $0x28] sm:$0xff]
    %v9218 = vld [vmem:[%s9211 + $0x30] sm:$0xff]
    %v9219 = vld [vmem:[%s9211 + $0x38] sm:$0xff]
    %v9220 = vld [vmem:[%s9211 + $0x40] sm:$0xff]
    %v9221 = vld [vmem:[%s9211 + $0x48] sm:$0xff]
    %v9222 = vld [vmem:[%s9211 + $0x50] sm:$0xff]
    %v9223 = vld [vmem:[%s9211 + $0x58] sm:$0xff]
    %v9224 = vld [vmem:[%s9211 + $0x60] sm:$0xff]
    %v9225 = vld [vmem:[%s9211 + $0x68] sm:$0xff]
    %v9226 = vld [vmem:[%s9211 + $0x70] sm:$0xff]
    %v9227 = vld [vmem:[%s9211 + $0x78] sm:$0xff]
    %v9230 = vrot.slane %v9210, 7
    %v9231 = vsel %vm7619, %v9230, %v9209
    %9233 = vmatprep.subr.mxu0 0.0
    %9234 = vmatpush1.msra.mxu0 %v9212
    %9235 = vmatprep.subr.mxu0 0.0
    %9236 = vmatpush1.msra.mxu0 %v9213
    %9237 = vmatprep.subr.mxu0 0.0
    %9238 = vmatpush1.msra.mxu0 %v9214
    %9239 = vmatprep.subr.mxu0 0.0
    %9240 = vmatpush1.msra.mxu0 %v9215
    %9241 = vmatprep.subr.mxu0 0.0
    %9242 = vmatpush1.msra.mxu0 %v9216
    %9243 = vmatprep.subr.mxu0 0.0
    %9244 = vmatpush1.msra.mxu0 %v9217
    %9245 = vmatprep.subr.mxu0 0.0
    %9246 = vmatpush1.msra.mxu0 %v9218
    %9247 = vmatprep.subr.mxu0 0.0
    %9248 = vmatpush1.msra.mxu0 %v9219
    %9249 = vmatprep.subr.mxu0 0.0
    %9250 = vmatpush1.msra.mxu0 %v9220
    %9251 = vmatprep.subr.mxu0 0.0
    %9252 = vmatpush1.msra.mxu0 %v9221
    %9253 = vmatprep.subr.mxu0 0.0
    %9254 = vmatpush1.msra.mxu0 %v9222
    %9255 = vmatprep.subr.mxu0 0.0
    %9256 = vmatpush1.msra.mxu0 %v9223
    %9257 = vmatprep.subr.mxu0 0.0
    %9258 = vmatpush1.msra.mxu0 %v9224
    %9259 = vmatprep.subr.mxu0 0.0
    %9260 = vmatpush1.msra.mxu0 %v9225
    %9261 = vmatprep.subr.mxu0 0.0
    %9262 = vmatpush1.msra.mxu0 %v9226
    %9263 = vmatprep.subr.mxu0 0.0
    %9264 = vmatpush1.msra.mxu0 %v9227
    %9265 = vmatprep.subr.mxu0 0.0
    %9266 = vmatpush1.msra.mxu0 0.0
    %9267 = vmatprep.subr.mxu0 0.0
    %9268 = vmatpush1.msra.mxu0 0.0
    %9269 = vmatprep.subr.mxu0 0.0
    %9270 = vmatpush1.msra.mxu0 0.0
    %9271 = vmatprep.subr.mxu0 0.0
    %9272 = vmatpush1.msra.mxu0 0.0
    %9273 = vmatprep.subr.mxu0 0.0
    %9274 = vmatpush1.msra.mxu0 0.0
    %9275 = vmatprep.subr.mxu0 0.0
    %9276 = vmatpush1.msra.mxu0 0.0
    %9277 = vmatprep.subr.mxu0 0.0
    %9278 = vmatpush1.msra.mxu0 0.0
    %9279 = vmatprep.subr.mxu0 0.0
    %9280 = vmatpush1.msra.mxu0 0.0
    %9281 = vmatprep.subr.mxu0 0.0
    %9282 = vmatpush1.msra.mxu0 0.0
    %9283 = vmatprep.subr.mxu0 0.0
    %9284 = vmatpush1.msra.mxu0 0.0
    %9285 = vmatprep.subr.mxu0 0.0
    %9286 = vmatpush1.msra.mxu0 0.0
    %9287 = vmatprep.subr.mxu0 0.0
    %9288 = vmatpush1.msra.mxu0 0.0
    %9289 = vmatprep.subr.mxu0 0.0
    %9290 = vmatpush1.msra.mxu0 0.0
    %9291 = vmatprep.subr.mxu0 0.0
    %9292 = vmatpush1.msra.mxu0 0.0
    %9293 = vmatprep.subr.mxu0 0.0
    %9294 = vmatpush1.msra.mxu0 0.0
    %9295 = vmatprep.subr.mxu0 0.0
    %9296 = vmatpush1.msra.mxu0 0.0
    %9297 = vmatprep.mubr.f32.mxu0 0.0
    %9298 = vmatmul.mubr.f32.gmra.mrb[0].mxu0 %v9231
    %v9299 = vpop.f32.mrb[0].mxu0
    %v9300 = vadd.f32 0.0, %v9299
    %v9301 = vpop.f32.mrb[0].mxu0
    %9302 = vdwg.mxu0
    %v9303 = vadd.f32 %v9196, %v9300
    %v9304 = vmax.f32 %v9303, 0.0
    %v9305 = vld [vmem:[%s7] sm:$0xff]
    %v9306 = vld [vmem:[%s7 + $0x8] sm:$0xff]
    %v9307 = vld [vmem:[%s7 + $0x10] sm:$0xff]
    %v9308 = vld [vmem:[%s7 + $0x18] sm:$0xff]
    %v9309 = vld [vmem:[%s7 + $0x20] sm:$0xff]
    %v9310 = vld [vmem:[%s7 + $0x28] sm:$0xff]
    %v9311 = vld [vmem:[%s7 + $0x30] sm:$0xff]
    %v9312 = vld [vmem:[%s7 + $0x38] sm:$0xff]
    %v9313 = vld [vmem:[%s7 + $0x40] sm:$0xff]
    %v9314 = vld [vmem:[%s7 + $0x48] sm:$0xff]
    %v9315 = vld [vmem:[%s7 + $0x50] sm:$0xff]
    %v9316 = vld [vmem:[%s7 + $0x58] sm:$0xff]
    %v9317 = vld [vmem:[%s7 + $0x60] sm:$0xff]
    %v9318 = vld [vmem:[%s7 + $0x68] sm:$0xff]
    %v9319 = vld [vmem:[%s7 + $0x70] sm:$0xff]
    %v9320 = vld [vmem:[%s7 + $0x78] sm:$0xff]
    %v9321 = vld [vmem:[%s8] sm:$0x1]
    %v9323 = vlaneseq
    %v9324 = vshrl.u32 %v9323, 7
    %v9325 = vsub.s32 0, %v9324
    %v9326 = vrot.slane %v9321, %v9325
    %9328 = vmatprep.subr.mxu0 0.0
    %9329 = vmatpush1.msra.mxu0 %v9305
    %9330 = vmatprep.subr.mxu0 0.0
    %9331 = vmatpush1.msra.mxu0 %v9306
    %9332 = vmatprep.subr.mxu0 0.0
    %9333 = vmatpush1.msra.mxu0 %v9307
    %9334 = vmatprep.subr.mxu0 0.0
    %9335 = vmatpush1.msra.mxu0 %v9308
    %9336 = vmatprep.subr.mxu0 0.0
    %9337 = vmatpush1.msra.mxu0 %v9309
    %9338 = vmatprep.subr.mxu0 0.0
    %9339 = vmatpush1.msra.mxu0 %v9310
    %9340 = vmatprep.subr.mxu0 0.0
    %9341 = vmatpush1.msra.mxu0 %v9311
    %9342 = vmatprep.subr.mxu0 0.0
    %9343 = vmatpush1.msra.mxu0 %v9312
    %9344 = vmatprep.subr.mxu0 0.0
    %9345 = vmatpush1.msra.mxu0 %v9313
    %9346 = vmatprep.subr.mxu0 0.0
    %9347 = vmatpush1.msra.mxu0 %v9314
    %9348 = vmatprep.subr.mxu0 0.0
    %9349 = vmatpush1.msra.mxu0 %v9315
    %9350 = vmatprep.subr.mxu0 0.0
    %9351 = vmatpush1.msra.mxu0 %v9316
    %9352 = vmatprep.subr.mxu0 0.0
    %9353 = vmatpush1.msra.mxu0 %v9317
    %9354 = vmatprep.subr.mxu0 0.0
    %9355 = vmatpush1.msra.mxu0 %v9318
    %9356 = vmatprep.subr.mxu0 0.0
    %9357 = vmatpush1.msra.mxu0 %v9319
    %9358 = vmatprep.subr.mxu0 0.0
    %9359 = vmatpush1.msra.mxu0 %v9320
    %9360 = vmatprep.subr.mxu0 0.0
    %9361 = vmatpush1.msra.mxu0 0.0
    %9362 = vmatprep.subr.mxu0 0.0
    %9363 = vmatpush1.msra.mxu0 0.0
    %9364 = vmatprep.subr.mxu0 0.0
    %9365 = vmatpush1.msra.mxu0 0.0
    %9366 = vmatprep.subr.mxu0 0.0
    %9367 = vmatpush1.msra.mxu0 0.0
    %9368 = vmatprep.subr.mxu0 0.0
    %9369 = vmatpush1.msra.mxu0 0.0
    %9370 = vmatprep.subr.mxu0 0.0
    %9371 = vmatpush1.msra.mxu0 0.0
    %9372 = vmatprep.subr.mxu0 0.0
    %9373 = vmatpush1.msra.mxu0 0.0
    %9374 = vmatprep.subr.mxu0 0.0
    %9375 = vmatpush1.msra.mxu0 0.0
    %9376 = vmatprep.subr.mxu0 0.0
    %9377 = vmatpush1.msra.mxu0 0.0
    %9378 = vmatprep.subr.mxu0 0.0
    %9379 = vmatpush1.msra.mxu0 0.0
    %9380 = vmatprep.subr.mxu0 0.0
    %9381 = vmatpush1.msra.mxu0 0.0
    %9382 = vmatprep.subr.mxu0 0.0
    %9383 = vmatpush1.msra.mxu0 0.0
    %9384 = vmatprep.subr.mxu0 0.0
    %9385 = vmatpush1.msra.mxu0 0.0
    %9386 = vmatprep.subr.mxu0 0.0
    %9387 = vmatpush1.msra.mxu0 0.0
    %9388 = vmatprep.subr.mxu0 0.0
    %9389 = vmatpush1.msra.mxu0 0.0
    %9390 = vmatprep.subr.mxu0 0.0
    %9391 = vmatpush1.msra.mxu0 0.0
    %9392 = vmatprep.mubr.f32.mxu0 0.0
    %9393 = vmatmul.mubr.f32.gmra.mrb[0].mxu0 %v9304
    %v9394 = vpop.f32.mrb[0].mxu0
    %v9395 = vadd.f32 %v9326, %v9394
    %v9396 = vpop.f32.mrb[0].mxu0
    %9397 = vdwg.mxu0
    %v9398 = vmax.f32 %v9395, 0.0
    %v9399 = vld [vmem:[%s9] sm:$0xff]
    %v9400 = vld [vmem:[%s9 + $0x8] sm:$0xff]
    %v9401 = vld [vmem:[%s9 + $0x10] sm:$0xff]
    %v9402 = vld [vmem:[%s9 + $0x18] sm:$0xff]
    %v9403 = vld [vmem:[%s9 + $0x20] sm:$0xff]
    %v9404 = vld [vmem:[%s9 + $0x28] sm:$0xff]
    %v9405 = vld [vmem:[%s9 + $0x30] sm:$0xff]
    %v9406 = vld [vmem:[%s9 + $0x38] sm:$0xff]
    %v9407 = vld [vmem:[%s9 + $0x40] sm:$0xff]
    %v9408 = vld [vmem:[%s9 + $0x48] sm:$0xff]
    %v9409 = vld [vmem:[%s9 + $0x50] sm:$0xff]
    %v9410 = vld [vmem:[%s9 + $0x58] sm:$0xff]
    %v9411 = vld [vmem:[%s9 + $0x60] sm:$0xff]
    %v9412 = vld [vmem:[%s9 + $0x68] sm:$0xff]
    %v9413 = vld [vmem:[%s9 + $0x70] sm:$0xff]
    %v9414 = vld [vmem:[%s9 + $0x78] sm:$0xff]
    %v9415 = vld [vmem:[%s10] sm:$0x1]
    %v9417 = vlaneseq
    %v9418 = vshrl.u32 %v9417, 7
    %v9419 = vsub.s32 0, %v9418
    %v9420 = vrot.slane %v9415, %v9419
    %9422 = vmatprep.subr.mxu0 0.0
    %9423 = vmatpush1.msra.mxu0 %v9399
    %9424 = vmatprep.subr.mxu0 0.0
    %9425 = vmatpush1.msra.mxu0 %v9400
    %9426 = vmatprep.subr.mxu0 0.0
    %9427 = vmatpush1.msra.mxu0 %v9401
    %9428 = vmatprep.subr.mxu0 0.0
    %9429 = vmatpush1.msra.mxu0 %v9402
    %9430 = vmatprep.subr.mxu0 0.0
    %9431 = vmatpush1.msra.mxu0 %v9403
    %9432 = vmatprep.subr.mxu0 0.0
    %9433 = vmatpush1.msra.mxu0 %v9404
    %9434 = vmatprep.subr.mxu0 0.0
    %9435 = vmatpush1.msra.mxu0 %v9405
    %9436 = vmatprep.subr.mxu0 0.0
    %9437 = vmatpush1.msra.mxu0 %v9406
    %9438 = vmatprep.subr.mxu0 0.0
    %9439 = vmatpush1.msra.mxu0 %v9407
    %9440 = vmatprep.subr.mxu0 0.0
    %9441 = vmatpush1.msra.mxu0 %v9408
    %9442 = vmatprep.subr.mxu0 0.0
    %9443 = vmatpush1.msra.mxu0 %v9409
    %9444 = vmatprep.subr.mxu0 0.0
    %9445 = vmatpush1.msra.mxu0 %v9410
    %9446 = vmatprep.subr.mxu0 0.0
    %9447 = vmatpush1.msra.mxu0 %v9411
    %9448 = vmatprep.subr.mxu0 0.0
    %9449 = vmatpush1.msra.mxu0 %v9412
    %9450 = vmatprep.subr.mxu0 0.0
    %9451 = vmatpush1.msra.mxu0 %v9413
    %9452 = vmatprep.subr.mxu0 0.0
    %9453 = vmatpush1.msra.mxu0 %v9414
    %9454 = vmatprep.subr.mxu0 0.0
    %9455 = vmatpush1.msra.mxu0 0.0
    %9456 = vmatprep.subr.mxu0 0.0
    %9457 = vmatpush1.msra.mxu0 0.0
    %9458 = vmatprep.subr.mxu0 0.0
    %9459 = vmatpush1.msra.mxu0 0.0
    %9460 = vmatprep.subr.mxu0 0.0
    %9461 = vmatpush1.msra.mxu0 0.0
    %9462 = vmatprep.subr.mxu0 0.0
    %9463 = vmatpush1.msra.mxu0 0.0
    %9464 = vmatprep.subr.mxu0 0.0
    %9465 = vmatpush1.msra.mxu0 0.0
    %9466 = vmatprep.subr.mxu0 0.0
    %9467 = vmatpush1.msra.mxu0 0.0
    %9468 = vmatprep.subr.mxu0 0.0
    %9469 = vmatpush1.msra.mxu0 0.0
    %9470 = vmatprep.subr.mxu0 0.0
    %9471 = vmatpush1.msra.mxu0 0.0
    %9472 = vmatprep.subr.mxu0 0.0
    %9473 = vmatpush1.msra.mxu0 0.0
    %9474 = vmatprep.subr.mxu0 0.0
    %9475 = vmatpush1.msra.mxu0 0.0
    %9476 = vmatprep.subr.mxu0 0.0
    %9477 = vmatpush1.msra.mxu0 0.0
    %9478 = vmatprep.subr.mxu0 0.0
    %9479 = vmatpush1.msra.mxu0 0.0
    %9480 = vmatprep.subr.mxu0 0.0
    %9481 = vmatpush1.msra.mxu0 0.0
    %9482 = vmatprep.subr.mxu0 0.0
    %9483 = vmatpush1.msra.mxu0 0.0
    %9484 = vmatprep.subr.mxu0 0.0
    %9485 = vmatpush1.msra.mxu0 0.0
    %9486 = vmatprep.mubr.f32.mxu0 0.0
    %9487 = vmatmul.mubr.f32.gmra.mrb[0].mxu0 %v9398
    %v9488 = vpop.f32.mrb[0].mxu0
    %v9489 = vadd.f32 %v9420, %v9488
    %v9490 = vpop.f32.mrb[0].mxu0
    %9491 = vdwg.mxu0
    %9492 = vst [vmem:[#allocation4] sm:$0x3] %v9489
    // Predicated region
    $region46: #{lenet_forward.1} parent=1 // pred_check
      _
    $region47: #{lenet_forward.1} parent=1 // pred_check_branch
      %9494 = sbr.rel (0) target = $region49
    $region48: #{lenet_forward.1} parent=1 // pred_region
      %s9496 = ssub.s32 32, 32
      %9497 = vsyncadd [#allocation5], %s9496
      %s9499 = sshll.u32 [#allocation4], 4
      %s9500 = int_to_ptr.vmem [resolvable:$true] %s9499
      %9502 = dma.vmem_to_hbm [thread:$0]  %s9500, 32, %s11, [#allocation5]
    $region49: #{lenet_forward.1} parent=1 // pred_fallthru
      _
    // Predicated region
    $region50: #{lenet_forward.1} parent=1 // pred_check
      _
    $region51: #{lenet_forward.1} parent=1 // pred_check_branch
      %9504 = sbr.rel (0) target = $region53
    $region52: #{lenet_forward.1} parent=1 // pred_region
      %9505 = dma.done [#allocation5], 32
    $region53: #{lenet_forward.1} parent=1 // pred_fallthru
      _
    %9506 = vsyncpa [#allocation5], 1

</llo_original>
